<compile_context>
chip_gen: v6e
topology: v6e:2x2x1
jax: 0.10.0
libtpu: 0.0.40
codegen_flags: <defaults>
</compile_context>

<pallas_src>
import jax
import jax.numpy as jnp
from jax import lax
from jax.experimental import pallas as pl
from jax.experimental.pallas import tpu as pltpu


# Cast MXU operands to bf16 (f32 accumulate) per perf review for v6e/v7x.
# Set False for an exact-f32 tolerance-testing path (v5e elementwise stays f32 anyway).
USE_BF16_MXU = True


def _mx(x):
    return x.astype(jnp.bfloat16) if USE_BF16_MXU else x


def _dot(a, b):
    return jnp.dot(_mx(a), _mx(b), preferred_element_type=jnp.float32)


def _softmax_rows(x):
    m = jnp.max(x, axis=1, keepdims=True)
    e = jnp.exp(x - m)
    return e * pl.reciprocal(jnp.sum(e, axis=1, keepdims=True), approx=True)


# ------------------------------------------------------------------ fused kernel
def _make_int_gcn_kernel(n_layers, n_heads):
    def kernel(pnode_ref, pedge_ref, snode_ref, sedge_ref,
               psel_ref, ssel_ref, counts_ref,
               # prot-GAT folded params, stacked over layers
               pg_vsrc, pg_vtgt, pg_vesc, pg_wno, pg_bno,
               pg_wes, pg_wet, pg_wee, pg_beo,
               # sub-GAT folded params, stacked over layers
               sg_vsrc, sg_vtgt, sg_vesc, sg_wno, sg_bno,
               sg_wes, sg_wet, sg_wee, sg_beo,
               # CrossGAT params, stacked over layers
               c_wpp, c_bpp, c_wsp, c_bsp, c_wpo, c_bpo, c_wso, c_bso,
               # FNN params
               f_w1, f_b1, f_w2, f_b2,
               out_ref):
        pnode = pnode_ref[...]
        pedge = pedge_ref[...]
        snode = snode_ref[...]
        sedge = sedge_ref[...]
        psel = psel_ref[...]
        ssel = ssel_ref[...]

        def gat(node, edge3, l, vsrc, vtgt, vesc, wno, bno, wes, wet, wee, beo):
            n, d_edge = edge3.shape[0], edge3.shape[-1]
            edge2d = edge3.reshape(n * n, d_edge)        # major-dims collapse (free)

            # ---- node update: per-head attention from pre-folded score vectors.
            #      The reference's [N, N, d_inner] score tensor is never built.
            node_upd = jnp.zeros_like(node)
            for h in range(n_heads):                      # static unroll, H small
                src_col = jnp.sum(node * vsrc[l, h], axis=-1, keepdims=True)   # [N,1]
                tgt_row = jnp.sum(node[None, :, :] * vtgt[l, h], axis=-1)      # [1,N]
                e_sc = jnp.sum(edge3 * vesc[l, h], axis=-1)                     # [N,N]
                sc = src_col + tgt_row + e_sc
                # adj_mask intentionally ignored: masked_fill is not in-place in the reference.
                att = _softmax_rows(sc)                                         # softmax over j
                q_h = _dot(node, wno[l, h])     # node @ (wp[h] @ node_out.W), folded
                node_upd = node_upd + _dot(att, q_h)
            node_new = node + node_upd + bno[l]

            # ---- edge update through weights pre-folded with edge_out.W
            src_eo = _dot(node, wes[l])                                         # [N,E]
            tgt_eo = _dot(node, wet[l])                                         # [N,E]
            e_eo = _dot(edge2d, wee[l]).reshape(n, n, d_edge)                   # [N,N,E]
            edge_new = (edge3 + src_eo[:, None, :] + tgt_eo[None, :, :]
                        + e_eo + beo[l])
            return node_new, edge_new

        def cross(p_node, s_node, l):
            prot_proj = _dot(p_node, c_wpp[l]) + c_bpp[l]                       # [Np,Di]
            sub_proj = _dot(s_node, c_wsp[l]) + c_bsp[l]                        # [Ns,Di]
            prot_int = _dot(psel, prot_proj)    # torch.index_select via one-hot matmul
            sub_int = _dot(ssel, sub_proj)
            # scores[i,j] = sum_d prot_int[i,d] + sum_d sub_int[j,d]
            # (no [Np,Ns,Di] temporary; both softmaxes done as row softmaxes)
            p_col = jnp.sum(prot_int, axis=-1, keepdims=True)                   # [Np,1]
            p_row = jnp.sum(prot_int[None, :, :], axis=-1)                      # [1,Np]
            s_col = jnp.sum(sub_int, axis=-1, keepdims=True)                    # [Ns,1]
            s_row = jnp.sum(sub_int[None, :, :], axis=-1)                       # [1,Ns]
            prot_scores = _softmax_rows(p_col + s_row)   # == softmax(scores, dim=1)
            sub_scores = _softmax_rows(s_col + p_row)    # == softmax(scores, dim=0).T
            prot_out = _dot(_dot(prot_scores, sub_proj), c_wpo[l]) + c_bpo[l]
            sub_out = _dot(_dot(sub_scores, prot_proj), c_wso[l]) + c_bso[l]
            return p_node + prot_out, s_node + sub_out

        for l in range(n_layers):                         # static unroll over layers
            pnode, pedge = gat(pnode, pedge, l, pg_vsrc, pg_vtgt, pg_vesc,
                               pg_wno, pg_bno, pg_wes, pg_wet, pg_wee, pg_beo)
            snode, sedge = gat(snode, sedge, l, sg_vsrc, sg_vtgt, sg_vesc,
                               sg_wno, sg_bno, sg_wes, sg_wet, sg_wee, sg_beo)
            pnode, snode = cross(pnode, snode, l)

        # TODO(synk): reference then runs `data = self.main(data)` on an nn.ModuleList,
        # which raises NotImplementedError in torch; treated as a no-op here.

        # reaction_group = sum(index_select(sub_node, 0, sub_idx), 0) == counts @ sub_node
        reaction = _dot(counts_ref[...], snode)                                 # [1,Ds]
        hidden = jnp.maximum(_dot(reaction, f_w1[...]) + f_b1[...], 0.0)
        out_ref[...] = _dot(hidden, f_w2[...]) + f_b2[...]

    return kernel


# ----------------------------------------------------------------- weight folding
def _fold_gat_params(p):
    """Fold GAT weights once in the wrapper (exact up to float-add reordering)."""
    wp, ssrc, stgt = p['wp'], p['ssrc'], p['stgt']     # [H,Dn,Di],[H,1,Di],[H,1,Di]
    wno, bno = p['wno'], p['bno']                      # [Di,Dn],[1,Dn]
    we, weo, beo = p['we'], p['weo'], p['beo']         # [H,De,Di],[Di,De],[1,De]
    wp_src = wp * ssrc                                 # exact column scaling
    wp_tgt = wp * stgt
    return dict(
        vsrc=jnp.sum(wp_src, axis=-1)[:, None, :],     # [H,1,Dn]  per-head src-score vector
        vtgt=jnp.sum(wp_tgt, axis=-1)[:, None, :],     # [H,1,Dn]
        vesc=jnp.sum(we, axis=-1)[:, None, :],         # [H,1,De]  per-head edge-score vector
        wno=jnp.einsum('hcd,de->hce', wp, wno),        # [H,Dn,Dn] wp[h] @ node_out.W
        bno=bno,                                       # [1,Dn]
        wes=jnp.sum(wp_src, axis=0) @ weo,             # [Dn,De]
        wet=jnp.sum(wp_tgt, axis=0) @ weo,             # [Dn,De]
        wee=jnp.sum(we, axis=0) @ weo,                 # [De,De]
        beo=beo,                                       # [1,De]
    )


_GAT_KEYS = ('vsrc', 'vtgt', 'vesc', 'wno', 'bno', 'wes', 'wet', 'wee', 'beo')
_CROSS_KEYS = ('wpp', 'bpp', 'wsp', 'bsp', 'wpo', 'bpo', 'wso', 'bso')


def _stack_layers(dicts, keys):
    return [jnp.stack([d[k] for d in dicts], axis=0) for k in keys]


# --------------------------------------------------------------------- parameters
def _init_gat_params(key, d_node, d_edge, d_inner, n_heads):
    ks = jax.random.split(key, 8)
    s = 0.1
    return dict(
        wp=jax.random.normal(ks[0], (n_heads, d_node, d_inner), jnp.float32) * s,
        ssrc=jax.random.normal(ks[1], (n_heads, 1, d_inner), jnp.float32) * s,
        stgt=jax.random.normal(ks[2], (n_heads, 1, d_inner), jnp.float32) * s,
        wno=jax.random.normal(ks[3], (d_inner, d_node), jnp.float32) * s,
        bno=jax.random.normal(ks[4], (1, d_node), jnp.float32) * s,
        we=jax.random.normal(ks[5], (n_heads, d_edge, d_inner), jnp.float32) * s,
        weo=jax.random.normal(ks[6], (d_inner, d_edge), jnp.float32) * s,
        beo=jax.random.normal(ks[7], (1, d_edge), jnp.float32) * s,
    )


def _init_cross_params(key, d_sub_node, d_prot_node, d_inner):
    # TODO(synk): reference passes `kernel` to CrossGAT.__init__ which only takes 4 args
    # (a bug); the extra arg is ignored here.
    ks = jax.random.split(key, 8)
    s = 0.1
    return dict(
        wpp=jax.random.normal(ks[0], (d_prot_node, d_inner), jnp.float32) * s,
        bpp=jax.random.normal(ks[1], (1, d_inner), jnp.float32) * s,
        wsp=jax.random.normal(ks[2], (d_sub_node, d_inner), jnp.float32) * s,
        bsp=jax.random.normal(ks[3], (1, d_inner), jnp.float32) * s,
        wpo=jax.random.normal(ks[4], (d_inner, d_prot_node), jnp.float32) * s,
        bpo=jax.random.normal(ks[5], (1, d_prot_node), jnp.float32) * s,
        wso=jax.random.normal(ks[6], (d_inner, d_sub_node), jnp.float32) * s,
        bso=jax.random.normal(ks[7], (1, d_sub_node), jnp.float32) * s,
    )


def _init_fnn_params(key, d_in, d_fnn, d_out):
    # weight_norm(dim=None): w = g * v / ||v||_F
    ks = jax.random.split(key, 6)
    v1 = jax.random.normal(ks[0], (d_in, d_fnn), jnp.float32) * 0.1
    g1 = 1.0 + 0.1 * jax.random.normal(ks[1], (), jnp.float32)
    v2 = jax.random.normal(ks[2], (d_fnn, d_out), jnp.float32) * 0.1
    g2 = 1.0 + 0.1 * jax.random.normal(ks[3], (), jnp.float32)
    return dict(
        w1=g1 * v1 / jnp.linalg.norm(v1),
        b1=jax.random.normal(ks[4], (1, d_fnn), jnp.float32) * 0.1,
        w2=g2 * v2 / jnp.linalg.norm(v2),
        b2=jax.random.normal(ks[5], (1, d_out), jnp.float32) * 0.1,
    )


def init_int_gcn_params(key, n_layers, d_prot_node, d_sub_node, d_prot_edge,
                        d_sub_edge, d_inner, n_heads, d_fnn):
    layers = []
    for _ in range(n_layers):
        k1, k2, k3, key = jax.random.split(key, 4)
        layers.append(dict(
            prot_gat=_init_gat_params(k1, d_prot_node, d_prot_edge, d_inner, n_heads),
            sub_gat=_init_gat_params(k2, d_sub_node, d_sub_edge, d_inner, n_heads),
            cross=_init_cross_params(k3, d_sub_node, d_prot_node, d_inner),
        ))
    return dict(layers=layers, fnn=_init_fnn_params(key, d_sub_node, d_fnn, 1))


# ------------------------------------------------------------------------- forward
def int_gcn_forward(data, params):
    (prot_node, prot_edge, prot_adj, sub_node, sub_edge, sub_adj,
     prot_idx, sub_idx) = data
    del prot_adj, sub_adj  # no effect: reference masked_fill is not in-place
    n_layers = len(params['layers'])
    n_heads = params['layers'][0]['prot_gat']['wp'].shape[0]
    n_prot, n_sub = prot_node.shape[0], sub_node.shape[0]

    # one-hot selection matrices implementing torch.index_select (tiny N here)
    prot_sel = jnp.eye(n_prot, dtype=jnp.float32)[prot_idx]
    sub_sel = jnp.eye(n_sub, dtype=jnp.float32)[sub_idx]
    counts = jnp.zeros((1, n_sub), jnp.float32).at[0, sub_idx].add(1.0)

    pg = _stack_layers([_fold_gat_params(lp['prot_gat']) for lp in params['layers']],
                       _GAT_KEYS)
    sg = _stack_layers([_fold_gat_params(lp['sub_gat']) for lp in params['layers']],
                       _GAT_KEYS)
    cr = _stack_layers([lp['cross'] for lp in params['layers']], _CROSS_KEYS)
    fnn = [params['fnn'][k] for k in ('w1', 'b1', 'w2', 'b2')]

    args = [prot_node, prot_edge, sub_node, sub_edge, prot_sel, sub_sel, counts]
    args += pg + sg + cr + fnn

    out = pl.pallas_call(
        _make_int_gcn_kernel(n_layers, n_heads),
        out_shape=jax.ShapeDtypeStruct((1, 1), jnp.float32),
        in_specs=[pl.BlockSpec(memory_space=pltpu.MemorySpace.VMEM)] * len(args),
        out_specs=pl.BlockSpec(memory_space=pltpu.MemorySpace.VMEM),
    )(*args)
    return out[0]                       # shape (1,), like FNN on a 1-D reaction vector


# ----------------------------------------------------------------------------- main
if __name__ == "__main__":
    key = jax.random.PRNGKey(0)
    n_layers = 2
    n_prot, n_sub = 8, 8
    d_prot_node, d_sub_node = 16, 16
    d_prot_edge, d_sub_edge = 8, 8
    d_inner, n_heads, d_fnn = 32, 4, 32

    kd, kp = jax.random.split(key)
    ks = jax.random.split(kd, 8)
    prot_node = jax.random.normal(ks[0], (n_prot, d_prot_node), jnp.float32)
    prot_edge = jax.random.normal(ks[1], (n_prot, n_prot, d_prot_edge), jnp.float32)
    prot_adj = jnp.ones((n_prot, n_prot), jnp.float32)
    sub_node = jax.random.normal(ks[2], (n_sub, d_sub_node), jnp.float32)
    sub_edge = jax.random.normal(ks[3], (n_sub, n_sub, d_sub_edge), jnp.float32)
    sub_adj = jnp.ones((n_sub, n_sub), jnp.float32)
    prot_idx = jax.random.permutation(ks[4], n_prot).astype(jnp.int32)
    sub_idx = jax.random.permutation(ks[5], n_sub).astype(jnp.int32)
    data = (prot_node, prot_edge, prot_adj, sub_node, sub_edge, sub_adj,
            prot_idx, sub_idx)

    params = init_int_gcn_params(kp, n_layers, d_prot_node, d_sub_node,
                                 d_prot_edge, d_sub_edge, d_inner, n_heads, d_fnn)

    out = int_gcn_forward(data, params)
    out = jax.block_until_ready(out)
    assert out.shape == (1,)
    print("KERNEL_OK")
</pallas_src>

<mosaic_0001>
module attributes {stable_mosaic.version = 11 : i64} {
  func.func @kernel(%arg0: memref<8x16xf32, #tpu.memory_space<vmem>>, %arg1: memref<8x8x8xf32, #tpu.memory_space<vmem>>, %arg2: memref<8x16xf32, #tpu.memory_space<vmem>>, %arg3: memref<8x8x8xf32, #tpu.memory_space<vmem>>, %arg4: memref<8x8xf32, #tpu.memory_space<vmem>>, %arg5: memref<8x8xf32, #tpu.memory_space<vmem>>, %arg6: memref<1x8xf32, #tpu.memory_space<vmem>>, %arg7: memref<2x4x1x16xf32, #tpu.memory_space<vmem>>, %arg8: memref<2x4x1x16xf32, #tpu.memory_space<vmem>>, %arg9: memref<2x4x1x8xf32, #tpu.memory_space<vmem>>, %arg10: memref<2x4x16x16xf32, #tpu.memory_space<vmem>>, %arg11: memref<2x1x16xf32, #tpu.memory_space<vmem>>, %arg12: memref<2x16x8xf32, #tpu.memory_space<vmem>>, %arg13: memref<2x16x8xf32, #tpu.memory_space<vmem>>, %arg14: memref<2x8x8xf32, #tpu.memory_space<vmem>>, %arg15: memref<2x1x8xf32, #tpu.memory_space<vmem>>, %arg16: memref<2x4x1x16xf32, #tpu.memory_space<vmem>>, %arg17: memref<2x4x1x16xf32, #tpu.memory_space<vmem>>, %arg18: memref<2x4x1x8xf32, #tpu.memory_space<vmem>>, %arg19: memref<2x4x16x16xf32, #tpu.memory_space<vmem>>, %arg20: memref<2x1x16xf32, #tpu.memory_space<vmem>>, %arg21: memref<2x16x8xf32, #tpu.memory_space<vmem>>, %arg22: memref<2x16x8xf32, #tpu.memory_space<vmem>>, %arg23: memref<2x8x8xf32, #tpu.memory_space<vmem>>, %arg24: memref<2x1x8xf32, #tpu.memory_space<vmem>>, %arg25: memref<2x16x32xf32, #tpu.memory_space<vmem>>, %arg26: memref<2x1x32xf32, #tpu.memory_space<vmem>>, %arg27: memref<2x16x32xf32, #tpu.memory_space<vmem>>, %arg28: memref<2x1x32xf32, #tpu.memory_space<vmem>>, %arg29: memref<2x32x16xf32, #tpu.memory_space<vmem>>, %arg30: memref<2x1x16xf32, #tpu.memory_space<vmem>>, %arg31: memref<2x32x16xf32, #tpu.memory_space<vmem>>, %arg32: memref<2x1x16xf32, #tpu.memory_space<vmem>>, %arg33: memref<16x32xf32, #tpu.memory_space<vmem>>, %arg34: memref<1x32xf32, #tpu.memory_space<vmem>>, %arg35: memref<32x1xf32, #tpu.memory_space<vmem>>, %arg36: memref<1x1xf32, #tpu.memory_space<vmem>>, %arg37: memref<1x1xf32, #tpu.memory_space<vmem>>) attributes {dimension_semantics = [], scalar_prefetch = 0 : i64, scratch_operands = 0 : i64, tpu.core_type = #tpu.core_type<tc>} {
    %c0 = arith.constant 0 : index
    %c0_0 = arith.constant 0 : index
    %0 = vector.load %arg0[%c0, %c0_0] : memref<8x16xf32, #tpu.memory_space<vmem>>, vector<8x16xf32>
    %c0_1 = arith.constant 0 : index
    %c0_2 = arith.constant 0 : index
    %c0_3 = arith.constant 0 : index
    %1 = vector.load %arg1[%c0_1, %c0_2, %c0_3] : memref<8x8x8xf32, #tpu.memory_space<vmem>>, vector<8x8x8xf32>
    %c0_4 = arith.constant 0 : index
    %c0_5 = arith.constant 0 : index
    %2 = vector.load %arg2[%c0_4, %c0_5] : memref<8x16xf32, #tpu.memory_space<vmem>>, vector<8x16xf32>
    %c0_6 = arith.constant 0 : index
    %c0_7 = arith.constant 0 : index
    %c0_8 = arith.constant 0 : index
    %3 = vector.load %arg3[%c0_6, %c0_7, %c0_8] : memref<8x8x8xf32, #tpu.memory_space<vmem>>, vector<8x8x8xf32>
    %c0_9 = arith.constant 0 : index
    %c0_10 = arith.constant 0 : index
    %4 = vector.load %arg4[%c0_9, %c0_10] : memref<8x8xf32, #tpu.memory_space<vmem>>, vector<8x8xf32>
    %c0_11 = arith.constant 0 : index
    %c0_12 = arith.constant 0 : index
    %5 = vector.load %arg5[%c0_11, %c0_12] : memref<8x8xf32, #tpu.memory_space<vmem>>, vector<8x8xf32>
    %6 = vector.shape_cast %1 : vector<8x8x8xf32> to vector<64x8xf32>
    %cst = arith.constant 0.000000e+00 : f32
    %7 = vector.broadcast %cst : f32 to vector<8x16xf32>
    %c0_13 = arith.constant 0 : index
    %c0_14 = arith.constant 0 : index
    %c0_15 = arith.constant 0 : index
    %c0_16 = arith.constant 0 : index
    %8 = vector.load %arg7[%c0_13, %c0_14, %c0_15, %c0_16] : memref<2x4x1x16xf32, #tpu.memory_space<vmem>>, vector<1x1x1x16xf32>
    %9 = vector.shape_cast %8 : vector<1x1x1x16xf32> to vector<1x16xf32>
    %10 = vector.broadcast %9 : vector<1x16xf32> to vector<8x16xf32>
    %11 = arith.mulf %0, %10 : vector<8x16xf32>
    %cst_17 = arith.constant dense<0.000000e+00> : vector<8xf32>
    %12 = vector.multi_reduction <add>, %11, %cst_17 [1] : vector<8x16xf32> to vector<8xf32>
    %13 = vector.shape_cast %12 : vector<8xf32> to vector<8x1xf32>
    %14 = vector.shape_cast %0 : vector<8x16xf32> to vector<1x8x16xf32>
    %c0_18 = arith.constant 0 : index
    %c0_19 = arith.constant 0 : index
    %c0_20 = arith.constant 0 : index
    %c0_21 = arith.constant 0 : index
    %15 = vector.load %arg8[%c0_18, %c0_19, %c0_20, %c0_21] : memref<2x4x1x16xf32, #tpu.memory_space<vmem>>, vector<1x1x1x16xf32>
    %16 = vector.shape_cast %15 : vector<1x1x1x16xf32> to vector<1x16xf32>
    %17 = vector.shape_cast %16 : vector<1x16xf32> to vector<1x1x16xf32>
    %18 = vector.broadcast %17 : vector<1x1x16xf32> to vector<1x8x16xf32>
    %19 = arith.mulf %14, %18 : vector<1x8x16xf32>
    %cst_22 = arith.constant dense<0.000000e+00> : vector<1x8xf32>
    %20 = vector.multi_reduction <add>, %19, %cst_22 [2] : vector<1x8x16xf32> to vector<1x8xf32>
    %c0_23 = arith.constant 0 : index
    %c0_24 = arith.constant 0 : index
    %c0_25 = arith.constant 0 : index
    %c0_26 = arith.constant 0 : index
    %21 = vector.load %arg9[%c0_23, %c0_24, %c0_25, %c0_26] : memref<2x4x1x8xf32, #tpu.memory_space<vmem>>, vector<1x1x1x8xf32>
    %22 = vector.shape_cast %21 : vector<1x1x1x8xf32> to vector<1x8xf32>
    %23 = vector.shape_cast %22 : vector<1x8xf32> to vector<1x1x8xf32>
    %24 = vector.broadcast %23 : vector<1x1x8xf32> to vector<8x8x8xf32>
    %25 = arith.mulf %1, %24 : vector<8x8x8xf32>
    %cst_27 = arith.constant dense<0.000000e+00> : vector<8x8xf32>
    %26 = vector.multi_reduction <add>, %25, %cst_27 [2] : vector<8x8x8xf32> to vector<8x8xf32>
    %27 = vector.broadcast %13 : vector<8x1xf32> to vector<8x8xf32>
    %28 = vector.broadcast %20 : vector<1x8xf32> to vector<8x8xf32>
    %29 = arith.addf %27, %28 : vector<8x8xf32>
    %30 = arith.addf %29, %26 : vector<8x8xf32>
    %cst_28 = arith.constant dense<0xFF800000> : vector<8xf32>
    %31 = vector.multi_reduction <maximumf>, %30, %cst_28 [1] : vector<8x8xf32> to vector<8xf32>
    %32 = vector.shape_cast %31 : vector<8xf32> to vector<8x1xf32>
    %33 = vector.broadcast %32 : vector<8x1xf32> to vector<8x8xf32>
    %34 = arith.subf %30, %33 : vector<8x8xf32>
    %35 = math.exp %34 : vector<8x8xf32>
    %cst_29 = arith.constant dense<0.000000e+00> : vector<8xf32>
    %36 = vector.multi_reduction <add>, %35, %cst_29 [1] : vector<8x8xf32> to vector<8xf32>
    %37 = vector.shape_cast %36 : vector<8xf32> to vector<8x1xf32>
    %38 = tpu.reciprocal %37 {approx = true} : vector<8x1xf32> -> vector<8x1xf32>
    %39 = vector.broadcast %38 : vector<8x1xf32> to vector<8x8xf32>
    %40 = arith.mulf %35, %39 : vector<8x8xf32>
    %c0_30 = arith.constant 0 : index
    %c0_31 = arith.constant 0 : index
    %c0_32 = arith.constant 0 : index
    %c0_33 = arith.constant 0 : index
    %41 = vector.load %arg10[%c0_30, %c0_31, %c0_32, %c0_33] : memref<2x4x16x16xf32, #tpu.memory_space<vmem>>, vector<1x1x16x16xf32>
    %42 = vector.shape_cast %41 : vector<1x1x16x16xf32> to vector<16x16xf32>
    %43 = arith.truncf %0 : vector<8x16xf32> to vector<8x16xbf16>
    %44 = arith.truncf %42 : vector<16x16xf32> to vector<16x16xbf16>
    %cst_34 = arith.constant dense<0.000000e+00> : vector<8x16xf32>
    %45 = tpu.matmul %43, %44, %cst_34 {dimension_numbers = #tpu.dot_dimension_numbers<[1], [0], [0], [1], [0, 0, 1, 1], [], []>} : vector<8x16xbf16>, vector<16x16xbf16>, vector<8x16xf32> -> vector<8x16xf32>
    %46 = arith.truncf %40 : vector<8x8xf32> to vector<8x8xbf16>
    %47 = arith.truncf %45 : vector<8x16xf32> to vector<8x16xbf16>
    %cst_35 = arith.constant dense<0.000000e+00> : vector<8x16xf32>
    %48 = tpu.matmul %46, %47, %cst_35 {dimension_numbers = #tpu.dot_dimension_numbers<[1], [0], [0], [1], [0, 0, 1, 1], [], []>} : vector<8x8xbf16>, vector<8x16xbf16>, vector<8x16xf32> -> vector<8x16xf32>
    %49 = arith.addf %7, %48 : vector<8x16xf32>
    %c0_36 = arith.constant 0 : index
    %c1 = arith.constant 1 : index
    %c0_37 = arith.constant 0 : index
    %c0_38 = arith.constant 0 : index
    %50 = vector.load %arg7[%c0_36, %c1, %c0_37, %c0_38] : memref<2x4x1x16xf32, #tpu.memory_space<vmem>>, vector<1x1x1x16xf32>
    %51 = vector.shape_cast %50 : vector<1x1x1x16xf32> to vector<1x16xf32>
    %52 = vector.broadcast %51 : vector<1x16xf32> to vector<8x16xf32>
    %53 = arith.mulf %0, %52 : vector<8x16xf32>
    %cst_39 = arith.constant dense<0.000000e+00> : vector<8xf32>
    %54 = vector.multi_reduction <add>, %53, %cst_39 [1] : vector<8x16xf32> to vector<8xf32>
    %55 = vector.shape_cast %54 : vector<8xf32> to vector<8x1xf32>
    %56 = vector.shape_cast %0 : vector<8x16xf32> to vector<1x8x16xf32>
    %c0_40 = arith.constant 0 : index
    %c1_41 = arith.constant 1 : index
    %c0_42 = arith.constant 0 : index
    %c0_43 = arith.constant 0 : index
    %57 = vector.load %arg8[%c0_40, %c1_41, %c0_42, %c0_43] : memref<2x4x1x16xf32, #tpu.memory_space<vmem>>, vector<1x1x1x16xf32>
    %58 = vector.shape_cast %57 : vector<1x1x1x16xf32> to vector<1x16xf32>
    %59 = vector.shape_cast %58 : vector<1x16xf32> to vector<1x1x16xf32>
    %60 = vector.broadcast %59 : vector<1x1x16xf32> to vector<1x8x16xf32>
    %61 = arith.mulf %56, %60 : vector<1x8x16xf32>
    %cst_44 = arith.constant dense<0.000000e+00> : vector<1x8xf32>
    %62 = vector.multi_reduction <add>, %61, %cst_44 [2] : vector<1x8x16xf32> to vector<1x8xf32>
    %c0_45 = arith.constant 0 : index
    %c1_46 = arith.constant 1 : index
    %c0_47 = arith.constant 0 : index
    %c0_48 = arith.constant 0 : index
    %63 = vector.load %arg9[%c0_45, %c1_46, %c0_47, %c0_48] : memref<2x4x1x8xf32, #tpu.memory_space<vmem>>, vector<1x1x1x8xf32>
    %64 = vector.shape_cast %63 : vector<1x1x1x8xf32> to vector<1x8xf32>
    %65 = vector.shape_cast %64 : vector<1x8xf32> to vector<1x1x8xf32>
    %66 = vector.broadcast %65 : vector<1x1x8xf32> to vector<8x8x8xf32>
    %67 = arith.mulf %1, %66 : vector<8x8x8xf32>
    %cst_49 = arith.constant dense<0.000000e+00> : vector<8x8xf32>
    %68 = vector.multi_reduction <add>, %67, %cst_49 [2] : vector<8x8x8xf32> to vector<8x8xf32>
    %69 = vector.broadcast %55 : vector<8x1xf32> to vector<8x8xf32>
    %70 = vector.broadcast %62 : vector<1x8xf32> to vector<8x8xf32>
    %71 = arith.addf %69, %70 : vector<8x8xf32>
    %72 = arith.addf %71, %68 : vector<8x8xf32>
    %cst_50 = arith.constant dense<0xFF800000> : vector<8xf32>
    %73 = vector.multi_reduction <maximumf>, %72, %cst_50 [1] : vector<8x8xf32> to vector<8xf32>
    %74 = vector.shape_cast %73 : vector<8xf32> to vector<8x1xf32>
    %75 = vector.broadcast %74 : vector<8x1xf32> to vector<8x8xf32>
    %76 = arith.subf %72, %75 : vector<8x8xf32>
    %77 = math.exp %76 : vector<8x8xf32>
    %cst_51 = arith.constant dense<0.000000e+00> : vector<8xf32>
    %78 = vector.multi_reduction <add>, %77, %cst_51 [1] : vector<8x8xf32> to vector<8xf32>
    %79 = vector.shape_cast %78 : vector<8xf32> to vector<8x1xf32>
    %80 = tpu.reciprocal %79 {approx = true} : vector<8x1xf32> -> vector<8x1xf32>
    %81 = vector.broadcast %80 : vector<8x1xf32> to vector<8x8xf32>
    %82 = arith.mulf %77, %81 : vector<8x8xf32>
    %c0_52 = arith.constant 0 : index
    %c1_53 = arith.constant 1 : index
    %c0_54 = arith.constant 0 : index
    %c0_55 = arith.constant 0 : index
    %83 = vector.load %arg10[%c0_52, %c1_53, %c0_54, %c0_55] : memref<2x4x16x16xf32, #tpu.memory_space<vmem>>, vector<1x1x16x16xf32>
    %84 = vector.shape_cast %83 : vector<1x1x16x16xf32> to vector<16x16xf32>
    %85 = arith.truncf %0 : vector<8x16xf32> to vector<8x16xbf16>
    %86 = arith.truncf %84 : vector<16x16xf32> to vector<16x16xbf16>
    %cst_56 = arith.constant dense<0.000000e+00> : vector<8x16xf32>
    %87 = tpu.matmul %85, %86, %cst_56 {dimension_numbers = #tpu.dot_dimension_numbers<[1], [0], [0], [1], [0, 0, 1, 1], [], []>} : vector<8x16xbf16>, vector<16x16xbf16>, vector<8x16xf32> -> vector<8x16xf32>
    %88 = arith.truncf %82 : vector<8x8xf32> to vector<8x8xbf16>
    %89 = arith.truncf %87 : vector<8x16xf32> to vector<8x16xbf16>
    %cst_57 = arith.constant dense<0.000000e+00> : vector<8x16xf32>
    %90 = tpu.matmul %88, %89, %cst_57 {dimension_numbers = #tpu.dot_dimension_numbers<[1], [0], [0], [1], [0, 0, 1, 1], [], []>} : vector<8x8xbf16>, vector<8x16xbf16>, vector<8x16xf32> -> vector<8x16xf32>
    %91 = arith.addf %49, %90 : vector<8x16xf32>
    %c0_58 = arith.constant 0 : index
    %c2 = arith.constant 2 : index
    %c0_59 = arith.constant 0 : index
    %c0_60 = arith.constant 0 : index
    %92 = vector.load %arg7[%c0_58, %c2, %c0_59, %c0_60] : memref<2x4x1x16xf32, #tpu.memory_space<vmem>>, vector<1x1x1x16xf32>
    %93 = vector.shape_cast %92 : vector<1x1x1x16xf32> to vector<1x16xf32>
    %94 = vector.broadcast %93 : vector<1x16xf32> to vector<8x16xf32>
    %95 = arith.mulf %0, %94 : vector<8x16xf32>
    %cst_61 = arith.constant dense<0.000000e+00> : vector<8xf32>
    %96 = vector.multi_reduction <add>, %95, %cst_61 [1] : vector<8x16xf32> to vector<8xf32>
    %97 = vector.shape_cast %96 : vector<8xf32> to vector<8x1xf32>
    %98 = vector.shape_cast %0 : vector<8x16xf32> to vector<1x8x16xf32>
    %c0_62 = arith.constant 0 : index
    %c2_63 = arith.constant 2 : index
    %c0_64 = arith.constant 0 : index
    %c0_65 = arith.constant 0 : index
    %99 = vector.load %arg8[%c0_62, %c2_63, %c0_64, %c0_65] : memref<2x4x1x16xf32, #tpu.memory_space<vmem>>, vector<1x1x1x16xf32>
    %100 = vector.shape_cast %99 : vector<1x1x1x16xf32> to vector<1x16xf32>
    %101 = vector.shape_cast %100 : vector<1x16xf32> to vector<1x1x16xf32>
    %102 = vector.broadcast %101 : vector<1x1x16xf32> to vector<1x8x16xf32>
    %103 = arith.mulf %98, %102 : vector<1x8x16xf32>
    %cst_66 = arith.constant dense<0.000000e+00> : vector<1x8xf32>
    %104 = vector.multi_reduction <add>, %103, %cst_66 [2] : vector<1x8x16xf32> to vector<1x8xf32>
    %c0_67 = arith.constant 0 : index
    %c2_68 = arith.constant 2 : index
    %c0_69 = arith.constant 0 : index
    %c0_70 = arith.constant 0 : index
    %105 = vector.load %arg9[%c0_67, %c2_68, %c0_69, %c0_70] : memref<2x4x1x8xf32, #tpu.memory_space<vmem>>, vector<1x1x1x8xf32>
    %106 = vector.shape_cast %105 : vector<1x1x1x8xf32> to vector<1x8xf32>
    %107 = vector.shape_cast %106 : vector<1x8xf32> to vector<1x1x8xf32>
    %108 = vector.broadcast %107 : vector<1x1x8xf32> to vector<8x8x8xf32>
    %109 = arith.mulf %1, %108 : vector<8x8x8xf32>
    %cst_71 = arith.constant dense<0.000000e+00> : vector<8x8xf32>
    %110 = vector.multi_reduction <add>, %109, %cst_71 [2] : vector<8x8x8xf32> to vector<8x8xf32>
    %111 = vector.broadcast %97 : vector<8x1xf32> to vector<8x8xf32>
    %112 = vector.broadcast %104 : vector<1x8xf32> to vector<8x8xf32>
    %113 = arith.addf %111, %112 : vector<8x8xf32>
    %114 = arith.addf %113, %110 : vector<8x8xf32>
    %cst_72 = arith.constant dense<0xFF800000> : vector<8xf32>
    %115 = vector.multi_reduction <maximumf>, %114, %cst_72 [1] : vector<8x8xf32> to vector<8xf32>
    %116 = vector.shape_cast %115 : vector<8xf32> to vector<8x1xf32>
    %117 = vector.broadcast %116 : vector<8x1xf32> to vector<8x8xf32>
    %118 = arith.subf %114, %117 : vector<8x8xf32>
    %119 = math.exp %118 : vector<8x8xf32>
    %cst_73 = arith.constant dense<0.000000e+00> : vector<8xf32>
    %120 = vector.multi_reduction <add>, %119, %cst_73 [1] : vector<8x8xf32> to vector<8xf32>
    %121 = vector.shape_cast %120 : vector<8xf32> to vector<8x1xf32>
    %122 = tpu.reciprocal %121 {approx = true} : vector<8x1xf32> -> vector<8x1xf32>
    %123 = vector.broadcast %122 : vector<8x1xf32> to vector<8x8xf32>
    %124 = arith.mulf %119, %123 : vector<8x8xf32>
    %c0_74 = arith.constant 0 : index
    %c2_75 = arith.constant 2 : index
    %c0_76 = arith.constant 0 : index
    %c0_77 = arith.constant 0 : index
    %125 = vector.load %arg10[%c0_74, %c2_75, %c0_76, %c0_77] : memref<2x4x16x16xf32, #tpu.memory_space<vmem>>, vector<1x1x16x16xf32>
    %126 = vector.shape_cast %125 : vector<1x1x16x16xf32> to vector<16x16xf32>
    %127 = arith.truncf %0 : vector<8x16xf32> to vector<8x16xbf16>
    %128 = arith.truncf %126 : vector<16x16xf32> to vector<16x16xbf16>
    %cst_78 = arith.constant dense<0.000000e+00> : vector<8x16xf32>
    %129 = tpu.matmul %127, %128, %cst_78 {dimension_numbers = #tpu.dot_dimension_numbers<[1], [0], [0], [1], [0, 0, 1, 1], [], []>} : vector<8x16xbf16>, vector<16x16xbf16>, vector<8x16xf32> -> vector<8x16xf32>
    %130 = arith.truncf %124 : vector<8x8xf32> to vector<8x8xbf16>
    %131 = arith.truncf %129 : vector<8x16xf32> to vector<8x16xbf16>
    %cst_79 = arith.constant dense<0.000000e+00> : vector<8x16xf32>
    %132 = tpu.matmul %130, %131, %cst_79 {dimension_numbers = #tpu.dot_dimension_numbers<[1], [0], [0], [1], [0, 0, 1, 1], [], []>} : vector<8x8xbf16>, vector<8x16xbf16>, vector<8x16xf32> -> vector<8x16xf32>
    %133 = arith.addf %91, %132 : vector<8x16xf32>
    %c0_80 = arith.constant 0 : index
    %c3 = arith.constant 3 : index
    %c0_81 = arith.constant 0 : index
    %c0_82 = arith.constant 0 : index
    %134 = vector.load %arg7[%c0_80, %c3, %c0_81, %c0_82] : memref<2x4x1x16xf32, #tpu.memory_space<vmem>>, vector<1x1x1x16xf32>
    %135 = vector.shape_cast %134 : vector<1x1x1x16xf32> to vector<1x16xf32>
    %136 = vector.broadcast %135 : vector<1x16xf32> to vector<8x16xf32>
    %137 = arith.mulf %0, %136 : vector<8x16xf32>
    %cst_83 = arith.constant dense<0.000000e+00> : vector<8xf32>
    %138 = vector.multi_reduction <add>, %137, %cst_83 [1] : vector<8x16xf32> to vector<8xf32>
    %139 = vector.shape_cast %138 : vector<8xf32> to vector<8x1xf32>
    %140 = vector.shape_cast %0 : vector<8x16xf32> to vector<1x8x16xf32>
    %c0_84 = arith.constant 0 : index
    %c3_85 = arith.constant 3 : index
    %c0_86 = arith.constant 0 : index
    %c0_87 = arith.constant 0 : index
    %141 = vector.load %arg8[%c0_84, %c3_85, %c0_86, %c0_87] : memref<2x4x1x16xf32, #tpu.memory_space<vmem>>, vector<1x1x1x16xf32>
    %142 = vector.shape_cast %141 : vector<1x1x1x16xf32> to vector<1x16xf32>
    %143 = vector.shape_cast %142 : vector<1x16xf32> to vector<1x1x16xf32>
    %144 = vector.broadcast %143 : vector<1x1x16xf32> to vector<1x8x16xf32>
    %145 = arith.mulf %140, %144 : vector<1x8x16xf32>
    %cst_88 = arith.constant dense<0.000000e+00> : vector<1x8xf32>
    %146 = vector.multi_reduction <add>, %145, %cst_88 [2] : vector<1x8x16xf32> to vector<1x8xf32>
    %c0_89 = arith.constant 0 : index
    %c3_90 = arith.constant 3 : index
    %c0_91 = arith.constant 0 : index
    %c0_92 = arith.constant 0 : index
    %147 = vector.load %arg9[%c0_89, %c3_90, %c0_91, %c0_92] : memref<2x4x1x8xf32, #tpu.memory_space<vmem>>, vector<1x1x1x8xf32>
    %148 = vector.shape_cast %147 : vector<1x1x1x8xf32> to vector<1x8xf32>
    %149 = vector.shape_cast %148 : vector<1x8xf32> to vector<1x1x8xf32>
    %150 = vector.broadcast %149 : vector<1x1x8xf32> to vector<8x8x8xf32>
    %151 = arith.mulf %1, %150 : vector<8x8x8xf32>
    %cst_93 = arith.constant dense<0.000000e+00> : vector<8x8xf32>
    %152 = vector.multi_reduction <add>, %151, %cst_93 [2] : vector<8x8x8xf32> to vector<8x8xf32>
    %153 = vector.broadcast %139 : vector<8x1xf32> to vector<8x8xf32>
    %154 = vector.broadcast %146 : vector<1x8xf32> to vector<8x8xf32>
    %155 = arith.addf %153, %154 : vector<8x8xf32>
    %156 = arith.addf %155, %152 : vector<8x8xf32>
    %cst_94 = arith.constant dense<0xFF800000> : vector<8xf32>
    %157 = vector.multi_reduction <maximumf>, %156, %cst_94 [1] : vector<8x8xf32> to vector<8xf32>
    %158 = vector.shape_cast %157 : vector<8xf32> to vector<8x1xf32>
    %159 = vector.broadcast %158 : vector<8x1xf32> to vector<8x8xf32>
    %160 = arith.subf %156, %159 : vector<8x8xf32>
    %161 = math.exp %160 : vector<8x8xf32>
    %cst_95 = arith.constant dense<0.000000e+00> : vector<8xf32>
    %162 = vector.multi_reduction <add>, %161, %cst_95 [1] : vector<8x8xf32> to vector<8xf32>
    %163 = vector.shape_cast %162 : vector<8xf32> to vector<8x1xf32>
    %164 = tpu.reciprocal %163 {approx = true} : vector<8x1xf32> -> vector<8x1xf32>
    %165 = vector.broadcast %164 : vector<8x1xf32> to vector<8x8xf32>
    %166 = arith.mulf %161, %165 : vector<8x8xf32>
    %c0_96 = arith.constant 0 : index
    %c3_97 = arith.constant 3 : index
    %c0_98 = arith.constant 0 : index
    %c0_99 = arith.constant 0 : index
    %167 = vector.load %arg10[%c0_96, %c3_97, %c0_98, %c0_99] : memref<2x4x16x16xf32, #tpu.memory_space<vmem>>, vector<1x1x16x16xf32>
    %168 = vector.shape_cast %167 : vector<1x1x16x16xf32> to vector<16x16xf32>
    %169 = arith.truncf %0 : vector<8x16xf32> to vector<8x16xbf16>
    %170 = arith.truncf %168 : vector<16x16xf32> to vector<16x16xbf16>
    %cst_100 = arith.constant dense<0.000000e+00> : vector<8x16xf32>
    %171 = tpu.matmul %169, %170, %cst_100 {dimension_numbers = #tpu.dot_dimension_numbers<[1], [0], [0], [1], [0, 0, 1, 1], [], []>} : vector<8x16xbf16>, vector<16x16xbf16>, vector<8x16xf32> -> vector<8x16xf32>
    %172 = arith.truncf %166 : vector<8x8xf32> to vector<8x8xbf16>
    %173 = arith.truncf %171 : vector<8x16xf32> to vector<8x16xbf16>
    %cst_101 = arith.constant dense<0.000000e+00> : vector<8x16xf32>
    %174 = tpu.matmul %172, %173, %cst_101 {dimension_numbers = #tpu.dot_dimension_numbers<[1], [0], [0], [1], [0, 0, 1, 1], [], []>} : vector<8x8xbf16>, vector<8x16xbf16>, vector<8x16xf32> -> vector<8x16xf32>
    %175 = arith.addf %133, %174 : vector<8x16xf32>
    %176 = arith.addf %0, %175 : vector<8x16xf32>
    %c0_102 = arith.constant 0 : index
    %c0_103 = arith.constant 0 : index
    %c0_104 = arith.constant 0 : index
    %177 = vector.load %arg11[%c0_102, %c0_103, %c0_104] : memref<2x1x16xf32, #tpu.memory_space<vmem>>, vector<1x1x16xf32>
    %178 = vector.shape_cast %177 : vector<1x1x16xf32> to vector<1x16xf32>
    %179 = vector.broadcast %178 : vector<1x16xf32> to vector<8x16xf32>
    %180 = arith.addf %176, %179 : vector<8x16xf32>
    %c0_105 = arith.constant 0 : index
    %c0_106 = arith.constant 0 : index
    %c0_107 = arith.constant 0 : index
    %181 = vector.load %arg12[%c0_105, %c0_106, %c0_107] : memref<2x16x8xf32, #tpu.memory_space<vmem>>, vector<1x16x8xf32>
    %182 = vector.shape_cast %181 : vector<1x16x8xf32> to vector<16x8xf32>
    %183 = arith.truncf %0 : vector<8x16xf32> to vector<8x16xbf16>
    %184 = arith.truncf %182 : vector<16x8xf32> to vector<16x8xbf16>
    %cst_108 = arith.constant dense<0.000000e+00> : vector<8x8xf32>
    %185 = tpu.matmul %183, %184, %cst_108 {dimension_numbers = #tpu.dot_dimension_numbers<[1], [0], [0], [1], [0, 0, 1, 1], [], []>} : vector<8x16xbf16>, vector<16x8xbf16>, vector<8x8xf32> -> vector<8x8xf32>
    %c0_109 = arith.constant 0 : index
    %c0_110 = arith.constant 0 : index
    %c0_111 = arith.constant 0 : index
    %186 = vector.load %arg13[%c0_109, %c0_110, %c0_111] : memref<2x16x8xf32, #tpu.memory_space<vmem>>, vector<1x16x8xf32>
    %187 = vector.shape_cast %186 : vector<1x16x8xf32> to vector<16x8xf32>
    %188 = arith.truncf %0 : vector<8x16xf32> to vector<8x16xbf16>
    %189 = arith.truncf %187 : vector<16x8xf32> to vector<16x8xbf16>
    %cst_112 = arith.constant dense<0.000000e+00> : vector<8x8xf32>
    %190 = tpu.matmul %188, %189, %cst_112 {dimension_numbers = #tpu.dot_dimension_numbers<[1], [0], [0], [1], [0, 0, 1, 1], [], []>} : vector<8x16xbf16>, vector<16x8xbf16>, vector<8x8xf32> -> vector<8x8xf32>
    %c0_113 = arith.constant 0 : index
    %c0_114 = arith.constant 0 : index
    %c0_115 = arith.constant 0 : index
    %191 = vector.load %arg14[%c0_113, %c0_114, %c0_115] : memref<2x8x8xf32, #tpu.memory_space<vmem>>, vector<1x8x8xf32>
    %192 = vector.shape_cast %191 : vector<1x8x8xf32> to vector<8x8xf32>
    %193 = arith.truncf %6 : vector<64x8xf32> to vector<64x8xbf16>
    %194 = arith.truncf %192 : vector<8x8xf32> to vector<8x8xbf16>
    %cst_116 = arith.constant dense<0.000000e+00> : vector<64x8xf32>
    %195 = tpu.matmul %193, %194, %cst_116 {dimension_numbers = #tpu.dot_dimension_numbers<[1], [0], [0], [1], [0, 0, 1, 1], [], []>} : vector<64x8xbf16>, vector<8x8xbf16>, vector<64x8xf32> -> vector<64x8xf32>
    %196 = vector.shape_cast %195 : vector<64x8xf32> to vector<8x8x8xf32>
    %197 = vector.shape_cast %185 : vector<8x8xf32> to vector<8x1x8xf32>
    %198 = vector.broadcast %197 : vector<8x1x8xf32> to vector<8x8x8xf32>
    %199 = arith.addf %1, %198 : vector<8x8x8xf32>
    %200 = vector.shape_cast %190 : vector<8x8xf32> to vector<1x8x8xf32>
    %201 = vector.broadcast %200 : vector<1x8x8xf32> to vector<8x8x8xf32>
    %202 = arith.addf %199, %201 : vector<8x8x8xf32>
    %203 = arith.addf %202, %196 : vector<8x8x8xf32>
    %c0_117 = arith.constant 0 : index
    %c0_118 = arith.constant 0 : index
    %c0_119 = arith.constant 0 : index
    %204 = vector.load %arg15[%c0_117, %c0_118, %c0_119] : memref<2x1x8xf32, #tpu.memory_space<vmem>>, vector<1x1x8xf32>
    %205 = vector.shape_cast %204 : vector<1x1x8xf32> to vector<1x8xf32>
    %206 = vector.shape_cast %205 : vector<1x8xf32> to vector<1x1x8xf32>
    %207 = vector.broadcast %206 : vector<1x1x8xf32> to vector<8x8x8xf32>
    %208 = arith.addf %203, %207 : vector<8x8x8xf32>
    %209 = vector.shape_cast %3 : vector<8x8x8xf32> to vector<64x8xf32>
    %cst_120 = arith.constant 0.000000e+00 : f32
    %210 = vector.broadcast %cst_120 : f32 to vector<8x16xf32>
    %c0_121 = arith.constant 0 : index
    %c0_122 = arith.constant 0 : index
    %c0_123 = arith.constant 0 : index
    %c0_124 = arith.constant 0 : index
    %211 = vector.load %arg16[%c0_121, %c0_122, %c0_123, %c0_124] : memref<2x4x1x16xf32, #tpu.memory_space<vmem>>, vector<1x1x1x16xf32>
    %212 = vector.shape_cast %211 : vector<1x1x1x16xf32> to vector<1x16xf32>
    %213 = vector.broadcast %212 : vector<1x16xf32> to vector<8x16xf32>
    %214 = arith.mulf %2, %213 : vector<8x16xf32>
    %cst_125 = arith.constant dense<0.000000e+00> : vector<8xf32>
    %215 = vector.multi_reduction <add>, %214, %cst_125 [1] : vector<8x16xf32> to vector<8xf32>
    %216 = vector.shape_cast %215 : vector<8xf32> to vector<8x1xf32>
    %217 = vector.shape_cast %2 : vector<8x16xf32> to vector<1x8x16xf32>
    %c0_126 = arith.constant 0 : index
    %c0_127 = arith.constant 0 : index
    %c0_128 = arith.constant 0 : index
    %c0_129 = arith.constant 0 : index
    %218 = vector.load %arg17[%c0_126, %c0_127, %c0_128, %c0_129] : memref<2x4x1x16xf32, #tpu.memory_space<vmem>>, vector<1x1x1x16xf32>
    %219 = vector.shape_cast %218 : vector<1x1x1x16xf32> to vector<1x16xf32>
    %220 = vector.shape_cast %219 : vector<1x16xf32> to vector<1x1x16xf32>
    %221 = vector.broadcast %220 : vector<1x1x16xf32> to vector<1x8x16xf32>
    %222 = arith.mulf %217, %221 : vector<1x8x16xf32>
    %cst_130 = arith.constant dense<0.000000e+00> : vector<1x8xf32>
    %223 = vector.multi_reduction <add>, %222, %cst_130 [2] : vector<1x8x16xf32> to vector<1x8xf32>
    %c0_131 = arith.constant 0 : index
    %c0_132 = arith.constant 0 : index
    %c0_133 = arith.constant 0 : index
    %c0_134 = arith.constant 0 : index
    %224 = vector.load %arg18[%c0_131, %c0_132, %c0_133, %c0_134] : memref<2x4x1x8xf32, #tpu.memory_space<vmem>>, vector<1x1x1x8xf32>
    %225 = vector.shape_cast %224 : vector<1x1x1x8xf32> to vector<1x8xf32>
    %226 = vector.shape_cast %225 : vector<1x8xf32> to vector<1x1x8xf32>
    %227 = vector.broadcast %226 : vector<1x1x8xf32> to vector<8x8x8xf32>
    %228 = arith.mulf %3, %227 : vector<8x8x8xf32>
    %cst_135 = arith.constant dense<0.000000e+00> : vector<8x8xf32>
    %229 = vector.multi_reduction <add>, %228, %cst_135 [2] : vector<8x8x8xf32> to vector<8x8xf32>
    %230 = vector.broadcast %216 : vector<8x1xf32> to vector<8x8xf32>
    %231 = vector.broadcast %223 : vector<1x8xf32> to vector<8x8xf32>
    %232 = arith.addf %230, %231 : vector<8x8xf32>
    %233 = arith.addf %232, %229 : vector<8x8xf32>
    %cst_136 = arith.constant dense<0xFF800000> : vector<8xf32>
    %234 = vector.multi_reduction <maximumf>, %233, %cst_136 [1] : vector<8x8xf32> to vector<8xf32>
    %235 = vector.shape_cast %234 : vector<8xf32> to vector<8x1xf32>
    %236 = vector.broadcast %235 : vector<8x1xf32> to vector<8x8xf32>
    %237 = arith.subf %233, %236 : vector<8x8xf32>
    %238 = math.exp %237 : vector<8x8xf32>
    %cst_137 = arith.constant dense<0.000000e+00> : vector<8xf32>
    %239 = vector.multi_reduction <add>, %238, %cst_137 [1] : vector<8x8xf32> to vector<8xf32>
    %240 = vector.shape_cast %239 : vector<8xf32> to vector<8x1xf32>
    %241 = tpu.reciprocal %240 {approx = true} : vector<8x1xf32> -> vector<8x1xf32>
    %242 = vector.broadcast %241 : vector<8x1xf32> to vector<8x8xf32>
    %243 = arith.mulf %238, %242 : vector<8x8xf32>
    %c0_138 = arith.constant 0 : index
    %c0_139 = arith.constant 0 : index
    %c0_140 = arith.constant 0 : index
    %c0_141 = arith.constant 0 : index
    %244 = vector.load %arg19[%c0_138, %c0_139, %c0_140, %c0_141] : memref<2x4x16x16xf32, #tpu.memory_space<vmem>>, vector<1x1x16x16xf32>
    %245 = vector.shape_cast %244 : vector<1x1x16x16xf32> to vector<16x16xf32>
    %246 = arith.truncf %2 : vector<8x16xf32> to vector<8x16xbf16>
    %247 = arith.truncf %245 : vector<16x16xf32> to vector<16x16xbf16>
    %cst_142 = arith.constant dense<0.000000e+00> : vector<8x16xf32>
    %248 = tpu.matmul %246, %247, %cst_142 {dimension_numbers = #tpu.dot_dimension_numbers<[1], [0], [0], [1], [0, 0, 1, 1], [], []>} : vector<8x16xbf16>, vector<16x16xbf16>, vector<8x16xf32> -> vector<8x16xf32>
    %249 = arith.truncf %243 : vector<8x8xf32> to vector<8x8xbf16>
    %250 = arith.truncf %248 : vector<8x16xf32> to vector<8x16xbf16>
    %cst_143 = arith.constant dense<0.000000e+00> : vector<8x16xf32>
    %251 = tpu.matmul %249, %250, %cst_143 {dimension_numbers = #tpu.dot_dimension_numbers<[1], [0], [0], [1], [0, 0, 1, 1], [], []>} : vector<8x8xbf16>, vector<8x16xbf16>, vector<8x16xf32> -> vector<8x16xf32>
    %252 = arith.addf %210, %251 : vector<8x16xf32>
    %c0_144 = arith.constant 0 : index
    %c1_145 = arith.constant 1 : index
    %c0_146 = arith.constant 0 : index
    %c0_147 = arith.constant 0 : index
    %253 = vector.load %arg16[%c0_144, %c1_145, %c0_146, %c0_147] : memref<2x4x1x16xf32, #tpu.memory_space<vmem>>, vector<1x1x1x16xf32>
    %254 = vector.shape_cast %253 : vector<1x1x1x16xf32> to vector<1x16xf32>
    %255 = vector.broadcast %254 : vector<1x16xf32> to vector<8x16xf32>
    %256 = arith.mulf %2, %255 : vector<8x16xf32>
    %cst_148 = arith.constant dense<0.000000e+00> : vector<8xf32>
    %257 = vector.multi_reduction <add>, %256, %cst_148 [1] : vector<8x16xf32> to vector<8xf32>
    %258 = vector.shape_cast %257 : vector<8xf32> to vector<8x1xf32>
    %259 = vector.shape_cast %2 : vector<8x16xf32> to vector<1x8x16xf32>
    %c0_149 = arith.constant 0 : index
    %c1_150 = arith.constant 1 : index
    %c0_151 = arith.constant 0 : index
    %c0_152 = arith.constant 0 : index
    %260 = vector.load %arg17[%c0_149, %c1_150, %c0_151, %c0_152] : memref<2x4x1x16xf32, #tpu.memory_space<vmem>>, vector<1x1x1x16xf32>
    %261 = vector.shape_cast %260 : vector<1x1x1x16xf32> to vector<1x16xf32>
    %262 = vector.shape_cast %261 : vector<1x16xf32> to vector<1x1x16xf32>
    %263 = vector.broadcast %262 : vector<1x1x16xf32> to vector<1x8x16xf32>
    %264 = arith.mulf %259, %263 : vector<1x8x16xf32>
    %cst_153 = arith.constant dense<0.000000e+00> : vector<1x8xf32>
    %265 = vector.multi_reduction <add>, %264, %cst_153 [2] : vector<1x8x16xf32> to vector<1x8xf32>
    %c0_154 = arith.constant 0 : index
    %c1_155 = arith.constant 1 : index
    %c0_156 = arith.constant 0 : index
    %c0_157 = arith.constant 0 : index
    %266 = vector.load %arg18[%c0_154, %c1_155, %c0_156, %c0_157] : memref<2x4x1x8xf32, #tpu.memory_space<vmem>>, vector<1x1x1x8xf32>
    %267 = vector.shape_cast %266 : vector<1x1x1x8xf32> to vector<1x8xf32>
    %268 = vector.shape_cast %267 : vector<1x8xf32> to vector<1x1x8xf32>
    %269 = vector.broadcast %268 : vector<1x1x8xf32> to vector<8x8x8xf32>
    %270 = arith.mulf %3, %269 : vector<8x8x8xf32>
    %cst_158 = arith.constant dense<0.000000e+00> : vector<8x8xf32>
    %271 = vector.multi_reduction <add>, %270, %cst_158 [2] : vector<8x8x8xf32> to vector<8x8xf32>
    %272 = vector.broadcast %258 : vector<8x1xf32> to vector<8x8xf32>
    %273 = vector.broadcast %265 : vector<1x8xf32> to vector<8x8xf32>
    %274 = arith.addf %272, %273 : vector<8x8xf32>
    %275 = arith.addf %274, %271 : vector<8x8xf32>
    %cst_159 = arith.constant dense<0xFF800000> : vector<8xf32>
    %276 = vector.multi_reduction <maximumf>, %275, %cst_159 [1] : vector<8x8xf32> to vector<8xf32>
    %277 = vector.shape_cast %276 : vector<8xf32> to vector<8x1xf32>
    %278 = vector.broadcast %277 : vector<8x1xf32> to vector<8x8xf32>
    %279 = arith.subf %275, %278 : vector<8x8xf32>
    %280 = math.exp %279 : vector<8x8xf32>
    %cst_160 = arith.constant dense<0.000000e+00> : vector<8xf32>
    %281 = vector.multi_reduction <add>, %280, %cst_160 [1] : vector<8x8xf32> to vector<8xf32>
    %282 = vector.shape_cast %281 : vector<8xf32> to vector<8x1xf32>
    %283 = tpu.reciprocal %282 {approx = true} : vector<8x1xf32> -> vector<8x1xf32>
    %284 = vector.broadcast %283 : vector<8x1xf32> to vector<8x8xf32>
    %285 = arith.mulf %280, %284 : vector<8x8xf32>
    %c0_161 = arith.constant 0 : index
    %c1_162 = arith.constant 1 : index
    %c0_163 = arith.constant 0 : index
    %c0_164 = arith.constant 0 : index
    %286 = vector.load %arg19[%c0_161, %c1_162, %c0_163, %c0_164] : memref<2x4x16x16xf32, #tpu.memory_space<vmem>>, vector<1x1x16x16xf32>
    %287 = vector.shape_cast %286 : vector<1x1x16x16xf32> to vector<16x16xf32>
    %288 = arith.truncf %2 : vector<8x16xf32> to vector<8x16xbf16>
    %289 = arith.truncf %287 : vector<16x16xf32> to vector<16x16xbf16>
    %cst_165 = arith.constant dense<0.000000e+00> : vector<8x16xf32>
    %290 = tpu.matmul %288, %289, %cst_165 {dimension_numbers = #tpu.dot_dimension_numbers<[1], [0], [0], [1], [0, 0, 1, 1], [], []>} : vector<8x16xbf16>, vector<16x16xbf16>, vector<8x16xf32> -> vector<8x16xf32>
    %291 = arith.truncf %285 : vector<8x8xf32> to vector<8x8xbf16>
    %292 = arith.truncf %290 : vector<8x16xf32> to vector<8x16xbf16>
    %cst_166 = arith.constant dense<0.000000e+00> : vector<8x16xf32>
    %293 = tpu.matmul %291, %292, %cst_166 {dimension_numbers = #tpu.dot_dimension_numbers<[1], [0], [0], [1], [0, 0, 1, 1], [], []>} : vector<8x8xbf16>, vector<8x16xbf16>, vector<8x16xf32> -> vector<8x16xf32>
    %294 = arith.addf %252, %293 : vector<8x16xf32>
    %c0_167 = arith.constant 0 : index
    %c2_168 = arith.constant 2 : index
    %c0_169 = arith.constant 0 : index
    %c0_170 = arith.constant 0 : index
    %295 = vector.load %arg16[%c0_167, %c2_168, %c0_169, %c0_170] : memref<2x4x1x16xf32, #tpu.memory_space<vmem>>, vector<1x1x1x16xf32>
    %296 = vector.shape_cast %295 : vector<1x1x1x16xf32> to vector<1x16xf32>
    %297 = vector.broadcast %296 : vector<1x16xf32> to vector<8x16xf32>
    %298 = arith.mulf %2, %297 : vector<8x16xf32>
    %cst_171 = arith.constant dense<0.000000e+00> : vector<8xf32>
    %299 = vector.multi_reduction <add>, %298, %cst_171 [1] : vector<8x16xf32> to vector<8xf32>
    %300 = vector.shape_cast %299 : vector<8xf32> to vector<8x1xf32>
    %301 = vector.shape_cast %2 : vector<8x16xf32> to vector<1x8x16xf32>
    %c0_172 = arith.constant 0 : index
    %c2_173 = arith.constant 2 : index
    %c0_174 = arith.constant 0 : index
    %c0_175 = arith.constant 0 : index
    %302 = vector.load %arg17[%c0_172, %c2_173, %c0_174, %c0_175] : memref<2x4x1x16xf32, #tpu.memory_space<vmem>>, vector<1x1x1x16xf32>
    %303 = vector.shape_cast %302 : vector<1x1x1x16xf32> to vector<1x16xf32>
    %304 = vector.shape_cast %303 : vector<1x16xf32> to vector<1x1x16xf32>
    %305 = vector.broadcast %304 : vector<1x1x16xf32> to vector<1x8x16xf32>
    %306 = arith.mulf %301, %305 : vector<1x8x16xf32>
    %cst_176 = arith.constant dense<0.000000e+00> : vector<1x8xf32>
    %307 = vector.multi_reduction <add>, %306, %cst_176 [2] : vector<1x8x16xf32> to vector<1x8xf32>
    %c0_177 = arith.constant 0 : index
    %c2_178 = arith.constant 2 : index
    %c0_179 = arith.constant 0 : index
    %c0_180 = arith.constant 0 : index
    %308 = vector.load %arg18[%c0_177, %c2_178, %c0_179, %c0_180] : memref<2x4x1x8xf32, #tpu.memory_space<vmem>>, vector<1x1x1x8xf32>
    %309 = vector.shape_cast %308 : vector<1x1x1x8xf32> to vector<1x8xf32>
    %310 = vector.shape_cast %309 : vector<1x8xf32> to vector<1x1x8xf32>
    %311 = vector.broadcast %310 : vector<1x1x8xf32> to vector<8x8x8xf32>
    %312 = arith.mulf %3, %311 : vector<8x8x8xf32>
    %cst_181 = arith.constant dense<0.000000e+00> : vector<8x8xf32>
    %313 = vector.multi_reduction <add>, %312, %cst_181 [2] : vector<8x8x8xf32> to vector<8x8xf32>
    %314 = vector.broadcast %300 : vector<8x1xf32> to vector<8x8xf32>
    %315 = vector.broadcast %307 : vector<1x8xf32> to vector<8x8xf32>
    %316 = arith.addf %314, %315 : vector<8x8xf32>
    %317 = arith.addf %316, %313 : vector<8x8xf32>
    %cst_182 = arith.constant dense<0xFF800000> : vector<8xf32>
    %318 = vector.multi_reduction <maximumf>, %317, %cst_182 [1] : vector<8x8xf32> to vector<8xf32>
    %319 = vector.shape_cast %318 : vector<8xf32> to vector<8x1xf32>
    %320 = vector.broadcast %319 : vector<8x1xf32> to vector<8x8xf32>
    %321 = arith.subf %317, %320 : vector<8x8xf32>
    %322 = math.exp %321 : vector<8x8xf32>
    %cst_183 = arith.constant dense<0.000000e+00> : vector<8xf32>
    %323 = vector.multi_reduction <add>, %322, %cst_183 [1] : vector<8x8xf32> to vector<8xf32>
    %324 = vector.shape_cast %323 : vector<8xf32> to vector<8x1xf32>
    %325 = tpu.reciprocal %324 {approx = true} : vector<8x1xf32> -> vector<8x1xf32>
    %326 = vector.broadcast %325 : vector<8x1xf32> to vector<8x8xf32>
    %327 = arith.mulf %322, %326 : vector<8x8xf32>
    %c0_184 = arith.constant 0 : index
    %c2_185 = arith.constant 2 : index
    %c0_186 = arith.constant 0 : index
    %c0_187 = arith.constant 0 : index
    %328 = vector.load %arg19[%c0_184, %c2_185, %c0_186, %c0_187] : memref<2x4x16x16xf32, #tpu.memory_space<vmem>>, vector<1x1x16x16xf32>
    %329 = vector.shape_cast %328 : vector<1x1x16x16xf32> to vector<16x16xf32>
    %330 = arith.truncf %2 : vector<8x16xf32> to vector<8x16xbf16>
    %331 = arith.truncf %329 : vector<16x16xf32> to vector<16x16xbf16>
    %cst_188 = arith.constant dense<0.000000e+00> : vector<8x16xf32>
    %332 = tpu.matmul %330, %331, %cst_188 {dimension_numbers = #tpu.dot_dimension_numbers<[1], [0], [0], [1], [0, 0, 1, 1], [], []>} : vector<8x16xbf16>, vector<16x16xbf16>, vector<8x16xf32> -> vector<8x16xf32>
    %333 = arith.truncf %327 : vector<8x8xf32> to vector<8x8xbf16>
    %334 = arith.truncf %332 : vector<8x16xf32> to vector<8x16xbf16>
    %cst_189 = arith.constant dense<0.000000e+00> : vector<8x16xf32>
    %335 = tpu.matmul %333, %334, %cst_189 {dimension_numbers = #tpu.dot_dimension_numbers<[1], [0], [0], [1], [0, 0, 1, 1], [], []>} : vector<8x8xbf16>, vector<8x16xbf16>, vector<8x16xf32> -> vector<8x16xf32>
    %336 = arith.addf %294, %335 : vector<8x16xf32>
    %c0_190 = arith.constant 0 : index
    %c3_191 = arith.constant 3 : index
    %c0_192 = arith.constant 0 : index
    %c0_193 = arith.constant 0 : index
    %337 = vector.load %arg16[%c0_190, %c3_191, %c0_192, %c0_193] : memref<2x4x1x16xf32, #tpu.memory_space<vmem>>, vector<1x1x1x16xf32>
    %338 = vector.shape_cast %337 : vector<1x1x1x16xf32> to vector<1x16xf32>
    %339 = vector.broadcast %338 : vector<1x16xf32> to vector<8x16xf32>
    %340 = arith.mulf %2, %339 : vector<8x16xf32>
    %cst_194 = arith.constant dense<0.000000e+00> : vector<8xf32>
    %341 = vector.multi_reduction <add>, %340, %cst_194 [1] : vector<8x16xf32> to vector<8xf32>
    %342 = vector.shape_cast %341 : vector<8xf32> to vector<8x1xf32>
    %343 = vector.shape_cast %2 : vector<8x16xf32> to vector<1x8x16xf32>
    %c0_195 = arith.constant 0 : index
    %c3_196 = arith.constant 3 : index
    %c0_197 = arith.constant 0 : index
    %c0_198 = arith.constant 0 : index
    %344 = vector.load %arg17[%c0_195, %c3_196, %c0_197, %c0_198] : memref<2x4x1x16xf32, #tpu.memory_space<vmem>>, vector<1x1x1x16xf32>
    %345 = vector.shape_cast %344 : vector<1x1x1x16xf32> to vector<1x16xf32>
    %346 = vector.shape_cast %345 : vector<1x16xf32> to vector<1x1x16xf32>
    %347 = vector.broadcast %346 : vector<1x1x16xf32> to vector<1x8x16xf32>
    %348 = arith.mulf %343, %347 : vector<1x8x16xf32>
    %cst_199 = arith.constant dense<0.000000e+00> : vector<1x8xf32>
    %349 = vector.multi_reduction <add>, %348, %cst_199 [2] : vector<1x8x16xf32> to vector<1x8xf32>
    %c0_200 = arith.constant 0 : index
    %c3_201 = arith.constant 3 : index
    %c0_202 = arith.constant 0 : index
    %c0_203 = arith.constant 0 : index
    %350 = vector.load %arg18[%c0_200, %c3_201, %c0_202, %c0_203] : memref<2x4x1x8xf32, #tpu.memory_space<vmem>>, vector<1x1x1x8xf32>
    %351 = vector.shape_cast %350 : vector<1x1x1x8xf32> to vector<1x8xf32>
    %352 = vector.shape_cast %351 : vector<1x8xf32> to vector<1x1x8xf32>
    %353 = vector.broadcast %352 : vector<1x1x8xf32> to vector<8x8x8xf32>
    %354 = arith.mulf %3, %353 : vector<8x8x8xf32>
    %cst_204 = arith.constant dense<0.000000e+00> : vector<8x8xf32>
    %355 = vector.multi_reduction <add>, %354, %cst_204 [2] : vector<8x8x8xf32> to vector<8x8xf32>
    %356 = vector.broadcast %342 : vector<8x1xf32> to vector<8x8xf32>
    %357 = vector.broadcast %349 : vector<1x8xf32> to vector<8x8xf32>
    %358 = arith.addf %356, %357 : vector<8x8xf32>
    %359 = arith.addf %358, %355 : vector<8x8xf32>
    %cst_205 = arith.constant dense<0xFF800000> : vector<8xf32>
    %360 = vector.multi_reduction <maximumf>, %359, %cst_205 [1] : vector<8x8xf32> to vector<8xf32>
    %361 = vector.shape_cast %360 : vector<8xf32> to vector<8x1xf32>
    %362 = vector.broadcast %361 : vector<8x1xf32> to vector<8x8xf32>
    %363 = arith.subf %359, %362 : vector<8x8xf32>
    %364 = math.exp %363 : vector<8x8xf32>
    %cst_206 = arith.constant dense<0.000000e+00> : vector<8xf32>
    %365 = vector.multi_reduction <add>, %364, %cst_206 [1] : vector<8x8xf32> to vector<8xf32>
    %366 = vector.shape_cast %365 : vector<8xf32> to vector<8x1xf32>
    %367 = tpu.reciprocal %366 {approx = true} : vector<8x1xf32> -> vector<8x1xf32>
    %368 = vector.broadcast %367 : vector<8x1xf32> to vector<8x8xf32>
    %369 = arith.mulf %364, %368 : vector<8x8xf32>
    %c0_207 = arith.constant 0 : index
    %c3_208 = arith.constant 3 : index
    %c0_209 = arith.constant 0 : index
    %c0_210 = arith.constant 0 : index
    %370 = vector.load %arg19[%c0_207, %c3_208, %c0_209, %c0_210] : memref<2x4x16x16xf32, #tpu.memory_space<vmem>>, vector<1x1x16x16xf32>
    %371 = vector.shape_cast %370 : vector<1x1x16x16xf32> to vector<16x16xf32>
    %372 = arith.truncf %2 : vector<8x16xf32> to vector<8x16xbf16>
    %373 = arith.truncf %371 : vector<16x16xf32> to vector<16x16xbf16>
    %cst_211 = arith.constant dense<0.000000e+00> : vector<8x16xf32>
    %374 = tpu.matmul %372, %373, %cst_211 {dimension_numbers = #tpu.dot_dimension_numbers<[1], [0], [0], [1], [0, 0, 1, 1], [], []>} : vector<8x16xbf16>, vector<16x16xbf16>, vector<8x16xf32> -> vector<8x16xf32>
    %375 = arith.truncf %369 : vector<8x8xf32> to vector<8x8xbf16>
    %376 = arith.truncf %374 : vector<8x16xf32> to vector<8x16xbf16>
    %cst_212 = arith.constant dense<0.000000e+00> : vector<8x16xf32>
    %377 = tpu.matmul %375, %376, %cst_212 {dimension_numbers = #tpu.dot_dimension_numbers<[1], [0], [0], [1], [0, 0, 1, 1], [], []>} : vector<8x8xbf16>, vector<8x16xbf16>, vector<8x16xf32> -> vector<8x16xf32>
    %378 = arith.addf %336, %377 : vector<8x16xf32>
    %379 = arith.addf %2, %378 : vector<8x16xf32>
    %c0_213 = arith.constant 0 : index
    %c0_214 = arith.constant 0 : index
    %c0_215 = arith.constant 0 : index
    %380 = vector.load %arg20[%c0_213, %c0_214, %c0_215] : memref<2x1x16xf32, #tpu.memory_space<vmem>>, vector<1x1x16xf32>
    %381 = vector.shape_cast %380 : vector<1x1x16xf32> to vector<1x16xf32>
    %382 = vector.broadcast %381 : vector<1x16xf32> to vector<8x16xf32>
    %383 = arith.addf %379, %382 : vector<8x16xf32>
    %c0_216 = arith.constant 0 : index
    %c0_217 = arith.constant 0 : index
    %c0_218 = arith.constant 0 : index
    %384 = vector.load %arg21[%c0_216, %c0_217, %c0_218] : memref<2x16x8xf32, #tpu.memory_space<vmem>>, vector<1x16x8xf32>
    %385 = vector.shape_cast %384 : vector<1x16x8xf32> to vector<16x8xf32>
    %386 = arith.truncf %2 : vector<8x16xf32> to vector<8x16xbf16>
    %387 = arith.truncf %385 : vector<16x8xf32> to vector<16x8xbf16>
    %cst_219 = arith.constant dense<0.000000e+00> : vector<8x8xf32>
    %388 = tpu.matmul %386, %387, %cst_219 {dimension_numbers = #tpu.dot_dimension_numbers<[1], [0], [0], [1], [0, 0, 1, 1], [], []>} : vector<8x16xbf16>, vector<16x8xbf16>, vector<8x8xf32> -> vector<8x8xf32>
    %c0_220 = arith.constant 0 : index
    %c0_221 = arith.constant 0 : index
    %c0_222 = arith.constant 0 : index
    %389 = vector.load %arg22[%c0_220, %c0_221, %c0_222] : memref<2x16x8xf32, #tpu.memory_space<vmem>>, vector<1x16x8xf32>
    %390 = vector.shape_cast %389 : vector<1x16x8xf32> to vector<16x8xf32>
    %391 = arith.truncf %2 : vector<8x16xf32> to vector<8x16xbf16>
    %392 = arith.truncf %390 : vector<16x8xf32> to vector<16x8xbf16>
    %cst_223 = arith.constant dense<0.000000e+00> : vector<8x8xf32>
    %393 = tpu.matmul %391, %392, %cst_223 {dimension_numbers = #tpu.dot_dimension_numbers<[1], [0], [0], [1], [0, 0, 1, 1], [], []>} : vector<8x16xbf16>, vector<16x8xbf16>, vector<8x8xf32> -> vector<8x8xf32>
    %c0_224 = arith.constant 0 : index
    %c0_225 = arith.constant 0 : index
    %c0_226 = arith.constant 0 : index
    %394 = vector.load %arg23[%c0_224, %c0_225, %c0_226] : memref<2x8x8xf32, #tpu.memory_space<vmem>>, vector<1x8x8xf32>
    %395 = vector.shape_cast %394 : vector<1x8x8xf32> to vector<8x8xf32>
    %396 = arith.truncf %209 : vector<64x8xf32> to vector<64x8xbf16>
    %397 = arith.truncf %395 : vector<8x8xf32> to vector<8x8xbf16>
    %cst_227 = arith.constant dense<0.000000e+00> : vector<64x8xf32>
    %398 = tpu.matmul %396, %397, %cst_227 {dimension_numbers = #tpu.dot_dimension_numbers<[1], [0], [0], [1], [0, 0, 1, 1], [], []>} : vector<64x8xbf16>, vector<8x8xbf16>, vector<64x8xf32> -> vector<64x8xf32>
    %399 = vector.shape_cast %398 : vector<64x8xf32> to vector<8x8x8xf32>
    %400 = vector.shape_cast %388 : vector<8x8xf32> to vector<8x1x8xf32>
    %401 = vector.broadcast %400 : vector<8x1x8xf32> to vector<8x8x8xf32>
    %402 = arith.addf %3, %401 : vector<8x8x8xf32>
    %403 = vector.shape_cast %393 : vector<8x8xf32> to vector<1x8x8xf32>
    %404 = vector.broadcast %403 : vector<1x8x8xf32> to vector<8x8x8xf32>
    %405 = arith.addf %402, %404 : vector<8x8x8xf32>
    %406 = arith.addf %405, %399 : vector<8x8x8xf32>
    %c0_228 = arith.constant 0 : index
    %c0_229 = arith.constant 0 : index
    %c0_230 = arith.constant 0 : index
    %407 = vector.load %arg24[%c0_228, %c0_229, %c0_230] : memref<2x1x8xf32, #tpu.memory_space<vmem>>, vector<1x1x8xf32>
    %408 = vector.shape_cast %407 : vector<1x1x8xf32> to vector<1x8xf32>
    %409 = vector.shape_cast %408 : vector<1x8xf32> to vector<1x1x8xf32>
    %410 = vector.broadcast %409 : vector<1x1x8xf32> to vector<8x8x8xf32>
    %411 = arith.addf %406, %410 : vector<8x8x8xf32>
    %c0_231 = arith.constant 0 : index
    %c0_232 = arith.constant 0 : index
    %c0_233 = arith.constant 0 : index
    %412 = vector.load %arg25[%c0_231, %c0_232, %c0_233] : memref<2x16x32xf32, #tpu.memory_space<vmem>>, vector<1x16x32xf32>
    %413 = vector.shape_cast %412 : vector<1x16x32xf32> to vector<16x32xf32>
    %414 = arith.truncf %180 : vector<8x16xf32> to vector<8x16xbf16>
    %415 = arith.truncf %413 : vector<16x32xf32> to vector<16x32xbf16>
    %cst_234 = arith.constant dense<0.000000e+00> : vector<8x32xf32>
    %416 = tpu.matmul %414, %415, %cst_234 {dimension_numbers = #tpu.dot_dimension_numbers<[1], [0], [0], [1], [0, 0, 1, 1], [], []>} : vector<8x16xbf16>, vector<16x32xbf16>, vector<8x32xf32> -> vector<8x32xf32>
    %c0_235 = arith.constant 0 : index
    %c0_236 = arith.constant 0 : index
    %c0_237 = arith.constant 0 : index
    %417 = vector.load %arg26[%c0_235, %c0_236, %c0_237] : memref<2x1x32xf32, #tpu.memory_space<vmem>>, vector<1x1x32xf32>
    %418 = vector.shape_cast %417 : vector<1x1x32xf32> to vector<1x32xf32>
    %419 = vector.broadcast %418 : vector<1x32xf32> to vector<8x32xf32>
    %420 = arith.addf %416, %419 : vector<8x32xf32>
    %c0_238 = arith.constant 0 : index
    %c0_239 = arith.constant 0 : index
    %c0_240 = arith.constant 0 : index
    %421 = vector.load %arg27[%c0_238, %c0_239, %c0_240] : memref<2x16x32xf32, #tpu.memory_space<vmem>>, vector<1x16x32xf32>
    %422 = vector.shape_cast %421 : vector<1x16x32xf32> to vector<16x32xf32>
    %423 = arith.truncf %383 : vector<8x16xf32> to vector<8x16xbf16>
    %424 = arith.truncf %422 : vector<16x32xf32> to vector<16x32xbf16>
    %cst_241 = arith.constant dense<0.000000e+00> : vector<8x32xf32>
    %425 = tpu.matmul %423, %424, %cst_241 {dimension_numbers = #tpu.dot_dimension_numbers<[1], [0], [0], [1], [0, 0, 1, 1], [], []>} : vector<8x16xbf16>, vector<16x32xbf16>, vector<8x32xf32> -> vector<8x32xf32>
    %c0_242 = arith.constant 0 : index
    %c0_243 = arith.constant 0 : index
    %c0_244 = arith.constant 0 : index
    %426 = vector.load %arg28[%c0_242, %c0_243, %c0_244] : memref<2x1x32xf32, #tpu.memory_space<vmem>>, vector<1x1x32xf32>
    %427 = vector.shape_cast %426 : vector<1x1x32xf32> to vector<1x32xf32>
    %428 = vector.broadcast %427 : vector<1x32xf32> to vector<8x32xf32>
    %429 = arith.addf %425, %428 : vector<8x32xf32>
    %430 = arith.truncf %4 : vector<8x8xf32> to vector<8x8xbf16>
    %431 = arith.truncf %420 : vector<8x32xf32> to vector<8x32xbf16>
    %cst_245 = arith.constant dense<0.000000e+00> : vector<8x32xf32>
    %432 = tpu.matmul %430, %431, %cst_245 {dimension_numbers = #tpu.dot_dimension_numbers<[1], [0], [0], [1], [0, 0, 1, 1], [], []>} : vector<8x8xbf16>, vector<8x32xbf16>, vector<8x32xf32> -> vector<8x32xf32>
    %433 = arith.truncf %5 : vector<8x8xf32> to vector<8x8xbf16>
    %434 = arith.truncf %429 : vector<8x32xf32> to vector<8x32xbf16>
    %cst_246 = arith.constant dense<0.000000e+00> : vector<8x32xf32>
    %435 = tpu.matmul %433, %434, %cst_246 {dimension_numbers = #tpu.dot_dimension_numbers<[1], [0], [0], [1], [0, 0, 1, 1], [], []>} : vector<8x8xbf16>, vector<8x32xbf16>, vector<8x32xf32> -> vector<8x32xf32>
    %cst_247 = arith.constant dense<0.000000e+00> : vector<8xf32>
    %436 = vector.multi_reduction <add>, %432, %cst_247 [1] : vector<8x32xf32> to vector<8xf32>
    %437 = vector.shape_cast %436 : vector<8xf32> to vector<8x1xf32>
    %438 = vector.shape_cast %432 : vector<8x32xf32> to vector<1x8x32xf32>
    %cst_248 = arith.constant dense<0.000000e+00> : vector<1x8xf32>
    %439 = vector.multi_reduction <add>, %438, %cst_248 [2] : vector<1x8x32xf32> to vector<1x8xf32>
    %cst_249 = arith.constant dense<0.000000e+00> : vector<8xf32>
    %440 = vector.multi_reduction <add>, %435, %cst_249 [1] : vector<8x32xf32> to vector<8xf32>
    %441 = vector.shape_cast %440 : vector<8xf32> to vector<8x1xf32>
    %442 = vector.shape_cast %435 : vector<8x32xf32> to vector<1x8x32xf32>
    %cst_250 = arith.constant dense<0.000000e+00> : vector<1x8xf32>
    %443 = vector.multi_reduction <add>, %442, %cst_250 [2] : vector<1x8x32xf32> to vector<1x8xf32>
    %444 = vector.broadcast %437 : vector<8x1xf32> to vector<8x8xf32>
    %445 = vector.broadcast %443 : vector<1x8xf32> to vector<8x8xf32>
    %446 = arith.addf %444, %445 : vector<8x8xf32>
    %cst_251 = arith.constant dense<0xFF800000> : vector<8xf32>
    %447 = vector.multi_reduction <maximumf>, %446, %cst_251 [1] : vector<8x8xf32> to vector<8xf32>
    %448 = vector.shape_cast %447 : vector<8xf32> to vector<8x1xf32>
    %449 = vector.broadcast %448 : vector<8x1xf32> to vector<8x8xf32>
    %450 = arith.subf %446, %449 : vector<8x8xf32>
    %451 = math.exp %450 : vector<8x8xf32>
    %cst_252 = arith.constant dense<0.000000e+00> : vector<8xf32>
    %452 = vector.multi_reduction <add>, %451, %cst_252 [1] : vector<8x8xf32> to vector<8xf32>
    %453 = vector.shape_cast %452 : vector<8xf32> to vector<8x1xf32>
    %454 = tpu.reciprocal %453 {approx = true} : vector<8x1xf32> -> vector<8x1xf32>
    %455 = vector.broadcast %454 : vector<8x1xf32> to vector<8x8xf32>
    %456 = arith.mulf %451, %455 : vector<8x8xf32>
    %457 = vector.broadcast %441 : vector<8x1xf32> to vector<8x8xf32>
    %458 = vector.broadcast %439 : vector<1x8xf32> to vector<8x8xf32>
    %459 = arith.addf %457, %458 : vector<8x8xf32>
    %cst_253 = arith.constant dense<0xFF800000> : vector<8xf32>
    %460 = vector.multi_reduction <maximumf>, %459, %cst_253 [1] : vector<8x8xf32> to vector<8xf32>
    %461 = vector.shape_cast %460 : vector<8xf32> to vector<8x1xf32>
    %462 = vector.broadcast %461 : vector<8x1xf32> to vector<8x8xf32>
    %463 = arith.subf %459, %462 : vector<8x8xf32>
    %464 = math.exp %463 : vector<8x8xf32>
    %cst_254 = arith.constant dense<0.000000e+00> : vector<8xf32>
    %465 = vector.multi_reduction <add>, %464, %cst_254 [1] : vector<8x8xf32> to vector<8xf32>
    %466 = vector.shape_cast %465 : vector<8xf32> to vector<8x1xf32>
    %467 = tpu.reciprocal %466 {approx = true} : vector<8x1xf32> -> vector<8x1xf32>
    %468 = vector.broadcast %467 : vector<8x1xf32> to vector<8x8xf32>
    %469 = arith.mulf %464, %468 : vector<8x8xf32>
    %470 = arith.truncf %456 : vector<8x8xf32> to vector<8x8xbf16>
    %471 = arith.truncf %429 : vector<8x32xf32> to vector<8x32xbf16>
    %cst_255 = arith.constant dense<0.000000e+00> : vector<8x32xf32>
    %472 = tpu.matmul %470, %471, %cst_255 {dimension_numbers = #tpu.dot_dimension_numbers<[1], [0], [0], [1], [0, 0, 1, 1], [], []>} : vector<8x8xbf16>, vector<8x32xbf16>, vector<8x32xf32> -> vector<8x32xf32>
    %c0_256 = arith.constant 0 : index
    %c0_257 = arith.constant 0 : index
    %c0_258 = arith.constant 0 : index
    %473 = vector.load %arg29[%c0_256, %c0_257, %c0_258] : memref<2x32x16xf32, #tpu.memory_space<vmem>>, vector<1x32x16xf32>
    %474 = vector.shape_cast %473 : vector<1x32x16xf32> to vector<32x16xf32>
    %475 = arith.truncf %472 : vector<8x32xf32> to vector<8x32xbf16>
    %476 = arith.truncf %474 : vector<32x16xf32> to vector<32x16xbf16>
    %cst_259 = arith.constant dense<0.000000e+00> : vector<8x16xf32>
    %477 = tpu.matmul %475, %476, %cst_259 {dimension_numbers = #tpu.dot_dimension_numbers<[1], [0], [0], [1], [0, 0, 1, 1], [], []>} : vector<8x32xbf16>, vector<32x16xbf16>, vector<8x16xf32> -> vector<8x16xf32>
    %c0_260 = arith.constant 0 : index
    %c0_261 = arith.constant 0 : index
    %c0_262 = arith.constant 0 : index
    %478 = vector.load %arg30[%c0_260, %c0_261, %c0_262] : memref<2x1x16xf32, #tpu.memory_space<vmem>>, vector<1x1x16xf32>
    %479 = vector.shape_cast %478 : vector<1x1x16xf32> to vector<1x16xf32>
    %480 = vector.broadcast %479 : vector<1x16xf32> to vector<8x16xf32>
    %481 = arith.addf %477, %480 : vector<8x16xf32>
    %482 = arith.truncf %469 : vector<8x8xf32> to vector<8x8xbf16>
    %483 = arith.truncf %420 : vector<8x32xf32> to vector<8x32xbf16>
    %cst_263 = arith.constant dense<0.000000e+00> : vector<8x32xf32>
    %484 = tpu.matmul %482, %483, %cst_263 {dimension_numbers = #tpu.dot_dimension_numbers<[1], [0], [0], [1], [0, 0, 1, 1], [], []>} : vector<8x8xbf16>, vector<8x32xbf16>, vector<8x32xf32> -> vector<8x32xf32>
    %c0_264 = arith.constant 0 : index
    %c0_265 = arith.constant 0 : index
    %c0_266 = arith.constant 0 : index
    %485 = vector.load %arg31[%c0_264, %c0_265, %c0_266] : memref<2x32x16xf32, #tpu.memory_space<vmem>>, vector<1x32x16xf32>
    %486 = vector.shape_cast %485 : vector<1x32x16xf32> to vector<32x16xf32>
    %487 = arith.truncf %484 : vector<8x32xf32> to vector<8x32xbf16>
    %488 = arith.truncf %486 : vector<32x16xf32> to vector<32x16xbf16>
    %cst_267 = arith.constant dense<0.000000e+00> : vector<8x16xf32>
    %489 = tpu.matmul %487, %488, %cst_267 {dimension_numbers = #tpu.dot_dimension_numbers<[1], [0], [0], [1], [0, 0, 1, 1], [], []>} : vector<8x32xbf16>, vector<32x16xbf16>, vector<8x16xf32> -> vector<8x16xf32>
    %c0_268 = arith.constant 0 : index
    %c0_269 = arith.constant 0 : index
    %c0_270 = arith.constant 0 : index
    %490 = vector.load %arg32[%c0_268, %c0_269, %c0_270] : memref<2x1x16xf32, #tpu.memory_space<vmem>>, vector<1x1x16xf32>
    %491 = vector.shape_cast %490 : vector<1x1x16xf32> to vector<1x16xf32>
    %492 = vector.broadcast %491 : vector<1x16xf32> to vector<8x16xf32>
    %493 = arith.addf %489, %492 : vector<8x16xf32>
    %494 = arith.addf %180, %481 : vector<8x16xf32>
    %495 = arith.addf %383, %493 : vector<8x16xf32>
    %cst_271 = arith.constant 0.000000e+00 : f32
    %496 = vector.broadcast %cst_271 : f32 to vector<8x16xf32>
    %c1_272 = arith.constant 1 : index
    %c0_273 = arith.constant 0 : index
    %c0_274 = arith.constant 0 : index
    %c0_275 = arith.constant 0 : index
    %497 = vector.load %arg7[%c1_272, %c0_273, %c0_274, %c0_275] : memref<2x4x1x16xf32, #tpu.memory_space<vmem>>, vector<1x1x1x16xf32>
    %498 = vector.shape_cast %497 : vector<1x1x1x16xf32> to vector<1x16xf32>
    %499 = vector.broadcast %498 : vector<1x16xf32> to vector<8x16xf32>
    %500 = arith.mulf %494, %499 : vector<8x16xf32>
    %cst_276 = arith.constant dense<0.000000e+00> : vector<8xf32>
    %501 = vector.multi_reduction <add>, %500, %cst_276 [1] : vector<8x16xf32> to vector<8xf32>
    %502 = vector.shape_cast %501 : vector<8xf32> to vector<8x1xf32>
    %503 = vector.shape_cast %494 : vector<8x16xf32> to vector<1x8x16xf32>
    %c1_277 = arith.constant 1 : index
    %c0_278 = arith.constant 0 : index
    %c0_279 = arith.constant 0 : index
    %c0_280 = arith.constant 0 : index
    %504 = vector.load %arg8[%c1_277, %c0_278, %c0_279, %c0_280] : memref<2x4x1x16xf32, #tpu.memory_space<vmem>>, vector<1x1x1x16xf32>
    %505 = vector.shape_cast %504 : vector<1x1x1x16xf32> to vector<1x16xf32>
    %506 = vector.shape_cast %505 : vector<1x16xf32> to vector<1x1x16xf32>
    %507 = vector.broadcast %506 : vector<1x1x16xf32> to vector<1x8x16xf32>
    %508 = arith.mulf %503, %507 : vector<1x8x16xf32>
    %cst_281 = arith.constant dense<0.000000e+00> : vector<1x8xf32>
    %509 = vector.multi_reduction <add>, %508, %cst_281 [2] : vector<1x8x16xf32> to vector<1x8xf32>
    %c1_282 = arith.constant 1 : index
    %c0_283 = arith.constant 0 : index
    %c0_284 = arith.constant 0 : index
    %c0_285 = arith.constant 0 : index
    %510 = vector.load %arg9[%c1_282, %c0_283, %c0_284, %c0_285] : memref<2x4x1x8xf32, #tpu.memory_space<vmem>>, vector<1x1x1x8xf32>
    %511 = vector.shape_cast %510 : vector<1x1x1x8xf32> to vector<1x8xf32>
    %512 = vector.shape_cast %511 : vector<1x8xf32> to vector<1x1x8xf32>
    %513 = vector.broadcast %512 : vector<1x1x8xf32> to vector<8x8x8xf32>
    %514 = arith.mulf %208, %513 : vector<8x8x8xf32>
    %cst_286 = arith.constant dense<0.000000e+00> : vector<8x8xf32>
    %515 = vector.multi_reduction <add>, %514, %cst_286 [2] : vector<8x8x8xf32> to vector<8x8xf32>
    %516 = vector.broadcast %502 : vector<8x1xf32> to vector<8x8xf32>
    %517 = vector.broadcast %509 : vector<1x8xf32> to vector<8x8xf32>
    %518 = arith.addf %516, %517 : vector<8x8xf32>
    %519 = arith.addf %518, %515 : vector<8x8xf32>
    %cst_287 = arith.constant dense<0xFF800000> : vector<8xf32>
    %520 = vector.multi_reduction <maximumf>, %519, %cst_287 [1] : vector<8x8xf32> to vector<8xf32>
    %521 = vector.shape_cast %520 : vector<8xf32> to vector<8x1xf32>
    %522 = vector.broadcast %521 : vector<8x1xf32> to vector<8x8xf32>
    %523 = arith.subf %519, %522 : vector<8x8xf32>
    %524 = math.exp %523 : vector<8x8xf32>
    %cst_288 = arith.constant dense<0.000000e+00> : vector<8xf32>
    %525 = vector.multi_reduction <add>, %524, %cst_288 [1] : vector<8x8xf32> to vector<8xf32>
    %526 = vector.shape_cast %525 : vector<8xf32> to vector<8x1xf32>
    %527 = tpu.reciprocal %526 {approx = true} : vector<8x1xf32> -> vector<8x1xf32>
    %528 = vector.broadcast %527 : vector<8x1xf32> to vector<8x8xf32>
    %529 = arith.mulf %524, %528 : vector<8x8xf32>
    %c1_289 = arith.constant 1 : index
    %c0_290 = arith.constant 0 : index
    %c0_291 = arith.constant 0 : index
    %c0_292 = arith.constant 0 : index
    %530 = vector.load %arg10[%c1_289, %c0_290, %c0_291, %c0_292] : memref<2x4x16x16xf32, #tpu.memory_space<vmem>>, vector<1x1x16x16xf32>
    %531 = vector.shape_cast %530 : vector<1x1x16x16xf32> to vector<16x16xf32>
    %532 = arith.truncf %494 : vector<8x16xf32> to vector<8x16xbf16>
    %533 = arith.truncf %531 : vector<16x16xf32> to vector<16x16xbf16>
    %cst_293 = arith.constant dense<0.000000e+00> : vector<8x16xf32>
    %534 = tpu.matmul %532, %533, %cst_293 {dimension_numbers = #tpu.dot_dimension_numbers<[1], [0], [0], [1], [0, 0, 1, 1], [], []>} : vector<8x16xbf16>, vector<16x16xbf16>, vector<8x16xf32> -> vector<8x16xf32>
    %535 = arith.truncf %529 : vector<8x8xf32> to vector<8x8xbf16>
    %536 = arith.truncf %534 : vector<8x16xf32> to vector<8x16xbf16>
    %cst_294 = arith.constant dense<0.000000e+00> : vector<8x16xf32>
    %537 = tpu.matmul %535, %536, %cst_294 {dimension_numbers = #tpu.dot_dimension_numbers<[1], [0], [0], [1], [0, 0, 1, 1], [], []>} : vector<8x8xbf16>, vector<8x16xbf16>, vector<8x16xf32> -> vector<8x16xf32>
    %538 = arith.addf %496, %537 : vector<8x16xf32>
    %c1_295 = arith.constant 1 : index
    %c1_296 = arith.constant 1 : index
    %c0_297 = arith.constant 0 : index
    %c0_298 = arith.constant 0 : index
    %539 = vector.load %arg7[%c1_295, %c1_296, %c0_297, %c0_298] : memref<2x4x1x16xf32, #tpu.memory_space<vmem>>, vector<1x1x1x16xf32>
    %540 = vector.shape_cast %539 : vector<1x1x1x16xf32> to vector<1x16xf32>
    %541 = vector.broadcast %540 : vector<1x16xf32> to vector<8x16xf32>
    %542 = arith.mulf %494, %541 : vector<8x16xf32>
    %cst_299 = arith.constant dense<0.000000e+00> : vector<8xf32>
    %543 = vector.multi_reduction <add>, %542, %cst_299 [1] : vector<8x16xf32> to vector<8xf32>
    %544 = vector.shape_cast %543 : vector<8xf32> to vector<8x1xf32>
    %545 = vector.shape_cast %494 : vector<8x16xf32> to vector<1x8x16xf32>
    %c1_300 = arith.constant 1 : index
    %c1_301 = arith.constant 1 : index
    %c0_302 = arith.constant 0 : index
    %c0_303 = arith.constant 0 : index
    %546 = vector.load %arg8[%c1_300, %c1_301, %c0_302, %c0_303] : memref<2x4x1x16xf32, #tpu.memory_space<vmem>>, vector<1x1x1x16xf32>
    %547 = vector.shape_cast %546 : vector<1x1x1x16xf32> to vector<1x16xf32>
    %548 = vector.shape_cast %547 : vector<1x16xf32> to vector<1x1x16xf32>
    %549 = vector.broadcast %548 : vector<1x1x16xf32> to vector<1x8x16xf32>
    %550 = arith.mulf %545, %549 : vector<1x8x16xf32>
    %cst_304 = arith.constant dense<0.000000e+00> : vector<1x8xf32>
    %551 = vector.multi_reduction <add>, %550, %cst_304 [2] : vector<1x8x16xf32> to vector<1x8xf32>
    %c1_305 = arith.constant 1 : index
    %c1_306 = arith.constant 1 : index
    %c0_307 = arith.constant 0 : index
    %c0_308 = arith.constant 0 : index
    %552 = vector.load %arg9[%c1_305, %c1_306, %c0_307, %c0_308] : memref<2x4x1x8xf32, #tpu.memory_space<vmem>>, vector<1x1x1x8xf32>
    %553 = vector.shape_cast %552 : vector<1x1x1x8xf32> to vector<1x8xf32>
    %554 = vector.shape_cast %553 : vector<1x8xf32> to vector<1x1x8xf32>
    %555 = vector.broadcast %554 : vector<1x1x8xf32> to vector<8x8x8xf32>
    %556 = arith.mulf %208, %555 : vector<8x8x8xf32>
    %cst_309 = arith.constant dense<0.000000e+00> : vector<8x8xf32>
    %557 = vector.multi_reduction <add>, %556, %cst_309 [2] : vector<8x8x8xf32> to vector<8x8xf32>
    %558 = vector.broadcast %544 : vector<8x1xf32> to vector<8x8xf32>
    %559 = vector.broadcast %551 : vector<1x8xf32> to vector<8x8xf32>
    %560 = arith.addf %558, %559 : vector<8x8xf32>
    %561 = arith.addf %560, %557 : vector<8x8xf32>
    %cst_310 = arith.constant dense<0xFF800000> : vector<8xf32>
    %562 = vector.multi_reduction <maximumf>, %561, %cst_310 [1] : vector<8x8xf32> to vector<8xf32>
    %563 = vector.shape_cast %562 : vector<8xf32> to vector<8x1xf32>
    %564 = vector.broadcast %563 : vector<8x1xf32> to vector<8x8xf32>
    %565 = arith.subf %561, %564 : vector<8x8xf32>
    %566 = math.exp %565 : vector<8x8xf32>
    %cst_311 = arith.constant dense<0.000000e+00> : vector<8xf32>
    %567 = vector.multi_reduction <add>, %566, %cst_311 [1] : vector<8x8xf32> to vector<8xf32>
    %568 = vector.shape_cast %567 : vector<8xf32> to vector<8x1xf32>
    %569 = tpu.reciprocal %568 {approx = true} : vector<8x1xf32> -> vector<8x1xf32>
    %570 = vector.broadcast %569 : vector<8x1xf32> to vector<8x8xf32>
    %571 = arith.mulf %566, %570 : vector<8x8xf32>
    %c1_312 = arith.constant 1 : index
    %c1_313 = arith.constant 1 : index
    %c0_314 = arith.constant 0 : index
    %c0_315 = arith.constant 0 : index
    %572 = vector.load %arg10[%c1_312, %c1_313, %c0_314, %c0_315] : memref<2x4x16x16xf32, #tpu.memory_space<vmem>>, vector<1x1x16x16xf32>
    %573 = vector.shape_cast %572 : vector<1x1x16x16xf32> to vector<16x16xf32>
    %574 = arith.truncf %494 : vector<8x16xf32> to vector<8x16xbf16>
    %575 = arith.truncf %573 : vector<16x16xf32> to vector<16x16xbf16>
    %cst_316 = arith.constant dense<0.000000e+00> : vector<8x16xf32>
    %576 = tpu.matmul %574, %575, %cst_316 {dimension_numbers = #tpu.dot_dimension_numbers<[1], [0], [0], [1], [0, 0, 1, 1], [], []>} : vector<8x16xbf16>, vector<16x16xbf16>, vector<8x16xf32> -> vector<8x16xf32>
    %577 = arith.truncf %571 : vector<8x8xf32> to vector<8x8xbf16>
    %578 = arith.truncf %576 : vector<8x16xf32> to vector<8x16xbf16>
    %cst_317 = arith.constant dense<0.000000e+00> : vector<8x16xf32>
    %579 = tpu.matmul %577, %578, %cst_317 {dimension_numbers = #tpu.dot_dimension_numbers<[1], [0], [0], [1], [0, 0, 1, 1], [], []>} : vector<8x8xbf16>, vector<8x16xbf16>, vector<8x16xf32> -> vector<8x16xf32>
    %580 = arith.addf %538, %579 : vector<8x16xf32>
    %c1_318 = arith.constant 1 : index
    %c2_319 = arith.constant 2 : index
    %c0_320 = arith.constant 0 : index
    %c0_321 = arith.constant 0 : index
    %581 = vector.load %arg7[%c1_318, %c2_319, %c0_320, %c0_321] : memref<2x4x1x16xf32, #tpu.memory_space<vmem>>, vector<1x1x1x16xf32>
    %582 = vector.shape_cast %581 : vector<1x1x1x16xf32> to vector<1x16xf32>
    %583 = vector.broadcast %582 : vector<1x16xf32> to vector<8x16xf32>
    %584 = arith.mulf %494, %583 : vector<8x16xf32>
    %cst_322 = arith.constant dense<0.000000e+00> : vector<8xf32>
    %585 = vector.multi_reduction <add>, %584, %cst_322 [1] : vector<8x16xf32> to vector<8xf32>
    %586 = vector.shape_cast %585 : vector<8xf32> to vector<8x1xf32>
    %587 = vector.shape_cast %494 : vector<8x16xf32> to vector<1x8x16xf32>
    %c1_323 = arith.constant 1 : index
    %c2_324 = arith.constant 2 : index
    %c0_325 = arith.constant 0 : index
    %c0_326 = arith.constant 0 : index
    %588 = vector.load %arg8[%c1_323, %c2_324, %c0_325, %c0_326] : memref<2x4x1x16xf32, #tpu.memory_space<vmem>>, vector<1x1x1x16xf32>
    %589 = vector.shape_cast %588 : vector<1x1x1x16xf32> to vector<1x16xf32>
    %590 = vector.shape_cast %589 : vector<1x16xf32> to vector<1x1x16xf32>
    %591 = vector.broadcast %590 : vector<1x1x16xf32> to vector<1x8x16xf32>
    %592 = arith.mulf %587, %591 : vector<1x8x16xf32>
    %cst_327 = arith.constant dense<0.000000e+00> : vector<1x8xf32>
    %593 = vector.multi_reduction <add>, %592, %cst_327 [2] : vector<1x8x16xf32> to vector<1x8xf32>
    %c1_328 = arith.constant 1 : index
    %c2_329 = arith.constant 2 : index
    %c0_330 = arith.constant 0 : index
    %c0_331 = arith.constant 0 : index
    %594 = vector.load %arg9[%c1_328, %c2_329, %c0_330, %c0_331] : memref<2x4x1x8xf32, #tpu.memory_space<vmem>>, vector<1x1x1x8xf32>
    %595 = vector.shape_cast %594 : vector<1x1x1x8xf32> to vector<1x8xf32>
    %596 = vector.shape_cast %595 : vector<1x8xf32> to vector<1x1x8xf32>
    %597 = vector.broadcast %596 : vector<1x1x8xf32> to vector<8x8x8xf32>
    %598 = arith.mulf %208, %597 : vector<8x8x8xf32>
    %cst_332 = arith.constant dense<0.000000e+00> : vector<8x8xf32>
    %599 = vector.multi_reduction <add>, %598, %cst_332 [2] : vector<8x8x8xf32> to vector<8x8xf32>
    %600 = vector.broadcast %586 : vector<8x1xf32> to vector<8x8xf32>
    %601 = vector.broadcast %593 : vector<1x8xf32> to vector<8x8xf32>
    %602 = arith.addf %600, %601 : vector<8x8xf32>
    %603 = arith.addf %602, %599 : vector<8x8xf32>
    %cst_333 = arith.constant dense<0xFF800000> : vector<8xf32>
    %604 = vector.multi_reduction <maximumf>, %603, %cst_333 [1] : vector<8x8xf32> to vector<8xf32>
    %605 = vector.shape_cast %604 : vector<8xf32> to vector<8x1xf32>
    %606 = vector.broadcast %605 : vector<8x1xf32> to vector<8x8xf32>
    %607 = arith.subf %603, %606 : vector<8x8xf32>
    %608 = math.exp %607 : vector<8x8xf32>
    %cst_334 = arith.constant dense<0.000000e+00> : vector<8xf32>
    %609 = vector.multi_reduction <add>, %608, %cst_334 [1] : vector<8x8xf32> to vector<8xf32>
    %610 = vector.shape_cast %609 : vector<8xf32> to vector<8x1xf32>
    %611 = tpu.reciprocal %610 {approx = true} : vector<8x1xf32> -> vector<8x1xf32>
    %612 = vector.broadcast %611 : vector<8x1xf32> to vector<8x8xf32>
    %613 = arith.mulf %608, %612 : vector<8x8xf32>
    %c1_335 = arith.constant 1 : index
    %c2_336 = arith.constant 2 : index
    %c0_337 = arith.constant 0 : index
    %c0_338 = arith.constant 0 : index
    %614 = vector.load %arg10[%c1_335, %c2_336, %c0_337, %c0_338] : memref<2x4x16x16xf32, #tpu.memory_space<vmem>>, vector<1x1x16x16xf32>
    %615 = vector.shape_cast %614 : vector<1x1x16x16xf32> to vector<16x16xf32>
    %616 = arith.truncf %494 : vector<8x16xf32> to vector<8x16xbf16>
    %617 = arith.truncf %615 : vector<16x16xf32> to vector<16x16xbf16>
    %cst_339 = arith.constant dense<0.000000e+00> : vector<8x16xf32>
    %618 = tpu.matmul %616, %617, %cst_339 {dimension_numbers = #tpu.dot_dimension_numbers<[1], [0], [0], [1], [0, 0, 1, 1], [], []>} : vector<8x16xbf16>, vector<16x16xbf16>, vector<8x16xf32> -> vector<8x16xf32>
    %619 = arith.truncf %613 : vector<8x8xf32> to vector<8x8xbf16>
    %620 = arith.truncf %618 : vector<8x16xf32> to vector<8x16xbf16>
    %cst_340 = arith.constant dense<0.000000e+00> : vector<8x16xf32>
    %621 = tpu.matmul %619, %620, %cst_340 {dimension_numbers = #tpu.dot_dimension_numbers<[1], [0], [0], [1], [0, 0, 1, 1], [], []>} : vector<8x8xbf16>, vector<8x16xbf16>, vector<8x16xf32> -> vector<8x16xf32>
    %622 = arith.addf %580, %621 : vector<8x16xf32>
    %c1_341 = arith.constant 1 : index
    %c3_342 = arith.constant 3 : index
    %c0_343 = arith.constant 0 : index
    %c0_344 = arith.constant 0 : index
    %623 = vector.load %arg7[%c1_341, %c3_342, %c0_343, %c0_344] : memref<2x4x1x16xf32, #tpu.memory_space<vmem>>, vector<1x1x1x16xf32>
    %624 = vector.shape_cast %623 : vector<1x1x1x16xf32> to vector<1x16xf32>
    %625 = vector.broadcast %624 : vector<1x16xf32> to vector<8x16xf32>
    %626 = arith.mulf %494, %625 : vector<8x16xf32>
    %cst_345 = arith.constant dense<0.000000e+00> : vector<8xf32>
    %627 = vector.multi_reduction <add>, %626, %cst_345 [1] : vector<8x16xf32> to vector<8xf32>
    %628 = vector.shape_cast %627 : vector<8xf32> to vector<8x1xf32>
    %629 = vector.shape_cast %494 : vector<8x16xf32> to vector<1x8x16xf32>
    %c1_346 = arith.constant 1 : index
    %c3_347 = arith.constant 3 : index
    %c0_348 = arith.constant 0 : index
    %c0_349 = arith.constant 0 : index
    %630 = vector.load %arg8[%c1_346, %c3_347, %c0_348, %c0_349] : memref<2x4x1x16xf32, #tpu.memory_space<vmem>>, vector<1x1x1x16xf32>
    %631 = vector.shape_cast %630 : vector<1x1x1x16xf32> to vector<1x16xf32>
    %632 = vector.shape_cast %631 : vector<1x16xf32> to vector<1x1x16xf32>
    %633 = vector.broadcast %632 : vector<1x1x16xf32> to vector<1x8x16xf32>
    %634 = arith.mulf %629, %633 : vector<1x8x16xf32>
    %cst_350 = arith.constant dense<0.000000e+00> : vector<1x8xf32>
    %635 = vector.multi_reduction <add>, %634, %cst_350 [2] : vector<1x8x16xf32> to vector<1x8xf32>
    %c1_351 = arith.constant 1 : index
    %c3_352 = arith.constant 3 : index
    %c0_353 = arith.constant 0 : index
    %c0_354 = arith.constant 0 : index
    %636 = vector.load %arg9[%c1_351, %c3_352, %c0_353, %c0_354] : memref<2x4x1x8xf32, #tpu.memory_space<vmem>>, vector<1x1x1x8xf32>
    %637 = vector.shape_cast %636 : vector<1x1x1x8xf32> to vector<1x8xf32>
    %638 = vector.shape_cast %637 : vector<1x8xf32> to vector<1x1x8xf32>
    %639 = vector.broadcast %638 : vector<1x1x8xf32> to vector<8x8x8xf32>
    %640 = arith.mulf %208, %639 : vector<8x8x8xf32>
    %cst_355 = arith.constant dense<0.000000e+00> : vector<8x8xf32>
    %641 = vector.multi_reduction <add>, %640, %cst_355 [2] : vector<8x8x8xf32> to vector<8x8xf32>
    %642 = vector.broadcast %628 : vector<8x1xf32> to vector<8x8xf32>
    %643 = vector.broadcast %635 : vector<1x8xf32> to vector<8x8xf32>
    %644 = arith.addf %642, %643 : vector<8x8xf32>
    %645 = arith.addf %644, %641 : vector<8x8xf32>
    %cst_356 = arith.constant dense<0xFF800000> : vector<8xf32>
    %646 = vector.multi_reduction <maximumf>, %645, %cst_356 [1] : vector<8x8xf32> to vector<8xf32>
    %647 = vector.shape_cast %646 : vector<8xf32> to vector<8x1xf32>
    %648 = vector.broadcast %647 : vector<8x1xf32> to vector<8x8xf32>
    %649 = arith.subf %645, %648 : vector<8x8xf32>
    %650 = math.exp %649 : vector<8x8xf32>
    %cst_357 = arith.constant dense<0.000000e+00> : vector<8xf32>
    %651 = vector.multi_reduction <add>, %650, %cst_357 [1] : vector<8x8xf32> to vector<8xf32>
    %652 = vector.shape_cast %651 : vector<8xf32> to vector<8x1xf32>
    %653 = tpu.reciprocal %652 {approx = true} : vector<8x1xf32> -> vector<8x1xf32>
    %654 = vector.broadcast %653 : vector<8x1xf32> to vector<8x8xf32>
    %655 = arith.mulf %650, %654 : vector<8x8xf32>
    %c1_358 = arith.constant 1 : index
    %c3_359 = arith.constant 3 : index
    %c0_360 = arith.constant 0 : index
    %c0_361 = arith.constant 0 : index
    %656 = vector.load %arg10[%c1_358, %c3_359, %c0_360, %c0_361] : memref<2x4x16x16xf32, #tpu.memory_space<vmem>>, vector<1x1x16x16xf32>
    %657 = vector.shape_cast %656 : vector<1x1x16x16xf32> to vector<16x16xf32>
    %658 = arith.truncf %494 : vector<8x16xf32> to vector<8x16xbf16>
    %659 = arith.truncf %657 : vector<16x16xf32> to vector<16x16xbf16>
    %cst_362 = arith.constant dense<0.000000e+00> : vector<8x16xf32>
    %660 = tpu.matmul %658, %659, %cst_362 {dimension_numbers = #tpu.dot_dimension_numbers<[1], [0], [0], [1], [0, 0, 1, 1], [], []>} : vector<8x16xbf16>, vector<16x16xbf16>, vector<8x16xf32> -> vector<8x16xf32>
    %661 = arith.truncf %655 : vector<8x8xf32> to vector<8x8xbf16>
    %662 = arith.truncf %660 : vector<8x16xf32> to vector<8x16xbf16>
    %cst_363 = arith.constant dense<0.000000e+00> : vector<8x16xf32>
    %663 = tpu.matmul %661, %662, %cst_363 {dimension_numbers = #tpu.dot_dimension_numbers<[1], [0], [0], [1], [0, 0, 1, 1], [], []>} : vector<8x8xbf16>, vector<8x16xbf16>, vector<8x16xf32> -> vector<8x16xf32>
    %664 = arith.addf %622, %663 : vector<8x16xf32>
    %665 = arith.addf %494, %664 : vector<8x16xf32>
    %c1_364 = arith.constant 1 : index
    %c0_365 = arith.constant 0 : index
    %c0_366 = arith.constant 0 : index
    %666 = vector.load %arg11[%c1_364, %c0_365, %c0_366] : memref<2x1x16xf32, #tpu.memory_space<vmem>>, vector<1x1x16xf32>
    %667 = vector.shape_cast %666 : vector<1x1x16xf32> to vector<1x16xf32>
    %668 = vector.broadcast %667 : vector<1x16xf32> to vector<8x16xf32>
    %669 = arith.addf %665, %668 : vector<8x16xf32>
    %cst_367 = arith.constant 0.000000e+00 : f32
    %670 = vector.broadcast %cst_367 : f32 to vector<8x16xf32>
    %c1_368 = arith.constant 1 : index
    %c0_369 = arith.constant 0 : index
    %c0_370 = arith.constant 0 : index
    %c0_371 = arith.constant 0 : index
    %671 = vector.load %arg16[%c1_368, %c0_369, %c0_370, %c0_371] : memref<2x4x1x16xf32, #tpu.memory_space<vmem>>, vector<1x1x1x16xf32>
    %672 = vector.shape_cast %671 : vector<1x1x1x16xf32> to vector<1x16xf32>
    %673 = vector.broadcast %672 : vector<1x16xf32> to vector<8x16xf32>
    %674 = arith.mulf %495, %673 : vector<8x16xf32>
    %cst_372 = arith.constant dense<0.000000e+00> : vector<8xf32>
    %675 = vector.multi_reduction <add>, %674, %cst_372 [1] : vector<8x16xf32> to vector<8xf32>
    %676 = vector.shape_cast %675 : vector<8xf32> to vector<8x1xf32>
    %677 = vector.shape_cast %495 : vector<8x16xf32> to vector<1x8x16xf32>
    %c1_373 = arith.constant 1 : index
    %c0_374 = arith.constant 0 : index
    %c0_375 = arith.constant 0 : index
    %c0_376 = arith.constant 0 : index
    %678 = vector.load %arg17[%c1_373, %c0_374, %c0_375, %c0_376] : memref<2x4x1x16xf32, #tpu.memory_space<vmem>>, vector<1x1x1x16xf32>
    %679 = vector.shape_cast %678 : vector<1x1x1x16xf32> to vector<1x16xf32>
    %680 = vector.shape_cast %679 : vector<1x16xf32> to vector<1x1x16xf32>
    %681 = vector.broadcast %680 : vector<1x1x16xf32> to vector<1x8x16xf32>
    %682 = arith.mulf %677, %681 : vector<1x8x16xf32>
    %cst_377 = arith.constant dense<0.000000e+00> : vector<1x8xf32>
    %683 = vector.multi_reduction <add>, %682, %cst_377 [2] : vector<1x8x16xf32> to vector<1x8xf32>
    %c1_378 = arith.constant 1 : index
    %c0_379 = arith.constant 0 : index
    %c0_380 = arith.constant 0 : index
    %c0_381 = arith.constant 0 : index
    %684 = vector.load %arg18[%c1_378, %c0_379, %c0_380, %c0_381] : memref<2x4x1x8xf32, #tpu.memory_space<vmem>>, vector<1x1x1x8xf32>
    %685 = vector.shape_cast %684 : vector<1x1x1x8xf32> to vector<1x8xf32>
    %686 = vector.shape_cast %685 : vector<1x8xf32> to vector<1x1x8xf32>
    %687 = vector.broadcast %686 : vector<1x1x8xf32> to vector<8x8x8xf32>
    %688 = arith.mulf %411, %687 : vector<8x8x8xf32>
    %cst_382 = arith.constant dense<0.000000e+00> : vector<8x8xf32>
    %689 = vector.multi_reduction <add>, %688, %cst_382 [2] : vector<8x8x8xf32> to vector<8x8xf32>
    %690 = vector.broadcast %676 : vector<8x1xf32> to vector<8x8xf32>
    %691 = vector.broadcast %683 : vector<1x8xf32> to vector<8x8xf32>
    %692 = arith.addf %690, %691 : vector<8x8xf32>
    %693 = arith.addf %692, %689 : vector<8x8xf32>
    %cst_383 = arith.constant dense<0xFF800000> : vector<8xf32>
    %694 = vector.multi_reduction <maximumf>, %693, %cst_383 [1] : vector<8x8xf32> to vector<8xf32>
    %695 = vector.shape_cast %694 : vector<8xf32> to vector<8x1xf32>
    %696 = vector.broadcast %695 : vector<8x1xf32> to vector<8x8xf32>
    %697 = arith.subf %693, %696 : vector<8x8xf32>
    %698 = math.exp %697 : vector<8x8xf32>
    %cst_384 = arith.constant dense<0.000000e+00> : vector<8xf32>
    %699 = vector.multi_reduction <add>, %698, %cst_384 [1] : vector<8x8xf32> to vector<8xf32>
    %700 = vector.shape_cast %699 : vector<8xf32> to vector<8x1xf32>
    %701 = tpu.reciprocal %700 {approx = true} : vector<8x1xf32> -> vector<8x1xf32>
    %702 = vector.broadcast %701 : vector<8x1xf32> to vector<8x8xf32>
    %703 = arith.mulf %698, %702 : vector<8x8xf32>
    %c1_385 = arith.constant 1 : index
    %c0_386 = arith.constant 0 : index
    %c0_387 = arith.constant 0 : index
    %c0_388 = arith.constant 0 : index
    %704 = vector.load %arg19[%c1_385, %c0_386, %c0_387, %c0_388] : memref<2x4x16x16xf32, #tpu.memory_space<vmem>>, vector<1x1x16x16xf32>
    %705 = vector.shape_cast %704 : vector<1x1x16x16xf32> to vector<16x16xf32>
    %706 = arith.truncf %495 : vector<8x16xf32> to vector<8x16xbf16>
    %707 = arith.truncf %705 : vector<16x16xf32> to vector<16x16xbf16>
    %cst_389 = arith.constant dense<0.000000e+00> : vector<8x16xf32>
    %708 = tpu.matmul %706, %707, %cst_389 {dimension_numbers = #tpu.dot_dimension_numbers<[1], [0], [0], [1], [0, 0, 1, 1], [], []>} : vector<8x16xbf16>, vector<16x16xbf16>, vector<8x16xf32> -> vector<8x16xf32>
    %709 = arith.truncf %703 : vector<8x8xf32> to vector<8x8xbf16>
    %710 = arith.truncf %708 : vector<8x16xf32> to vector<8x16xbf16>
    %cst_390 = arith.constant dense<0.000000e+00> : vector<8x16xf32>
    %711 = tpu.matmul %709, %710, %cst_390 {dimension_numbers = #tpu.dot_dimension_numbers<[1], [0], [0], [1], [0, 0, 1, 1], [], []>} : vector<8x8xbf16>, vector<8x16xbf16>, vector<8x16xf32> -> vector<8x16xf32>
    %712 = arith.addf %670, %711 : vector<8x16xf32>
    %c1_391 = arith.constant 1 : index
    %c1_392 = arith.constant 1 : index
    %c0_393 = arith.constant 0 : index
    %c0_394 = arith.constant 0 : index
    %713 = vector.load %arg16[%c1_391, %c1_392, %c0_393, %c0_394] : memref<2x4x1x16xf32, #tpu.memory_space<vmem>>, vector<1x1x1x16xf32>
    %714 = vector.shape_cast %713 : vector<1x1x1x16xf32> to vector<1x16xf32>
    %715 = vector.broadcast %714 : vector<1x16xf32> to vector<8x16xf32>
    %716 = arith.mulf %495, %715 : vector<8x16xf32>
    %cst_395 = arith.constant dense<0.000000e+00> : vector<8xf32>
    %717 = vector.multi_reduction <add>, %716, %cst_395 [1] : vector<8x16xf32> to vector<8xf32>
    %718 = vector.shape_cast %717 : vector<8xf32> to vector<8x1xf32>
    %719 = vector.shape_cast %495 : vector<8x16xf32> to vector<1x8x16xf32>
    %c1_396 = arith.constant 1 : index
    %c1_397 = arith.constant 1 : index
    %c0_398 = arith.constant 0 : index
    %c0_399 = arith.constant 0 : index
    %720 = vector.load %arg17[%c1_396, %c1_397, %c0_398, %c0_399] : memref<2x4x1x16xf32, #tpu.memory_space<vmem>>, vector<1x1x1x16xf32>
    %721 = vector.shape_cast %720 : vector<1x1x1x16xf32> to vector<1x16xf32>
    %722 = vector.shape_cast %721 : vector<1x16xf32> to vector<1x1x16xf32>
    %723 = vector.broadcast %722 : vector<1x1x16xf32> to vector<1x8x16xf32>
    %724 = arith.mulf %719, %723 : vector<1x8x16xf32>
    %cst_400 = arith.constant dense<0.000000e+00> : vector<1x8xf32>
    %725 = vector.multi_reduction <add>, %724, %cst_400 [2] : vector<1x8x16xf32> to vector<1x8xf32>
    %c1_401 = arith.constant 1 : index
    %c1_402 = arith.constant 1 : index
    %c0_403 = arith.constant 0 : index
    %c0_404 = arith.constant 0 : index
    %726 = vector.load %arg18[%c1_401, %c1_402, %c0_403, %c0_404] : memref<2x4x1x8xf32, #tpu.memory_space<vmem>>, vector<1x1x1x8xf32>
    %727 = vector.shape_cast %726 : vector<1x1x1x8xf32> to vector<1x8xf32>
    %728 = vector.shape_cast %727 : vector<1x8xf32> to vector<1x1x8xf32>
    %729 = vector.broadcast %728 : vector<1x1x8xf32> to vector<8x8x8xf32>
    %730 = arith.mulf %411, %729 : vector<8x8x8xf32>
    %cst_405 = arith.constant dense<0.000000e+00> : vector<8x8xf32>
    %731 = vector.multi_reduction <add>, %730, %cst_405 [2] : vector<8x8x8xf32> to vector<8x8xf32>
    %732 = vector.broadcast %718 : vector<8x1xf32> to vector<8x8xf32>
    %733 = vector.broadcast %725 : vector<1x8xf32> to vector<8x8xf32>
    %734 = arith.addf %732, %733 : vector<8x8xf32>
    %735 = arith.addf %734, %731 : vector<8x8xf32>
    %cst_406 = arith.constant dense<0xFF800000> : vector<8xf32>
    %736 = vector.multi_reduction <maximumf>, %735, %cst_406 [1] : vector<8x8xf32> to vector<8xf32>
    %737 = vector.shape_cast %736 : vector<8xf32> to vector<8x1xf32>
    %738 = vector.broadcast %737 : vector<8x1xf32> to vector<8x8xf32>
    %739 = arith.subf %735, %738 : vector<8x8xf32>
    %740 = math.exp %739 : vector<8x8xf32>
    %cst_407 = arith.constant dense<0.000000e+00> : vector<8xf32>
    %741 = vector.multi_reduction <add>, %740, %cst_407 [1] : vector<8x8xf32> to vector<8xf32>
    %742 = vector.shape_cast %741 : vector<8xf32> to vector<8x1xf32>
    %743 = tpu.reciprocal %742 {approx = true} : vector<8x1xf32> -> vector<8x1xf32>
    %744 = vector.broadcast %743 : vector<8x1xf32> to vector<8x8xf32>
    %745 = arith.mulf %740, %744 : vector<8x8xf32>
    %c1_408 = arith.constant 1 : index
    %c1_409 = arith.constant 1 : index
    %c0_410 = arith.constant 0 : index
    %c0_411 = arith.constant 0 : index
    %746 = vector.load %arg19[%c1_408, %c1_409, %c0_410, %c0_411] : memref<2x4x16x16xf32, #tpu.memory_space<vmem>>, vector<1x1x16x16xf32>
    %747 = vector.shape_cast %746 : vector<1x1x16x16xf32> to vector<16x16xf32>
    %748 = arith.truncf %495 : vector<8x16xf32> to vector<8x16xbf16>
    %749 = arith.truncf %747 : vector<16x16xf32> to vector<16x16xbf16>
    %cst_412 = arith.constant dense<0.000000e+00> : vector<8x16xf32>
    %750 = tpu.matmul %748, %749, %cst_412 {dimension_numbers = #tpu.dot_dimension_numbers<[1], [0], [0], [1], [0, 0, 1, 1], [], []>} : vector<8x16xbf16>, vector<16x16xbf16>, vector<8x16xf32> -> vector<8x16xf32>
    %751 = arith.truncf %745 : vector<8x8xf32> to vector<8x8xbf16>
    %752 = arith.truncf %750 : vector<8x16xf32> to vector<8x16xbf16>
    %cst_413 = arith.constant dense<0.000000e+00> : vector<8x16xf32>
    %753 = tpu.matmul %751, %752, %cst_413 {dimension_numbers = #tpu.dot_dimension_numbers<[1], [0], [0], [1], [0, 0, 1, 1], [], []>} : vector<8x8xbf16>, vector<8x16xbf16>, vector<8x16xf32> -> vector<8x16xf32>
    %754 = arith.addf %712, %753 : vector<8x16xf32>
    %c1_414 = arith.constant 1 : index
    %c2_415 = arith.constant 2 : index
    %c0_416 = arith.constant 0 : index
    %c0_417 = arith.constant 0 : index
    %755 = vector.load %arg16[%c1_414, %c2_415, %c0_416, %c0_417] : memref<2x4x1x16xf32, #tpu.memory_space<vmem>>, vector<1x1x1x16xf32>
    %756 = vector.shape_cast %755 : vector<1x1x1x16xf32> to vector<1x16xf32>
    %757 = vector.broadcast %756 : vector<1x16xf32> to vector<8x16xf32>
    %758 = arith.mulf %495, %757 : vector<8x16xf32>
    %cst_418 = arith.constant dense<0.000000e+00> : vector<8xf32>
    %759 = vector.multi_reduction <add>, %758, %cst_418 [1] : vector<8x16xf32> to vector<8xf32>
    %760 = vector.shape_cast %759 : vector<8xf32> to vector<8x1xf32>
    %761 = vector.shape_cast %495 : vector<8x16xf32> to vector<1x8x16xf32>
    %c1_419 = arith.constant 1 : index
    %c2_420 = arith.constant 2 : index
    %c0_421 = arith.constant 0 : index
    %c0_422 = arith.constant 0 : index
    %762 = vector.load %arg17[%c1_419, %c2_420, %c0_421, %c0_422] : memref<2x4x1x16xf32, #tpu.memory_space<vmem>>, vector<1x1x1x16xf32>
    %763 = vector.shape_cast %762 : vector<1x1x1x16xf32> to vector<1x16xf32>
    %764 = vector.shape_cast %763 : vector<1x16xf32> to vector<1x1x16xf32>
    %765 = vector.broadcast %764 : vector<1x1x16xf32> to vector<1x8x16xf32>
    %766 = arith.mulf %761, %765 : vector<1x8x16xf32>
    %cst_423 = arith.constant dense<0.000000e+00> : vector<1x8xf32>
    %767 = vector.multi_reduction <add>, %766, %cst_423 [2] : vector<1x8x16xf32> to vector<1x8xf32>
    %c1_424 = arith.constant 1 : index
    %c2_425 = arith.constant 2 : index
    %c0_426 = arith.constant 0 : index
    %c0_427 = arith.constant 0 : index
    %768 = vector.load %arg18[%c1_424, %c2_425, %c0_426, %c0_427] : memref<2x4x1x8xf32, #tpu.memory_space<vmem>>, vector<1x1x1x8xf32>
    %769 = vector.shape_cast %768 : vector<1x1x1x8xf32> to vector<1x8xf32>
    %770 = vector.shape_cast %769 : vector<1x8xf32> to vector<1x1x8xf32>
    %771 = vector.broadcast %770 : vector<1x1x8xf32> to vector<8x8x8xf32>
    %772 = arith.mulf %411, %771 : vector<8x8x8xf32>
    %cst_428 = arith.constant dense<0.000000e+00> : vector<8x8xf32>
    %773 = vector.multi_reduction <add>, %772, %cst_428 [2] : vector<8x8x8xf32> to vector<8x8xf32>
    %774 = vector.broadcast %760 : vector<8x1xf32> to vector<8x8xf32>
    %775 = vector.broadcast %767 : vector<1x8xf32> to vector<8x8xf32>
    %776 = arith.addf %774, %775 : vector<8x8xf32>
    %777 = arith.addf %776, %773 : vector<8x8xf32>
    %cst_429 = arith.constant dense<0xFF800000> : vector<8xf32>
    %778 = vector.multi_reduction <maximumf>, %777, %cst_429 [1] : vector<8x8xf32> to vector<8xf32>
    %779 = vector.shape_cast %778 : vector<8xf32> to vector<8x1xf32>
    %780 = vector.broadcast %779 : vector<8x1xf32> to vector<8x8xf32>
    %781 = arith.subf %777, %780 : vector<8x8xf32>
    %782 = math.exp %781 : vector<8x8xf32>
    %cst_430 = arith.constant dense<0.000000e+00> : vector<8xf32>
    %783 = vector.multi_reduction <add>, %782, %cst_430 [1] : vector<8x8xf32> to vector<8xf32>
    %784 = vector.shape_cast %783 : vector<8xf32> to vector<8x1xf32>
    %785 = tpu.reciprocal %784 {approx = true} : vector<8x1xf32> -> vector<8x1xf32>
    %786 = vector.broadcast %785 : vector<8x1xf32> to vector<8x8xf32>
    %787 = arith.mulf %782, %786 : vector<8x8xf32>
    %c1_431 = arith.constant 1 : index
    %c2_432 = arith.constant 2 : index
    %c0_433 = arith.constant 0 : index
    %c0_434 = arith.constant 0 : index
    %788 = vector.load %arg19[%c1_431, %c2_432, %c0_433, %c0_434] : memref<2x4x16x16xf32, #tpu.memory_space<vmem>>, vector<1x1x16x16xf32>
    %789 = vector.shape_cast %788 : vector<1x1x16x16xf32> to vector<16x16xf32>
    %790 = arith.truncf %495 : vector<8x16xf32> to vector<8x16xbf16>
    %791 = arith.truncf %789 : vector<16x16xf32> to vector<16x16xbf16>
    %cst_435 = arith.constant dense<0.000000e+00> : vector<8x16xf32>
    %792 = tpu.matmul %790, %791, %cst_435 {dimension_numbers = #tpu.dot_dimension_numbers<[1], [0], [0], [1], [0, 0, 1, 1], [], []>} : vector<8x16xbf16>, vector<16x16xbf16>, vector<8x16xf32> -> vector<8x16xf32>
    %793 = arith.truncf %787 : vector<8x8xf32> to vector<8x8xbf16>
    %794 = arith.truncf %792 : vector<8x16xf32> to vector<8x16xbf16>
    %cst_436 = arith.constant dense<0.000000e+00> : vector<8x16xf32>
    %795 = tpu.matmul %793, %794, %cst_436 {dimension_numbers = #tpu.dot_dimension_numbers<[1], [0], [0], [1], [0, 0, 1, 1], [], []>} : vector<8x8xbf16>, vector<8x16xbf16>, vector<8x16xf32> -> vector<8x16xf32>
    %796 = arith.addf %754, %795 : vector<8x16xf32>
    %c1_437 = arith.constant 1 : index
    %c3_438 = arith.constant 3 : index
    %c0_439 = arith.constant 0 : index
    %c0_440 = arith.constant 0 : index
    %797 = vector.load %arg16[%c1_437, %c3_438, %c0_439, %c0_440] : memref<2x4x1x16xf32, #tpu.memory_space<vmem>>, vector<1x1x1x16xf32>
    %798 = vector.shape_cast %797 : vector<1x1x1x16xf32> to vector<1x16xf32>
    %799 = vector.broadcast %798 : vector<1x16xf32> to vector<8x16xf32>
    %800 = arith.mulf %495, %799 : vector<8x16xf32>
    %cst_441 = arith.constant dense<0.000000e+00> : vector<8xf32>
    %801 = vector.multi_reduction <add>, %800, %cst_441 [1] : vector<8x16xf32> to vector<8xf32>
    %802 = vector.shape_cast %801 : vector<8xf32> to vector<8x1xf32>
    %803 = vector.shape_cast %495 : vector<8x16xf32> to vector<1x8x16xf32>
    %c1_442 = arith.constant 1 : index
    %c3_443 = arith.constant 3 : index
    %c0_444 = arith.constant 0 : index
    %c0_445 = arith.constant 0 : index
    %804 = vector.load %arg17[%c1_442, %c3_443, %c0_444, %c0_445] : memref<2x4x1x16xf32, #tpu.memory_space<vmem>>, vector<1x1x1x16xf32>
    %805 = vector.shape_cast %804 : vector<1x1x1x16xf32> to vector<1x16xf32>
    %806 = vector.shape_cast %805 : vector<1x16xf32> to vector<1x1x16xf32>
    %807 = vector.broadcast %806 : vector<1x1x16xf32> to vector<1x8x16xf32>
    %808 = arith.mulf %803, %807 : vector<1x8x16xf32>
    %cst_446 = arith.constant dense<0.000000e+00> : vector<1x8xf32>
    %809 = vector.multi_reduction <add>, %808, %cst_446 [2] : vector<1x8x16xf32> to vector<1x8xf32>
    %c1_447 = arith.constant 1 : index
    %c3_448 = arith.constant 3 : index
    %c0_449 = arith.constant 0 : index
    %c0_450 = arith.constant 0 : index
    %810 = vector.load %arg18[%c1_447, %c3_448, %c0_449, %c0_450] : memref<2x4x1x8xf32, #tpu.memory_space<vmem>>, vector<1x1x1x8xf32>
    %811 = vector.shape_cast %810 : vector<1x1x1x8xf32> to vector<1x8xf32>
    %812 = vector.shape_cast %811 : vector<1x8xf32> to vector<1x1x8xf32>
    %813 = vector.broadcast %812 : vector<1x1x8xf32> to vector<8x8x8xf32>
    %814 = arith.mulf %411, %813 : vector<8x8x8xf32>
    %cst_451 = arith.constant dense<0.000000e+00> : vector<8x8xf32>
    %815 = vector.multi_reduction <add>, %814, %cst_451 [2] : vector<8x8x8xf32> to vector<8x8xf32>
    %816 = vector.broadcast %802 : vector<8x1xf32> to vector<8x8xf32>
    %817 = vector.broadcast %809 : vector<1x8xf32> to vector<8x8xf32>
    %818 = arith.addf %816, %817 : vector<8x8xf32>
    %819 = arith.addf %818, %815 : vector<8x8xf32>
    %cst_452 = arith.constant dense<0xFF800000> : vector<8xf32>
    %820 = vector.multi_reduction <maximumf>, %819, %cst_452 [1] : vector<8x8xf32> to vector<8xf32>
    %821 = vector.shape_cast %820 : vector<8xf32> to vector<8x1xf32>
    %822 = vector.broadcast %821 : vector<8x1xf32> to vector<8x8xf32>
    %823 = arith.subf %819, %822 : vector<8x8xf32>
    %824 = math.exp %823 : vector<8x8xf32>
    %cst_453 = arith.constant dense<0.000000e+00> : vector<8xf32>
    %825 = vector.multi_reduction <add>, %824, %cst_453 [1] : vector<8x8xf32> to vector<8xf32>
    %826 = vector.shape_cast %825 : vector<8xf32> to vector<8x1xf32>
    %827 = tpu.reciprocal %826 {approx = true} : vector<8x1xf32> -> vector<8x1xf32>
    %828 = vector.broadcast %827 : vector<8x1xf32> to vector<8x8xf32>
    %829 = arith.mulf %824, %828 : vector<8x8xf32>
    %c1_454 = arith.constant 1 : index
    %c3_455 = arith.constant 3 : index
    %c0_456 = arith.constant 0 : index
    %c0_457 = arith.constant 0 : index
    %830 = vector.load %arg19[%c1_454, %c3_455, %c0_456, %c0_457] : memref<2x4x16x16xf32, #tpu.memory_space<vmem>>, vector<1x1x16x16xf32>
    %831 = vector.shape_cast %830 : vector<1x1x16x16xf32> to vector<16x16xf32>
    %832 = arith.truncf %495 : vector<8x16xf32> to vector<8x16xbf16>
    %833 = arith.truncf %831 : vector<16x16xf32> to vector<16x16xbf16>
    %cst_458 = arith.constant dense<0.000000e+00> : vector<8x16xf32>
    %834 = tpu.matmul %832, %833, %cst_458 {dimension_numbers = #tpu.dot_dimension_numbers<[1], [0], [0], [1], [0, 0, 1, 1], [], []>} : vector<8x16xbf16>, vector<16x16xbf16>, vector<8x16xf32> -> vector<8x16xf32>
    %835 = arith.truncf %829 : vector<8x8xf32> to vector<8x8xbf16>
    %836 = arith.truncf %834 : vector<8x16xf32> to vector<8x16xbf16>
    %cst_459 = arith.constant dense<0.000000e+00> : vector<8x16xf32>
    %837 = tpu.matmul %835, %836, %cst_459 {dimension_numbers = #tpu.dot_dimension_numbers<[1], [0], [0], [1], [0, 0, 1, 1], [], []>} : vector<8x8xbf16>, vector<8x16xbf16>, vector<8x16xf32> -> vector<8x16xf32>
    %838 = arith.addf %796, %837 : vector<8x16xf32>
    %839 = arith.addf %495, %838 : vector<8x16xf32>
    %c1_460 = arith.constant 1 : index
    %c0_461 = arith.constant 0 : index
    %c0_462 = arith.constant 0 : index
    %840 = vector.load %arg20[%c1_460, %c0_461, %c0_462] : memref<2x1x16xf32, #tpu.memory_space<vmem>>, vector<1x1x16xf32>
    %841 = vector.shape_cast %840 : vector<1x1x16xf32> to vector<1x16xf32>
    %842 = vector.broadcast %841 : vector<1x16xf32> to vector<8x16xf32>
    %843 = arith.addf %839, %842 : vector<8x16xf32>
    %c1_463 = arith.constant 1 : index
    %c0_464 = arith.constant 0 : index
    %c0_465 = arith.constant 0 : index
    %844 = vector.load %arg25[%c1_463, %c0_464, %c0_465] : memref<2x16x32xf32, #tpu.memory_space<vmem>>, vector<1x16x32xf32>
    %845 = vector.shape_cast %844 : vector<1x16x32xf32> to vector<16x32xf32>
    %846 = arith.truncf %669 : vector<8x16xf32> to vector<8x16xbf16>
    %847 = arith.truncf %845 : vector<16x32xf32> to vector<16x32xbf16>
    %cst_466 = arith.constant dense<0.000000e+00> : vector<8x32xf32>
    %848 = tpu.matmul %846, %847, %cst_466 {dimension_numbers = #tpu.dot_dimension_numbers<[1], [0], [0], [1], [0, 0, 1, 1], [], []>} : vector<8x16xbf16>, vector<16x32xbf16>, vector<8x32xf32> -> vector<8x32xf32>
    %c1_467 = arith.constant 1 : index
    %c0_468 = arith.constant 0 : index
    %c0_469 = arith.constant 0 : index
    %849 = vector.load %arg26[%c1_467, %c0_468, %c0_469] : memref<2x1x32xf32, #tpu.memory_space<vmem>>, vector<1x1x32xf32>
    %850 = vector.shape_cast %849 : vector<1x1x32xf32> to vector<1x32xf32>
    %851 = vector.broadcast %850 : vector<1x32xf32> to vector<8x32xf32>
    %852 = arith.addf %848, %851 : vector<8x32xf32>
    %c1_470 = arith.constant 1 : index
    %c0_471 = arith.constant 0 : index
    %c0_472 = arith.constant 0 : index
    %853 = vector.load %arg27[%c1_470, %c0_471, %c0_472] : memref<2x16x32xf32, #tpu.memory_space<vmem>>, vector<1x16x32xf32>
    %854 = vector.shape_cast %853 : vector<1x16x32xf32> to vector<16x32xf32>
    %855 = arith.truncf %843 : vector<8x16xf32> to vector<8x16xbf16>
    %856 = arith.truncf %854 : vector<16x32xf32> to vector<16x32xbf16>
    %cst_473 = arith.constant dense<0.000000e+00> : vector<8x32xf32>
    %857 = tpu.matmul %855, %856, %cst_473 {dimension_numbers = #tpu.dot_dimension_numbers<[1], [0], [0], [1], [0, 0, 1, 1], [], []>} : vector<8x16xbf16>, vector<16x32xbf16>, vector<8x32xf32> -> vector<8x32xf32>
    %c1_474 = arith.constant 1 : index
    %c0_475 = arith.constant 0 : index
    %c0_476 = arith.constant 0 : index
    %858 = vector.load %arg28[%c1_474, %c0_475, %c0_476] : memref<2x1x32xf32, #tpu.memory_space<vmem>>, vector<1x1x32xf32>
    %859 = vector.shape_cast %858 : vector<1x1x32xf32> to vector<1x32xf32>
    %860 = vector.broadcast %859 : vector<1x32xf32> to vector<8x32xf32>
    %861 = arith.addf %857, %860 : vector<8x32xf32>
    %862 = arith.truncf %4 : vector<8x8xf32> to vector<8x8xbf16>
    %863 = arith.truncf %852 : vector<8x32xf32> to vector<8x32xbf16>
    %cst_477 = arith.constant dense<0.000000e+00> : vector<8x32xf32>
    %864 = tpu.matmul %862, %863, %cst_477 {dimension_numbers = #tpu.dot_dimension_numbers<[1], [0], [0], [1], [0, 0, 1, 1], [], []>} : vector<8x8xbf16>, vector<8x32xbf16>, vector<8x32xf32> -> vector<8x32xf32>
    %865 = arith.truncf %5 : vector<8x8xf32> to vector<8x8xbf16>
    %866 = arith.truncf %861 : vector<8x32xf32> to vector<8x32xbf16>
    %cst_478 = arith.constant dense<0.000000e+00> : vector<8x32xf32>
    %867 = tpu.matmul %865, %866, %cst_478 {dimension_numbers = #tpu.dot_dimension_numbers<[1], [0], [0], [1], [0, 0, 1, 1], [], []>} : vector<8x8xbf16>, vector<8x32xbf16>, vector<8x32xf32> -> vector<8x32xf32>
    %868 = vector.shape_cast %864 : vector<8x32xf32> to vector<1x8x32xf32>
    %cst_479 = arith.constant dense<0.000000e+00> : vector<1x8xf32>
    %869 = vector.multi_reduction <add>, %868, %cst_479 [2] : vector<1x8x32xf32> to vector<1x8xf32>
    %cst_480 = arith.constant dense<0.000000e+00> : vector<8xf32>
    %870 = vector.multi_reduction <add>, %867, %cst_480 [1] : vector<8x32xf32> to vector<8xf32>
    %871 = vector.shape_cast %870 : vector<8xf32> to vector<8x1xf32>
    %872 = vector.broadcast %871 : vector<8x1xf32> to vector<8x8xf32>
    %873 = vector.broadcast %869 : vector<1x8xf32> to vector<8x8xf32>
    %874 = arith.addf %872, %873 : vector<8x8xf32>
    %cst_481 = arith.constant dense<0xFF800000> : vector<8xf32>
    %875 = vector.multi_reduction <maximumf>, %874, %cst_481 [1] : vector<8x8xf32> to vector<8xf32>
    %876 = vector.shape_cast %875 : vector<8xf32> to vector<8x1xf32>
    %877 = vector.broadcast %876 : vector<8x1xf32> to vector<8x8xf32>
    %878 = arith.subf %874, %877 : vector<8x8xf32>
    %879 = math.exp %878 : vector<8x8xf32>
    %cst_482 = arith.constant dense<0.000000e+00> : vector<8xf32>
    %880 = vector.multi_reduction <add>, %879, %cst_482 [1] : vector<8x8xf32> to vector<8xf32>
    %881 = vector.shape_cast %880 : vector<8xf32> to vector<8x1xf32>
    %882 = tpu.reciprocal %881 {approx = true} : vector<8x1xf32> -> vector<8x1xf32>
    %883 = vector.broadcast %882 : vector<8x1xf32> to vector<8x8xf32>
    %884 = arith.mulf %879, %883 : vector<8x8xf32>
    %885 = arith.truncf %884 : vector<8x8xf32> to vector<8x8xbf16>
    %886 = arith.truncf %852 : vector<8x32xf32> to vector<8x32xbf16>
    %cst_483 = arith.constant dense<0.000000e+00> : vector<8x32xf32>
    %887 = tpu.matmul %885, %886, %cst_483 {dimension_numbers = #tpu.dot_dimension_numbers<[1], [0], [0], [1], [0, 0, 1, 1], [], []>} : vector<8x8xbf16>, vector<8x32xbf16>, vector<8x32xf32> -> vector<8x32xf32>
    %c1_484 = arith.constant 1 : index
    %c0_485 = arith.constant 0 : index
    %c0_486 = arith.constant 0 : index
    %888 = vector.load %arg31[%c1_484, %c0_485, %c0_486] : memref<2x32x16xf32, #tpu.memory_space<vmem>>, vector<1x32x16xf32>
    %889 = vector.shape_cast %888 : vector<1x32x16xf32> to vector<32x16xf32>
    %890 = arith.truncf %887 : vector<8x32xf32> to vector<8x32xbf16>
    %891 = arith.truncf %889 : vector<32x16xf32> to vector<32x16xbf16>
    %cst_487 = arith.constant dense<0.000000e+00> : vector<8x16xf32>
    %892 = tpu.matmul %890, %891, %cst_487 {dimension_numbers = #tpu.dot_dimension_numbers<[1], [0], [0], [1], [0, 0, 1, 1], [], []>} : vector<8x32xbf16>, vector<32x16xbf16>, vector<8x16xf32> -> vector<8x16xf32>
    %c1_488 = arith.constant 1 : index
    %c0_489 = arith.constant 0 : index
    %c0_490 = arith.constant 0 : index
    %893 = vector.load %arg32[%c1_488, %c0_489, %c0_490] : memref<2x1x16xf32, #tpu.memory_space<vmem>>, vector<1x1x16xf32>
    %894 = vector.shape_cast %893 : vector<1x1x16xf32> to vector<1x16xf32>
    %895 = vector.broadcast %894 : vector<1x16xf32> to vector<8x16xf32>
    %896 = arith.addf %892, %895 : vector<8x16xf32>
    %897 = arith.addf %843, %896 : vector<8x16xf32>
    %c0_491 = arith.constant 0 : index
    %c0_492 = arith.constant 0 : index
    %898 = vector.load %arg6[%c0_491, %c0_492] : memref<1x8xf32, #tpu.memory_space<vmem>>, vector<1x8xf32>
    %899 = arith.truncf %898 : vector<1x8xf32> to vector<1x8xbf16>
    %900 = arith.truncf %897 : vector<8x16xf32> to vector<8x16xbf16>
    %cst_493 = arith.constant dense<0.000000e+00> : vector<1x16xf32>
    %901 = tpu.matmul %899, %900, %cst_493 {dimension_numbers = #tpu.dot_dimension_numbers<[1], [0], [0], [1], [0, 0, 1, 1], [], []>} : vector<1x8xbf16>, vector<8x16xbf16>, vector<1x16xf32> -> vector<1x16xf32>
    %c0_494 = arith.constant 0 : index
    %c0_495 = arith.constant 0 : index
    %902 = vector.load %arg33[%c0_494, %c0_495] : memref<16x32xf32, #tpu.memory_space<vmem>>, vector<16x32xf32>
    %903 = arith.truncf %901 : vector<1x16xf32> to vector<1x16xbf16>
    %904 = arith.truncf %902 : vector<16x32xf32> to vector<16x32xbf16>
    %cst_496 = arith.constant dense<0.000000e+00> : vector<1x32xf32>
    %905 = tpu.matmul %903, %904, %cst_496 {dimension_numbers = #tpu.dot_dimension_numbers<[1], [0], [0], [1], [0, 0, 1, 1], [], []>} : vector<1x16xbf16>, vector<16x32xbf16>, vector<1x32xf32> -> vector<1x32xf32>
    %c0_497 = arith.constant 0 : index
    %c0_498 = arith.constant 0 : index
    %906 = vector.load %arg34[%c0_497, %c0_498] : memref<1x32xf32, #tpu.memory_space<vmem>>, vector<1x32xf32>
    %907 = arith.addf %905, %906 : vector<1x32xf32>
    %cst_499 = arith.constant 0.000000e+00 : f32
    %908 = vector.broadcast %cst_499 : f32 to vector<1x32xf32>
    %909 = arith.maximumf %907, %908 : vector<1x32xf32>
    %c0_500 = arith.constant 0 : index
    %c0_501 = arith.constant 0 : index
    %910 = vector.load %arg35[%c0_500, %c0_501] : memref<32x1xf32, #tpu.memory_space<vmem>>, vector<32x1xf32>
    %911 = arith.truncf %909 : vector<1x32xf32> to vector<1x32xbf16>
    %912 = arith.truncf %910 : vector<32x1xf32> to vector<32x1xbf16>
    %cst_502 = arith.constant dense<0.000000e+00> : vector<1x1xf32>
    %913 = tpu.matmul %911, %912, %cst_502 {dimension_numbers = #tpu.dot_dimension_numbers<[1], [0], [0], [1], [0, 0, 1, 1], [], []>} : vector<1x32xbf16>, vector<32x1xbf16>, vector<1x1xf32> -> vector<1x1xf32>
    %c0_503 = arith.constant 0 : index
    %c0_504 = arith.constant 0 : index
    %914 = vector.load %arg36[%c0_503, %c0_504] : memref<1x1xf32, #tpu.memory_space<vmem>>, vector<1x1xf32>
    %915 = arith.addf %913, %914 : vector<1x1xf32>
    %c0_505 = arith.constant 0 : index
    %c0_506 = arith.constant 0 : index
    %916 = vector.load %arg37[%c0_505, %c0_506] : memref<1x1xf32, #tpu.memory_space<vmem>>, vector<1x1xf32>
    tpu.vector_store %arg37[%c0_505, %c0_506], %915 {strides = array<i32>} : memref<1x1xf32, #tpu.memory_space<vmem>>, vector<1x1xf32>,
    return
  }
}

</mosaic_0001>

<llo_original>
// kernel: tpu_custom_call.1
$region0: #{tpu_custom_call.1}
  #allocation0 [shape = 'u32[]', space=smem, size = 0x4, offset = 0x4, fixed_abs, tag = 'smem constant byte address 0x4 - core index']
  #allocation1 [shape = 'u32[144,128]{1,0:T(1,128)}', space=vmem, size = 0x12000, scoped, tag = 'internal scratch']
  #allocation2 [shape = 'f32[1,1]{1,0:T(1,128)S(1)}', space=vmem, size = 0x200, scoped, tag = 'scoped memory for tpu_custom_call.1']
  %s0 = inlined_call_operand.smem [shape: u32[38], index: -1, kind: input, shape index: {}]
  %s1 = sld [smem:[%s0]]
  %s2 = scalar_lea.smem %s0, 1
  %s3 = sld [smem:[%s2]]
  %s4 = scalar_lea.smem %s0, 2
  %s5 = sld [smem:[%s4]]
  %s6 = scalar_lea.smem %s0, 3
  %s7 = sld [smem:[%s6]]
  %s8 = scalar_lea.smem %s0, 4
  %s9 = sld [smem:[%s8]]
  %s10 = scalar_lea.smem %s0, 5
  %s11 = sld [smem:[%s10]]
  %s12 = scalar_lea.smem %s0, 6
  %s13 = sld [smem:[%s12]]
  %s14 = scalar_lea.smem %s0, 7
  %s15 = sld [smem:[%s14]]
  %s16 = scalar_lea.smem %s0, 8
  %s17 = sld [smem:[%s16]]
  %s18 = scalar_lea.smem %s0, 9
  %s19 = sld [smem:[%s18]]
  %s20 = scalar_lea.smem %s0, 10
  %s21 = sld [smem:[%s20]]
  %s22 = scalar_lea.smem %s0, 11
  %s23 = sld [smem:[%s22]]
  %s24 = scalar_lea.smem %s0, 12
  %s25 = sld [smem:[%s24]]
  %s26 = scalar_lea.smem %s0, 13
  %s27 = sld [smem:[%s26]]
  %s28 = scalar_lea.smem %s0, 14
  %s29 = sld [smem:[%s28]]
  %s30 = scalar_lea.smem %s0, 15
  %s31 = sld [smem:[%s30]]
  %s32 = scalar_lea.smem %s0, 16
  %s33 = sld [smem:[%s32]]
  %s34 = scalar_lea.smem %s0, 17
  %s35 = sld [smem:[%s34]]
  %s36 = scalar_lea.smem %s0, 18
  %s37 = sld [smem:[%s36]]
  %s38 = scalar_lea.smem %s0, 19
  %s39 = sld [smem:[%s38]]
  %s40 = scalar_lea.smem %s0, 20
  %s41 = sld [smem:[%s40]]
  %s42 = scalar_lea.smem %s0, 21
  %s43 = sld [smem:[%s42]]
  %s44 = scalar_lea.smem %s0, 22
  %s45 = sld [smem:[%s44]]
  %s46 = scalar_lea.smem %s0, 23
  %s47 = sld [smem:[%s46]]
  %s48 = scalar_lea.smem %s0, 24
  %s49 = sld [smem:[%s48]]
  %s50 = scalar_lea.smem %s0, 25
  %s51 = sld [smem:[%s50]]
  %s52 = scalar_lea.smem %s0, 26
  %s53 = sld [smem:[%s52]]
  %s54 = scalar_lea.smem %s0, 27
  %s55 = sld [smem:[%s54]]
  %s56 = scalar_lea.smem %s0, 28
  %s57 = sld [smem:[%s56]]
  %s58 = scalar_lea.smem %s0, 29
  %s59 = sld [smem:[%s58]]
  %s60 = scalar_lea.smem %s0, 30
  %s61 = sld [smem:[%s60]]
  %s62 = scalar_lea.smem %s0, 31
  %s63 = sld [smem:[%s62]]
  %s64 = scalar_lea.smem %s0, 32
  %s65 = sld [smem:[%s64]]
  %s66 = scalar_lea.smem %s0, 33
  %s67 = sld [smem:[%s66]]
  %s68 = scalar_lea.smem %s0, 34
  %s69 = sld [smem:[%s68]]
  %s70 = scalar_lea.smem %s0, 35
  %s71 = sld [smem:[%s70]]
  %s72 = scalar_lea.smem %s0, 36
  %s73 = sld [smem:[%s72]]
  %s74 = scalar_lea.smem %s0, 37
  %s75 = sld [smem:[%s74]]
  %s76 = sld [smem:[#allocation0]]
  $region238: #{tpu_custom_call.1} parent=0
    _
  %s78 = ssub.s32 1, %s76
  %s79 = scalar_select 0, %s78, %s76
  %v80 = vstv %s73
  %81 = vst [vmem:[#allocation2] sm:$0x1] %v80
  $region1: #{tpu_custom_call.1} parent=0
    #allocation3 [shape = 'u8[4096]{0}', space=vmem, size = 0x1000, scoped, tag = 'input window, operand 0, single buffered']
    #allocation4 [shape = 's32[1]{0}', space=sflag, size = 0x4, scoped, tag = 'scoped memory for tpu_custom_call.1']
    #allocation5 [shape = 's32[1]{0}', space=sflag, size = 0x4, scoped, tag = 'scoped memory for tpu_custom_call.1']
    #allocation6 [shape = 'u8[4096]{0}', space=vmem, size = 0x1000, scoped, tag = 'input window, operand 2, single buffered']
    #allocation7 [shape = 's32[1]{0}', space=sflag, size = 0x4, scoped, tag = 'scoped memory for tpu_custom_call.1']
    #allocation8 [shape = 'u8[4096]{0}', space=vmem, size = 0x1000, scoped, tag = 'input window, operand 4, single buffered']
    #allocation9 [shape = 'u8[4096]{0}', space=vmem, size = 0x1000, scoped, tag = 'input window, operand 5, single buffered']
    #allocation10 [shape = 's32[1]{0}', space=sflag, size = 0x4, scoped, tag = 'scoped memory for tpu_custom_call.1']
    #allocation11 [shape = 'u8[512]{0}', space=vmem, size = 0x400, scoped, tag = 'input window, operand 6, single buffered']
    #allocation12 [shape = 'u8[4096]{0}', space=vmem, size = 0x1000, scoped, tag = 'input window, operand 7, single buffered']
    #allocation13 [shape = 's32[1]{0}', space=sflag, size = 0x4, scoped, tag = 'scoped memory for tpu_custom_call.1']
    #allocation14 [shape = 'u8[4096]{0}', space=vmem, size = 0x1000, scoped, tag = 'input window, operand 8, single buffered']
    #allocation15 [shape = 'u8[4096]{0}', space=vmem, size = 0x1000, scoped, tag = 'input window, operand 9, single buffered']
    #allocation16 [shape = 's32[1]{0}', space=sflag, size = 0x4, scoped, tag = 'scoped memory for tpu_custom_call.1']
    #allocation17 [shape = 'u8[1024]{0}', space=vmem, size = 0x400, scoped, tag = 'input window, operand 11, single buffered']
    #allocation18 [shape = 'u8[8192]{0}', space=vmem, size = 0x2000, scoped, tag = 'input window, operand 14, single buffered']
    #allocation19 [shape = 's32[1]{0}', space=sflag, size = 0x4, scoped, tag = 'scoped memory for tpu_custom_call.1']
    #allocation20 [shape = 'u8[1024]{0}', space=vmem, size = 0x400, scoped, tag = 'input window, operand 15, single buffered']
    #allocation21 [shape = 'u8[4096]{0}', space=vmem, size = 0x1000, scoped, tag = 'input window, operand 16, single buffered']
    #allocation22 [shape = 's32[1]{0}', space=sflag, size = 0x4, scoped, tag = 'scoped memory for tpu_custom_call.1']
    #allocation23 [shape = 'u8[4096]{0}', space=vmem, size = 0x1000, scoped, tag = 'input window, operand 17, single buffered']
    #allocation24 [shape = 'u8[4096]{0}', space=vmem, size = 0x1000, scoped, tag = 'input window, operand 18, single buffered']
    #allocation25 [shape = 's32[1]{0}', space=sflag, size = 0x4, scoped, tag = 'scoped memory for tpu_custom_call.1']
    #allocation26 [shape = 'u8[8192]{0}', space=vmem, size = 0x2000, scoped, tag = 'input window, operand 23, single buffered']
    #allocation27 [shape = 'u8[1024]{0}', space=vmem, size = 0x400, scoped, tag = 'input window, operand 24, single buffered']
    #allocation28 [shape = 's32[1]{0}', space=sflag, size = 0x4, scoped, tag = 'scoped memory for tpu_custom_call.1']
    #allocation29 [shape = 'u8[16384]{0}', space=vmem, size = 0x4000, scoped, tag = 'input window, operand 25, single buffered']
    #allocation30 [shape = 'u8[1024]{0}', space=vmem, size = 0x400, scoped, tag = 'input window, operand 26, single buffered']
    #allocation31 [shape = 's32[1]{0}', space=sflag, size = 0x4, scoped, tag = 'scoped memory for tpu_custom_call.1']
    #allocation32 [shape = 'u8[16384]{0}', space=vmem, size = 0x4000, scoped, tag = 'input window, operand 27, single buffered']
    #allocation33 [shape = 'u8[1024]{0}', space=vmem, size = 0x400, scoped, tag = 'input window, operand 28, single buffered']
    #allocation34 [shape = 's32[1]{0}', space=sflag, size = 0x4, scoped, tag = 'scoped memory for tpu_custom_call.1']
    #allocation35 [shape = 'u8[512]{0}', space=vmem, size = 0x400, scoped, tag = 'output window, operand 0, single buffered']
    %82 = vsyncpa [#allocation4], 0
    %83 = vsyncpa [#allocation7], 0
    %84 = vsyncpa [#allocation10], 0
    %85 = vsyncpa [#allocation13], 0
    %86 = vsyncpa [#allocation16], 0
    %87 = vsyncpa [#allocation19], 0
    %88 = vsyncpa [#allocation22], 0
    %89 = vsyncpa [#allocation25], 0
    %90 = vsyncpa [#allocation28], 0
    %91 = vsyncpa [#allocation31], 0
    %92 = vsyncpa [#allocation34], 0
    %93 = vsyncpa [#allocation5], 0
    // Predicated region
    $region2: #{tpu_custom_call.1} parent=1 // pred_check
      _
    $region3: #{tpu_custom_call.1} parent=1 // pred_check_branch
      %95 = sbr.rel (0) target = $region5
    $region4: #{tpu_custom_call.1} parent=1 // pred_region
      %s97 = ssub.s32 128, 128
      %98 = vsyncadd [#allocation4], %s97
      %s100 = sshll.u32 [#allocation3], 4
      %s101 = int_to_ptr.vmem [resolvable:$true] %s100
      %103 = dma.hbm_to_vmem [thread:$0]  %s1, 128, %s101, [#allocation4]
    $region5: #{tpu_custom_call.1} parent=1 // pred_fallthru
      _
    // Predicated region
    $region6: #{tpu_custom_call.1} parent=1 // pred_check
      _
    $region7: #{tpu_custom_call.1} parent=1 // pred_check_branch
      %105 = sbr.rel (0) target = $region9
    $region8: #{tpu_custom_call.1} parent=1 // pred_region
      _
    $region9: #{tpu_custom_call.1} parent=1 // pred_fallthru
      _
    // Predicated region
    $region10: #{tpu_custom_call.1} parent=1 // pred_check
      _
    $region11: #{tpu_custom_call.1} parent=1 // pred_check_branch
      %107 = sbr.rel (0) target = $region13
    $region12: #{tpu_custom_call.1} parent=1 // pred_region
      %s109 = ssub.s32 128, 128
      %110 = vsyncadd [#allocation7], %s109
      %s112 = sshll.u32 [#allocation6], 4
      %s113 = int_to_ptr.vmem [resolvable:$true] %s112
      %115 = dma.hbm_to_vmem [thread:$0]  %s5, 128, %s113, [#allocation7]
    $region13: #{tpu_custom_call.1} parent=1 // pred_fallthru
      _
    // Predicated region
    $region14: #{tpu_custom_call.1} parent=1 // pred_check
      _
    $region15: #{tpu_custom_call.1} parent=1 // pred_check_branch
      %117 = sbr.rel (0) target = $region17
    $region16: #{tpu_custom_call.1} parent=1 // pred_region
      _
    $region17: #{tpu_custom_call.1} parent=1 // pred_fallthru
      _
    // Predicated region
    $region18: #{tpu_custom_call.1} parent=1 // pred_check
      _
    $region19: #{tpu_custom_call.1} parent=1 // pred_check_branch
      %119 = sbr.rel (0) target = $region21
    $region20: #{tpu_custom_call.1} parent=1 // pred_region
      %s121 = ssub.s32 128, 128
      %122 = vsyncadd [#allocation7], %s121
      %s124 = sshll.u32 [#allocation8], 4
      %s125 = int_to_ptr.vmem [resolvable:$true] %s124
      %127 = dma.hbm_to_vmem [thread:$0]  %s9, 128, %s125, [#allocation7]
    $region21: #{tpu_custom_call.1} parent=1 // pred_fallthru
      _
    // Predicated region
    $region22: #{tpu_custom_call.1} parent=1 // pred_check
      _
    $region23: #{tpu_custom_call.1} parent=1 // pred_check_branch
      %129 = sbr.rel (0) target = $region25
    $region24: #{tpu_custom_call.1} parent=1 // pred_region
      %s131 = ssub.s32 128, 128
      %132 = vsyncadd [#allocation10], %s131
      %s134 = sshll.u32 [#allocation9], 4
      %s135 = int_to_ptr.vmem [resolvable:$true] %s134
      %137 = dma.hbm_to_vmem [thread:$0]  %s11, 128, %s135, [#allocation10]
    $region25: #{tpu_custom_call.1} parent=1 // pred_fallthru
      _
    // Predicated region
    $region26: #{tpu_custom_call.1} parent=1 // pred_check
      _
    $region27: #{tpu_custom_call.1} parent=1 // pred_check_branch
      %139 = sbr.rel (0) target = $region29
    $region28: #{tpu_custom_call.1} parent=1 // pred_region
      %s141 = ssub.s32 16, 16
      %142 = vsyncadd [#allocation10], %s141
      %s144 = sshll.u32 [#allocation11], 4
      %s145 = int_to_ptr.vmem [resolvable:$true] %s144
      %147 = dma.hbm_to_vmem [thread:$0]  %s13, 16, %s145, [#allocation10]
    $region29: #{tpu_custom_call.1} parent=1 // pred_fallthru
      _
    // Predicated region
    $region30: #{tpu_custom_call.1} parent=1 // pred_check
      _
    $region31: #{tpu_custom_call.1} parent=1 // pred_check_branch
      %149 = sbr.rel (0) target = $region33
    $region32: #{tpu_custom_call.1} parent=1 // pred_region
      %s151 = ssub.s32 128, 128
      %152 = vsyncadd [#allocation13], %s151
      %s153 = sshll.u32 [#allocation12], 4
      %s154 = int_to_ptr.vmem [resolvable:$true] %s153
      %159 = dma.hbm_to_vmem [thread:$0]  %s15, 128, %s154, [#allocation13], 16, 16, 1
    $region33: #{tpu_custom_call.1} parent=1 // pred_fallthru
      _
    // Predicated region
    $region34: #{tpu_custom_call.1} parent=1 // pred_check
      _
    $region35: #{tpu_custom_call.1} parent=1 // pred_check_branch
      %161 = sbr.rel (0) target = $region37
    $region36: #{tpu_custom_call.1} parent=1 // pred_region
      %s163 = ssub.s32 128, 128
      %164 = vsyncadd [#allocation13], %s163
      %s165 = sshll.u32 [#allocation14], 4
      %s166 = int_to_ptr.vmem [resolvable:$true] %s165
      %171 = dma.hbm_to_vmem [thread:$0]  %s17, 128, %s166, [#allocation13], 16, 16, 1
    $region37: #{tpu_custom_call.1} parent=1 // pred_fallthru
      _
    // Predicated region
    $region38: #{tpu_custom_call.1} parent=1 // pred_check
      _
    $region39: #{tpu_custom_call.1} parent=1 // pred_check_branch
      %173 = sbr.rel (0) target = $region41
    $region40: #{tpu_custom_call.1} parent=1 // pred_region
      %s175 = ssub.s32 128, 128
      %176 = vsyncadd [#allocation16], %s175
      %s177 = sshll.u32 [#allocation15], 4
      %s178 = int_to_ptr.vmem [resolvable:$true] %s177
      %183 = dma.hbm_to_vmem [thread:$0]  %s19, 128, %s178, [#allocation16], 16, 16, 1
    $region41: #{tpu_custom_call.1} parent=1 // pred_fallthru
      _
    // Predicated region
    $region42: #{tpu_custom_call.1} parent=1 // pred_check
      _
    $region43: #{tpu_custom_call.1} parent=1 // pred_check_branch
      %185 = sbr.rel (0) target = $region45
    $region44: #{tpu_custom_call.1} parent=1 // pred_region
      _
    $region45: #{tpu_custom_call.1} parent=1 // pred_fallthru
      _
    // Predicated region
    $region46: #{tpu_custom_call.1} parent=1 // pred_check
      _
    $region47: #{tpu_custom_call.1} parent=1 // pred_check_branch
      %187 = sbr.rel (0) target = $region49
    $region48: #{tpu_custom_call.1} parent=1 // pred_region
      %s189 = ssub.s32 32, 32
      %190 = vsyncadd [#allocation16], %s189
      %s191 = sshll.u32 [#allocation17], 4
      %s192 = int_to_ptr.vmem [resolvable:$true] %s191
      %197 = dma.hbm_to_vmem [thread:$0]  %s23, 32, %s192, [#allocation16], 16, 16, 1
    $region49: #{tpu_custom_call.1} parent=1 // pred_fallthru
      _
    // Predicated region
    $region50: #{tpu_custom_call.1} parent=1 // pred_check
      _
    $region51: #{tpu_custom_call.1} parent=1 // pred_check_branch
      %199 = sbr.rel (0) target = $region53
    $region52: #{tpu_custom_call.1} parent=1 // pred_region
      _
    $region53: #{tpu_custom_call.1} parent=1 // pred_fallthru
      _
    // Predicated region
    $region54: #{tpu_custom_call.1} parent=1 // pred_check
      _
    $region55: #{tpu_custom_call.1} parent=1 // pred_check_branch
      %201 = sbr.rel (0) target = $region57
    $region56: #{tpu_custom_call.1} parent=1 // pred_region
      _
    $region57: #{tpu_custom_call.1} parent=1 // pred_fallthru
      _
    // Predicated region
    $region58: #{tpu_custom_call.1} parent=1 // pred_check
      _
    $region59: #{tpu_custom_call.1} parent=1 // pred_check_branch
      %203 = sbr.rel (0) target = $region61
    $region60: #{tpu_custom_call.1} parent=1 // pred_region
      %s205 = ssub.s32 256, 256
      %206 = vsyncadd [#allocation19], %s205
      %s207 = sshll.u32 [#allocation18], 4
      %s208 = int_to_ptr.vmem [resolvable:$true] %s207
      %213 = dma.hbm_to_vmem [thread:$0]  %s29, 256, %s208, [#allocation19], 128, 128, 8
    $region61: #{tpu_custom_call.1} parent=1 // pred_fallthru
      _
    // Predicated region
    $region62: #{tpu_custom_call.1} parent=1 // pred_check
      _
    $region63: #{tpu_custom_call.1} parent=1 // pred_check_branch
      %215 = sbr.rel (0) target = $region65
    $region64: #{tpu_custom_call.1} parent=1 // pred_region
      %s217 = ssub.s32 32, 32
      %218 = vsyncadd [#allocation19], %s217
      %s219 = sshll.u32 [#allocation20], 4
      %s220 = int_to_ptr.vmem [resolvable:$true] %s219
      %225 = dma.hbm_to_vmem [thread:$0]  %s31, 32, %s220, [#allocation19], 16, 16, 1
    $region65: #{tpu_custom_call.1} parent=1 // pred_fallthru
      _
    // Predicated region
    $region66: #{tpu_custom_call.1} parent=1 // pred_check
      _
    $region67: #{tpu_custom_call.1} parent=1 // pred_check_branch
      %227 = sbr.rel (0) target = $region69
    $region68: #{tpu_custom_call.1} parent=1 // pred_region
      %s229 = ssub.s32 128, 128
      %230 = vsyncadd [#allocation22], %s229
      %s231 = sshll.u32 [#allocation21], 4
      %s232 = int_to_ptr.vmem [resolvable:$true] %s231
      %237 = dma.hbm_to_vmem [thread:$0]  %s33, 128, %s232, [#allocation22], 16, 16, 1
    $region69: #{tpu_custom_call.1} parent=1 // pred_fallthru
      _
    // Predicated region
    $region70: #{tpu_custom_call.1} parent=1 // pred_check
      _
    $region71: #{tpu_custom_call.1} parent=1 // pred_check_branch
      %239 = sbr.rel (0) target = $region73
    $region72: #{tpu_custom_call.1} parent=1 // pred_region
      %s241 = ssub.s32 128, 128
      %242 = vsyncadd [#allocation22], %s241
      %s243 = sshll.u32 [#allocation23], 4
      %s244 = int_to_ptr.vmem [resolvable:$true] %s243
      %249 = dma.hbm_to_vmem [thread:$0]  %s35, 128, %s244, [#allocation22], 16, 16, 1
    $region73: #{tpu_custom_call.1} parent=1 // pred_fallthru
      _
    // Predicated region
    $region74: #{tpu_custom_call.1} parent=1 // pred_check
      _
    $region75: #{tpu_custom_call.1} parent=1 // pred_check_branch
      %251 = sbr.rel (0) target = $region77
    $region76: #{tpu_custom_call.1} parent=1 // pred_region
      %s253 = ssub.s32 128, 128
      %254 = vsyncadd [#allocation25], %s253
      %s255 = sshll.u32 [#allocation24], 4
      %s256 = int_to_ptr.vmem [resolvable:$true] %s255
      %261 = dma.hbm_to_vmem [thread:$0]  %s37, 128, %s256, [#allocation25], 16, 16, 1
    $region77: #{tpu_custom_call.1} parent=1 // pred_fallthru
      _
    // Predicated region
    $region78: #{tpu_custom_call.1} parent=1 // pred_check
      _
    $region79: #{tpu_custom_call.1} parent=1 // pred_check_branch
      %263 = sbr.rel (0) target = $region81
    $region80: #{tpu_custom_call.1} parent=1 // pred_region
      _
    $region81: #{tpu_custom_call.1} parent=1 // pred_fallthru
      _
    // Predicated region
    $region82: #{tpu_custom_call.1} parent=1 // pred_check
      _
    $region83: #{tpu_custom_call.1} parent=1 // pred_check_branch
      %265 = sbr.rel (0) target = $region85
    $region84: #{tpu_custom_call.1} parent=1 // pred_region
      _
    $region85: #{tpu_custom_call.1} parent=1 // pred_fallthru
      _
    // Predicated region
    $region86: #{tpu_custom_call.1} parent=1 // pred_check
      _
    $region87: #{tpu_custom_call.1} parent=1 // pred_check_branch
      %267 = sbr.rel (0) target = $region89
    $region88: #{tpu_custom_call.1} parent=1 // pred_region
      _
    $region89: #{tpu_custom_call.1} parent=1 // pred_fallthru
      _
    // Predicated region
    $region90: #{tpu_custom_call.1} parent=1 // pred_check
      _
    $region91: #{tpu_custom_call.1} parent=1 // pred_check_branch
      %269 = sbr.rel (0) target = $region93
    $region92: #{tpu_custom_call.1} parent=1 // pred_region
      _
    $region93: #{tpu_custom_call.1} parent=1 // pred_fallthru
      _
    // Predicated region
    $region94: #{tpu_custom_call.1} parent=1 // pred_check
      _
    $region95: #{tpu_custom_call.1} parent=1 // pred_check_branch
      %271 = sbr.rel (0) target = $region97
    $region96: #{tpu_custom_call.1} parent=1 // pred_region
      %s273 = ssub.s32 256, 256
      %274 = vsyncadd [#allocation25], %s273
      %s275 = sshll.u32 [#allocation26], 4
      %s276 = int_to_ptr.vmem [resolvable:$true] %s275
      %281 = dma.hbm_to_vmem [thread:$0]  %s47, 256, %s276, [#allocation25], 128, 128, 8
    $region97: #{tpu_custom_call.1} parent=1 // pred_fallthru
      _
    // Predicated region
    $region98: #{tpu_custom_call.1} parent=1 // pred_check
      _
    $region99: #{tpu_custom_call.1} parent=1 // pred_check_branch
      %283 = sbr.rel (0) target = $region101
    $region100: #{tpu_custom_call.1} parent=1 // pred_region
      %s285 = ssub.s32 32, 32
      %286 = vsyncadd [#allocation28], %s285
      %s287 = sshll.u32 [#allocation27], 4
      %s288 = int_to_ptr.vmem [resolvable:$true] %s287
      %293 = dma.hbm_to_vmem [thread:$0]  %s49, 32, %s288, [#allocation28], 16, 16, 1
    $region101: #{tpu_custom_call.1} parent=1 // pred_fallthru
      _
    // Predicated region
    $region102: #{tpu_custom_call.1} parent=1 // pred_check
      _
    $region103: #{tpu_custom_call.1} parent=1 // pred_check_branch
      %295 = sbr.rel (0) target = $region105
    $region104: #{tpu_custom_call.1} parent=1 // pred_region
      %s297 = ssub.s32 512, 512
      %298 = vsyncadd [#allocation28], %s297
      %s299 = sshll.u32 [#allocation29], 4
      %s300 = int_to_ptr.vmem [resolvable:$true] %s299
      %305 = dma.hbm_to_vmem [thread:$0]  %s51, 512, %s300, [#allocation28], 128, 128, 8
    $region105: #{tpu_custom_call.1} parent=1 // pred_fallthru
      _
    // Predicated region
    $region106: #{tpu_custom_call.1} parent=1 // pred_check
      _
    $region107: #{tpu_custom_call.1} parent=1 // pred_check_branch
      %307 = sbr.rel (0) target = $region109
    $region108: #{tpu_custom_call.1} parent=1 // pred_region
      %s309 = ssub.s32 32, 32
      %310 = vsyncadd [#allocation31], %s309
      %s311 = sshll.u32 [#allocation30], 4
      %s312 = int_to_ptr.vmem [resolvable:$true] %s311
      %317 = dma.hbm_to_vmem [thread:$0]  %s53, 32, %s312, [#allocation31], 16, 16, 1
    $region109: #{tpu_custom_call.1} parent=1 // pred_fallthru
      _
    // Predicated region
    $region110: #{tpu_custom_call.1} parent=1 // pred_check
      _
    $region111: #{tpu_custom_call.1} parent=1 // pred_check_branch
      %319 = sbr.rel (0) target = $region113
    $region112: #{tpu_custom_call.1} parent=1 // pred_region
      %s321 = ssub.s32 512, 512
      %322 = vsyncadd [#allocation31], %s321
      %s323 = sshll.u32 [#allocation32], 4
      %s324 = int_to_ptr.vmem [resolvable:$true] %s323
      %329 = dma.hbm_to_vmem [thread:$0]  %s55, 512, %s324, [#allocation31], 128, 128, 8
    $region113: #{tpu_custom_call.1} parent=1 // pred_fallthru
      _
    // Predicated region
    $region114: #{tpu_custom_call.1} parent=1 // pred_check
      _
    $region115: #{tpu_custom_call.1} parent=1 // pred_check_branch
      %331 = sbr.rel (0) target = $region117
    $region116: #{tpu_custom_call.1} parent=1 // pred_region
      %s333 = ssub.s32 32, 32
      %334 = vsyncadd [#allocation34], %s333
      %s335 = sshll.u32 [#allocation33], 4
      %s336 = int_to_ptr.vmem [resolvable:$true] %s335
      %341 = dma.hbm_to_vmem [thread:$0]  %s57, 32, %s336, [#allocation34], 16, 16, 1
    $region117: #{tpu_custom_call.1} parent=1 // pred_fallthru
      _
    // Predicated region
    $region118: #{tpu_custom_call.1} parent=1 // pred_check
      _
    $region119: #{tpu_custom_call.1} parent=1 // pred_check_branch
      %343 = sbr.rel (0) target = $region121
    $region120: #{tpu_custom_call.1} parent=1 // pred_region
      _
    $region121: #{tpu_custom_call.1} parent=1 // pred_fallthru
      _
    // Predicated region
    $region122: #{tpu_custom_call.1} parent=1 // pred_check
      _
    $region123: #{tpu_custom_call.1} parent=1 // pred_check_branch
      %345 = sbr.rel (0) target = $region125
    $region124: #{tpu_custom_call.1} parent=1 // pred_region
      _
    $region125: #{tpu_custom_call.1} parent=1 // pred_fallthru
      _
    // Predicated region
    $region126: #{tpu_custom_call.1} parent=1 // pred_check
      _
    $region127: #{tpu_custom_call.1} parent=1 // pred_check_branch
      %347 = sbr.rel (0) target = $region129
    $region128: #{tpu_custom_call.1} parent=1 // pred_region
      _
    $region129: #{tpu_custom_call.1} parent=1 // pred_fallthru
      _
    // Predicated region
    $region130: #{tpu_custom_call.1} parent=1 // pred_check
      _
    $region131: #{tpu_custom_call.1} parent=1 // pred_check_branch
      %349 = sbr.rel (0) target = $region133
    $region132: #{tpu_custom_call.1} parent=1 // pred_region
      _
    $region133: #{tpu_custom_call.1} parent=1 // pred_fallthru
      _
    // Predicated region
    $region134: #{tpu_custom_call.1} parent=1 // pred_check
      _
    $region135: #{tpu_custom_call.1} parent=1 // pred_check_branch
      %351 = sbr.rel (0) target = $region137
    $region136: #{tpu_custom_call.1} parent=1 // pred_region
      _
    $region137: #{tpu_custom_call.1} parent=1 // pred_fallthru
      _
    // Predicated region
    $region138: #{tpu_custom_call.1} parent=1 // pred_check
      _
    $region139: #{tpu_custom_call.1} parent=1 // pred_check_branch
      %353 = sbr.rel (0) target = $region141
    $region140: #{tpu_custom_call.1} parent=1 // pred_region
      _
    $region141: #{tpu_custom_call.1} parent=1 // pred_fallthru
      _
    // Predicated region
    $region142: #{tpu_custom_call.1} parent=1 // pred_check
      _
    $region143: #{tpu_custom_call.1} parent=1 // pred_check_branch
      %355 = sbr.rel (0) target = $region145
    $region144: #{tpu_custom_call.1} parent=1 // pred_region
      _
    $region145: #{tpu_custom_call.1} parent=1 // pred_fallthru
      _
    // Predicated region
    $region146: #{tpu_custom_call.1} parent=1 // pred_check
      _
    $region147: #{tpu_custom_call.1} parent=1 // pred_check_branch
      %357 = sbr.rel (0) target = $region149
    $region148: #{tpu_custom_call.1} parent=1 // pred_region
      _
    $region149: #{tpu_custom_call.1} parent=1 // pred_fallthru
      _
    // Predicated region
    $region150: #{tpu_custom_call.1} parent=1 // pred_check
      _
    $region151: #{tpu_custom_call.1} parent=1 // pred_check_branch
      %359 = sbr.rel (0) target = $region153
    $region152: #{tpu_custom_call.1} parent=1 // pred_region
      %360 = dma.done [#allocation4], 128
    $region153: #{tpu_custom_call.1} parent=1 // pred_fallthru
      _
    // Predicated region
    $region154: #{tpu_custom_call.1} parent=1 // pred_check
      _
    $region155: #{tpu_custom_call.1} parent=1 // pred_check_branch
      %362 = sbr.rel (0) target = $region157
    $region156: #{tpu_custom_call.1} parent=1 // pred_region
      %363 = dma.done [#allocation7], 128
    $region157: #{tpu_custom_call.1} parent=1 // pred_fallthru
      _
    // Predicated region
    $region158: #{tpu_custom_call.1} parent=1 // pred_check
      _
    $region159: #{tpu_custom_call.1} parent=1 // pred_check_branch
      %365 = sbr.rel (0) target = $region161
    $region160: #{tpu_custom_call.1} parent=1 // pred_region
      %366 = dma.done [#allocation7], 128
    $region161: #{tpu_custom_call.1} parent=1 // pred_fallthru
      _
    // Predicated region
    $region162: #{tpu_custom_call.1} parent=1 // pred_check
      _
    $region163: #{tpu_custom_call.1} parent=1 // pred_check_branch
      %368 = sbr.rel (0) target = $region165
    $region164: #{tpu_custom_call.1} parent=1 // pred_region
      %369 = dma.done [#allocation10], 128
    $region165: #{tpu_custom_call.1} parent=1 // pred_fallthru
      _
    // Predicated region
    $region166: #{tpu_custom_call.1} parent=1 // pred_check
      _
    $region167: #{tpu_custom_call.1} parent=1 // pred_check_branch
      %371 = sbr.rel (0) target = $region169
    $region168: #{tpu_custom_call.1} parent=1 // pred_region
      %372 = dma.done [#allocation10], 16
    $region169: #{tpu_custom_call.1} parent=1 // pred_fallthru
      _
    // Predicated region
    $region170: #{tpu_custom_call.1} parent=1 // pred_check
      _
    $region171: #{tpu_custom_call.1} parent=1 // pred_check_branch
      %374 = sbr.rel (0) target = $region173
    $region172: #{tpu_custom_call.1} parent=1 // pred_region
      %375 = dma.done [#allocation13], 128
    $region173: #{tpu_custom_call.1} parent=1 // pred_fallthru
      _
    // Predicated region
    $region174: #{tpu_custom_call.1} parent=1 // pred_check
      _
    $region175: #{tpu_custom_call.1} parent=1 // pred_check_branch
      %377 = sbr.rel (0) target = $region177
    $region176: #{tpu_custom_call.1} parent=1 // pred_region
      %378 = dma.done [#allocation13], 128
    $region177: #{tpu_custom_call.1} parent=1 // pred_fallthru
      _
    // Predicated region
    $region178: #{tpu_custom_call.1} parent=1 // pred_check
      _
    $region179: #{tpu_custom_call.1} parent=1 // pred_check_branch
      %380 = sbr.rel (0) target = $region181
    $region180: #{tpu_custom_call.1} parent=1 // pred_region
      %381 = dma.done [#allocation16], 128
    $region181: #{tpu_custom_call.1} parent=1 // pred_fallthru
      _
    // Predicated region
    $region182: #{tpu_custom_call.1} parent=1 // pred_check
      _
    $region183: #{tpu_custom_call.1} parent=1 // pred_check_branch
      %383 = sbr.rel (0) target = $region185
    $region184: #{tpu_custom_call.1} parent=1 // pred_region
      %384 = dma.done [#allocation16], 32
    $region185: #{tpu_custom_call.1} parent=1 // pred_fallthru
      _
    // Predicated region
    $region186: #{tpu_custom_call.1} parent=1 // pred_check
      _
    $region187: #{tpu_custom_call.1} parent=1 // pred_check_branch
      %386 = sbr.rel (0) target = $region189
    $region188: #{tpu_custom_call.1} parent=1 // pred_region
      %387 = dma.done [#allocation19], 256
    $region189: #{tpu_custom_call.1} parent=1 // pred_fallthru
      _
    // Predicated region
    $region190: #{tpu_custom_call.1} parent=1 // pred_check
      _
    $region191: #{tpu_custom_call.1} parent=1 // pred_check_branch
      %389 = sbr.rel (0) target = $region193
    $region192: #{tpu_custom_call.1} parent=1 // pred_region
      %390 = dma.done [#allocation19], 32
    $region193: #{tpu_custom_call.1} parent=1 // pred_fallthru
      _
    // Predicated region
    $region194: #{tpu_custom_call.1} parent=1 // pred_check
      _
    $region195: #{tpu_custom_call.1} parent=1 // pred_check_branch
      %392 = sbr.rel (0) target = $region197
    $region196: #{tpu_custom_call.1} parent=1 // pred_region
      %393 = dma.done [#allocation22], 128
    $region197: #{tpu_custom_call.1} parent=1 // pred_fallthru
      _
    // Predicated region
    $region198: #{tpu_custom_call.1} parent=1 // pred_check
      _
    $region199: #{tpu_custom_call.1} parent=1 // pred_check_branch
      %395 = sbr.rel (0) target = $region201
    $region200: #{tpu_custom_call.1} parent=1 // pred_region
      %396 = dma.done [#allocation22], 128
    $region201: #{tpu_custom_call.1} parent=1 // pred_fallthru
      _
    // Predicated region
    $region202: #{tpu_custom_call.1} parent=1 // pred_check
      _
    $region203: #{tpu_custom_call.1} parent=1 // pred_check_branch
      %398 = sbr.rel (0) target = $region205
    $region204: #{tpu_custom_call.1} parent=1 // pred_region
      %399 = dma.done [#allocation25], 128
    $region205: #{tpu_custom_call.1} parent=1 // pred_fallthru
      _
    // Predicated region
    $region206: #{tpu_custom_call.1} parent=1 // pred_check
      _
    $region207: #{tpu_custom_call.1} parent=1 // pred_check_branch
      %401 = sbr.rel (0) target = $region209
    $region208: #{tpu_custom_call.1} parent=1 // pred_region
      %402 = dma.done [#allocation25], 256
    $region209: #{tpu_custom_call.1} parent=1 // pred_fallthru
      _
    // Predicated region
    $region210: #{tpu_custom_call.1} parent=1 // pred_check
      _
    $region211: #{tpu_custom_call.1} parent=1 // pred_check_branch
      %404 = sbr.rel (0) target = $region213
    $region212: #{tpu_custom_call.1} parent=1 // pred_region
      %405 = dma.done [#allocation28], 32
    $region213: #{tpu_custom_call.1} parent=1 // pred_fallthru
      _
    // Predicated region
    $region214: #{tpu_custom_call.1} parent=1 // pred_check
      _
    $region215: #{tpu_custom_call.1} parent=1 // pred_check_branch
      %407 = sbr.rel (0) target = $region217
    $region216: #{tpu_custom_call.1} parent=1 // pred_region
      %408 = dma.done [#allocation28], 512
    $region217: #{tpu_custom_call.1} parent=1 // pred_fallthru
      _
    // Predicated region
    $region218: #{tpu_custom_call.1} parent=1 // pred_check
      _
    $region219: #{tpu_custom_call.1} parent=1 // pred_check_branch
      %410 = sbr.rel (0) target = $region221
    $region220: #{tpu_custom_call.1} parent=1 // pred_region
      %411 = dma.done [#allocation31], 32
    $region221: #{tpu_custom_call.1} parent=1 // pred_fallthru
      _
    // Predicated region
    $region222: #{tpu_custom_call.1} parent=1 // pred_check
      _
    $region223: #{tpu_custom_call.1} parent=1 // pred_check_branch
      %413 = sbr.rel (0) target = $region225
    $region224: #{tpu_custom_call.1} parent=1 // pred_region
      %414 = dma.done [#allocation31], 512
    $region225: #{tpu_custom_call.1} parent=1 // pred_fallthru
      _
    // Predicated region
    $region226: #{tpu_custom_call.1} parent=1 // pred_check
      _
    $region227: #{tpu_custom_call.1} parent=1 // pred_check_branch
      %416 = sbr.rel (0) target = $region229
    $region228: #{tpu_custom_call.1} parent=1 // pred_region
      %417 = dma.done [#allocation34], 32
    $region229: #{tpu_custom_call.1} parent=1 // pred_fallthru
      _
    %v419 = vld [vmem:[#allocation3] sm:$0xff]
    %v420 = vld [vmem:[%s3] sm:$0xff]
    %v421 = vld [vmem:[%s3 + $0x8] sm:$0xff]
    %v422 = vld [vmem:[%s3 + $0x10] sm:$0xff]
    %v423 = vld [vmem:[%s3 + $0x18] sm:$0xff]
    %v424 = vld [vmem:[%s3 + $0x20] sm:$0xff]
    %v425 = vld [vmem:[%s3 + $0x28] sm:$0xff]
    %v426 = vld [vmem:[%s3 + $0x30] sm:$0xff]
    %v427 = vld [vmem:[%s3 + $0x38] sm:$0xff]
    %v428 = vld [vmem:[#allocation6] sm:$0xff]
    %v429 = vld [vmem:[%s7] sm:$0xff]
    %v430 = vld [vmem:[%s7 + $0x8] sm:$0xff]
    %v431 = vld [vmem:[%s7 + $0x10] sm:$0xff]
    %v432 = vld [vmem:[%s7 + $0x18] sm:$0xff]
    %v433 = vld [vmem:[%s7 + $0x20] sm:$0xff]
    %v434 = vld [vmem:[%s7 + $0x28] sm:$0xff]
    %v435 = vld [vmem:[%s7 + $0x30] sm:$0xff]
    %v436 = vld [vmem:[%s7 + $0x38] sm:$0xff]
    %v437 = vld [vmem:[#allocation8] sm:$0xff]
    %v438 = vld [vmem:[#allocation9] sm:$0xff]
    %v439 = vld [vmem:[#allocation12] sm:$0x1]
    %v441 = vlaneseq
    %v442 = vshrl.u32 %v441, 7
    %v443 = vsub.s32 0, %v442
    %v444 = vrot.slane %v439, %v443
    %v446 = vmul.f32 %v419, %v444
    %vm447 = vcmask 130048
    %v448 = vsel %vm447, %v446, 0.0
    %449 = vadd.xlane.f32.xlu0 %v448
    %v450 = vpop.xlane.xlu0 %449
    %v451 = vld [vmem:[#allocation14] sm:$0x1]
    %v453 = vlaneseq
    %v454 = vshrl.u32 %v453, 7
    %v455 = vsub.s32 0, %v454
    %v456 = vrot.slane %v451, %v455
    %v458 = vmul.f32 %v419, %v456
    %v459 = vsel %vm447, %v458, 0.0
    %460 = vadd.xlane.f32.xlu0 %v459
    %v461 = vpop.xlane.xlu0 %460
    %v462 = vld [vmem:[#allocation15] sm:$0x1]
    %v464 = vlaneseq
    %v465 = vshrl.u32 %v464, 7
    %v466 = vsub.s32 0, %v465
    %v467 = vrot.slane %v462, %v466
    %v469 = vmul.f32 %v420, %v467
    %v470 = vmul.f32 %v421, %v467
    %v471 = vmul.f32 %v422, %v467
    %v472 = vmul.f32 %v423, %v467
    %v473 = vmul.f32 %v424, %v467
    %v474 = vmul.f32 %v425, %v467
    %v475 = vmul.f32 %v426, %v467
    %v476 = vmul.f32 %v427, %v467
    %vm477 = vcmask 64512
    %v478 = vsel %vm477, %v469, 0.0
    %479 = vadd.xlane.f32.xlu0 %v478
    %v480 = vpop.xlane.xlu0 %479
    %v481 = vsel %vm477, %v470, 0.0
    %482 = vadd.xlane.f32.xlu0 %v481
    %v483 = vpop.xlane.xlu0 %482
    %v484 = vsel %vm477, %v471, 0.0
    %485 = vadd.xlane.f32.xlu0 %v484
    %v486 = vpop.xlane.xlu0 %485
    %v487 = vsel %vm477, %v472, 0.0
    %488 = vadd.xlane.f32.xlu0 %v487
    %v489 = vpop.xlane.xlu0 %488
    %v490 = vsel %vm477, %v473, 0.0
    %491 = vadd.xlane.f32.xlu0 %v490
    %v492 = vpop.xlane.xlu0 %491
    %v493 = vsel %vm477, %v474, 0.0
    %494 = vadd.xlane.f32.xlu0 %v493
    %v495 = vpop.xlane.xlu0 %494
    %v496 = vsel %vm477, %v475, 0.0
    %497 = vadd.xlane.f32.xlu0 %v496
    %v498 = vpop.xlane.xlu0 %497
    %v499 = vsel %vm477, %v476, 0.0
    %500 = vadd.xlane.f32.xlu0 %v499
    %v501 = vpop.xlane.xlu0 %500
    %v503 = vlaneseq
    %v504 = vand.u32 %v503, 127
    %v505 = vlaneseq
    %v506 = vshrl.u32 %v505, 7
    %v507 = vsub.s32 %v504, %v506
    %v508 = vrot.slane %v461, %v507
    %vm509 = vcmask 1041409
    %vm510 = vcmask 1042434
    %v511 = vsel %vm510, %v508, %v508
    %vm512 = vcmask 1043459
    %v513 = vsel %vm512, %v508, %v511
    %vm514 = vcmask 1044484
    %v515 = vsel %vm514, %v508, %v513
    %vm516 = vcmask 1045509
    %v517 = vsel %vm516, %v508, %v515
    %vm518 = vcmask 1046534
    %v519 = vsel %vm518, %v508, %v517
    %vm520 = vcmask 1047559
    %v521 = vsel %vm520, %v508, %v519
    %v523 = vadd.f32 %v450, %v521
    %v532 = vlaneseq
    %v533 = vshrl.u32 %v532, 7
    %v534 = vsub.s32 %v504, %v533
    %v535 = vrot.slane %v480, %v534
    %v536 = vlaneseq
    %v537 = vshrl.u32 %v536, 7
    %v538 = vsub.s32 %v504, %v537
    %v539 = vrot.slane %v483, %v538
    %v540 = vlaneseq
    %v541 = vshrl.u32 %v540, 7
    %v542 = vsub.s32 %v504, %v541
    %v543 = vrot.slane %v486, %v542
    %v544 = vlaneseq
    %v545 = vshrl.u32 %v544, 7
    %v546 = vsub.s32 %v504, %v545
    %v547 = vrot.slane %v489, %v546
    %v548 = vlaneseq
    %v549 = vshrl.u32 %v548, 7
    %v550 = vsub.s32 %v504, %v549
    %v551 = vrot.slane %v492, %v550
    %v552 = vlaneseq
    %v553 = vshrl.u32 %v552, 7
    %v554 = vsub.s32 %v504, %v553
    %v555 = vrot.slane %v495, %v554
    %v556 = vlaneseq
    %v557 = vshrl.u32 %v556, 7
    %v558 = vsub.s32 %v504, %v557
    %v559 = vrot.slane %v498, %v558
    %v560 = vlaneseq
    %v561 = vshrl.u32 %v560, 7
    %v562 = vsub.s32 %v504, %v561
    %v563 = vrot.slane %v501, %v562
    %v564 = vsel %vm509, %v539, %v535
    %v565 = vsel %vm510, %v543, %v564
    %v566 = vsel %vm512, %v547, %v565
    %v567 = vsel %vm514, %v551, %v566
    %v568 = vsel %vm516, %v555, %v567
    %v569 = vsel %vm518, %v559, %v568
    %v570 = vsel %vm520, %v563, %v569
    %v572 = vadd.f32 %v523, %v570
    %v573 = vsel %vm477, %v572, -inf
    %574 = vmax.xlane.f32.xlu0 %v573
    %v575 = vpop.xlane.xlu0 %574
    %v576 = vsub.f32 %v572, %v575
    %v577 = vmul.f32 %v576, 1.442695
    %v578 = vpow.pop %v577
    %v579 = vsel %vm477, %v578, 0.0
    %580 = vadd.xlane.f32.xlu0 %v579
    %v581 = vpop.xlane.xlu0 %580
    %v582 = vrcp.pop %v581
    %v583 = vmul.f32 %v578, %v582
    %v584 = vld [vmem:[%s21] sm:$0xff]
    %v585 = vld [vmem:[%s21 + $0x8] sm:$0xff]
    %v586 = vpack.c.bf16 %v419, %v419
    %v587 = vpack.c.bf16 %v585, %v584
    %v589 = vsel %vm447, %v586, 0
    %591 = vmatprep.subr.bf16.mxu0 0
    %592 = vmatpush1.bf16.msra.mxu0 0
    %593 = vmatprep.subr.bf16.mxu0 0
    %594 = vmatpush1.bf16.msra.mxu0 0
    %595 = vmatprep.subr.bf16.mxu0 0
    %596 = vmatpush1.bf16.msra.mxu0 0
    %597 = vmatprep.subr.bf16.mxu0 0
    %598 = vmatpush1.bf16.msra.mxu0 0
    %599 = vmatprep.subr.bf16.mxu0 0
    %600 = vmatpush1.bf16.msra.mxu0 0
    %601 = vmatprep.subr.bf16.mxu0 0
    %602 = vmatpush1.bf16.msra.mxu0 0
    %603 = vmatprep.subr.bf16.mxu0 0
    %604 = vmatpush1.bf16.msra.mxu0 0
    %605 = vmatprep.subr.bf16.mxu0 0
    %606 = vmatpush1.bf16.msra.mxu0 %v587
    %607 = vmatprep.subr.bf16.mxu0 0
    %608 = vmatpush2.bf16.msra.mxu0 0
    %609 = vmatprep.subr.bf16.mxu0 0
    %610 = vmatpush2.bf16.msra.mxu0 0
    %611 = vmatprep.subr.bf16.mxu0 0
    %612 = vmatpush2.bf16.msra.mxu0 0
    %613 = vmatprep.subr.bf16.mxu0 0
    %614 = vmatpush2.bf16.msra.mxu0 0
    %615 = vmatprep.subr.bf16.mxu0 0
    %616 = vmatpush2.bf16.msra.mxu0 0
    %617 = vmatprep.subr.bf16.mxu0 0
    %618 = vmatpush2.bf16.msra.mxu0 0
    %619 = vmatprep.subr.bf16.mxu0 0
    %620 = vmatpush2.bf16.msra.mxu0 0
    %621 = vmatprep.subr.bf16.mxu0 0
    %622 = vmatpush2.bf16.msra.mxu0 0
    %623 = vmatprep.mubr.bf16.mxu0 0
    %624 = vmatmul.mubr.bf16.gmra.mxu0 %v589
    %v625 = vpop.f32.mrf.mxu0
    %v626 = vadd.f32 0.0, %v625
    %v627 = vpop.f32.mrf.mxu0
    %v628 = vpop.f32.mrf.mxu0
    %v629 = vpop.f32.mrf.mxu0
    %630 = vdwg.mxu0
    %v631 = vpack.c.bf16 %v583, %v583
    %v632 = vpack.c.bf16 %v626, %v626
    %s633 = scalar_lea.vmem [#allocation12], 1
    %v634 = vld [vmem:[%s633] sm:$0x1]
    %v636 = vlaneseq
    %v637 = vshrl.u32 %v636, 7
    %v638 = vsub.s32 0, %v637
    %v639 = vrot.slane %v634, %v638
    %v641 = vmul.f32 %v419, %v639
    %v642 = vsel %vm447, %v641, 0.0
    %643 = vadd.xlane.f32.xlu0 %v642
    %v644 = vpop.xlane.xlu0 %643
    %s645 = scalar_lea.vmem [#allocation14], 1
    %v646 = vld [vmem:[%s645] sm:$0x1]
    %v648 = vlaneseq
    %v649 = vshrl.u32 %v648, 7
    %v650 = vsub.s32 0, %v649
    %v651 = vrot.slane %v646, %v650
    %v653 = vmul.f32 %v419, %v651
    %v654 = vsel %vm447, %v653, 0.0
    %655 = vadd.xlane.f32.xlu0 %v654
    %v656 = vpop.xlane.xlu0 %655
    %s657 = scalar_lea.vmem [#allocation15], 1
    %v658 = vld [vmem:[%s657] sm:$0x1]
    %v660 = vlaneseq
    %v661 = vshrl.u32 %v660, 7
    %v662 = vsub.s32 0, %v661
    %v663 = vrot.slane %v658, %v662
    %v665 = vmul.f32 %v420, %v663
    %v666 = vmul.f32 %v421, %v663
    %v667 = vmul.f32 %v422, %v663
    %v668 = vmul.f32 %v423, %v663
    %v669 = vmul.f32 %v424, %v663
    %v670 = vmul.f32 %v425, %v663
    %v671 = vmul.f32 %v426, %v663
    %v672 = vmul.f32 %v427, %v663
    %v673 = vsel %vm477, %v665, 0.0
    %674 = vadd.xlane.f32.xlu0 %v673
    %v675 = vpop.xlane.xlu0 %674
    %v676 = vsel %vm477, %v666, 0.0
    %677 = vadd.xlane.f32.xlu0 %v676
    %v678 = vpop.xlane.xlu0 %677
    %v679 = vsel %vm477, %v667, 0.0
    %680 = vadd.xlane.f32.xlu0 %v679
    %v681 = vpop.xlane.xlu0 %680
    %v682 = vsel %vm477, %v668, 0.0
    %683 = vadd.xlane.f32.xlu0 %v682
    %v684 = vpop.xlane.xlu0 %683
    %v685 = vsel %vm477, %v669, 0.0
    %686 = vadd.xlane.f32.xlu0 %v685
    %v687 = vpop.xlane.xlu0 %686
    %v688 = vsel %vm477, %v670, 0.0
    %689 = vadd.xlane.f32.xlu0 %v688
    %v690 = vpop.xlane.xlu0 %689
    %v691 = vsel %vm477, %v671, 0.0
    %692 = vadd.xlane.f32.xlu0 %v691
    %v693 = vpop.xlane.xlu0 %692
    %v694 = vsel %vm477, %v672, 0.0
    %695 = vadd.xlane.f32.xlu0 %v694
    %v696 = vpop.xlane.xlu0 %695
    %v698 = vlaneseq
    %v699 = vshrl.u32 %v698, 7
    %v700 = vsub.s32 %v504, %v699
    %v701 = vrot.slane %v656, %v700
    %v702 = vsel %vm510, %v701, %v701
    %v703 = vsel %vm512, %v701, %v702
    %v704 = vsel %vm514, %v701, %v703
    %v705 = vsel %vm516, %v701, %v704
    %v706 = vsel %vm518, %v701, %v705
    %v707 = vsel %vm520, %v701, %v706
    %v709 = vadd.f32 %v644, %v707
    %v718 = vlaneseq
    %v719 = vshrl.u32 %v718, 7
    %v720 = vsub.s32 %v504, %v719
    %v721 = vrot.slane %v675, %v720
    %v722 = vlaneseq
    %v723 = vshrl.u32 %v722, 7
    %v724 = vsub.s32 %v504, %v723
    %v725 = vrot.slane %v678, %v724
    %v726 = vlaneseq
    %v727 = vshrl.u32 %v726, 7
    %v728 = vsub.s32 %v504, %v727
    %v729 = vrot.slane %v681, %v728
    %v730 = vlaneseq
    %v731 = vshrl.u32 %v730, 7
    %v732 = vsub.s32 %v504, %v731
    %v733 = vrot.slane %v684, %v732
    %v734 = vlaneseq
    %v735 = vshrl.u32 %v734, 7
    %v736 = vsub.s32 %v504, %v735
    %v737 = vrot.slane %v687, %v736
    %v738 = vlaneseq
    %v739 = vshrl.u32 %v738, 7
    %v740 = vsub.s32 %v504, %v739
    %v741 = vrot.slane %v690, %v740
    %v742 = vlaneseq
    %v743 = vshrl.u32 %v742, 7
    %v744 = vsub.s32 %v504, %v743
    %v745 = vrot.slane %v693, %v744
    %v746 = vlaneseq
    %v747 = vshrl.u32 %v746, 7
    %v748 = vsub.s32 %v504, %v747
    %v749 = vrot.slane %v696, %v748
    %v750 = vsel %vm509, %v725, %v721
    %v751 = vsel %vm510, %v729, %v750
    %v752 = vsel %vm512, %v733, %v751
    %v753 = vsel %vm514, %v737, %v752
    %v754 = vsel %vm516, %v741, %v753
    %v755 = vsel %vm518, %v745, %v754
    %v756 = vsel %vm520, %v749, %v755
    %v758 = vadd.f32 %v709, %v756
    %v759 = vsel %vm477, %v758, -inf
    %760 = vmax.xlane.f32.xlu0 %v759
    %v761 = vpop.xlane.xlu0 %760
    %v762 = vsub.f32 %v758, %v761
    %v763 = vmul.f32 %v762, 1.442695
    %v764 = vpow.pop %v763
    %v765 = vsel %vm477, %v764, 0.0
    %766 = vadd.xlane.f32.xlu0 %v765
    %v767 = vpop.xlane.xlu0 %766
    %v768 = vrcp.pop %v767
    %v769 = vmul.f32 %v764, %v768
    %s770 = scalar_lea.vmem %s21, 16
    %v771 = vld [vmem:[%s770] sm:$0xff]
    %v772 = vld [vmem:[%s770 + $0x8] sm:$0xff]
    %v773 = vpack.c.bf16 %v772, %v771
    %774 = vmatprep.subr.bf16.mxu0 0
    %775 = vmatpush1.bf16.msra.mxu0 0
    %776 = vmatprep.subr.bf16.mxu0 0
    %777 = vmatpush1.bf16.msra.mxu0 0
    %778 = vmatprep.subr.bf16.mxu0 0
    %779 = vmatpush1.bf16.msra.mxu0 0
    %780 = vmatprep.subr.bf16.mxu0 0
    %781 = vmatpush1.bf16.msra.mxu0 0
    %782 = vmatprep.subr.bf16.mxu0 0
    %783 = vmatpush1.bf16.msra.mxu0 0
    %784 = vmatprep.subr.bf16.mxu0 0
    %785 = vmatpush1.bf16.msra.mxu0 0
    %786 = vmatprep.subr.bf16.mxu0 0
    %787 = vmatpush1.bf16.msra.mxu0 0
    %788 = vmatprep.subr.bf16.mxu0 0
    %789 = vmatpush1.bf16.msra.mxu0 %v773
    %790 = vmatprep.subr.bf16.mxu0 0
    %791 = vmatpush2.bf16.msra.mxu0 0
    %792 = vmatprep.subr.bf16.mxu0 0
    %793 = vmatpush2.bf16.msra.mxu0 0
    %794 = vmatprep.subr.bf16.mxu0 0
    %795 = vmatpush2.bf16.msra.mxu0 0
    %796 = vmatprep.subr.bf16.mxu0 0
    %797 = vmatpush2.bf16.msra.mxu0 0
    %798 = vmatprep.subr.bf16.mxu0 0
    %799 = vmatpush2.bf16.msra.mxu0 0
    %800 = vmatprep.subr.bf16.mxu0 0
    %801 = vmatpush2.bf16.msra.mxu0 0
    %802 = vmatprep.subr.bf16.mxu0 0
    %803 = vmatpush2.bf16.msra.mxu0 0
    %804 = vmatprep.subr.bf16.mxu0 0
    %805 = vmatpush2.bf16.msra.mxu0 0
    %806 = vmatprep.mubr.bf16.mxu0 0
    %807 = vmatmul.mubr.bf16.gmra.mxu0 %v589
    %v808 = vpop.f32.mrf.mxu0
    %v809 = vadd.f32 0.0, %v808
    %v810 = vpop.f32.mrf.mxu0
    %v811 = vpop.f32.mrf.mxu0
    %v812 = vpop.f32.mrf.mxu0
    %813 = vdwg.mxu0
    %v814 = vpack.c.bf16 %v769, %v769
    %v815 = vpack.c.bf16 %v809, %v809
    %v817 = vsel %vm477, %v814, 0
    %vm819 = vcmask 1043456
    %v821 = vsel %vm819, %v815, 0
    %823 = vmatprep.subr.bf16.mxu0 0
    %824 = vmatpush1.bf16.msra.mxu0 0
    %825 = vmatprep.subr.bf16.mxu0 0
    %826 = vmatpush1.bf16.msra.mxu0 0
    %827 = vmatprep.subr.bf16.mxu0 0
    %828 = vmatpush1.bf16.msra.mxu0 0
    %829 = vmatprep.subr.bf16.mxu0 0
    %830 = vmatpush1.bf16.msra.mxu0 0
    %831 = vmatprep.subr.bf16.mxu0 0
    %832 = vmatpush1.bf16.msra.mxu0 0
    %833 = vmatprep.subr.bf16.mxu0 0
    %834 = vmatpush1.bf16.msra.mxu0 0
    %835 = vmatprep.subr.bf16.mxu0 0
    %836 = vmatpush1.bf16.msra.mxu0 0
    %837 = vmatprep.subr.bf16.mxu0 0
    %838 = vmatpush1.bf16.msra.mxu0 %v821
    %839 = vmatprep.subr.bf16.mxu0 0
    %840 = vmatpush2.bf16.msra.mxu0 0
    %841 = vmatprep.subr.bf16.mxu0 0
    %842 = vmatpush2.bf16.msra.mxu0 0
    %843 = vmatprep.subr.bf16.mxu0 0
    %844 = vmatpush2.bf16.msra.mxu0 0
    %845 = vmatprep.subr.bf16.mxu0 0
    %846 = vmatpush2.bf16.msra.mxu0 0
    %847 = vmatprep.subr.bf16.mxu0 0
    %848 = vmatpush2.bf16.msra.mxu0 0
    %849 = vmatprep.subr.bf16.mxu0 0
    %850 = vmatpush2.bf16.msra.mxu0 0
    %851 = vmatprep.subr.bf16.mxu0 0
    %852 = vmatpush2.bf16.msra.mxu0 0
    %853 = vmatprep.subr.bf16.mxu0 0
    %854 = vmatpush2.bf16.msra.mxu0 0
    %855 = vmatprep.mubr.bf16.mxu0 0
    %856 = vmatmul.mubr.bf16.gmra.mxu0 %v817
    %v857 = vpop.f32.mrf.mxu0
    %v858 = vadd.f32 0.0, %v857
    %v859 = vpop.f32.mrf.mxu0
    %v860 = vpop.f32.mrf.mxu0
    %v861 = vpop.f32.mrf.mxu0
    %862 = vdwg.mxu0
    %v864 = vsel %vm477, %v631, 0
    %v867 = vsel %vm819, %v632, 0
    %869 = vmatprep.subr.bf16.mxu0 0
    %870 = vmatpush1.bf16.msra.mxu0 0
    %871 = vmatprep.subr.bf16.mxu0 0
    %872 = vmatpush1.bf16.msra.mxu0 0
    %873 = vmatprep.subr.bf16.mxu0 0
    %874 = vmatpush1.bf16.msra.mxu0 0
    %875 = vmatprep.subr.bf16.mxu0 0
    %876 = vmatpush1.bf16.msra.mxu0 0
    %877 = vmatprep.subr.bf16.mxu0 0
    %878 = vmatpush1.bf16.msra.mxu0 0
    %879 = vmatprep.subr.bf16.mxu0 0
    %880 = vmatpush1.bf16.msra.mxu0 0
    %881 = vmatprep.subr.bf16.mxu0 0
    %882 = vmatpush1.bf16.msra.mxu0 0
    %883 = vmatprep.subr.bf16.mxu0 0
    %884 = vmatpush1.bf16.msra.mxu0 %v867
    %885 = vmatprep.subr.bf16.mxu0 0
    %886 = vmatpush2.bf16.msra.mxu0 0
    %887 = vmatprep.subr.bf16.mxu0 0
    %888 = vmatpush2.bf16.msra.mxu0 0
    %889 = vmatprep.subr.bf16.mxu0 0
    %890 = vmatpush2.bf16.msra.mxu0 0
    %891 = vmatprep.subr.bf16.mxu0 0
    %892 = vmatpush2.bf16.msra.mxu0 0
    %893 = vmatprep.subr.bf16.mxu0 0
    %894 = vmatpush2.bf16.msra.mxu0 0
    %895 = vmatprep.subr.bf16.mxu0 0
    %896 = vmatpush2.bf16.msra.mxu0 0
    %897 = vmatprep.subr.bf16.mxu0 0
    %898 = vmatpush2.bf16.msra.mxu0 0
    %899 = vmatprep.subr.bf16.mxu0 0
    %900 = vmatpush2.bf16.msra.mxu0 0
    %901 = vmatprep.mubr.bf16.mxu0 0
    %902 = vmatmul.mubr.bf16.gmra.mxu0 %v864
    %v903 = vpop.f32.mrf.mxu0
    %v904 = vadd.f32 %v858, %v903
    %v905 = vpop.f32.mrf.mxu0
    %v906 = vpop.f32.mrf.mxu0
    %v907 = vpop.f32.mrf.mxu0
    %908 = vdwg.mxu0
    %s909 = scalar_lea.vmem [#allocation12], 2
    %v910 = vld [vmem:[%s909] sm:$0x1]
    %v912 = vlaneseq
    %v913 = vshrl.u32 %v912, 7
    %v914 = vsub.s32 0, %v913
    %v915 = vrot.slane %v910, %v914
    %v917 = vmul.f32 %v419, %v915
    %v918 = vsel %vm447, %v917, 0.0
    %919 = vadd.xlane.f32.xlu0 %v918
    %v920 = vpop.xlane.xlu0 %919
    %s921 = scalar_lea.vmem [#allocation14], 2
    %v922 = vld [vmem:[%s921] sm:$0x1]
    %v924 = vlaneseq
    %v925 = vshrl.u32 %v924, 7
    %v926 = vsub.s32 0, %v925
    %v927 = vrot.slane %v922, %v926
    %v929 = vmul.f32 %v419, %v927
    %v930 = vsel %vm447, %v929, 0.0
    %931 = vadd.xlane.f32.xlu0 %v930
    %v932 = vpop.xlane.xlu0 %931
    %s933 = scalar_lea.vmem [#allocation15], 2
    %v934 = vld [vmem:[%s933] sm:$0x1]
    %v936 = vlaneseq
    %v937 = vshrl.u32 %v936, 7
    %v938 = vsub.s32 0, %v937
    %v939 = vrot.slane %v934, %v938
    %v941 = vmul.f32 %v420, %v939
    %v942 = vmul.f32 %v421, %v939
    %v943 = vmul.f32 %v422, %v939
    %v944 = vmul.f32 %v423, %v939
    %v945 = vmul.f32 %v424, %v939
    %v946 = vmul.f32 %v425, %v939
    %v947 = vmul.f32 %v426, %v939
    %v948 = vmul.f32 %v427, %v939
    %v949 = vsel %vm477, %v941, 0.0
    %950 = vadd.xlane.f32.xlu0 %v949
    %v951 = vpop.xlane.xlu0 %950
    %v952 = vsel %vm477, %v942, 0.0
    %953 = vadd.xlane.f32.xlu0 %v952
    %v954 = vpop.xlane.xlu0 %953
    %v955 = vsel %vm477, %v943, 0.0
    %956 = vadd.xlane.f32.xlu0 %v955
    %v957 = vpop.xlane.xlu0 %956
    %v958 = vsel %vm477, %v944, 0.0
    %959 = vadd.xlane.f32.xlu0 %v958
    %v960 = vpop.xlane.xlu0 %959
    %v961 = vsel %vm477, %v945, 0.0
    %962 = vadd.xlane.f32.xlu0 %v961
    %v963 = vpop.xlane.xlu0 %962
    %v964 = vsel %vm477, %v946, 0.0
    %965 = vadd.xlane.f32.xlu0 %v964
    %v966 = vpop.xlane.xlu0 %965
    %v967 = vsel %vm477, %v947, 0.0
    %968 = vadd.xlane.f32.xlu0 %v967
    %v969 = vpop.xlane.xlu0 %968
    %v970 = vsel %vm477, %v948, 0.0
    %971 = vadd.xlane.f32.xlu0 %v970
    %v972 = vpop.xlane.xlu0 %971
    %v974 = vlaneseq
    %v975 = vshrl.u32 %v974, 7
    %v976 = vsub.s32 %v504, %v975
    %v977 = vrot.slane %v932, %v976
    %v978 = vsel %vm510, %v977, %v977
    %v979 = vsel %vm512, %v977, %v978
    %v980 = vsel %vm514, %v977, %v979
    %v981 = vsel %vm516, %v977, %v980
    %v982 = vsel %vm518, %v977, %v981
    %v983 = vsel %vm520, %v977, %v982
    %v985 = vadd.f32 %v920, %v983
    %v994 = vlaneseq
    %v995 = vshrl.u32 %v994, 7
    %v996 = vsub.s32 %v504, %v995
    %v997 = vrot.slane %v951, %v996
    %v998 = vlaneseq
    %v999 = vshrl.u32 %v998, 7
    %v1000 = vsub.s32 %v504, %v999
    %v1001 = vrot.slane %v954, %v1000
    %v1002 = vlaneseq
    %v1003 = vshrl.u32 %v1002, 7
    %v1004 = vsub.s32 %v504, %v1003
    %v1005 = vrot.slane %v957, %v1004
    %v1006 = vlaneseq
    %v1007 = vshrl.u32 %v1006, 7
    %v1008 = vsub.s32 %v504, %v1007
    %v1009 = vrot.slane %v960, %v1008
    %v1010 = vlaneseq
    %v1011 = vshrl.u32 %v1010, 7
    %v1012 = vsub.s32 %v504, %v1011
    %v1013 = vrot.slane %v963, %v1012
    %v1014 = vlaneseq
    %v1015 = vshrl.u32 %v1014, 7
    %v1016 = vsub.s32 %v504, %v1015
    %v1017 = vrot.slane %v966, %v1016
    %v1018 = vlaneseq
    %v1019 = vshrl.u32 %v1018, 7
    %v1020 = vsub.s32 %v504, %v1019
    %v1021 = vrot.slane %v969, %v1020
    %v1022 = vlaneseq
    %v1023 = vshrl.u32 %v1022, 7
    %v1024 = vsub.s32 %v504, %v1023
    %v1025 = vrot.slane %v972, %v1024
    %v1026 = vsel %vm509, %v1001, %v997
    %v1027 = vsel %vm510, %v1005, %v1026
    %v1028 = vsel %vm512, %v1009, %v1027
    %v1029 = vsel %vm514, %v1013, %v1028
    %v1030 = vsel %vm516, %v1017, %v1029
    %v1031 = vsel %vm518, %v1021, %v1030
    %v1032 = vsel %vm520, %v1025, %v1031
    %v1034 = vadd.f32 %v985, %v1032
    %v1035 = vsel %vm477, %v1034, -inf
    %1036 = vmax.xlane.f32.xlu0 %v1035
    %v1037 = vpop.xlane.xlu0 %1036
    %v1038 = vsub.f32 %v1034, %v1037
    %v1039 = vmul.f32 %v1038, 1.442695
    %v1040 = vpow.pop %v1039
    %v1041 = vsel %vm477, %v1040, 0.0
    %1042 = vadd.xlane.f32.xlu0 %v1041
    %v1043 = vpop.xlane.xlu0 %1042
    %v1044 = vrcp.pop %v1043
    %v1045 = vmul.f32 %v1040, %v1044
    %s1046 = scalar_lea.vmem %s21, 32
    %v1047 = vld [vmem:[%s1046] sm:$0xff]
    %v1048 = vld [vmem:[%s1046 + $0x8] sm:$0xff]
    %v1049 = vpack.c.bf16 %v1048, %v1047
    %1050 = vmatprep.subr.bf16.mxu0 0
    %1051 = vmatpush1.bf16.msra.mxu0 0
    %1052 = vmatprep.subr.bf16.mxu0 0
    %1053 = vmatpush1.bf16.msra.mxu0 0
    %1054 = vmatprep.subr.bf16.mxu0 0
    %1055 = vmatpush1.bf16.msra.mxu0 0
    %1056 = vmatprep.subr.bf16.mxu0 0
    %1057 = vmatpush1.bf16.msra.mxu0 0
    %1058 = vmatprep.subr.bf16.mxu0 0
    %1059 = vmatpush1.bf16.msra.mxu0 0
    %1060 = vmatprep.subr.bf16.mxu0 0
    %1061 = vmatpush1.bf16.msra.mxu0 0
    %1062 = vmatprep.subr.bf16.mxu0 0
    %1063 = vmatpush1.bf16.msra.mxu0 0
    %1064 = vmatprep.subr.bf16.mxu0 0
    %1065 = vmatpush1.bf16.msra.mxu0 %v1049
    %1066 = vmatprep.subr.bf16.mxu0 0
    %1067 = vmatpush2.bf16.msra.mxu0 0
    %1068 = vmatprep.subr.bf16.mxu0 0
    %1069 = vmatpush2.bf16.msra.mxu0 0
    %1070 = vmatprep.subr.bf16.mxu0 0
    %1071 = vmatpush2.bf16.msra.mxu0 0
    %1072 = vmatprep.subr.bf16.mxu0 0
    %1073 = vmatpush2.bf16.msra.mxu0 0
    %1074 = vmatprep.subr.bf16.mxu0 0
    %1075 = vmatpush2.bf16.msra.mxu0 0
    %1076 = vmatprep.subr.bf16.mxu0 0
    %1077 = vmatpush2.bf16.msra.mxu0 0
    %1078 = vmatprep.subr.bf16.mxu0 0
    %1079 = vmatpush2.bf16.msra.mxu0 0
    %1080 = vmatprep.subr.bf16.mxu0 0
    %1081 = vmatpush2.bf16.msra.mxu0 0
    %1082 = vmatprep.mubr.bf16.mxu0 0
    %1083 = vmatmul.mubr.bf16.gmra.mxu0 %v589
    %v1084 = vpop.f32.mrf.mxu0
    %v1085 = vadd.f32 0.0, %v1084
    %v1086 = vpop.f32.mrf.mxu0
    %v1087 = vpop.f32.mrf.mxu0
    %v1088 = vpop.f32.mrf.mxu0
    %1089 = vdwg.mxu0
    %v1090 = vpack.c.bf16 %v1045, %v1045
    %v1091 = vpack.c.bf16 %v1085, %v1085
    %v1093 = vsel %vm477, %v1090, 0
    %v1096 = vsel %vm819, %v1091, 0
    %1098 = vmatprep.subr.bf16.mxu0 0
    %1099 = vmatpush1.bf16.msra.mxu0 0
    %1100 = vmatprep.subr.bf16.mxu0 0
    %1101 = vmatpush1.bf16.msra.mxu0 0
    %1102 = vmatprep.subr.bf16.mxu0 0
    %1103 = vmatpush1.bf16.msra.mxu0 0
    %1104 = vmatprep.subr.bf16.mxu0 0
    %1105 = vmatpush1.bf16.msra.mxu0 0
    %1106 = vmatprep.subr.bf16.mxu0 0
    %1107 = vmatpush1.bf16.msra.mxu0 0
    %1108 = vmatprep.subr.bf16.mxu0 0
    %1109 = vmatpush1.bf16.msra.mxu0 0
    %1110 = vmatprep.subr.bf16.mxu0 0
    %1111 = vmatpush1.bf16.msra.mxu0 0
    %1112 = vmatprep.subr.bf16.mxu0 0
    %1113 = vmatpush1.bf16.msra.mxu0 %v1096
    %1114 = vmatprep.subr.bf16.mxu0 0
    %1115 = vmatpush2.bf16.msra.mxu0 0
    %1116 = vmatprep.subr.bf16.mxu0 0
    %1117 = vmatpush2.bf16.msra.mxu0 0
    %1118 = vmatprep.subr.bf16.mxu0 0
    %1119 = vmatpush2.bf16.msra.mxu0 0
    %1120 = vmatprep.subr.bf16.mxu0 0
    %1121 = vmatpush2.bf16.msra.mxu0 0
    %1122 = vmatprep.subr.bf16.mxu0 0
    %1123 = vmatpush2.bf16.msra.mxu0 0
    %1124 = vmatprep.subr.bf16.mxu0 0
    %1125 = vmatpush2.bf16.msra.mxu0 0
    %1126 = vmatprep.subr.bf16.mxu0 0
    %1127 = vmatpush2.bf16.msra.mxu0 0
    %1128 = vmatprep.subr.bf16.mxu0 0
    %1129 = vmatpush2.bf16.msra.mxu0 0
    %1130 = vmatprep.mubr.bf16.mxu0 0
    %1131 = vmatmul.mubr.bf16.gmra.mxu0 %v1093
    %v1132 = vpop.f32.mrf.mxu0
    %v1133 = vadd.f32 0.0, %v1132
    %v1134 = vpop.f32.mrf.mxu0
    %v1135 = vpop.f32.mrf.mxu0
    %v1136 = vpop.f32.mrf.mxu0
    %1137 = vdwg.mxu0
    %v1138 = vadd.f32 %v904, %v1133
    %s1139 = scalar_lea.vmem [#allocation12], 3
    %v1140 = vld [vmem:[%s1139] sm:$0x1]
    %v1142 = vlaneseq
    %v1143 = vshrl.u32 %v1142, 7
    %v1144 = vsub.s32 0, %v1143
    %v1145 = vrot.slane %v1140, %v1144
    %v1147 = vmul.f32 %v419, %v1145
    %v1148 = vsel %vm447, %v1147, 0.0
    %1149 = vadd.xlane.f32.xlu0 %v1148
    %v1150 = vpop.xlane.xlu0 %1149
    %s1151 = scalar_lea.vmem [#allocation14], 3
    %v1152 = vld [vmem:[%s1151] sm:$0x1]
    %v1154 = vlaneseq
    %v1155 = vshrl.u32 %v1154, 7
    %v1156 = vsub.s32 0, %v1155
    %v1157 = vrot.slane %v1152, %v1156
    %v1159 = vmul.f32 %v419, %v1157
    %v1160 = vsel %vm447, %v1159, 0.0
    %1161 = vadd.xlane.f32.xlu0 %v1160
    %v1162 = vpop.xlane.xlu0 %1161
    %s1163 = scalar_lea.vmem [#allocation15], 3
    %v1164 = vld [vmem:[%s1163] sm:$0x1]
    %v1166 = vlaneseq
    %v1167 = vshrl.u32 %v1166, 7
    %v1168 = vsub.s32 0, %v1167
    %v1169 = vrot.slane %v1164, %v1168
    %v1171 = vmul.f32 %v420, %v1169
    %v1172 = vmul.f32 %v421, %v1169
    %v1173 = vmul.f32 %v422, %v1169
    %v1174 = vmul.f32 %v423, %v1169
    %v1175 = vmul.f32 %v424, %v1169
    %v1176 = vmul.f32 %v425, %v1169
    %v1177 = vmul.f32 %v426, %v1169
    %v1178 = vmul.f32 %v427, %v1169
    %v1179 = vsel %vm477, %v1171, 0.0
    %1180 = vadd.xlane.f32.xlu0 %v1179
    %v1181 = vpop.xlane.xlu0 %1180
    %v1182 = vsel %vm477, %v1172, 0.0
    %1183 = vadd.xlane.f32.xlu0 %v1182
    %v1184 = vpop.xlane.xlu0 %1183
    %v1185 = vsel %vm477, %v1173, 0.0
    %1186 = vadd.xlane.f32.xlu0 %v1185
    %v1187 = vpop.xlane.xlu0 %1186
    %v1188 = vsel %vm477, %v1174, 0.0
    %1189 = vadd.xlane.f32.xlu0 %v1188
    %v1190 = vpop.xlane.xlu0 %1189
    %v1191 = vsel %vm477, %v1175, 0.0
    %1192 = vadd.xlane.f32.xlu0 %v1191
    %v1193 = vpop.xlane.xlu0 %1192
    %v1194 = vsel %vm477, %v1176, 0.0
    %1195 = vadd.xlane.f32.xlu0 %v1194
    %v1196 = vpop.xlane.xlu0 %1195
    %v1197 = vsel %vm477, %v1177, 0.0
    %1198 = vadd.xlane.f32.xlu0 %v1197
    %v1199 = vpop.xlane.xlu0 %1198
    %v1200 = vsel %vm477, %v1178, 0.0
    %1201 = vadd.xlane.f32.xlu0 %v1200
    %v1202 = vpop.xlane.xlu0 %1201
    %v1204 = vlaneseq
    %v1205 = vshrl.u32 %v1204, 7
    %v1206 = vsub.s32 %v504, %v1205
    %v1207 = vrot.slane %v1162, %v1206
    %v1208 = vsel %vm510, %v1207, %v1207
    %v1209 = vsel %vm512, %v1207, %v1208
    %v1210 = vsel %vm514, %v1207, %v1209
    %v1211 = vsel %vm516, %v1207, %v1210
    %v1212 = vsel %vm518, %v1207, %v1211
    %v1213 = vsel %vm520, %v1207, %v1212
    %v1215 = vadd.f32 %v1150, %v1213
    %v1224 = vlaneseq
    %v1225 = vshrl.u32 %v1224, 7
    %v1226 = vsub.s32 %v504, %v1225
    %v1227 = vrot.slane %v1181, %v1226
    %v1228 = vlaneseq
    %v1229 = vshrl.u32 %v1228, 7
    %v1230 = vsub.s32 %v504, %v1229
    %v1231 = vrot.slane %v1184, %v1230
    %v1232 = vlaneseq
    %v1233 = vshrl.u32 %v1232, 7
    %v1234 = vsub.s32 %v504, %v1233
    %v1235 = vrot.slane %v1187, %v1234
    %v1236 = vlaneseq
    %v1237 = vshrl.u32 %v1236, 7
    %v1238 = vsub.s32 %v504, %v1237
    %v1239 = vrot.slane %v1190, %v1238
    %v1240 = vlaneseq
    %v1241 = vshrl.u32 %v1240, 7
    %v1242 = vsub.s32 %v504, %v1241
    %v1243 = vrot.slane %v1193, %v1242
    %v1244 = vlaneseq
    %v1245 = vshrl.u32 %v1244, 7
    %v1246 = vsub.s32 %v504, %v1245
    %v1247 = vrot.slane %v1196, %v1246
    %v1248 = vlaneseq
    %v1249 = vshrl.u32 %v1248, 7
    %v1250 = vsub.s32 %v504, %v1249
    %v1251 = vrot.slane %v1199, %v1250
    %v1252 = vlaneseq
    %v1253 = vshrl.u32 %v1252, 7
    %v1254 = vsub.s32 %v504, %v1253
    %v1255 = vrot.slane %v1202, %v1254
    %v1256 = vsel %vm509, %v1231, %v1227
    %v1257 = vsel %vm510, %v1235, %v1256
    %v1258 = vsel %vm512, %v1239, %v1257
    %v1259 = vsel %vm514, %v1243, %v1258
    %v1260 = vsel %vm516, %v1247, %v1259
    %v1261 = vsel %vm518, %v1251, %v1260
    %v1262 = vsel %vm520, %v1255, %v1261
    %v1264 = vadd.f32 %v1215, %v1262
    %v1265 = vsel %vm477, %v1264, -inf
    %1266 = vmax.xlane.f32.xlu0 %v1265
    %v1267 = vpop.xlane.xlu0 %1266
    %v1268 = vsub.f32 %v1264, %v1267
    %v1269 = vmul.f32 %v1268, 1.442695
    %v1270 = vpow.pop %v1269
    %v1271 = vsel %vm477, %v1270, 0.0
    %1272 = vadd.xlane.f32.xlu0 %v1271
    %v1273 = vpop.xlane.xlu0 %1272
    %v1274 = vrcp.pop %v1273
    %v1275 = vmul.f32 %v1270, %v1274
    %s1276 = scalar_lea.vmem %s21, 48
    %v1277 = vld [vmem:[%s1276] sm:$0xff]
    %v1278 = vld [vmem:[%s1276 + $0x8] sm:$0xff]
    %v1279 = vpack.c.bf16 %v1278, %v1277
    %1280 = vmatprep.subr.bf16.mxu0 0
    %1281 = vmatpush1.bf16.msra.mxu0 0
    %1282 = vmatprep.subr.bf16.mxu0 0
    %1283 = vmatpush1.bf16.msra.mxu0 0
    %1284 = vmatprep.subr.bf16.mxu0 0
    %1285 = vmatpush1.bf16.msra.mxu0 0
    %1286 = vmatprep.subr.bf16.mxu0 0
    %1287 = vmatpush1.bf16.msra.mxu0 0
    %1288 = vmatprep.subr.bf16.mxu0 0
    %1289 = vmatpush1.bf16.msra.mxu0 0
    %1290 = vmatprep.subr.bf16.mxu0 0
    %1291 = vmatpush1.bf16.msra.mxu0 0
    %1292 = vmatprep.subr.bf16.mxu0 0
    %1293 = vmatpush1.bf16.msra.mxu0 0
    %1294 = vmatprep.subr.bf16.mxu0 0
    %1295 = vmatpush1.bf16.msra.mxu0 %v1279
    %1296 = vmatprep.subr.bf16.mxu0 0
    %1297 = vmatpush2.bf16.msra.mxu0 0
    %1298 = vmatprep.subr.bf16.mxu0 0
    %1299 = vmatpush2.bf16.msra.mxu0 0
    %1300 = vmatprep.subr.bf16.mxu0 0
    %1301 = vmatpush2.bf16.msra.mxu0 0
    %1302 = vmatprep.subr.bf16.mxu0 0
    %1303 = vmatpush2.bf16.msra.mxu0 0
    %1304 = vmatprep.subr.bf16.mxu0 0
    %1305 = vmatpush2.bf16.msra.mxu0 0
    %1306 = vmatprep.subr.bf16.mxu0 0
    %1307 = vmatpush2.bf16.msra.mxu0 0
    %1308 = vmatprep.subr.bf16.mxu0 0
    %1309 = vmatpush2.bf16.msra.mxu0 0
    %1310 = vmatprep.subr.bf16.mxu0 0
    %1311 = vmatpush2.bf16.msra.mxu0 0
    %1312 = vmatprep.mubr.bf16.mxu0 0
    %1313 = vmatmul.mubr.bf16.gmra.mxu0 %v589
    %v1314 = vpop.f32.mrf.mxu0
    %v1315 = vadd.f32 0.0, %v1314
    %v1316 = vpop.f32.mrf.mxu0
    %v1317 = vpop.f32.mrf.mxu0
    %v1318 = vpop.f32.mrf.mxu0
    %1319 = vdwg.mxu0
    %v1320 = vpack.c.bf16 %v1275, %v1275
    %v1321 = vpack.c.bf16 %v1315, %v1315
    %v1323 = vsel %vm477, %v1320, 0
    %v1326 = vsel %vm819, %v1321, 0
    %1328 = vmatprep.subr.bf16.mxu0 0
    %1329 = vmatpush1.bf16.msra.mxu0 0
    %1330 = vmatprep.subr.bf16.mxu0 0
    %1331 = vmatpush1.bf16.msra.mxu0 0
    %1332 = vmatprep.subr.bf16.mxu0 0
    %1333 = vmatpush1.bf16.msra.mxu0 0
    %1334 = vmatprep.subr.bf16.mxu0 0
    %1335 = vmatpush1.bf16.msra.mxu0 0
    %1336 = vmatprep.subr.bf16.mxu0 0
    %1337 = vmatpush1.bf16.msra.mxu0 0
    %1338 = vmatprep.subr.bf16.mxu0 0
    %1339 = vmatpush1.bf16.msra.mxu0 0
    %1340 = vmatprep.subr.bf16.mxu0 0
    %1341 = vmatpush1.bf16.msra.mxu0 0
    %1342 = vmatprep.subr.bf16.mxu0 0
    %1343 = vmatpush1.bf16.msra.mxu0 %v1326
    %1344 = vmatprep.subr.bf16.mxu0 0
    %1345 = vmatpush2.bf16.msra.mxu0 0
    %1346 = vmatprep.subr.bf16.mxu0 0
    %1347 = vmatpush2.bf16.msra.mxu0 0
    %1348 = vmatprep.subr.bf16.mxu0 0
    %1349 = vmatpush2.bf16.msra.mxu0 0
    %1350 = vmatprep.subr.bf16.mxu0 0
    %1351 = vmatpush2.bf16.msra.mxu0 0
    %1352 = vmatprep.subr.bf16.mxu0 0
    %1353 = vmatpush2.bf16.msra.mxu0 0
    %1354 = vmatprep.subr.bf16.mxu0 0
    %1355 = vmatpush2.bf16.msra.mxu0 0
    %1356 = vmatprep.subr.bf16.mxu0 0
    %1357 = vmatpush2.bf16.msra.mxu0 0
    %1358 = vmatprep.subr.bf16.mxu0 0
    %1359 = vmatpush2.bf16.msra.mxu0 0
    %1360 = vmatprep.mubr.bf16.mxu0 0
    %1361 = vmatmul.mubr.bf16.gmra.mxu0 %v1323
    %v1362 = vpop.f32.mrf.mxu0
    %v1363 = vadd.f32 0.0, %v1362
    %v1364 = vpop.f32.mrf.mxu0
    %v1365 = vpop.f32.mrf.mxu0
    %v1366 = vpop.f32.mrf.mxu0
    %1367 = vdwg.mxu0
    %v1368 = vadd.f32 %v1138, %v1363
    %v1369 = vadd.f32 %v419, %v1368
    %v1370 = vld [vmem:[#allocation17] sm:$0x1]
    %v1372 = vlaneseq
    %v1373 = vshrl.u32 %v1372, 7
    %v1374 = vsub.s32 0, %v1373
    %v1375 = vrot.slane %v1370, %v1374
    %v1377 = vadd.f32 %v1369, %v1375
    %v1378 = vld [vmem:[%s25] sm:$0xff]
    %v1379 = vld [vmem:[%s25 + $0x8] sm:$0xff]
    %v1380 = vpack.c.bf16 %v1379, %v1378
    %1381 = vmatprep.subr.bf16.mxu0 0
    %1382 = vmatpush1.bf16.msra.mxu0 0
    %1383 = vmatprep.subr.bf16.mxu0 0
    %1384 = vmatpush1.bf16.msra.mxu0 0
    %1385 = vmatprep.subr.bf16.mxu0 0
    %1386 = vmatpush1.bf16.msra.mxu0 0
    %1387 = vmatprep.subr.bf16.mxu0 0
    %1388 = vmatpush1.bf16.msra.mxu0 0
    %1389 = vmatprep.subr.bf16.mxu0 0
    %1390 = vmatpush1.bf16.msra.mxu0 0
    %1391 = vmatprep.subr.bf16.mxu0 0
    %1392 = vmatpush1.bf16.msra.mxu0 0
    %1393 = vmatprep.subr.bf16.mxu0 0
    %1394 = vmatpush1.bf16.msra.mxu0 0
    %1395 = vmatprep.subr.bf16.mxu0 0
    %1396 = vmatpush1.bf16.msra.mxu0 %v1380
    %1397 = vmatprep.subr.bf16.mxu0 0
    %1398 = vmatpush2.bf16.msra.mxu0 0
    %1399 = vmatprep.subr.bf16.mxu0 0
    %1400 = vmatpush2.bf16.msra.mxu0 0
    %1401 = vmatprep.subr.bf16.mxu0 0
    %1402 = vmatpush2.bf16.msra.mxu0 0
    %1403 = vmatprep.subr.bf16.mxu0 0
    %1404 = vmatpush2.bf16.msra.mxu0 0
    %1405 = vmatprep.subr.bf16.mxu0 0
    %1406 = vmatpush2.bf16.msra.mxu0 0
    %1407 = vmatprep.subr.bf16.mxu0 0
    %1408 = vmatpush2.bf16.msra.mxu0 0
    %1409 = vmatprep.subr.bf16.mxu0 0
    %1410 = vmatpush2.bf16.msra.mxu0 0
    %1411 = vmatprep.subr.bf16.mxu0 0
    %1412 = vmatpush2.bf16.msra.mxu0 0
    %1413 = vmatprep.mubr.bf16.mxu0 0
    %1414 = vmatmul.mubr.bf16.gmra.mxu0 %v589
    %v1415 = vpop.f32.mrf.mxu0
    %v1416 = vadd.f32 0.0, %v1415
    %v1417 = vpop.f32.mrf.mxu0
    %v1418 = vpop.f32.mrf.mxu0
    %v1419 = vpop.f32.mrf.mxu0
    %1420 = vdwg.mxu0
    %v1421 = vld [vmem:[%s27] sm:$0xff]
    %v1422 = vld [vmem:[%s27 + $0x8] sm:$0xff]
    %v1423 = vpack.c.bf16 %v1422, %v1421
    %1424 = vmatprep.subr.bf16.mxu0 0
    %1425 = vmatpush1.bf16.msra.mxu0 0
    %1426 = vmatprep.subr.bf16.mxu0 0
    %1427 = vmatpush1.bf16.msra.mxu0 0
    %1428 = vmatprep.subr.bf16.mxu0 0
    %1429 = vmatpush1.bf16.msra.mxu0 0
    %1430 = vmatprep.subr.bf16.mxu0 0
    %1431 = vmatpush1.bf16.msra.mxu0 0
    %1432 = vmatprep.subr.bf16.mxu0 0
    %1433 = vmatpush1.bf16.msra.mxu0 0
    %1434 = vmatprep.subr.bf16.mxu0 0
    %1435 = vmatpush1.bf16.msra.mxu0 0
    %1436 = vmatprep.subr.bf16.mxu0 0
    %1437 = vmatpush1.bf16.msra.mxu0 0
    %1438 = vmatprep.subr.bf16.mxu0 0
    %1439 = vmatpush1.bf16.msra.mxu0 %v1423
    %1440 = vmatprep.subr.bf16.mxu0 0
    %1441 = vmatpush2.bf16.msra.mxu0 0
    %1442 = vmatprep.subr.bf16.mxu0 0
    %1443 = vmatpush2.bf16.msra.mxu0 0
    %1444 = vmatprep.subr.bf16.mxu0 0
    %1445 = vmatpush2.bf16.msra.mxu0 0
    %1446 = vmatprep.subr.bf16.mxu0 0
    %1447 = vmatpush2.bf16.msra.mxu0 0
    %1448 = vmatprep.subr.bf16.mxu0 0
    %1449 = vmatpush2.bf16.msra.mxu0 0
    %1450 = vmatprep.subr.bf16.mxu0 0
    %1451 = vmatpush2.bf16.msra.mxu0 0
    %1452 = vmatprep.subr.bf16.mxu0 0
    %1453 = vmatpush2.bf16.msra.mxu0 0
    %1454 = vmatprep.subr.bf16.mxu0 0
    %1455 = vmatpush2.bf16.msra.mxu0 0
    %1456 = vmatprep.mubr.bf16.mxu0 0
    %1457 = vmatmul.mubr.bf16.gmra.mxu0 %v589
    %v1458 = vpop.f32.mrf.mxu0
    %v1459 = vadd.f32 0.0, %v1458
    %v1460 = vpop.f32.mrf.mxu0
    %v1461 = vpop.f32.mrf.mxu0
    %v1462 = vpop.f32.mrf.mxu0
    %1463 = vdwg.mxu0
    %v1464 = vld [vmem:[#allocation18] sm:$0xff]
    %v1465 = vpack.c.bf16 %v421, %v420
    %v1466 = vpack.c.bf16 %v423, %v422
    %v1467 = vpack.c.bf16 %v425, %v424
    %v1468 = vpack.c.bf16 %v427, %v426
    %v1469 = vpack.c.bf16 %v1464, %v1464
    %v1471 = vsel %vm477, %v1465, 0
    %v1474 = vsel %vm477, %v1466, 0
    %v1477 = vsel %vm477, %v1467, 0
    %v1480 = vsel %vm477, %v1468, 0
    %v1483 = vsel %vm819, %v1469, 0
    %1485 = vmatprep.subr.bf16.mxu0 0
    %1486 = vmatpush1.bf16.msra.mxu0 0
    %1487 = vmatprep.subr.bf16.mxu0 0
    %1488 = vmatpush1.bf16.msra.mxu0 0
    %1489 = vmatprep.subr.bf16.mxu0 0
    %1490 = vmatpush1.bf16.msra.mxu0 0
    %1491 = vmatprep.subr.bf16.mxu0 0
    %1492 = vmatpush1.bf16.msra.mxu0 0
    %1493 = vmatprep.subr.bf16.mxu0 0
    %1494 = vmatpush1.bf16.msra.mxu0 0
    %1495 = vmatprep.subr.bf16.mxu0 0
    %1496 = vmatpush1.bf16.msra.mxu0 0
    %1497 = vmatprep.subr.bf16.mxu0 0
    %1498 = vmatpush1.bf16.msra.mxu0 0
    %1499 = vmatprep.subr.bf16.mxu0 0
    %1500 = vmatpush1.bf16.msra.mxu0 %v1483
    %1501 = vmatprep.subr.bf16.mxu0 0
    %1502 = vmatpush2.bf16.msra.mxu0 0
    %1503 = vmatprep.subr.bf16.mxu0 0
    %1504 = vmatpush2.bf16.msra.mxu0 0
    %1505 = vmatprep.subr.bf16.mxu0 0
    %1506 = vmatpush2.bf16.msra.mxu0 0
    %1507 = vmatprep.subr.bf16.mxu0 0
    %1508 = vmatpush2.bf16.msra.mxu0 0
    %1509 = vmatprep.subr.bf16.mxu0 0
    %1510 = vmatpush2.bf16.msra.mxu0 0
    %1511 = vmatprep.subr.bf16.mxu0 0
    %1512 = vmatpush2.bf16.msra.mxu0 0
    %1513 = vmatprep.subr.bf16.mxu0 0
    %1514 = vmatpush2.bf16.msra.mxu0 0
    %1515 = vmatprep.subr.bf16.mxu0 0
    %1516 = vmatpush2.bf16.msra.mxu0 0
    %1517 = vmatprep.mubr.bf16.mxu0 0
    %1518 = vmatmul.mubr.bf16.gmra.mxu0 %v1471
    %v1519 = vpop.f32.mrf.mxu0
    %v1520 = vadd.f32 0.0, %v1519
    %v1521 = vpop.f32.mrf.mxu0
    %v1522 = vpop.f32.mrf.mxu0
    %v1523 = vadd.f32 0.0, %v1522
    %v1524 = vpop.f32.mrf.mxu0
    %1525 = vmatprep.mubr.bf16.mxu0 0
    %1526 = vmatmul.mubr.bf16.gmra.mxu0 %v1474
    %v1527 = vpop.f32.mrf.mxu0
    %v1528 = vadd.f32 0.0, %v1527
    %v1529 = vpop.f32.mrf.mxu0
    %v1530 = vpop.f32.mrf.mxu0
    %v1531 = vadd.f32 0.0, %v1530
    %v1532 = vpop.f32.mrf.mxu0
    %1533 = vmatprep.mubr.bf16.mxu0 0
    %1534 = vmatmul.mubr.bf16.gmra.mxu0 %v1477
    %v1535 = vpop.f32.mrf.mxu0
    %v1536 = vadd.f32 0.0, %v1535
    %v1537 = vpop.f32.mrf.mxu0
    %v1538 = vpop.f32.mrf.mxu0
    %v1539 = vadd.f32 0.0, %v1538
    %v1540 = vpop.f32.mrf.mxu0
    %1541 = vmatprep.mubr.bf16.mxu0 0
    %1542 = vmatmul.mubr.bf16.gmra.mxu0 %v1480
    %v1543 = vpop.f32.mrf.mxu0
    %v1544 = vadd.f32 0.0, %v1543
    %v1545 = vpop.f32.mrf.mxu0
    %v1546 = vpop.f32.mrf.mxu0
    %v1547 = vadd.f32 0.0, %v1546
    %v1548 = vpop.f32.mrf.mxu0
    %1549 = vdwg.mxu0
    %v1551 = vcombine.high %v1416, %v1416
    %v1553 = vunpack.c.l.s4 1966171168
    %v1554 = vunpack.c.0.s8 %v1553
    %v1555 = vlaneseq
    %v1556 = vshrl.u32 %v1555, 7
    %v1557 = vsub.s32 %v1554, %v1556
    %v1558 = vrot.slane %v1416, %v1557
    %v1560 = vunpack.c.l.s4 1966171168
    %v1561 = vunpack.c.0.s8 %v1560
    %v1562 = vlaneseq
    %v1563 = vshrl.u32 %v1562, 7
    %v1564 = vsub.s32 %v1561, %v1563
    %v1565 = vrot.slane %v1551, %v1564
    %v1566 = vcombine.high %v1558, %v1558
    %v1567 = vcombine.high %v1565, %v1565
    %v1569 = vunpack.c.l.s4 1966171168
    %v1570 = vunpack.c.0.s8 %v1569
    %v1571 = vlaneseq
    %v1572 = vshrl.u32 %v1571, 7
    %v1573 = vsub.s32 %v1570, %v1572
    %v1574 = vrot.slane %v1558, %v1573
    %v1576 = vunpack.c.l.s4 1966171168
    %v1577 = vunpack.c.0.s8 %v1576
    %v1578 = vlaneseq
    %v1579 = vshrl.u32 %v1578, 7
    %v1580 = vsub.s32 %v1577, %v1579
    %v1581 = vrot.slane %v1565, %v1580
    %v1583 = vunpack.c.l.s4 1966171168
    %v1584 = vunpack.c.0.s8 %v1583
    %v1585 = vlaneseq
    %v1586 = vshrl.u32 %v1585, 7
    %v1587 = vsub.s32 %v1584, %v1586
    %v1588 = vrot.slane %v1566, %v1587
    %v1590 = vunpack.c.l.s4 1966171168
    %v1591 = vunpack.c.0.s8 %v1590
    %v1592 = vlaneseq
    %v1593 = vshrl.u32 %v1592, 7
    %v1594 = vsub.s32 %v1591, %v1593
    %v1595 = vrot.slane %v1567, %v1594
    %v1596 = vcombine.high %v1574, %v1574
    %v1597 = vcombine.high %v1581, %v1581
    %v1598 = vcombine.high %v1588, %v1588
    %v1599 = vcombine.high %v1595, %v1595
    %v1600 = vlaneseq
    %v1601 = vshrl.u32 %v1600, 7
    %v1602 = vsub.s32 0, %v1601
    %v1603 = vrot.slane %v1574, %v1602
    %v1604 = vlaneseq
    %v1605 = vshrl.u32 %v1604, 7
    %v1606 = vsub.s32 0, %v1605
    %v1607 = vrot.slane %v1588, %v1606
    %v1608 = vlaneseq
    %v1609 = vshrl.u32 %v1608, 7
    %v1610 = vsub.s32 0, %v1609
    %v1611 = vrot.slane %v1596, %v1610
    %v1612 = vlaneseq
    %v1613 = vshrl.u32 %v1612, 7
    %v1614 = vsub.s32 0, %v1613
    %v1615 = vrot.slane %v1598, %v1614
    %v1616 = vlaneseq
    %v1617 = vshrl.u32 %v1616, 7
    %v1618 = vsub.s32 0, %v1617
    %v1619 = vrot.slane %v1581, %v1618
    %v1620 = vlaneseq
    %v1621 = vshrl.u32 %v1620, 7
    %v1622 = vsub.s32 0, %v1621
    %v1623 = vrot.slane %v1595, %v1622
    %v1624 = vlaneseq
    %v1625 = vshrl.u32 %v1624, 7
    %v1626 = vsub.s32 0, %v1625
    %v1627 = vrot.slane %v1597, %v1626
    %v1628 = vlaneseq
    %v1629 = vshrl.u32 %v1628, 7
    %v1630 = vsub.s32 0, %v1629
    %v1631 = vrot.slane %v1599, %v1630
    %v1640 = vadd.f32 %v420, %v1603
    %v1641 = vadd.f32 %v421, %v1607
    %v1642 = vadd.f32 %v422, %v1611
    %v1643 = vadd.f32 %v423, %v1615
    %v1644 = vadd.f32 %v424, %v1619
    %v1645 = vadd.f32 %v425, %v1623
    %v1646 = vadd.f32 %v426, %v1627
    %v1647 = vadd.f32 %v427, %v1631
    %v1648 = vadd.f32 %v1640, %v1459
    %v1649 = vadd.f32 %v1641, %v1459
    %v1650 = vadd.f32 %v1642, %v1459
    %v1651 = vadd.f32 %v1643, %v1459
    %v1652 = vadd.f32 %v1644, %v1459
    %v1653 = vadd.f32 %v1645, %v1459
    %v1654 = vadd.f32 %v1646, %v1459
    %v1655 = vadd.f32 %v1647, %v1459
    %v1656 = vadd.f32 %v1648, %v1520
    %v1657 = vadd.f32 %v1649, %v1523
    %v1658 = vadd.f32 %v1650, %v1528
    %v1659 = vadd.f32 %v1651, %v1531
    %v1660 = vadd.f32 %v1652, %v1536
    %v1661 = vadd.f32 %v1653, %v1539
    %v1662 = vadd.f32 %v1654, %v1544
    %v1663 = vadd.f32 %v1655, %v1547
    %v1664 = vld [vmem:[#allocation20] sm:$0x1]
    %v1666 = vlaneseq
    %v1667 = vshrl.u32 %v1666, 7
    %v1668 = vsub.s32 0, %v1667
    %v1669 = vrot.slane %v1664, %v1668
    %v1671 = vadd.f32 %v1656, %v1669
    %v1672 = vadd.f32 %v1657, %v1669
    %v1673 = vadd.f32 %v1658, %v1669
    %v1674 = vadd.f32 %v1659, %v1669
    %v1675 = vadd.f32 %v1660, %v1669
    %v1676 = vadd.f32 %v1661, %v1669
    %v1677 = vadd.f32 %v1662, %v1669
    %v1678 = vadd.f32 %v1663, %v1669
    %v1679 = vld [vmem:[#allocation21] sm:$0x1]
    %v1681 = vlaneseq
    %v1682 = vshrl.u32 %v1681, 7
    %v1683 = vsub.s32 0, %v1682
    %v1684 = vrot.slane %v1679, %v1683
    %v1686 = vmul.f32 %v428, %v1684
    %v1687 = vsel %vm447, %v1686, 0.0
    %1688 = vadd.xlane.f32.xlu0 %v1687
    %v1689 = vpop.xlane.xlu0 %1688
    %v1690 = vld [vmem:[#allocation23] sm:$0x1]
    %v1692 = vlaneseq
    %v1693 = vshrl.u32 %v1692, 7
    %v1694 = vsub.s32 0, %v1693
    %v1695 = vrot.slane %v1690, %v1694
    %v1697 = vmul.f32 %v428, %v1695
    %v1698 = vsel %vm447, %v1697, 0.0
    %1699 = vadd.xlane.f32.xlu0 %v1698
    %v1700 = vpop.xlane.xlu0 %1699
    %v1701 = vld [vmem:[#allocation24] sm:$0x1]
    %v1703 = vlaneseq
    %v1704 = vshrl.u32 %v1703, 7
    %v1705 = vsub.s32 0, %v1704
    %v1706 = vrot.slane %v1701, %v1705
    %v1708 = vmul.f32 %v429, %v1706
    %v1709 = vmul.f32 %v430, %v1706
    %v1710 = vmul.f32 %v431, %v1706
    %v1711 = vmul.f32 %v432, %v1706
    %v1712 = vmul.f32 %v433, %v1706
    %v1713 = vmul.f32 %v434, %v1706
    %v1714 = vmul.f32 %v435, %v1706
    %v1715 = vmul.f32 %v436, %v1706
    %v1716 = vsel %vm477, %v1708, 0.0
    %1717 = vadd.xlane.f32.xlu0 %v1716
    %v1718 = vpop.xlane.xlu0 %1717
    %v1719 = vsel %vm477, %v1709, 0.0
    %1720 = vadd.xlane.f32.xlu0 %v1719
    %v1721 = vpop.xlane.xlu0 %1720
    %v1722 = vsel %vm477, %v1710, 0.0
    %1723 = vadd.xlane.f32.xlu0 %v1722
    %v1724 = vpop.xlane.xlu0 %1723
    %v1725 = vsel %vm477, %v1711, 0.0
    %1726 = vadd.xlane.f32.xlu0 %v1725
    %v1727 = vpop.xlane.xlu0 %1726
    %v1728 = vsel %vm477, %v1712, 0.0
    %1729 = vadd.xlane.f32.xlu0 %v1728
    %v1730 = vpop.xlane.xlu0 %1729
    %v1731 = vsel %vm477, %v1713, 0.0
    %1732 = vadd.xlane.f32.xlu0 %v1731
    %v1733 = vpop.xlane.xlu0 %1732
    %v1734 = vsel %vm477, %v1714, 0.0
    %1735 = vadd.xlane.f32.xlu0 %v1734
    %v1736 = vpop.xlane.xlu0 %1735
    %v1737 = vsel %vm477, %v1715, 0.0
    %1738 = vadd.xlane.f32.xlu0 %v1737
    %v1739 = vpop.xlane.xlu0 %1738
    %v1741 = vlaneseq
    %v1742 = vshrl.u32 %v1741, 7
    %v1743 = vsub.s32 %v504, %v1742
    %v1744 = vrot.slane %v1700, %v1743
    %v1745 = vsel %vm510, %v1744, %v1744
    %v1746 = vsel %vm512, %v1744, %v1745
    %v1747 = vsel %vm514, %v1744, %v1746
    %v1748 = vsel %vm516, %v1744, %v1747
    %v1749 = vsel %vm518, %v1744, %v1748
    %v1750 = vsel %vm520, %v1744, %v1749
    %v1752 = vadd.f32 %v1689, %v1750
    %v1761 = vlaneseq
    %v1762 = vshrl.u32 %v1761, 7
    %v1763 = vsub.s32 %v504, %v1762
    %v1764 = vrot.slane %v1718, %v1763
    %v1765 = vlaneseq
    %v1766 = vshrl.u32 %v1765, 7
    %v1767 = vsub.s32 %v504, %v1766
    %v1768 = vrot.slane %v1721, %v1767
    %v1769 = vlaneseq
    %v1770 = vshrl.u32 %v1769, 7
    %v1771 = vsub.s32 %v504, %v1770
    %v1772 = vrot.slane %v1724, %v1771
    %v1773 = vlaneseq
    %v1774 = vshrl.u32 %v1773, 7
    %v1775 = vsub.s32 %v504, %v1774
    %v1776 = vrot.slane %v1727, %v1775
    %v1777 = vlaneseq
    %v1778 = vshrl.u32 %v1777, 7
    %v1779 = vsub.s32 %v504, %v1778
    %v1780 = vrot.slane %v1730, %v1779
    %v1781 = vlaneseq
    %v1782 = vshrl.u32 %v1781, 7
    %v1783 = vsub.s32 %v504, %v1782
    %v1784 = vrot.slane %v1733, %v1783
    %v1785 = vlaneseq
    %v1786 = vshrl.u32 %v1785, 7
    %v1787 = vsub.s32 %v504, %v1786
    %v1788 = vrot.slane %v1736, %v1787
    %v1789 = vlaneseq
    %v1790 = vshrl.u32 %v1789, 7
    %v1791 = vsub.s32 %v504, %v1790
    %v1792 = vrot.slane %v1739, %v1791
    %v1793 = vsel %vm509, %v1768, %v1764
    %v1794 = vsel %vm510, %v1772, %v1793
    %v1795 = vsel %vm512, %v1776, %v1794
    %v1796 = vsel %vm514, %v1780, %v1795
    %v1797 = vsel %vm516, %v1784, %v1796
    %v1798 = vsel %vm518, %v1788, %v1797
    %v1799 = vsel %vm520, %v1792, %v1798
    %v1801 = vadd.f32 %v1752, %v1799
    %v1802 = vsel %vm477, %v1801, -inf
    %1803 = vmax.xlane.f32.xlu0 %v1802
    %v1804 = vpop.xlane.xlu0 %1803
    %v1805 = vsub.f32 %v1801, %v1804
    %v1806 = vmul.f32 %v1805, 1.442695
    %v1807 = vpow.pop %v1806
    %v1808 = vsel %vm477, %v1807, 0.0
    %1809 = vadd.xlane.f32.xlu0 %v1808
    %v1810 = vpop.xlane.xlu0 %1809
    %v1811 = vrcp.pop %v1810
    %v1812 = vmul.f32 %v1807, %v1811
    %v1813 = vld [vmem:[%s39] sm:$0xff]
    %v1814 = vld [vmem:[%s39 + $0x8] sm:$0xff]
    %v1815 = vpack.c.bf16 %v428, %v428
    %v1816 = vpack.c.bf16 %v1814, %v1813
    %v1818 = vsel %vm447, %v1815, 0
    %1820 = vmatprep.subr.bf16.mxu0 0
    %1821 = vmatpush1.bf16.msra.mxu0 0
    %1822 = vmatprep.subr.bf16.mxu0 0
    %1823 = vmatpush1.bf16.msra.mxu0 0
    %1824 = vmatprep.subr.bf16.mxu0 0
    %1825 = vmatpush1.bf16.msra.mxu0 0
    %1826 = vmatprep.subr.bf16.mxu0 0
    %1827 = vmatpush1.bf16.msra.mxu0 0
    %1828 = vmatprep.subr.bf16.mxu0 0
    %1829 = vmatpush1.bf16.msra.mxu0 0
    %1830 = vmatprep.subr.bf16.mxu0 0
    %1831 = vmatpush1.bf16.msra.mxu0 0
    %1832 = vmatprep.subr.bf16.mxu0 0
    %1833 = vmatpush1.bf16.msra.mxu0 0
    %1834 = vmatprep.subr.bf16.mxu0 0
    %1835 = vmatpush1.bf16.msra.mxu0 %v1816
    %1836 = vmatprep.subr.bf16.mxu0 0
    %1837 = vmatpush2.bf16.msra.mxu0 0
    %1838 = vmatprep.subr.bf16.mxu0 0
    %1839 = vmatpush2.bf16.msra.mxu0 0
    %1840 = vmatprep.subr.bf16.mxu0 0
    %1841 = vmatpush2.bf16.msra.mxu0 0
    %1842 = vmatprep.subr.bf16.mxu0 0
    %1843 = vmatpush2.bf16.msra.mxu0 0
    %1844 = vmatprep.subr.bf16.mxu0 0
    %1845 = vmatpush2.bf16.msra.mxu0 0
    %1846 = vmatprep.subr.bf16.mxu0 0
    %1847 = vmatpush2.bf16.msra.mxu0 0
    %1848 = vmatprep.subr.bf16.mxu0 0
    %1849 = vmatpush2.bf16.msra.mxu0 0
    %1850 = vmatprep.subr.bf16.mxu0 0
    %1851 = vmatpush2.bf16.msra.mxu0 0
    %1852 = vmatprep.mubr.bf16.mxu0 0
    %1853 = vmatmul.mubr.bf16.gmra.mxu0 %v1818
    %v1854 = vpop.f32.mrf.mxu0
    %v1855 = vadd.f32 0.0, %v1854
    %v1856 = vpop.f32.mrf.mxu0
    %v1857 = vpop.f32.mrf.mxu0
    %v1858 = vpop.f32.mrf.mxu0
    %1859 = vdwg.mxu0
    %v1860 = vpack.c.bf16 %v1812, %v1812
    %v1861 = vpack.c.bf16 %v1855, %v1855
    %s1862 = scalar_lea.vmem [#allocation21], 1
    %v1863 = vld [vmem:[%s1862] sm:$0x1]
    %v1865 = vlaneseq
    %v1866 = vshrl.u32 %v1865, 7
    %v1867 = vsub.s32 0, %v1866
    %v1868 = vrot.slane %v1863, %v1867
    %v1870 = vmul.f32 %v428, %v1868
    %v1871 = vsel %vm447, %v1870, 0.0
    %1872 = vadd.xlane.f32.xlu0 %v1871
    %v1873 = vpop.xlane.xlu0 %1872
    %s1874 = scalar_lea.vmem [#allocation23], 1
    %v1875 = vld [vmem:[%s1874] sm:$0x1]
    %v1877 = vlaneseq
    %v1878 = vshrl.u32 %v1877, 7
    %v1879 = vsub.s32 0, %v1878
    %v1880 = vrot.slane %v1875, %v1879
    %v1882 = vmul.f32 %v428, %v1880
    %v1883 = vsel %vm447, %v1882, 0.0
    %1884 = vadd.xlane.f32.xlu0 %v1883
    %v1885 = vpop.xlane.xlu0 %1884
    %s1886 = scalar_lea.vmem [#allocation24], 1
    %v1887 = vld [vmem:[%s1886] sm:$0x1]
    %v1889 = vlaneseq
    %v1890 = vshrl.u32 %v1889, 7
    %v1891 = vsub.s32 0, %v1890
    %v1892 = vrot.slane %v1887, %v1891
    %v1894 = vmul.f32 %v429, %v1892
    %v1895 = vmul.f32 %v430, %v1892
    %v1896 = vmul.f32 %v431, %v1892
    %v1897 = vmul.f32 %v432, %v1892
    %v1898 = vmul.f32 %v433, %v1892
    %v1899 = vmul.f32 %v434, %v1892
    %v1900 = vmul.f32 %v435, %v1892
    %v1901 = vmul.f32 %v436, %v1892
    %v1902 = vsel %vm477, %v1894, 0.0
    %1903 = vadd.xlane.f32.xlu0 %v1902
    %v1904 = vpop.xlane.xlu0 %1903
    %v1905 = vsel %vm477, %v1895, 0.0
    %1906 = vadd.xlane.f32.xlu0 %v1905
    %v1907 = vpop.xlane.xlu0 %1906
    %v1908 = vsel %vm477, %v1896, 0.0
    %1909 = vadd.xlane.f32.xlu0 %v1908
    %v1910 = vpop.xlane.xlu0 %1909
    %v1911 = vsel %vm477, %v1897, 0.0
    %1912 = vadd.xlane.f32.xlu0 %v1911
    %v1913 = vpop.xlane.xlu0 %1912
    %v1914 = vsel %vm477, %v1898, 0.0
    %1915 = vadd.xlane.f32.xlu0 %v1914
    %v1916 = vpop.xlane.xlu0 %1915
    %v1917 = vsel %vm477, %v1899, 0.0
    %1918 = vadd.xlane.f32.xlu0 %v1917
    %v1919 = vpop.xlane.xlu0 %1918
    %v1920 = vsel %vm477, %v1900, 0.0
    %1921 = vadd.xlane.f32.xlu0 %v1920
    %v1922 = vpop.xlane.xlu0 %1921
    %v1923 = vsel %vm477, %v1901, 0.0
    %1924 = vadd.xlane.f32.xlu0 %v1923
    %v1925 = vpop.xlane.xlu0 %1924
    %v1927 = vlaneseq
    %v1928 = vshrl.u32 %v1927, 7
    %v1929 = vsub.s32 %v504, %v1928
    %v1930 = vrot.slane %v1885, %v1929
    %v1931 = vsel %vm510, %v1930, %v1930
    %v1932 = vsel %vm512, %v1930, %v1931
    %v1933 = vsel %vm514, %v1930, %v1932
    %v1934 = vsel %vm516, %v1930, %v1933
    %v1935 = vsel %vm518, %v1930, %v1934
    %v1936 = vsel %vm520, %v1930, %v1935
    %v1938 = vadd.f32 %v1873, %v1936
    %v1947 = vlaneseq
    %v1948 = vshrl.u32 %v1947, 7
    %v1949 = vsub.s32 %v504, %v1948
    %v1950 = vrot.slane %v1904, %v1949
    %v1951 = vlaneseq
    %v1952 = vshrl.u32 %v1951, 7
    %v1953 = vsub.s32 %v504, %v1952
    %v1954 = vrot.slane %v1907, %v1953
    %v1955 = vlaneseq
    %v1956 = vshrl.u32 %v1955, 7
    %v1957 = vsub.s32 %v504, %v1956
    %v1958 = vrot.slane %v1910, %v1957
    %v1959 = vlaneseq
    %v1960 = vshrl.u32 %v1959, 7
    %v1961 = vsub.s32 %v504, %v1960
    %v1962 = vrot.slane %v1913, %v1961
    %v1963 = vlaneseq
    %v1964 = vshrl.u32 %v1963, 7
    %v1965 = vsub.s32 %v504, %v1964
    %v1966 = vrot.slane %v1916, %v1965
    %v1967 = vlaneseq
    %v1968 = vshrl.u32 %v1967, 7
    %v1969 = vsub.s32 %v504, %v1968
    %v1970 = vrot.slane %v1919, %v1969
    %v1971 = vlaneseq
    %v1972 = vshrl.u32 %v1971, 7
    %v1973 = vsub.s32 %v504, %v1972
    %v1974 = vrot.slane %v1922, %v1973
    %v1975 = vlaneseq
    %v1976 = vshrl.u32 %v1975, 7
    %v1977 = vsub.s32 %v504, %v1976
    %v1978 = vrot.slane %v1925, %v1977
    %v1979 = vsel %vm509, %v1954, %v1950
    %v1980 = vsel %vm510, %v1958, %v1979
    %v1981 = vsel %vm512, %v1962, %v1980
    %v1982 = vsel %vm514, %v1966, %v1981
    %v1983 = vsel %vm516, %v1970, %v1982
    %v1984 = vsel %vm518, %v1974, %v1983
    %v1985 = vsel %vm520, %v1978, %v1984
    %v1987 = vadd.f32 %v1938, %v1985
    %v1988 = vsel %vm477, %v1987, -inf
    %1989 = vmax.xlane.f32.xlu0 %v1988
    %v1990 = vpop.xlane.xlu0 %1989
    %v1991 = vsub.f32 %v1987, %v1990
    %v1992 = vmul.f32 %v1991, 1.442695
    %v1993 = vpow.pop %v1992
    %v1994 = vsel %vm477, %v1993, 0.0
    %1995 = vadd.xlane.f32.xlu0 %v1994
    %v1996 = vpop.xlane.xlu0 %1995
    %v1997 = vrcp.pop %v1996
    %v1998 = vmul.f32 %v1993, %v1997
    %s1999 = scalar_lea.vmem %s39, 16
    %v2000 = vld [vmem:[%s1999] sm:$0xff]
    %v2001 = vld [vmem:[%s1999 + $0x8] sm:$0xff]
    %v2002 = vpack.c.bf16 %v2001, %v2000
    %2003 = vmatprep.subr.bf16.mxu0 0
    %2004 = vmatpush1.bf16.msra.mxu0 0
    %2005 = vmatprep.subr.bf16.mxu0 0
    %2006 = vmatpush1.bf16.msra.mxu0 0
    %2007 = vmatprep.subr.bf16.mxu0 0
    %2008 = vmatpush1.bf16.msra.mxu0 0
    %2009 = vmatprep.subr.bf16.mxu0 0
    %2010 = vmatpush1.bf16.msra.mxu0 0
    %2011 = vmatprep.subr.bf16.mxu0 0
    %2012 = vmatpush1.bf16.msra.mxu0 0
    %2013 = vmatprep.subr.bf16.mxu0 0
    %2014 = vmatpush1.bf16.msra.mxu0 0
    %2015 = vmatprep.subr.bf16.mxu0 0
    %2016 = vmatpush1.bf16.msra.mxu0 0
    %2017 = vmatprep.subr.bf16.mxu0 0
    %2018 = vmatpush1.bf16.msra.mxu0 %v2002
    %2019 = vmatprep.subr.bf16.mxu0 0
    %2020 = vmatpush2.bf16.msra.mxu0 0
    %2021 = vmatprep.subr.bf16.mxu0 0
    %2022 = vmatpush2.bf16.msra.mxu0 0
    %2023 = vmatprep.subr.bf16.mxu0 0
    %2024 = vmatpush2.bf16.msra.mxu0 0
    %2025 = vmatprep.subr.bf16.mxu0 0
    %2026 = vmatpush2.bf16.msra.mxu0 0
    %2027 = vmatprep.subr.bf16.mxu0 0
    %2028 = vmatpush2.bf16.msra.mxu0 0
    %2029 = vmatprep.subr.bf16.mxu0 0
    %2030 = vmatpush2.bf16.msra.mxu0 0
    %2031 = vmatprep.subr.bf16.mxu0 0
    %2032 = vmatpush2.bf16.msra.mxu0 0
    %2033 = vmatprep.subr.bf16.mxu0 0
    %2034 = vmatpush2.bf16.msra.mxu0 0
    %2035 = vmatprep.mubr.bf16.mxu0 0
    %2036 = vmatmul.mubr.bf16.gmra.mxu0 %v1818
    %v2037 = vpop.f32.mrf.mxu0
    %v2038 = vadd.f32 0.0, %v2037
    %v2039 = vpop.f32.mrf.mxu0
    %v2040 = vpop.f32.mrf.mxu0
    %v2041 = vpop.f32.mrf.mxu0
    %2042 = vdwg.mxu0
    %v2043 = vpack.c.bf16 %v1998, %v1998
    %v2044 = vpack.c.bf16 %v2038, %v2038
    %v2046 = vsel %vm477, %v2043, 0
    %v2049 = vsel %vm819, %v2044, 0
    %2051 = vmatprep.subr.bf16.mxu0 0
    %2052 = vmatpush1.bf16.msra.mxu0 0
    %2053 = vmatprep.subr.bf16.mxu0 0
    %2054 = vmatpush1.bf16.msra.mxu0 0
    %2055 = vmatprep.subr.bf16.mxu0 0
    %2056 = vmatpush1.bf16.msra.mxu0 0
    %2057 = vmatprep.subr.bf16.mxu0 0
    %2058 = vmatpush1.bf16.msra.mxu0 0
    %2059 = vmatprep.subr.bf16.mxu0 0
    %2060 = vmatpush1.bf16.msra.mxu0 0
    %2061 = vmatprep.subr.bf16.mxu0 0
    %2062 = vmatpush1.bf16.msra.mxu0 0
    %2063 = vmatprep.subr.bf16.mxu0 0
    %2064 = vmatpush1.bf16.msra.mxu0 0
    %2065 = vmatprep.subr.bf16.mxu0 0
    %2066 = vmatpush1.bf16.msra.mxu0 %v2049
    %2067 = vmatprep.subr.bf16.mxu0 0
    %2068 = vmatpush2.bf16.msra.mxu0 0
    %2069 = vmatprep.subr.bf16.mxu0 0
    %2070 = vmatpush2.bf16.msra.mxu0 0
    %2071 = vmatprep.subr.bf16.mxu0 0
    %2072 = vmatpush2.bf16.msra.mxu0 0
    %2073 = vmatprep.subr.bf16.mxu0 0
    %2074 = vmatpush2.bf16.msra.mxu0 0
    %2075 = vmatprep.subr.bf16.mxu0 0
    %2076 = vmatpush2.bf16.msra.mxu0 0
    %2077 = vmatprep.subr.bf16.mxu0 0
    %2078 = vmatpush2.bf16.msra.mxu0 0
    %2079 = vmatprep.subr.bf16.mxu0 0
    %2080 = vmatpush2.bf16.msra.mxu0 0
    %2081 = vmatprep.subr.bf16.mxu0 0
    %2082 = vmatpush2.bf16.msra.mxu0 0
    %2083 = vmatprep.mubr.bf16.mxu0 0
    %2084 = vmatmul.mubr.bf16.gmra.mxu0 %v2046
    %v2085 = vpop.f32.mrf.mxu0
    %v2086 = vadd.f32 0.0, %v2085
    %v2087 = vpop.f32.mrf.mxu0
    %v2088 = vpop.f32.mrf.mxu0
    %v2089 = vpop.f32.mrf.mxu0
    %2090 = vdwg.mxu0
    %v2092 = vsel %vm477, %v1860, 0
    %v2095 = vsel %vm819, %v1861, 0
    %2097 = vmatprep.subr.bf16.mxu0 0
    %2098 = vmatpush1.bf16.msra.mxu0 0
    %2099 = vmatprep.subr.bf16.mxu0 0
    %2100 = vmatpush1.bf16.msra.mxu0 0
    %2101 = vmatprep.subr.bf16.mxu0 0
    %2102 = vmatpush1.bf16.msra.mxu0 0
    %2103 = vmatprep.subr.bf16.mxu0 0
    %2104 = vmatpush1.bf16.msra.mxu0 0
    %2105 = vmatprep.subr.bf16.mxu0 0
    %2106 = vmatpush1.bf16.msra.mxu0 0
    %2107 = vmatprep.subr.bf16.mxu0 0
    %2108 = vmatpush1.bf16.msra.mxu0 0
    %2109 = vmatprep.subr.bf16.mxu0 0
    %2110 = vmatpush1.bf16.msra.mxu0 0
    %2111 = vmatprep.subr.bf16.mxu0 0
    %2112 = vmatpush1.bf16.msra.mxu0 %v2095
    %2113 = vmatprep.subr.bf16.mxu0 0
    %2114 = vmatpush2.bf16.msra.mxu0 0
    %2115 = vmatprep.subr.bf16.mxu0 0
    %2116 = vmatpush2.bf16.msra.mxu0 0
    %2117 = vmatprep.subr.bf16.mxu0 0
    %2118 = vmatpush2.bf16.msra.mxu0 0
    %2119 = vmatprep.subr.bf16.mxu0 0
    %2120 = vmatpush2.bf16.msra.mxu0 0
    %2121 = vmatprep.subr.bf16.mxu0 0
    %2122 = vmatpush2.bf16.msra.mxu0 0
    %2123 = vmatprep.subr.bf16.mxu0 0
    %2124 = vmatpush2.bf16.msra.mxu0 0
    %2125 = vmatprep.subr.bf16.mxu0 0
    %2126 = vmatpush2.bf16.msra.mxu0 0
    %2127 = vmatprep.subr.bf16.mxu0 0
    %2128 = vmatpush2.bf16.msra.mxu0 0
    %2129 = vmatprep.mubr.bf16.mxu0 0
    %2130 = vmatmul.mubr.bf16.gmra.mxu0 %v2092
    %v2131 = vpop.f32.mrf.mxu0
    %v2132 = vadd.f32 %v2086, %v2131
    %v2133 = vpop.f32.mrf.mxu0
    %v2134 = vpop.f32.mrf.mxu0
    %v2135 = vpop.f32.mrf.mxu0
    %2136 = vdwg.mxu0
    %s2137 = scalar_lea.vmem [#allocation21], 2
    %v2138 = vld [vmem:[%s2137] sm:$0x1]
    %v2140 = vlaneseq
    %v2141 = vshrl.u32 %v2140, 7
    %v2142 = vsub.s32 0, %v2141
    %v2143 = vrot.slane %v2138, %v2142
    %v2145 = vmul.f32 %v428, %v2143
    %v2146 = vsel %vm447, %v2145, 0.0
    %2147 = vadd.xlane.f32.xlu0 %v2146
    %v2148 = vpop.xlane.xlu0 %2147
    %s2149 = scalar_lea.vmem [#allocation23], 2
    %v2150 = vld [vmem:[%s2149] sm:$0x1]
    %v2152 = vlaneseq
    %v2153 = vshrl.u32 %v2152, 7
    %v2154 = vsub.s32 0, %v2153
    %v2155 = vrot.slane %v2150, %v2154
    %v2157 = vmul.f32 %v428, %v2155
    %v2158 = vsel %vm447, %v2157, 0.0
    %2159 = vadd.xlane.f32.xlu0 %v2158
    %v2160 = vpop.xlane.xlu0 %2159
    %s2161 = scalar_lea.vmem [#allocation24], 2
    %v2162 = vld [vmem:[%s2161] sm:$0x1]
    %v2164 = vlaneseq
    %v2165 = vshrl.u32 %v2164, 7
    %v2166 = vsub.s32 0, %v2165
    %v2167 = vrot.slane %v2162, %v2166
    %v2169 = vmul.f32 %v429, %v2167
    %v2170 = vmul.f32 %v430, %v2167
    %v2171 = vmul.f32 %v431, %v2167
    %v2172 = vmul.f32 %v432, %v2167
    %v2173 = vmul.f32 %v433, %v2167
    %v2174 = vmul.f32 %v434, %v2167
    %v2175 = vmul.f32 %v435, %v2167
    %v2176 = vmul.f32 %v436, %v2167
    %v2177 = vsel %vm477, %v2169, 0.0
    %2178 = vadd.xlane.f32.xlu0 %v2177
    %v2179 = vpop.xlane.xlu0 %2178
    %v2180 = vsel %vm477, %v2170, 0.0
    %2181 = vadd.xlane.f32.xlu0 %v2180
    %v2182 = vpop.xlane.xlu0 %2181
    %v2183 = vsel %vm477, %v2171, 0.0
    %2184 = vadd.xlane.f32.xlu0 %v2183
    %v2185 = vpop.xlane.xlu0 %2184
    %v2186 = vsel %vm477, %v2172, 0.0
    %2187 = vadd.xlane.f32.xlu0 %v2186
    %v2188 = vpop.xlane.xlu0 %2187
    %v2189 = vsel %vm477, %v2173, 0.0
    %2190 = vadd.xlane.f32.xlu0 %v2189
    %v2191 = vpop.xlane.xlu0 %2190
    %v2192 = vsel %vm477, %v2174, 0.0
    %2193 = vadd.xlane.f32.xlu0 %v2192
    %v2194 = vpop.xlane.xlu0 %2193
    %v2195 = vsel %vm477, %v2175, 0.0
    %2196 = vadd.xlane.f32.xlu0 %v2195
    %v2197 = vpop.xlane.xlu0 %2196
    %v2198 = vsel %vm477, %v2176, 0.0
    %2199 = vadd.xlane.f32.xlu0 %v2198
    %v2200 = vpop.xlane.xlu0 %2199
    %v2202 = vlaneseq
    %v2203 = vshrl.u32 %v2202, 7
    %v2204 = vsub.s32 %v504, %v2203
    %v2205 = vrot.slane %v2160, %v2204
    %v2206 = vsel %vm510, %v2205, %v2205
    %v2207 = vsel %vm512, %v2205, %v2206
    %v2208 = vsel %vm514, %v2205, %v2207
    %v2209 = vsel %vm516, %v2205, %v2208
    %v2210 = vsel %vm518, %v2205, %v2209
    %v2211 = vsel %vm520, %v2205, %v2210
    %v2213 = vadd.f32 %v2148, %v2211
    %v2222 = vlaneseq
    %v2223 = vshrl.u32 %v2222, 7
    %v2224 = vsub.s32 %v504, %v2223
    %v2225 = vrot.slane %v2179, %v2224
    %v2226 = vlaneseq
    %v2227 = vshrl.u32 %v2226, 7
    %v2228 = vsub.s32 %v504, %v2227
    %v2229 = vrot.slane %v2182, %v2228
    %v2230 = vlaneseq
    %v2231 = vshrl.u32 %v2230, 7
    %v2232 = vsub.s32 %v504, %v2231
    %v2233 = vrot.slane %v2185, %v2232
    %v2234 = vlaneseq
    %v2235 = vshrl.u32 %v2234, 7
    %v2236 = vsub.s32 %v504, %v2235
    %v2237 = vrot.slane %v2188, %v2236
    %v2238 = vlaneseq
    %v2239 = vshrl.u32 %v2238, 7
    %v2240 = vsub.s32 %v504, %v2239
    %v2241 = vrot.slane %v2191, %v2240
    %v2242 = vlaneseq
    %v2243 = vshrl.u32 %v2242, 7
    %v2244 = vsub.s32 %v504, %v2243
    %v2245 = vrot.slane %v2194, %v2244
    %v2246 = vlaneseq
    %v2247 = vshrl.u32 %v2246, 7
    %v2248 = vsub.s32 %v504, %v2247
    %v2249 = vrot.slane %v2197, %v2248
    %v2250 = vlaneseq
    %v2251 = vshrl.u32 %v2250, 7
    %v2252 = vsub.s32 %v504, %v2251
    %v2253 = vrot.slane %v2200, %v2252
    %v2254 = vsel %vm509, %v2229, %v2225
    %v2255 = vsel %vm510, %v2233, %v2254
    %v2256 = vsel %vm512, %v2237, %v2255
    %v2257 = vsel %vm514, %v2241, %v2256
    %v2258 = vsel %vm516, %v2245, %v2257
    %v2259 = vsel %vm518, %v2249, %v2258
    %v2260 = vsel %vm520, %v2253, %v2259
    %v2262 = vadd.f32 %v2213, %v2260
    %v2263 = vsel %vm477, %v2262, -inf
    %2264 = vmax.xlane.f32.xlu0 %v2263
    %v2265 = vpop.xlane.xlu0 %2264
    %v2266 = vsub.f32 %v2262, %v2265
    %v2267 = vmul.f32 %v2266, 1.442695
    %v2268 = vpow.pop %v2267
    %v2269 = vsel %vm477, %v2268, 0.0
    %2270 = vadd.xlane.f32.xlu0 %v2269
    %v2271 = vpop.xlane.xlu0 %2270
    %v2272 = vrcp.pop %v2271
    %v2273 = vmul.f32 %v2268, %v2272
    %s2274 = scalar_lea.vmem %s39, 32
    %v2275 = vld [vmem:[%s2274] sm:$0xff]
    %v2276 = vld [vmem:[%s2274 + $0x8] sm:$0xff]
    %v2277 = vpack.c.bf16 %v2276, %v2275
    %2278 = vmatprep.subr.bf16.mxu0 0
    %2279 = vmatpush1.bf16.msra.mxu0 0
    %2280 = vmatprep.subr.bf16.mxu0 0
    %2281 = vmatpush1.bf16.msra.mxu0 0
    %2282 = vmatprep.subr.bf16.mxu0 0
    %2283 = vmatpush1.bf16.msra.mxu0 0
    %2284 = vmatprep.subr.bf16.mxu0 0
    %2285 = vmatpush1.bf16.msra.mxu0 0
    %2286 = vmatprep.subr.bf16.mxu0 0
    %2287 = vmatpush1.bf16.msra.mxu0 0
    %2288 = vmatprep.subr.bf16.mxu0 0
    %2289 = vmatpush1.bf16.msra.mxu0 0
    %2290 = vmatprep.subr.bf16.mxu0 0
    %2291 = vmatpush1.bf16.msra.mxu0 0
    %2292 = vmatprep.subr.bf16.mxu0 0
    %2293 = vmatpush1.bf16.msra.mxu0 %v2277
    %2294 = vmatprep.subr.bf16.mxu0 0
    %2295 = vmatpush2.bf16.msra.mxu0 0
    %2296 = vmatprep.subr.bf16.mxu0 0
    %2297 = vmatpush2.bf16.msra.mxu0 0
    %2298 = vmatprep.subr.bf16.mxu0 0
    %2299 = vmatpush2.bf16.msra.mxu0 0
    %2300 = vmatprep.subr.bf16.mxu0 0
    %2301 = vmatpush2.bf16.msra.mxu0 0
    %2302 = vmatprep.subr.bf16.mxu0 0
    %2303 = vmatpush2.bf16.msra.mxu0 0
    %2304 = vmatprep.subr.bf16.mxu0 0
    %2305 = vmatpush2.bf16.msra.mxu0 0
    %2306 = vmatprep.subr.bf16.mxu0 0
    %2307 = vmatpush2.bf16.msra.mxu0 0
    %2308 = vmatprep.subr.bf16.mxu0 0
    %2309 = vmatpush2.bf16.msra.mxu0 0
    %2310 = vmatprep.mubr.bf16.mxu0 0
    %2311 = vmatmul.mubr.bf16.gmra.mxu0 %v1818
    %v2312 = vpop.f32.mrf.mxu0
    %v2313 = vadd.f32 0.0, %v2312
    %v2314 = vpop.f32.mrf.mxu0
    %v2315 = vpop.f32.mrf.mxu0
    %v2316 = vpop.f32.mrf.mxu0
    %2317 = vdwg.mxu0
    %v2318 = vpack.c.bf16 %v2273, %v2273
    %v2319 = vpack.c.bf16 %v2313, %v2313
    %v2321 = vsel %vm477, %v2318, 0
    %v2324 = vsel %vm819, %v2319, 0
    %2326 = vmatprep.subr.bf16.mxu0 0
    %2327 = vmatpush1.bf16.msra.mxu0 0
    %2328 = vmatprep.subr.bf16.mxu0 0
    %2329 = vmatpush1.bf16.msra.mxu0 0
    %2330 = vmatprep.subr.bf16.mxu0 0
    %2331 = vmatpush1.bf16.msra.mxu0 0
    %2332 = vmatprep.subr.bf16.mxu0 0
    %2333 = vmatpush1.bf16.msra.mxu0 0
    %2334 = vmatprep.subr.bf16.mxu0 0
    %2335 = vmatpush1.bf16.msra.mxu0 0
    %2336 = vmatprep.subr.bf16.mxu0 0
    %2337 = vmatpush1.bf16.msra.mxu0 0
    %2338 = vmatprep.subr.bf16.mxu0 0
    %2339 = vmatpush1.bf16.msra.mxu0 0
    %2340 = vmatprep.subr.bf16.mxu0 0
    %2341 = vmatpush1.bf16.msra.mxu0 %v2324
    %2342 = vmatprep.subr.bf16.mxu0 0
    %2343 = vmatpush2.bf16.msra.mxu0 0
    %2344 = vmatprep.subr.bf16.mxu0 0
    %2345 = vmatpush2.bf16.msra.mxu0 0
    %2346 = vmatprep.subr.bf16.mxu0 0
    %2347 = vmatpush2.bf16.msra.mxu0 0
    %2348 = vmatprep.subr.bf16.mxu0 0
    %2349 = vmatpush2.bf16.msra.mxu0 0
    %2350 = vmatprep.subr.bf16.mxu0 0
    %2351 = vmatpush2.bf16.msra.mxu0 0
    %2352 = vmatprep.subr.bf16.mxu0 0
    %2353 = vmatpush2.bf16.msra.mxu0 0
    %2354 = vmatprep.subr.bf16.mxu0 0
    %2355 = vmatpush2.bf16.msra.mxu0 0
    %2356 = vmatprep.subr.bf16.mxu0 0
    %2357 = vmatpush2.bf16.msra.mxu0 0
    %2358 = vmatprep.mubr.bf16.mxu0 0
    %2359 = vmatmul.mubr.bf16.gmra.mxu0 %v2321
    %v2360 = vpop.f32.mrf.mxu0
    %v2361 = vadd.f32 0.0, %v2360
    %v2362 = vpop.f32.mrf.mxu0
    %v2363 = vpop.f32.mrf.mxu0
    %v2364 = vpop.f32.mrf.mxu0
    %2365 = vdwg.mxu0
    %v2366 = vadd.f32 %v2132, %v2361
    %s2367 = scalar_lea.vmem [#allocation21], 3
    %v2368 = vld [vmem:[%s2367] sm:$0x1]
    %v2370 = vlaneseq
    %v2371 = vshrl.u32 %v2370, 7
    %v2372 = vsub.s32 0, %v2371
    %v2373 = vrot.slane %v2368, %v2372
    %v2375 = vmul.f32 %v428, %v2373
    %v2376 = vsel %vm447, %v2375, 0.0
    %2377 = vadd.xlane.f32.xlu0 %v2376
    %v2378 = vpop.xlane.xlu0 %2377
    %s2379 = scalar_lea.vmem [#allocation23], 3
    %v2380 = vld [vmem:[%s2379] sm:$0x1]
    %v2382 = vlaneseq
    %v2383 = vshrl.u32 %v2382, 7
    %v2384 = vsub.s32 0, %v2383
    %v2385 = vrot.slane %v2380, %v2384
    %v2387 = vmul.f32 %v428, %v2385
    %v2388 = vsel %vm447, %v2387, 0.0
    %2389 = vadd.xlane.f32.xlu0 %v2388
    %v2390 = vpop.xlane.xlu0 %2389
    %s2391 = scalar_lea.vmem [#allocation24], 3
    %v2392 = vld [vmem:[%s2391] sm:$0x1]
    %v2394 = vlaneseq
    %v2395 = vshrl.u32 %v2394, 7
    %v2396 = vsub.s32 0, %v2395
    %v2397 = vrot.slane %v2392, %v2396
    %v2399 = vmul.f32 %v429, %v2397
    %v2400 = vmul.f32 %v430, %v2397
    %v2401 = vmul.f32 %v431, %v2397
    %v2402 = vmul.f32 %v432, %v2397
    %v2403 = vmul.f32 %v433, %v2397
    %v2404 = vmul.f32 %v434, %v2397
    %v2405 = vmul.f32 %v435, %v2397
    %v2406 = vmul.f32 %v436, %v2397
    %v2407 = vsel %vm477, %v2399, 0.0
    %2408 = vadd.xlane.f32.xlu0 %v2407
    %v2409 = vpop.xlane.xlu0 %2408
    %v2410 = vsel %vm477, %v2400, 0.0
    %2411 = vadd.xlane.f32.xlu0 %v2410
    %v2412 = vpop.xlane.xlu0 %2411
    %v2413 = vsel %vm477, %v2401, 0.0
    %2414 = vadd.xlane.f32.xlu0 %v2413
    %v2415 = vpop.xlane.xlu0 %2414
    %v2416 = vsel %vm477, %v2402, 0.0
    %2417 = vadd.xlane.f32.xlu0 %v2416
    %v2418 = vpop.xlane.xlu0 %2417
    %v2419 = vsel %vm477, %v2403, 0.0
    %2420 = vadd.xlane.f32.xlu0 %v2419
    %v2421 = vpop.xlane.xlu0 %2420
    %v2422 = vsel %vm477, %v2404, 0.0
    %2423 = vadd.xlane.f32.xlu0 %v2422
    %v2424 = vpop.xlane.xlu0 %2423
    %v2425 = vsel %vm477, %v2405, 0.0
    %2426 = vadd.xlane.f32.xlu0 %v2425
    %v2427 = vpop.xlane.xlu0 %2426
    %v2428 = vsel %vm477, %v2406, 0.0
    %2429 = vadd.xlane.f32.xlu0 %v2428
    %v2430 = vpop.xlane.xlu0 %2429
    %v2432 = vlaneseq
    %v2433 = vshrl.u32 %v2432, 7
    %v2434 = vsub.s32 %v504, %v2433
    %v2435 = vrot.slane %v2390, %v2434
    %v2436 = vsel %vm510, %v2435, %v2435
    %v2437 = vsel %vm512, %v2435, %v2436
    %v2438 = vsel %vm514, %v2435, %v2437
    %v2439 = vsel %vm516, %v2435, %v2438
    %v2440 = vsel %vm518, %v2435, %v2439
    %v2441 = vsel %vm520, %v2435, %v2440
    %v2443 = vadd.f32 %v2378, %v2441
    %v2452 = vlaneseq
    %v2453 = vshrl.u32 %v2452, 7
    %v2454 = vsub.s32 %v504, %v2453
    %v2455 = vrot.slane %v2409, %v2454
    %v2456 = vlaneseq
    %v2457 = vshrl.u32 %v2456, 7
    %v2458 = vsub.s32 %v504, %v2457
    %v2459 = vrot.slane %v2412, %v2458
    %v2460 = vlaneseq
    %v2461 = vshrl.u32 %v2460, 7
    %v2462 = vsub.s32 %v504, %v2461
    %v2463 = vrot.slane %v2415, %v2462
    %v2464 = vlaneseq
    %v2465 = vshrl.u32 %v2464, 7
    %v2466 = vsub.s32 %v504, %v2465
    %v2467 = vrot.slane %v2418, %v2466
    %v2468 = vlaneseq
    %v2469 = vshrl.u32 %v2468, 7
    %v2470 = vsub.s32 %v504, %v2469
    %v2471 = vrot.slane %v2421, %v2470
    %v2472 = vlaneseq
    %v2473 = vshrl.u32 %v2472, 7
    %v2474 = vsub.s32 %v504, %v2473
    %v2475 = vrot.slane %v2424, %v2474
    %v2476 = vlaneseq
    %v2477 = vshrl.u32 %v2476, 7
    %v2478 = vsub.s32 %v504, %v2477
    %v2479 = vrot.slane %v2427, %v2478
    %v2480 = vlaneseq
    %v2481 = vshrl.u32 %v2480, 7
    %v2482 = vsub.s32 %v504, %v2481
    %v2483 = vrot.slane %v2430, %v2482
    %v2484 = vsel %vm509, %v2459, %v2455
    %v2485 = vsel %vm510, %v2463, %v2484
    %v2486 = vsel %vm512, %v2467, %v2485
    %v2487 = vsel %vm514, %v2471, %v2486
    %v2488 = vsel %vm516, %v2475, %v2487
    %v2489 = vsel %vm518, %v2479, %v2488
    %v2490 = vsel %vm520, %v2483, %v2489
    %v2492 = vadd.f32 %v2443, %v2490
    %v2493 = vsel %vm477, %v2492, -inf
    %2494 = vmax.xlane.f32.xlu0 %v2493
    %v2495 = vpop.xlane.xlu0 %2494
    %v2496 = vsub.f32 %v2492, %v2495
    %v2497 = vmul.f32 %v2496, 1.442695
    %v2498 = vpow.pop %v2497
    %v2499 = vsel %vm477, %v2498, 0.0
    %2500 = vadd.xlane.f32.xlu0 %v2499
    %v2501 = vpop.xlane.xlu0 %2500
    %v2502 = vrcp.pop %v2501
    %v2503 = vmul.f32 %v2498, %v2502
    %s2504 = scalar_lea.vmem %s39, 48
    %v2505 = vld [vmem:[%s2504] sm:$0xff]
    %v2506 = vld [vmem:[%s2504 + $0x8] sm:$0xff]
    %v2507 = vpack.c.bf16 %v2506, %v2505
    %2508 = vmatprep.subr.bf16.mxu0 0
    %2509 = vmatpush1.bf16.msra.mxu0 0
    %2510 = vmatprep.subr.bf16.mxu0 0
    %2511 = vmatpush1.bf16.msra.mxu0 0
    %2512 = vmatprep.subr.bf16.mxu0 0
    %2513 = vmatpush1.bf16.msra.mxu0 0
    %2514 = vmatprep.subr.bf16.mxu0 0
    %2515 = vmatpush1.bf16.msra.mxu0 0
    %2516 = vmatprep.subr.bf16.mxu0 0
    %2517 = vmatpush1.bf16.msra.mxu0 0
    %2518 = vmatprep.subr.bf16.mxu0 0
    %2519 = vmatpush1.bf16.msra.mxu0 0
    %2520 = vmatprep.subr.bf16.mxu0 0
    %2521 = vmatpush1.bf16.msra.mxu0 0
    %2522 = vmatprep.subr.bf16.mxu0 0
    %2523 = vmatpush1.bf16.msra.mxu0 %v2507
    %2524 = vmatprep.subr.bf16.mxu0 0
    %2525 = vmatpush2.bf16.msra.mxu0 0
    %2526 = vmatprep.subr.bf16.mxu0 0
    %2527 = vmatpush2.bf16.msra.mxu0 0
    %2528 = vmatprep.subr.bf16.mxu0 0
    %2529 = vmatpush2.bf16.msra.mxu0 0
    %2530 = vmatprep.subr.bf16.mxu0 0
    %2531 = vmatpush2.bf16.msra.mxu0 0
    %2532 = vmatprep.subr.bf16.mxu0 0
    %2533 = vmatpush2.bf16.msra.mxu0 0
    %2534 = vmatprep.subr.bf16.mxu0 0
    %2535 = vmatpush2.bf16.msra.mxu0 0
    %2536 = vmatprep.subr.bf16.mxu0 0
    %2537 = vmatpush2.bf16.msra.mxu0 0
    %2538 = vmatprep.subr.bf16.mxu0 0
    %2539 = vmatpush2.bf16.msra.mxu0 0
    %2540 = vmatprep.mubr.bf16.mxu0 0
    %2541 = vmatmul.mubr.bf16.gmra.mxu0 %v1818
    %v2542 = vpop.f32.mrf.mxu0
    %v2543 = vadd.f32 0.0, %v2542
    %v2544 = vpop.f32.mrf.mxu0
    %v2545 = vpop.f32.mrf.mxu0
    %v2546 = vpop.f32.mrf.mxu0
    %2547 = vdwg.mxu0
    %v2548 = vpack.c.bf16 %v2503, %v2503
    %v2549 = vpack.c.bf16 %v2543, %v2543
    %v2551 = vsel %vm477, %v2548, 0
    %v2554 = vsel %vm819, %v2549, 0
    %2556 = vmatprep.subr.bf16.mxu0 0
    %2557 = vmatpush1.bf16.msra.mxu0 0
    %2558 = vmatprep.subr.bf16.mxu0 0
    %2559 = vmatpush1.bf16.msra.mxu0 0
    %2560 = vmatprep.subr.bf16.mxu0 0
    %2561 = vmatpush1.bf16.msra.mxu0 0
    %2562 = vmatprep.subr.bf16.mxu0 0
    %2563 = vmatpush1.bf16.msra.mxu0 0
    %2564 = vmatprep.subr.bf16.mxu0 0
    %2565 = vmatpush1.bf16.msra.mxu0 0
    %2566 = vmatprep.subr.bf16.mxu0 0
    %2567 = vmatpush1.bf16.msra.mxu0 0
    %2568 = vmatprep.subr.bf16.mxu0 0
    %2569 = vmatpush1.bf16.msra.mxu0 0
    %2570 = vmatprep.subr.bf16.mxu0 0
    %2571 = vmatpush1.bf16.msra.mxu0 %v2554
    %2572 = vmatprep.subr.bf16.mxu0 0
    %2573 = vmatpush2.bf16.msra.mxu0 0
    %2574 = vmatprep.subr.bf16.mxu0 0
    %2575 = vmatpush2.bf16.msra.mxu0 0
    %2576 = vmatprep.subr.bf16.mxu0 0
    %2577 = vmatpush2.bf16.msra.mxu0 0
    %2578 = vmatprep.subr.bf16.mxu0 0
    %2579 = vmatpush2.bf16.msra.mxu0 0
    %2580 = vmatprep.subr.bf16.mxu0 0
    %2581 = vmatpush2.bf16.msra.mxu0 0
    %2582 = vmatprep.subr.bf16.mxu0 0
    %2583 = vmatpush2.bf16.msra.mxu0 0
    %2584 = vmatprep.subr.bf16.mxu0 0
    %2585 = vmatpush2.bf16.msra.mxu0 0
    %2586 = vmatprep.subr.bf16.mxu0 0
    %2587 = vmatpush2.bf16.msra.mxu0 0
    %2588 = vmatprep.mubr.bf16.mxu0 0
    %2589 = vmatmul.mubr.bf16.gmra.mxu0 %v2551
    %v2590 = vpop.f32.mrf.mxu0
    %v2591 = vadd.f32 0.0, %v2590
    %v2592 = vpop.f32.mrf.mxu0
    %v2593 = vpop.f32.mrf.mxu0
    %v2594 = vpop.f32.mrf.mxu0
    %2595 = vdwg.mxu0
    %v2596 = vadd.f32 %v2366, %v2591
    %v2597 = vadd.f32 %v428, %v2596
    %v2598 = vld [vmem:[%s41] sm:$0x1]
    %v2600 = vlaneseq
    %v2601 = vshrl.u32 %v2600, 7
    %v2602 = vsub.s32 0, %v2601
    %v2603 = vrot.slane %v2598, %v2602
    %v2605 = vadd.f32 %v2597, %v2603
    %v2606 = vld [vmem:[%s43] sm:$0xff]
    %v2607 = vld [vmem:[%s43 + $0x8] sm:$0xff]
    %v2608 = vpack.c.bf16 %v2607, %v2606
    %2609 = vmatprep.subr.bf16.mxu0 0
    %2610 = vmatpush1.bf16.msra.mxu0 0
    %2611 = vmatprep.subr.bf16.mxu0 0
    %2612 = vmatpush1.bf16.msra.mxu0 0
    %2613 = vmatprep.subr.bf16.mxu0 0
    %2614 = vmatpush1.bf16.msra.mxu0 0
    %2615 = vmatprep.subr.bf16.mxu0 0
    %2616 = vmatpush1.bf16.msra.mxu0 0
    %2617 = vmatprep.subr.bf16.mxu0 0
    %2618 = vmatpush1.bf16.msra.mxu0 0
    %2619 = vmatprep.subr.bf16.mxu0 0
    %2620 = vmatpush1.bf16.msra.mxu0 0
    %2621 = vmatprep.subr.bf16.mxu0 0
    %2622 = vmatpush1.bf16.msra.mxu0 0
    %2623 = vmatprep.subr.bf16.mxu0 0
    %2624 = vmatpush1.bf16.msra.mxu0 %v2608
    %2625 = vmatprep.subr.bf16.mxu0 0
    %2626 = vmatpush2.bf16.msra.mxu0 0
    %2627 = vmatprep.subr.bf16.mxu0 0
    %2628 = vmatpush2.bf16.msra.mxu0 0
    %2629 = vmatprep.subr.bf16.mxu0 0
    %2630 = vmatpush2.bf16.msra.mxu0 0
    %2631 = vmatprep.subr.bf16.mxu0 0
    %2632 = vmatpush2.bf16.msra.mxu0 0
    %2633 = vmatprep.subr.bf16.mxu0 0
    %2634 = vmatpush2.bf16.msra.mxu0 0
    %2635 = vmatprep.subr.bf16.mxu0 0
    %2636 = vmatpush2.bf16.msra.mxu0 0
    %2637 = vmatprep.subr.bf16.mxu0 0
    %2638 = vmatpush2.bf16.msra.mxu0 0
    %2639 = vmatprep.subr.bf16.mxu0 0
    %2640 = vmatpush2.bf16.msra.mxu0 0
    %2641 = vmatprep.mubr.bf16.mxu0 0
    %2642 = vmatmul.mubr.bf16.gmra.mxu0 %v1818
    %v2643 = vpop.f32.mrf.mxu0
    %v2644 = vadd.f32 0.0, %v2643
    %v2645 = vpop.f32.mrf.mxu0
    %v2646 = vpop.f32.mrf.mxu0
    %v2647 = vpop.f32.mrf.mxu0
    %2648 = vdwg.mxu0
    %v2649 = vld [vmem:[%s45] sm:$0xff]
    %v2650 = vld [vmem:[%s45 + $0x8] sm:$0xff]
    %v2651 = vpack.c.bf16 %v2650, %v2649
    %2652 = vmatprep.subr.bf16.mxu0 0
    %2653 = vmatpush1.bf16.msra.mxu0 0
    %2654 = vmatprep.subr.bf16.mxu0 0
    %2655 = vmatpush1.bf16.msra.mxu0 0
    %2656 = vmatprep.subr.bf16.mxu0 0
    %2657 = vmatpush1.bf16.msra.mxu0 0
    %2658 = vmatprep.subr.bf16.mxu0 0
    %2659 = vmatpush1.bf16.msra.mxu0 0
    %2660 = vmatprep.subr.bf16.mxu0 0
    %2661 = vmatpush1.bf16.msra.mxu0 0
    %2662 = vmatprep.subr.bf16.mxu0 0
    %2663 = vmatpush1.bf16.msra.mxu0 0
    %2664 = vmatprep.subr.bf16.mxu0 0
    %2665 = vmatpush1.bf16.msra.mxu0 0
    %2666 = vmatprep.subr.bf16.mxu0 0
    %2667 = vmatpush1.bf16.msra.mxu0 %v2651
    %2668 = vmatprep.subr.bf16.mxu0 0
    %2669 = vmatpush2.bf16.msra.mxu0 0
    %2670 = vmatprep.subr.bf16.mxu0 0
    %2671 = vmatpush2.bf16.msra.mxu0 0
    %2672 = vmatprep.subr.bf16.mxu0 0
    %2673 = vmatpush2.bf16.msra.mxu0 0
    %2674 = vmatprep.subr.bf16.mxu0 0
    %2675 = vmatpush2.bf16.msra.mxu0 0
    %2676 = vmatprep.subr.bf16.mxu0 0
    %2677 = vmatpush2.bf16.msra.mxu0 0
    %2678 = vmatprep.subr.bf16.mxu0 0
    %2679 = vmatpush2.bf16.msra.mxu0 0
    %2680 = vmatprep.subr.bf16.mxu0 0
    %2681 = vmatpush2.bf16.msra.mxu0 0
    %2682 = vmatprep.subr.bf16.mxu0 0
    %2683 = vmatpush2.bf16.msra.mxu0 0
    %2684 = vmatprep.mubr.bf16.mxu0 0
    %2685 = vmatmul.mubr.bf16.gmra.mxu0 %v1818
    %v2686 = vpop.f32.mrf.mxu0
    %v2687 = vadd.f32 0.0, %v2686
    %v2688 = vpop.f32.mrf.mxu0
    %v2689 = vpop.f32.mrf.mxu0
    %v2690 = vpop.f32.mrf.mxu0
    %2691 = vdwg.mxu0
    %v2692 = vld [vmem:[#allocation26] sm:$0xff]
    %v2693 = vpack.c.bf16 %v430, %v429
    %v2694 = vpack.c.bf16 %v432, %v431
    %v2695 = vpack.c.bf16 %v434, %v433
    %v2696 = vpack.c.bf16 %v436, %v435
    %v2697 = vpack.c.bf16 %v2692, %v2692
    %v2699 = vsel %vm477, %v2693, 0
    %v2702 = vsel %vm477, %v2694, 0
    %v2705 = vsel %vm477, %v2695, 0
    %v2708 = vsel %vm477, %v2696, 0
    %v2711 = vsel %vm819, %v2697, 0
    %2713 = vmatprep.subr.bf16.mxu0 0
    %2714 = vmatpush1.bf16.msra.mxu0 0
    %2715 = vmatprep.subr.bf16.mxu0 0
    %2716 = vmatpush1.bf16.msra.mxu0 0
    %2717 = vmatprep.subr.bf16.mxu0 0
    %2718 = vmatpush1.bf16.msra.mxu0 0
    %2719 = vmatprep.subr.bf16.mxu0 0
    %2720 = vmatpush1.bf16.msra.mxu0 0
    %2721 = vmatprep.subr.bf16.mxu0 0
    %2722 = vmatpush1.bf16.msra.mxu0 0
    %2723 = vmatprep.subr.bf16.mxu0 0
    %2724 = vmatpush1.bf16.msra.mxu0 0
    %2725 = vmatprep.subr.bf16.mxu0 0
    %2726 = vmatpush1.bf16.msra.mxu0 0
    %2727 = vmatprep.subr.bf16.mxu0 0
    %2728 = vmatpush1.bf16.msra.mxu0 %v2711
    %2729 = vmatprep.subr.bf16.mxu0 0
    %2730 = vmatpush2.bf16.msra.mxu0 0
    %2731 = vmatprep.subr.bf16.mxu0 0
    %2732 = vmatpush2.bf16.msra.mxu0 0
    %2733 = vmatprep.subr.bf16.mxu0 0
    %2734 = vmatpush2.bf16.msra.mxu0 0
    %2735 = vmatprep.subr.bf16.mxu0 0
    %2736 = vmatpush2.bf16.msra.mxu0 0
    %2737 = vmatprep.subr.bf16.mxu0 0
    %2738 = vmatpush2.bf16.msra.mxu0 0
    %2739 = vmatprep.subr.bf16.mxu0 0
    %2740 = vmatpush2.bf16.msra.mxu0 0
    %2741 = vmatprep.subr.bf16.mxu0 0
    %2742 = vmatpush2.bf16.msra.mxu0 0
    %2743 = vmatprep.subr.bf16.mxu0 0
    %2744 = vmatpush2.bf16.msra.mxu0 0
    %2745 = vmatprep.mubr.bf16.mxu0 0
    %2746 = vmatmul.mubr.bf16.gmra.mxu0 %v2699
    %v2747 = vpop.f32.mrf.mxu0
    %v2748 = vadd.f32 0.0, %v2747
    %v2749 = vpop.f32.mrf.mxu0
    %v2750 = vpop.f32.mrf.mxu0
    %v2751 = vadd.f32 0.0, %v2750
    %v2752 = vpop.f32.mrf.mxu0
    %2753 = vmatprep.mubr.bf16.mxu0 0
    %2754 = vmatmul.mubr.bf16.gmra.mxu0 %v2702
    %v2755 = vpop.f32.mrf.mxu0
    %v2756 = vadd.f32 0.0, %v2755
    %v2757 = vpop.f32.mrf.mxu0
    %v2758 = vpop.f32.mrf.mxu0
    %v2759 = vadd.f32 0.0, %v2758
    %v2760 = vpop.f32.mrf.mxu0
    %2761 = vmatprep.mubr.bf16.mxu0 0
    %2762 = vmatmul.mubr.bf16.gmra.mxu0 %v2705
    %v2763 = vpop.f32.mrf.mxu0
    %v2764 = vadd.f32 0.0, %v2763
    %v2765 = vpop.f32.mrf.mxu0
    %v2766 = vpop.f32.mrf.mxu0
    %v2767 = vadd.f32 0.0, %v2766
    %v2768 = vpop.f32.mrf.mxu0
    %2769 = vmatprep.mubr.bf16.mxu0 0
    %2770 = vmatmul.mubr.bf16.gmra.mxu0 %v2708
    %v2771 = vpop.f32.mrf.mxu0
    %v2772 = vadd.f32 0.0, %v2771
    %v2773 = vpop.f32.mrf.mxu0
    %v2774 = vpop.f32.mrf.mxu0
    %v2775 = vadd.f32 0.0, %v2774
    %v2776 = vpop.f32.mrf.mxu0
    %2777 = vdwg.mxu0
    %v2779 = vcombine.high %v2644, %v2644
    %v2781 = vunpack.c.l.s4 1966171168
    %v2782 = vunpack.c.0.s8 %v2781
    %v2783 = vlaneseq
    %v2784 = vshrl.u32 %v2783, 7
    %v2785 = vsub.s32 %v2782, %v2784
    %v2786 = vrot.slane %v2644, %v2785
    %v2788 = vunpack.c.l.s4 1966171168
    %v2789 = vunpack.c.0.s8 %v2788
    %v2790 = vlaneseq
    %v2791 = vshrl.u32 %v2790, 7
    %v2792 = vsub.s32 %v2789, %v2791
    %v2793 = vrot.slane %v2779, %v2792
    %v2794 = vcombine.high %v2786, %v2786
    %v2795 = vcombine.high %v2793, %v2793
    %v2797 = vunpack.c.l.s4 1966171168
    %v2798 = vunpack.c.0.s8 %v2797
    %v2799 = vlaneseq
    %v2800 = vshrl.u32 %v2799, 7
    %v2801 = vsub.s32 %v2798, %v2800
    %v2802 = vrot.slane %v2786, %v2801
    %v2804 = vunpack.c.l.s4 1966171168
    %v2805 = vunpack.c.0.s8 %v2804
    %v2806 = vlaneseq
    %v2807 = vshrl.u32 %v2806, 7
    %v2808 = vsub.s32 %v2805, %v2807
    %v2809 = vrot.slane %v2793, %v2808
    %v2811 = vunpack.c.l.s4 1966171168
    %v2812 = vunpack.c.0.s8 %v2811
    %v2813 = vlaneseq
    %v2814 = vshrl.u32 %v2813, 7
    %v2815 = vsub.s32 %v2812, %v2814
    %v2816 = vrot.slane %v2794, %v2815
    %v2818 = vunpack.c.l.s4 1966171168
    %v2819 = vunpack.c.0.s8 %v2818
    %v2820 = vlaneseq
    %v2821 = vshrl.u32 %v2820, 7
    %v2822 = vsub.s32 %v2819, %v2821
    %v2823 = vrot.slane %v2795, %v2822
    %v2824 = vcombine.high %v2802, %v2802
    %v2825 = vcombine.high %v2809, %v2809
    %v2826 = vcombine.high %v2816, %v2816
    %v2827 = vcombine.high %v2823, %v2823
    %v2828 = vlaneseq
    %v2829 = vshrl.u32 %v2828, 7
    %v2830 = vsub.s32 0, %v2829
    %v2831 = vrot.slane %v2802, %v2830
    %v2832 = vlaneseq
    %v2833 = vshrl.u32 %v2832, 7
    %v2834 = vsub.s32 0, %v2833
    %v2835 = vrot.slane %v2816, %v2834
    %v2836 = vlaneseq
    %v2837 = vshrl.u32 %v2836, 7
    %v2838 = vsub.s32 0, %v2837
    %v2839 = vrot.slane %v2824, %v2838
    %v2840 = vlaneseq
    %v2841 = vshrl.u32 %v2840, 7
    %v2842 = vsub.s32 0, %v2841
    %v2843 = vrot.slane %v2826, %v2842
    %v2844 = vlaneseq
    %v2845 = vshrl.u32 %v2844, 7
    %v2846 = vsub.s32 0, %v2845
    %v2847 = vrot.slane %v2809, %v2846
    %v2848 = vlaneseq
    %v2849 = vshrl.u32 %v2848, 7
    %v2850 = vsub.s32 0, %v2849
    %v2851 = vrot.slane %v2823, %v2850
    %v2852 = vlaneseq
    %v2853 = vshrl.u32 %v2852, 7
    %v2854 = vsub.s32 0, %v2853
    %v2855 = vrot.slane %v2825, %v2854
    %v2856 = vlaneseq
    %v2857 = vshrl.u32 %v2856, 7
    %v2858 = vsub.s32 0, %v2857
    %v2859 = vrot.slane %v2827, %v2858
    %v2868 = vadd.f32 %v429, %v2831
    %v2869 = vadd.f32 %v430, %v2835
    %v2870 = vadd.f32 %v431, %v2839
    %v2871 = vadd.f32 %v432, %v2843
    %v2872 = vadd.f32 %v433, %v2847
    %v2873 = vadd.f32 %v434, %v2851
    %v2874 = vadd.f32 %v435, %v2855
    %v2875 = vadd.f32 %v436, %v2859
    %v2876 = vadd.f32 %v2868, %v2687
    %v2877 = vadd.f32 %v2869, %v2687
    %v2878 = vadd.f32 %v2870, %v2687
    %v2879 = vadd.f32 %v2871, %v2687
    %v2880 = vadd.f32 %v2872, %v2687
    %v2881 = vadd.f32 %v2873, %v2687
    %v2882 = vadd.f32 %v2874, %v2687
    %v2883 = vadd.f32 %v2875, %v2687
    %v2884 = vadd.f32 %v2876, %v2748
    %v2885 = vadd.f32 %v2877, %v2751
    %v2886 = vadd.f32 %v2878, %v2756
    %v2887 = vadd.f32 %v2879, %v2759
    %v2888 = vadd.f32 %v2880, %v2764
    %v2889 = vadd.f32 %v2881, %v2767
    %v2890 = vadd.f32 %v2882, %v2772
    %v2891 = vadd.f32 %v2883, %v2775
    %v2892 = vld [vmem:[#allocation27] sm:$0x1]
    %v2894 = vlaneseq
    %v2895 = vshrl.u32 %v2894, 7
    %v2896 = vsub.s32 0, %v2895
    %v2897 = vrot.slane %v2892, %v2896
    %v2899 = vadd.f32 %v2884, %v2897
    %v2900 = vadd.f32 %v2885, %v2897
    %v2901 = vadd.f32 %v2886, %v2897
    %v2902 = vadd.f32 %v2887, %v2897
    %v2903 = vadd.f32 %v2888, %v2897
    %v2904 = vadd.f32 %v2889, %v2897
    %v2905 = vadd.f32 %v2890, %v2897
    %v2906 = vadd.f32 %v2891, %v2897
    %v2907 = vld [vmem:[#allocation29] sm:$0xff]
    %v2908 = vld [vmem:[#allocation29 + $0x8] sm:$0xff]
    %v2909 = vpack.c.bf16 %v1377, %v1377
    %v2910 = vpack.c.bf16 %v2908, %v2907
    %v2911 = vld [vmem:[#allocation30] sm:$0x1]
    %v2913 = vlaneseq
    %v2914 = vshrl.u32 %v2913, 7
    %v2915 = vsub.s32 0, %v2914
    %v2916 = vrot.slane %v2911, %v2915
    %v2919 = vsel %vm447, %v2909, 0
    %2921 = vmatprep.subr.bf16.mxu0 0
    %2922 = vmatpush1.bf16.msra.mxu0 0
    %2923 = vmatprep.subr.bf16.mxu0 0
    %2924 = vmatpush1.bf16.msra.mxu0 0
    %2925 = vmatprep.subr.bf16.mxu0 0
    %2926 = vmatpush1.bf16.msra.mxu0 0
    %2927 = vmatprep.subr.bf16.mxu0 0
    %2928 = vmatpush1.bf16.msra.mxu0 0
    %2929 = vmatprep.subr.bf16.mxu0 0
    %2930 = vmatpush1.bf16.msra.mxu0 0
    %2931 = vmatprep.subr.bf16.mxu0 0
    %2932 = vmatpush1.bf16.msra.mxu0 0
    %2933 = vmatprep.subr.bf16.mxu0 0
    %2934 = vmatpush1.bf16.msra.mxu0 0
    %2935 = vmatprep.subr.bf16.mxu0 0
    %2936 = vmatpush1.bf16.msra.mxu0 %v2910
    %2937 = vmatprep.subr.bf16.mxu0 0
    %2938 = vmatpush2.bf16.msra.mxu0 0
    %2939 = vmatprep.subr.bf16.mxu0 0
    %2940 = vmatpush2.bf16.msra.mxu0 0
    %2941 = vmatprep.subr.bf16.mxu0 0
    %2942 = vmatpush2.bf16.msra.mxu0 0
    %2943 = vmatprep.subr.bf16.mxu0 0
    %2944 = vmatpush2.bf16.msra.mxu0 0
    %2945 = vmatprep.subr.bf16.mxu0 0
    %2946 = vmatpush2.bf16.msra.mxu0 0
    %2947 = vmatprep.subr.bf16.mxu0 0
    %2948 = vmatpush2.bf16.msra.mxu0 0
    %2949 = vmatprep.subr.bf16.mxu0 0
    %2950 = vmatpush2.bf16.msra.mxu0 0
    %2951 = vmatprep.subr.bf16.mxu0 0
    %2952 = vmatpush2.bf16.msra.mxu0 0
    %2953 = vmatprep.mubr.bf16.mxu0 0
    %2954 = vmatmul.mubr.bf16.gmra.mxu0 %v2919
    %v2955 = vpop.f32.mrf.mxu0
    %v2956 = vadd.f32 %v2916, %v2955
    %v2957 = vpop.f32.mrf.mxu0
    %v2958 = vpop.f32.mrf.mxu0
    %v2959 = vpop.f32.mrf.mxu0
    %2960 = vdwg.mxu0
    %v2961 = vld [vmem:[#allocation32] sm:$0xff]
    %v2962 = vld [vmem:[#allocation32 + $0x8] sm:$0xff]
    %v2963 = vpack.c.bf16 %v2605, %v2605
    %v2964 = vpack.c.bf16 %v2962, %v2961
    %v2965 = vld [vmem:[#allocation33] sm:$0x1]
    %v2967 = vlaneseq
    %v2968 = vshrl.u32 %v2967, 7
    %v2969 = vsub.s32 0, %v2968
    %v2970 = vrot.slane %v2965, %v2969
    %v2973 = vsel %vm447, %v2963, 0
    %2975 = vmatprep.subr.bf16.mxu0 0
    %2976 = vmatpush1.bf16.msra.mxu0 0
    %2977 = vmatprep.subr.bf16.mxu0 0
    %2978 = vmatpush1.bf16.msra.mxu0 0
    %2979 = vmatprep.subr.bf16.mxu0 0
    %2980 = vmatpush1.bf16.msra.mxu0 0
    %2981 = vmatprep.subr.bf16.mxu0 0
    %2982 = vmatpush1.bf16.msra.mxu0 0
    %2983 = vmatprep.subr.bf16.mxu0 0
    %2984 = vmatpush1.bf16.msra.mxu0 0
    %2985 = vmatprep.subr.bf16.mxu0 0
    %2986 = vmatpush1.bf16.msra.mxu0 0
    %2987 = vmatprep.subr.bf16.mxu0 0
    %2988 = vmatpush1.bf16.msra.mxu0 0
    %2989 = vmatprep.subr.bf16.mxu0 0
    %2990 = vmatpush1.bf16.msra.mxu0 %v2964
    %2991 = vmatprep.subr.bf16.mxu0 0
    %2992 = vmatpush2.bf16.msra.mxu0 0
    %2993 = vmatprep.subr.bf16.mxu0 0
    %2994 = vmatpush2.bf16.msra.mxu0 0
    %2995 = vmatprep.subr.bf16.mxu0 0
    %2996 = vmatpush2.bf16.msra.mxu0 0
    %2997 = vmatprep.subr.bf16.mxu0 0
    %2998 = vmatpush2.bf16.msra.mxu0 0
    %2999 = vmatprep.subr.bf16.mxu0 0
    %3000 = vmatpush2.bf16.msra.mxu0 0
    %3001 = vmatprep.subr.bf16.mxu0 0
    %3002 = vmatpush2.bf16.msra.mxu0 0
    %3003 = vmatprep.subr.bf16.mxu0 0
    %3004 = vmatpush2.bf16.msra.mxu0 0
    %3005 = vmatprep.subr.bf16.mxu0 0
    %3006 = vmatpush2.bf16.msra.mxu0 0
    %3007 = vmatprep.mubr.bf16.mxu0 0
    %3008 = vmatmul.mubr.bf16.gmra.mxu0 %v2973
    %v3009 = vpop.f32.mrf.mxu0
    %v3010 = vadd.f32 %v2970, %v3009
    %v3011 = vpop.f32.mrf.mxu0
    %v3012 = vpop.f32.mrf.mxu0
    %v3013 = vpop.f32.mrf.mxu0
    %3014 = vdwg.mxu0
    %v3015 = vpack.c.bf16 %v437, %v437
    %v3016 = vpack.c.bf16 %v2956, %v2956
    %v3018 = vsel %vm477, %v3015, 0
    %v3021 = vsel %vm819, %v3016, 0
    %3023 = vmatprep.subr.bf16.mxu0 0
    %3024 = vmatpush1.bf16.msra.mxu0 0
    %3025 = vmatprep.subr.bf16.mxu0 0
    %3026 = vmatpush1.bf16.msra.mxu0 0
    %3027 = vmatprep.subr.bf16.mxu0 0
    %3028 = vmatpush1.bf16.msra.mxu0 0
    %3029 = vmatprep.subr.bf16.mxu0 0
    %3030 = vmatpush1.bf16.msra.mxu0 0
    %3031 = vmatprep.subr.bf16.mxu0 0
    %3032 = vmatpush1.bf16.msra.mxu0 0
    %3033 = vmatprep.subr.bf16.mxu0 0
    %3034 = vmatpush1.bf16.msra.mxu0 0
    %3035 = vmatprep.subr.bf16.mxu0 0
    %3036 = vmatpush1.bf16.msra.mxu0 0
    %3037 = vmatprep.subr.bf16.mxu0 0
    %3038 = vmatpush1.bf16.msra.mxu0 %v3021
    %3039 = vmatprep.subr.bf16.mxu0 0
    %3040 = vmatpush2.bf16.msra.mxu0 0
    %3041 = vmatprep.subr.bf16.mxu0 0
    %3042 = vmatpush2.bf16.msra.mxu0 0
    %3043 = vmatprep.subr.bf16.mxu0 0
    %3044 = vmatpush2.bf16.msra.mxu0 0
    %3045 = vmatprep.subr.bf16.mxu0 0
    %3046 = vmatpush2.bf16.msra.mxu0 0
    %3047 = vmatprep.subr.bf16.mxu0 0
    %3048 = vmatpush2.bf16.msra.mxu0 0
    %3049 = vmatprep.subr.bf16.mxu0 0
    %3050 = vmatpush2.bf16.msra.mxu0 0
    %3051 = vmatprep.subr.bf16.mxu0 0
    %3052 = vmatpush2.bf16.msra.mxu0 0
    %3053 = vmatprep.subr.bf16.mxu0 0
    %3054 = vmatpush2.bf16.msra.mxu0 0
    %3055 = vmatprep.mubr.bf16.mxu0 0
    %3056 = vmatmul.mubr.bf16.gmra.mxu0 %v3018
    %v3057 = vpop.f32.mrf.mxu0
    %v3058 = vadd.f32 0.0, %v3057
    %v3059 = vpop.f32.mrf.mxu0
    %v3060 = vpop.f32.mrf.mxu0
    %v3061 = vpop.f32.mrf.mxu0
    %3062 = vdwg.mxu0
    %v3063 = vpack.c.bf16 %v438, %v438
    %v3064 = vpack.c.bf16 %v3010, %v3010
    %v3066 = vsel %vm477, %v3063, 0
    %v3069 = vsel %vm819, %v3064, 0
    %3071 = vmatprep.subr.bf16.mxu0 0
    %3072 = vmatpush1.bf16.msra.mxu0 0
    %3073 = vmatprep.subr.bf16.mxu0 0
    %3074 = vmatpush1.bf16.msra.mxu0 0
    %3075 = vmatprep.subr.bf16.mxu0 0
    %3076 = vmatpush1.bf16.msra.mxu0 0
    %3077 = vmatprep.subr.bf16.mxu0 0
    %3078 = vmatpush1.bf16.msra.mxu0 0
    %3079 = vmatprep.subr.bf16.mxu0 0
    %3080 = vmatpush1.bf16.msra.mxu0 0
    %3081 = vmatprep.subr.bf16.mxu0 0
    %3082 = vmatpush1.bf16.msra.mxu0 0
    %3083 = vmatprep.subr.bf16.mxu0 0
    %3084 = vmatpush1.bf16.msra.mxu0 0
    %3085 = vmatprep.subr.bf16.mxu0 0
    %3086 = vmatpush1.bf16.msra.mxu0 %v3069
    %3087 = vmatprep.subr.bf16.mxu0 0
    %3088 = vmatpush2.bf16.msra.mxu0 0
    %3089 = vmatprep.subr.bf16.mxu0 0
    %3090 = vmatpush2.bf16.msra.mxu0 0
    %3091 = vmatprep.subr.bf16.mxu0 0
    %3092 = vmatpush2.bf16.msra.mxu0 0
    %3093 = vmatprep.subr.bf16.mxu0 0
    %3094 = vmatpush2.bf16.msra.mxu0 0
    %3095 = vmatprep.subr.bf16.mxu0 0
    %3096 = vmatpush2.bf16.msra.mxu0 0
    %3097 = vmatprep.subr.bf16.mxu0 0
    %3098 = vmatpush2.bf16.msra.mxu0 0
    %3099 = vmatprep.subr.bf16.mxu0 0
    %3100 = vmatpush2.bf16.msra.mxu0 0
    %3101 = vmatprep.subr.bf16.mxu0 0
    %3102 = vmatpush2.bf16.msra.mxu0 0
    %3103 = vmatprep.mubr.bf16.mxu0 0
    %3104 = vmatmul.mubr.bf16.gmra.mxu0 %v3066
    %v3105 = vpop.f32.mrf.mxu0
    %v3106 = vadd.f32 0.0, %v3105
    %v3107 = vpop.f32.mrf.mxu0
    %v3108 = vpop.f32.mrf.mxu0
    %v3109 = vpop.f32.mrf.mxu0
    %3110 = vdwg.mxu0
    %vm3111 = vcmask 261120
    %v3112 = vsel %vm3111, %v3058, 0.0
    %3113 = vadd.xlane.f32.xlu0 %v3112
    %v3114 = vpop.xlane.xlu0 %3113
    %v3115 = vsel %vm3111, %v3106, 0.0
    %3116 = vadd.xlane.f32.xlu0 %v3115
    %v3117 = vpop.xlane.xlu0 %3116
    %v3119 = vlaneseq
    %v3120 = vshrl.u32 %v3119, 7
    %v3121 = vsub.s32 %v504, %v3120
    %v3122 = vrot.slane %v3117, %v3121
    %v3123 = vsel %vm510, %v3122, %v3122
    %v3124 = vsel %vm512, %v3122, %v3123
    %v3125 = vsel %vm514, %v3122, %v3124
    %v3126 = vsel %vm516, %v3122, %v3125
    %v3127 = vsel %vm518, %v3122, %v3126
    %v3128 = vsel %vm520, %v3122, %v3127
    %v3130 = vadd.f32 %v3114, %v3128
    %v3131 = vsel %vm477, %v3130, -inf
    %3132 = vmax.xlane.f32.xlu0 %v3131
    %v3133 = vpop.xlane.xlu0 %3132
    %v3134 = vsub.f32 %v3130, %v3133
    %v3135 = vmul.f32 %v3134, 1.442695
    %v3136 = vpow.pop %v3135
    %v3137 = vsel %vm477, %v3136, 0.0
    %3138 = vadd.xlane.f32.xlu0 %v3137
    %v3139 = vpop.xlane.xlu0 %3138
    %v3140 = vrcp.pop %v3139
    %v3141 = vmul.f32 %v3136, %v3140
    %v3143 = vlaneseq
    %v3144 = vshrl.u32 %v3143, 7
    %v3145 = vsub.s32 %v504, %v3144
    %v3146 = vrot.slane %v3114, %v3145
    %v3147 = vsel %vm510, %v3146, %v3146
    %v3148 = vsel %vm512, %v3146, %v3147
    %v3149 = vsel %vm514, %v3146, %v3148
    %v3150 = vsel %vm516, %v3146, %v3149
    %v3151 = vsel %vm518, %v3146, %v3150
    %v3152 = vsel %vm520, %v3146, %v3151
    %v3154 = vadd.f32 %v3117, %v3152
    %v3155 = vsel %vm477, %v3154, -inf
    %3156 = vmax.xlane.f32.xlu0 %v3155
    %v3157 = vpop.xlane.xlu0 %3156
    %v3158 = vsub.f32 %v3154, %v3157
    %v3159 = vmul.f32 %v3158, 1.442695
    %v3160 = vpow.pop %v3159
    %v3161 = vsel %vm477, %v3160, 0.0
    %3162 = vadd.xlane.f32.xlu0 %v3161
    %v3163 = vpop.xlane.xlu0 %3162
    %v3164 = vrcp.pop %v3163
    %v3165 = vmul.f32 %v3160, %v3164
    %v3166 = vpack.c.bf16 %v3141, %v3141
    %v3168 = vsel %vm477, %v3166, 0
    %3170 = vmatprep.subr.bf16.mxu0 0
    %3171 = vmatpush1.bf16.msra.mxu0 0
    %3172 = vmatprep.subr.bf16.mxu0 0
    %3173 = vmatpush1.bf16.msra.mxu0 0
    %3174 = vmatprep.subr.bf16.mxu0 0
    %3175 = vmatpush1.bf16.msra.mxu0 0
    %3176 = vmatprep.subr.bf16.mxu0 0
    %3177 = vmatpush1.bf16.msra.mxu0 0
    %3178 = vmatprep.subr.bf16.mxu0 0
    %3179 = vmatpush1.bf16.msra.mxu0 0
    %3180 = vmatprep.subr.bf16.mxu0 0
    %3181 = vmatpush1.bf16.msra.mxu0 0
    %3182 = vmatprep.subr.bf16.mxu0 0
    %3183 = vmatpush1.bf16.msra.mxu0 0
    %3184 = vmatprep.subr.bf16.mxu0 0
    %3185 = vmatpush1.bf16.msra.mxu0 %v3069
    %3186 = vmatprep.subr.bf16.mxu0 0
    %3187 = vmatpush2.bf16.msra.mxu0 0
    %3188 = vmatprep.subr.bf16.mxu0 0
    %3189 = vmatpush2.bf16.msra.mxu0 0
    %3190 = vmatprep.subr.bf16.mxu0 0
    %3191 = vmatpush2.bf16.msra.mxu0 0
    %3192 = vmatprep.subr.bf16.mxu0 0
    %3193 = vmatpush2.bf16.msra.mxu0 0
    %3194 = vmatprep.subr.bf16.mxu0 0
    %3195 = vmatpush2.bf16.msra.mxu0 0
    %3196 = vmatprep.subr.bf16.mxu0 0
    %3197 = vmatpush2.bf16.msra.mxu0 0
    %3198 = vmatprep.subr.bf16.mxu0 0
    %3199 = vmatpush2.bf16.msra.mxu0 0
    %3200 = vmatprep.subr.bf16.mxu0 0
    %3201 = vmatpush2.bf16.msra.mxu0 0
    %3202 = vmatprep.mubr.bf16.mxu0 0
    %3203 = vmatmul.mubr.bf16.gmra.mxu0 %v3168
    %v3204 = vpop.f32.mrf.mxu0
    %v3205 = vadd.f32 0.0, %v3204
    %v3206 = vpop.f32.mrf.mxu0
    %v3207 = vpop.f32.mrf.mxu0
    %v3208 = vpop.f32.mrf.mxu0
    %3209 = vdwg.mxu0
    %v3210 = vld [vmem:[%s59] sm:$0xff]
    %v3211 = vld [vmem:[%s59 + $0x8] sm:$0xff]
    %v3212 = vld [vmem:[%s59 + $0x10] sm:$0xff]
    %v3213 = vld [vmem:[%s59 + $0x18] sm:$0xff]
    %v3214 = vpack.c.bf16 %v3205, %v3205
    %v3215 = vpack.c.bf16 %v3211, %v3210
    %v3216 = vpack.c.bf16 %v3213, %v3212
    %v3217 = vld [vmem:[%s61] sm:$0x1]
    %v3219 = vlaneseq
    %v3220 = vshrl.u32 %v3219, 7
    %v3221 = vsub.s32 0, %v3220
    %v3222 = vrot.slane %v3217, %v3221
    %v3225 = vsel %vm3111, %v3214, 0
    %3227 = vmatprep.subr.bf16.mxu0 0
    %3228 = vmatpush1.bf16.msra.mxu0 0
    %3229 = vmatprep.subr.bf16.mxu0 0
    %3230 = vmatpush1.bf16.msra.mxu0 0
    %3231 = vmatprep.subr.bf16.mxu0 0
    %3232 = vmatpush1.bf16.msra.mxu0 0
    %3233 = vmatprep.subr.bf16.mxu0 0
    %3234 = vmatpush1.bf16.msra.mxu0 0
    %3235 = vmatprep.subr.bf16.mxu0 0
    %3236 = vmatpush1.bf16.msra.mxu0 0
    %3237 = vmatprep.subr.bf16.mxu0 0
    %3238 = vmatpush1.bf16.msra.mxu0 0
    %3239 = vmatprep.subr.bf16.mxu0 0
    %3240 = vmatpush1.bf16.msra.mxu0 %v3216
    %3241 = vmatprep.subr.bf16.mxu0 0
    %3242 = vmatpush1.bf16.msra.mxu0 %v3215
    %3243 = vmatprep.subr.bf16.mxu0 0
    %3244 = vmatpush2.bf16.msra.mxu0 0
    %3245 = vmatprep.subr.bf16.mxu0 0
    %3246 = vmatpush2.bf16.msra.mxu0 0
    %3247 = vmatprep.subr.bf16.mxu0 0
    %3248 = vmatpush2.bf16.msra.mxu0 0
    %3249 = vmatprep.subr.bf16.mxu0 0
    %3250 = vmatpush2.bf16.msra.mxu0 0
    %3251 = vmatprep.subr.bf16.mxu0 0
    %3252 = vmatpush2.bf16.msra.mxu0 0
    %3253 = vmatprep.subr.bf16.mxu0 0
    %3254 = vmatpush2.bf16.msra.mxu0 0
    %3255 = vmatprep.subr.bf16.mxu0 0
    %3256 = vmatpush2.bf16.msra.mxu0 0
    %3257 = vmatprep.subr.bf16.mxu0 0
    %3258 = vmatpush2.bf16.msra.mxu0 0
    %3259 = vmatprep.mubr.bf16.mxu0 0
    %3260 = vmatmul.mubr.bf16.gmra.mxu0 %v3225
    %v3261 = vpop.f32.mrf.mxu0
    %v3262 = vadd.f32 %v3222, %v3261
    %v3263 = vpop.f32.mrf.mxu0
    %v3264 = vpop.f32.mrf.mxu0
    %v3265 = vpop.f32.mrf.mxu0
    %3266 = vdwg.mxu0
    %v3267 = vpack.c.bf16 %v3165, %v3165
    %v3269 = vsel %vm477, %v3267, 0
    %3271 = vmatprep.subr.bf16.mxu0 0
    %3272 = vmatpush1.bf16.msra.mxu0 0
    %3273 = vmatprep.subr.bf16.mxu0 0
    %3274 = vmatpush1.bf16.msra.mxu0 0
    %3275 = vmatprep.subr.bf16.mxu0 0
    %3276 = vmatpush1.bf16.msra.mxu0 0
    %3277 = vmatprep.subr.bf16.mxu0 0
    %3278 = vmatpush1.bf16.msra.mxu0 0
    %3279 = vmatprep.subr.bf16.mxu0 0
    %3280 = vmatpush1.bf16.msra.mxu0 0
    %3281 = vmatprep.subr.bf16.mxu0 0
    %3282 = vmatpush1.bf16.msra.mxu0 0
    %3283 = vmatprep.subr.bf16.mxu0 0
    %3284 = vmatpush1.bf16.msra.mxu0 0
    %3285 = vmatprep.subr.bf16.mxu0 0
    %3286 = vmatpush1.bf16.msra.mxu0 %v3021
    %3287 = vmatprep.subr.bf16.mxu0 0
    %3288 = vmatpush2.bf16.msra.mxu0 0
    %3289 = vmatprep.subr.bf16.mxu0 0
    %3290 = vmatpush2.bf16.msra.mxu0 0
    %3291 = vmatprep.subr.bf16.mxu0 0
    %3292 = vmatpush2.bf16.msra.mxu0 0
    %3293 = vmatprep.subr.bf16.mxu0 0
    %3294 = vmatpush2.bf16.msra.mxu0 0
    %3295 = vmatprep.subr.bf16.mxu0 0
    %3296 = vmatpush2.bf16.msra.mxu0 0
    %3297 = vmatprep.subr.bf16.mxu0 0
    %3298 = vmatpush2.bf16.msra.mxu0 0
    %3299 = vmatprep.subr.bf16.mxu0 0
    %3300 = vmatpush2.bf16.msra.mxu0 0
    %3301 = vmatprep.subr.bf16.mxu0 0
    %3302 = vmatpush2.bf16.msra.mxu0 0
    %3303 = vmatprep.mubr.bf16.mxu0 0
    %3304 = vmatmul.mubr.bf16.gmra.mxu0 %v3269
    %v3305 = vpop.f32.mrf.mxu0
    %v3306 = vadd.f32 0.0, %v3305
    %v3307 = vpop.f32.mrf.mxu0
    %v3308 = vpop.f32.mrf.mxu0
    %v3309 = vpop.f32.mrf.mxu0
    %3310 = vdwg.mxu0
    %v3311 = vld [vmem:[%s63] sm:$0xff]
    %v3312 = vld [vmem:[%s63 + $0x8] sm:$0xff]
    %v3313 = vld [vmem:[%s63 + $0x10] sm:$0xff]
    %v3314 = vld [vmem:[%s63 + $0x18] sm:$0xff]
    %v3315 = vpack.c.bf16 %v3306, %v3306
    %v3316 = vpack.c.bf16 %v3312, %v3311
    %v3317 = vpack.c.bf16 %v3314, %v3313
    %v3318 = vld [vmem:[%s65] sm:$0x1]
    %v3320 = vlaneseq
    %v3321 = vshrl.u32 %v3320, 7
    %v3322 = vsub.s32 0, %v3321
    %v3323 = vrot.slane %v3318, %v3322
    %v3326 = vsel %vm3111, %v3315, 0
    %3328 = vmatprep.subr.bf16.mxu0 0
    %3329 = vmatpush1.bf16.msra.mxu0 0
    %3330 = vmatprep.subr.bf16.mxu0 0
    %3331 = vmatpush1.bf16.msra.mxu0 0
    %3332 = vmatprep.subr.bf16.mxu0 0
    %3333 = vmatpush1.bf16.msra.mxu0 0
    %3334 = vmatprep.subr.bf16.mxu0 0
    %3335 = vmatpush1.bf16.msra.mxu0 0
    %3336 = vmatprep.subr.bf16.mxu0 0
    %3337 = vmatpush1.bf16.msra.mxu0 0
    %3338 = vmatprep.subr.bf16.mxu0 0
    %3339 = vmatpush1.bf16.msra.mxu0 0
    %3340 = vmatprep.subr.bf16.mxu0 0
    %3341 = vmatpush1.bf16.msra.mxu0 %v3317
    %3342 = vmatprep.subr.bf16.mxu0 0
    %3343 = vmatpush1.bf16.msra.mxu0 %v3316
    %3344 = vmatprep.subr.bf16.mxu0 0
    %3345 = vmatpush2.bf16.msra.mxu0 0
    %3346 = vmatprep.subr.bf16.mxu0 0
    %3347 = vmatpush2.bf16.msra.mxu0 0
    %3348 = vmatprep.subr.bf16.mxu0 0
    %3349 = vmatpush2.bf16.msra.mxu0 0
    %3350 = vmatprep.subr.bf16.mxu0 0
    %3351 = vmatpush2.bf16.msra.mxu0 0
    %3352 = vmatprep.subr.bf16.mxu0 0
    %3353 = vmatpush2.bf16.msra.mxu0 0
    %3354 = vmatprep.subr.bf16.mxu0 0
    %3355 = vmatpush2.bf16.msra.mxu0 0
    %3356 = vmatprep.subr.bf16.mxu0 0
    %3357 = vmatpush2.bf16.msra.mxu0 0
    %3358 = vmatprep.subr.bf16.mxu0 0
    %3359 = vmatpush2.bf16.msra.mxu0 0
    %3360 = vmatprep.mubr.bf16.mxu0 0
    %3361 = vmatmul.mubr.bf16.gmra.mxu0 %v3326
    %v3362 = vpop.f32.mrf.mxu0
    %v3363 = vadd.f32 %v3323, %v3362
    %v3364 = vpop.f32.mrf.mxu0
    %v3365 = vpop.f32.mrf.mxu0
    %v3366 = vpop.f32.mrf.mxu0
    %3367 = vdwg.mxu0
    %v3368 = vadd.f32 %v1377, %v3262
    %v3369 = vadd.f32 %v2605, %v3363
    %s3370 = scalar_lea.vmem [#allocation12], 4
    %v3371 = vld [vmem:[%s3370] sm:$0x1]
    %v3373 = vlaneseq
    %v3374 = vshrl.u32 %v3373, 7
    %v3375 = vsub.s32 0, %v3374
    %v3376 = vrot.slane %v3371, %v3375
    %v3378 = vmul.f32 %v3368, %v3376
    %v3379 = vsel %vm447, %v3378, 0.0
    %3380 = vadd.xlane.f32.xlu0 %v3379
    %v3381 = vpop.xlane.xlu0 %3380
    %s3382 = scalar_lea.vmem [#allocation14], 4
    %v3383 = vld [vmem:[%s3382] sm:$0x1]
    %v3385 = vlaneseq
    %v3386 = vshrl.u32 %v3385, 7
    %v3387 = vsub.s32 0, %v3386
    %v3388 = vrot.slane %v3383, %v3387
    %v3390 = vmul.f32 %v3368, %v3388
    %v3391 = vsel %vm447, %v3390, 0.0
    %3392 = vadd.xlane.f32.xlu0 %v3391
    %v3393 = vpop.xlane.xlu0 %3392
    %s3394 = scalar_lea.vmem [#allocation15], 4
    %v3395 = vld [vmem:[%s3394] sm:$0x1]
    %v3397 = vlaneseq
    %v3398 = vshrl.u32 %v3397, 7
    %v3399 = vsub.s32 0, %v3398
    %v3400 = vrot.slane %v3395, %v3399
    %v3402 = vmul.f32 %v1671, %v3400
    %v3403 = vmul.f32 %v1672, %v3400
    %v3404 = vmul.f32 %v1673, %v3400
    %v3405 = vmul.f32 %v1674, %v3400
    %v3406 = vmul.f32 %v1675, %v3400
    %v3407 = vmul.f32 %v1676, %v3400
    %v3408 = vmul.f32 %v1677, %v3400
    %v3409 = vmul.f32 %v1678, %v3400
    %v3410 = vsel %vm477, %v3402, 0.0
    %3411 = vadd.xlane.f32.xlu0 %v3410
    %v3412 = vpop.xlane.xlu0 %3411
    %v3413 = vsel %vm477, %v3403, 0.0
    %3414 = vadd.xlane.f32.xlu0 %v3413
    %v3415 = vpop.xlane.xlu0 %3414
    %v3416 = vsel %vm477, %v3404, 0.0
    %3417 = vadd.xlane.f32.xlu0 %v3416
    %v3418 = vpop.xlane.xlu0 %3417
    %v3419 = vsel %vm477, %v3405, 0.0
    %3420 = vadd.xlane.f32.xlu0 %v3419
    %v3421 = vpop.xlane.xlu0 %3420
    %v3422 = vsel %vm477, %v3406, 0.0
    %3423 = vadd.xlane.f32.xlu0 %v3422
    %v3424 = vpop.xlane.xlu0 %3423
    %v3425 = vsel %vm477, %v3407, 0.0
    %3426 = vadd.xlane.f32.xlu0 %v3425
    %v3427 = vpop.xlane.xlu0 %3426
    %v3428 = vsel %vm477, %v3408, 0.0
    %3429 = vadd.xlane.f32.xlu0 %v3428
    %v3430 = vpop.xlane.xlu0 %3429
    %v3431 = vsel %vm477, %v3409, 0.0
    %3432 = vadd.xlane.f32.xlu0 %v3431
    %v3433 = vpop.xlane.xlu0 %3432
    %v3435 = vlaneseq
    %v3436 = vshrl.u32 %v3435, 7
    %v3437 = vsub.s32 %v504, %v3436
    %v3438 = vrot.slane %v3393, %v3437
    %v3439 = vsel %vm510, %v3438, %v3438
    %v3440 = vsel %vm512, %v3438, %v3439
    %v3441 = vsel %vm514, %v3438, %v3440
    %v3442 = vsel %vm516, %v3438, %v3441
    %v3443 = vsel %vm518, %v3438, %v3442
    %v3444 = vsel %vm520, %v3438, %v3443
    %v3446 = vadd.f32 %v3381, %v3444
    %v3455 = vlaneseq
    %v3456 = vshrl.u32 %v3455, 7
    %v3457 = vsub.s32 %v504, %v3456
    %v3458 = vrot.slane %v3412, %v3457
    %v3459 = vlaneseq
    %v3460 = vshrl.u32 %v3459, 7
    %v3461 = vsub.s32 %v504, %v3460
    %v3462 = vrot.slane %v3415, %v3461
    %v3463 = vlaneseq
    %v3464 = vshrl.u32 %v3463, 7
    %v3465 = vsub.s32 %v504, %v3464
    %v3466 = vrot.slane %v3418, %v3465
    %v3467 = vlaneseq
    %v3468 = vshrl.u32 %v3467, 7
    %v3469 = vsub.s32 %v504, %v3468
    %v3470 = vrot.slane %v3421, %v3469
    %v3471 = vlaneseq
    %v3472 = vshrl.u32 %v3471, 7
    %v3473 = vsub.s32 %v504, %v3472
    %v3474 = vrot.slane %v3424, %v3473
    %v3475 = vlaneseq
    %v3476 = vshrl.u32 %v3475, 7
    %v3477 = vsub.s32 %v504, %v3476
    %v3478 = vrot.slane %v3427, %v3477
    %v3479 = vlaneseq
    %v3480 = vshrl.u32 %v3479, 7
    %v3481 = vsub.s32 %v504, %v3480
    %v3482 = vrot.slane %v3430, %v3481
    %v3483 = vlaneseq
    %v3484 = vshrl.u32 %v3483, 7
    %v3485 = vsub.s32 %v504, %v3484
    %v3486 = vrot.slane %v3433, %v3485
    %v3487 = vsel %vm509, %v3462, %v3458
    %v3488 = vsel %vm510, %v3466, %v3487
    %v3489 = vsel %vm512, %v3470, %v3488
    %v3490 = vsel %vm514, %v3474, %v3489
    %v3491 = vsel %vm516, %v3478, %v3490
    %v3492 = vsel %vm518, %v3482, %v3491
    %v3493 = vsel %vm520, %v3486, %v3492
    %v3495 = vadd.f32 %v3446, %v3493
    %v3496 = vsel %vm477, %v3495, -inf
    %3497 = vmax.xlane.f32.xlu0 %v3496
    %v3498 = vpop.xlane.xlu0 %3497
    %v3499 = vsub.f32 %v3495, %v3498
    %v3500 = vmul.f32 %v3499, 1.442695
    %v3501 = vpow.pop %v3500
    %v3502 = vsel %vm477, %v3501, 0.0
    %3503 = vadd.xlane.f32.xlu0 %v3502
    %v3504 = vpop.xlane.xlu0 %3503
    %v3505 = vrcp.pop %v3504
    %v3506 = vmul.f32 %v3501, %v3505
    %s3507 = scalar_lea.vmem %s21, 64
    %v3508 = vld [vmem:[%s3507] sm:$0xff]
    %v3509 = vld [vmem:[%s3507 + $0x8] sm:$0xff]
    %v3510 = vpack.c.bf16 %v3368, %v3368
    %v3511 = vpack.c.bf16 %v3509, %v3508
    %v3513 = vsel %vm447, %v3510, 0
    %3515 = vmatprep.subr.bf16.mxu0 0
    %3516 = vmatpush1.bf16.msra.mxu0 0
    %3517 = vmatprep.subr.bf16.mxu0 0
    %3518 = vmatpush1.bf16.msra.mxu0 0
    %3519 = vmatprep.subr.bf16.mxu0 0
    %3520 = vmatpush1.bf16.msra.mxu0 0
    %3521 = vmatprep.subr.bf16.mxu0 0
    %3522 = vmatpush1.bf16.msra.mxu0 0
    %3523 = vmatprep.subr.bf16.mxu0 0
    %3524 = vmatpush1.bf16.msra.mxu0 0
    %3525 = vmatprep.subr.bf16.mxu0 0
    %3526 = vmatpush1.bf16.msra.mxu0 0
    %3527 = vmatprep.subr.bf16.mxu0 0
    %3528 = vmatpush1.bf16.msra.mxu0 0
    %3529 = vmatprep.subr.bf16.mxu0 0
    %3530 = vmatpush1.bf16.msra.mxu0 %v3511
    %3531 = vmatprep.subr.bf16.mxu0 0
    %3532 = vmatpush2.bf16.msra.mxu0 0
    %3533 = vmatprep.subr.bf16.mxu0 0
    %3534 = vmatpush2.bf16.msra.mxu0 0
    %3535 = vmatprep.subr.bf16.mxu0 0
    %3536 = vmatpush2.bf16.msra.mxu0 0
    %3537 = vmatprep.subr.bf16.mxu0 0
    %3538 = vmatpush2.bf16.msra.mxu0 0
    %3539 = vmatprep.subr.bf16.mxu0 0
    %3540 = vmatpush2.bf16.msra.mxu0 0
    %3541 = vmatprep.subr.bf16.mxu0 0
    %3542 = vmatpush2.bf16.msra.mxu0 0
    %3543 = vmatprep.subr.bf16.mxu0 0
    %3544 = vmatpush2.bf16.msra.mxu0 0
    %3545 = vmatprep.subr.bf16.mxu0 0
    %3546 = vmatpush2.bf16.msra.mxu0 0
    %3547 = vmatprep.mubr.bf16.mxu0 0
    %3548 = vmatmul.mubr.bf16.gmra.mxu0 %v3513
    %v3549 = vpop.f32.mrf.mxu0
    %v3550 = vadd.f32 0.0, %v3549
    %v3551 = vpop.f32.mrf.mxu0
    %v3552 = vpop.f32.mrf.mxu0
    %v3553 = vpop.f32.mrf.mxu0
    %3554 = vdwg.mxu0
    %v3555 = vpack.c.bf16 %v3506, %v3506
    %v3556 = vpack.c.bf16 %v3550, %v3550
    %s3557 = scalar_lea.vmem [#allocation12], 5
    %v3558 = vld [vmem:[%s3557] sm:$0x1]
    %v3560 = vlaneseq
    %v3561 = vshrl.u32 %v3560, 7
    %v3562 = vsub.s32 0, %v3561
    %v3563 = vrot.slane %v3558, %v3562
    %v3565 = vmul.f32 %v3368, %v3563
    %v3566 = vsel %vm447, %v3565, 0.0
    %3567 = vadd.xlane.f32.xlu0 %v3566
    %v3568 = vpop.xlane.xlu0 %3567
    %s3569 = scalar_lea.vmem [#allocation14], 5
    %v3570 = vld [vmem:[%s3569] sm:$0x1]
    %v3572 = vlaneseq
    %v3573 = vshrl.u32 %v3572, 7
    %v3574 = vsub.s32 0, %v3573
    %v3575 = vrot.slane %v3570, %v3574
    %v3577 = vmul.f32 %v3368, %v3575
    %v3578 = vsel %vm447, %v3577, 0.0
    %3579 = vadd.xlane.f32.xlu0 %v3578
    %v3580 = vpop.xlane.xlu0 %3579
    %s3581 = scalar_lea.vmem [#allocation15], 5
    %v3582 = vld [vmem:[%s3581] sm:$0x1]
    %v3584 = vlaneseq
    %v3585 = vshrl.u32 %v3584, 7
    %v3586 = vsub.s32 0, %v3585
    %v3587 = vrot.slane %v3582, %v3586
    %v3589 = vmul.f32 %v1671, %v3587
    %v3590 = vmul.f32 %v1672, %v3587
    %v3591 = vmul.f32 %v1673, %v3587
    %v3592 = vmul.f32 %v1674, %v3587
    %v3593 = vmul.f32 %v1675, %v3587
    %v3594 = vmul.f32 %v1676, %v3587
    %v3595 = vmul.f32 %v1677, %v3587
    %v3596 = vmul.f32 %v1678, %v3587
    %v3597 = vsel %vm477, %v3589, 0.0
    %3598 = vadd.xlane.f32.xlu0 %v3597
    %v3599 = vpop.xlane.xlu0 %3598
    %v3600 = vsel %vm477, %v3590, 0.0
    %3601 = vadd.xlane.f32.xlu0 %v3600
    %v3602 = vpop.xlane.xlu0 %3601
    %v3603 = vsel %vm477, %v3591, 0.0
    %3604 = vadd.xlane.f32.xlu0 %v3603
    %v3605 = vpop.xlane.xlu0 %3604
    %v3606 = vsel %vm477, %v3592, 0.0
    %3607 = vadd.xlane.f32.xlu0 %v3606
    %v3608 = vpop.xlane.xlu0 %3607
    %v3609 = vsel %vm477, %v3593, 0.0
    %3610 = vadd.xlane.f32.xlu0 %v3609
    %v3611 = vpop.xlane.xlu0 %3610
    %v3612 = vsel %vm477, %v3594, 0.0
    %3613 = vadd.xlane.f32.xlu0 %v3612
    %v3614 = vpop.xlane.xlu0 %3613
    %v3615 = vsel %vm477, %v3595, 0.0
    %3616 = vadd.xlane.f32.xlu0 %v3615
    %v3617 = vpop.xlane.xlu0 %3616
    %v3618 = vsel %vm477, %v3596, 0.0
    %3619 = vadd.xlane.f32.xlu0 %v3618
    %v3620 = vpop.xlane.xlu0 %3619
    %v3622 = vlaneseq
    %v3623 = vshrl.u32 %v3622, 7
    %v3624 = vsub.s32 %v504, %v3623
    %v3625 = vrot.slane %v3580, %v3624
    %v3626 = vsel %vm510, %v3625, %v3625
    %v3627 = vsel %vm512, %v3625, %v3626
    %v3628 = vsel %vm514, %v3625, %v3627
    %v3629 = vsel %vm516, %v3625, %v3628
    %v3630 = vsel %vm518, %v3625, %v3629
    %v3631 = vsel %vm520, %v3625, %v3630
    %v3633 = vadd.f32 %v3568, %v3631
    %v3642 = vlaneseq
    %v3643 = vshrl.u32 %v3642, 7
    %v3644 = vsub.s32 %v504, %v3643
    %v3645 = vrot.slane %v3599, %v3644
    %v3646 = vlaneseq
    %v3647 = vshrl.u32 %v3646, 7
    %v3648 = vsub.s32 %v504, %v3647
    %v3649 = vrot.slane %v3602, %v3648
    %v3650 = vlaneseq
    %v3651 = vshrl.u32 %v3650, 7
    %v3652 = vsub.s32 %v504, %v3651
    %v3653 = vrot.slane %v3605, %v3652
    %v3654 = vlaneseq
    %v3655 = vshrl.u32 %v3654, 7
    %v3656 = vsub.s32 %v504, %v3655
    %v3657 = vrot.slane %v3608, %v3656
    %v3658 = vlaneseq
    %v3659 = vshrl.u32 %v3658, 7
    %v3660 = vsub.s32 %v504, %v3659
    %v3661 = vrot.slane %v3611, %v3660
    %v3662 = vlaneseq
    %v3663 = vshrl.u32 %v3662, 7
    %v3664 = vsub.s32 %v504, %v3663
    %v3665 = vrot.slane %v3614, %v3664
    %v3666 = vlaneseq
    %v3667 = vshrl.u32 %v3666, 7
    %v3668 = vsub.s32 %v504, %v3667
    %v3669 = vrot.slane %v3617, %v3668
    %v3670 = vlaneseq
    %v3671 = vshrl.u32 %v3670, 7
    %v3672 = vsub.s32 %v504, %v3671
    %v3673 = vrot.slane %v3620, %v3672
    %v3674 = vsel %vm509, %v3649, %v3645
    %v3675 = vsel %vm510, %v3653, %v3674
    %v3676 = vsel %vm512, %v3657, %v3675
    %v3677 = vsel %vm514, %v3661, %v3676
    %v3678 = vsel %vm516, %v3665, %v3677
    %v3679 = vsel %vm518, %v3669, %v3678
    %v3680 = vsel %vm520, %v3673, %v3679
    %v3682 = vadd.f32 %v3633, %v3680
    %v3683 = vsel %vm477, %v3682, -inf
    %3684 = vmax.xlane.f32.xlu0 %v3683
    %v3685 = vpop.xlane.xlu0 %3684
    %v3686 = vsub.f32 %v3682, %v3685
    %v3687 = vmul.f32 %v3686, 1.442695
    %v3688 = vpow.pop %v3687
    %v3689 = vsel %vm477, %v3688, 0.0
    %3690 = vadd.xlane.f32.xlu0 %v3689
    %v3691 = vpop.xlane.xlu0 %3690
    %v3692 = vrcp.pop %v3691
    %v3693 = vmul.f32 %v3688, %v3692
    %s3694 = scalar_lea.vmem %s21, 80
    %v3695 = vld [vmem:[%s3694] sm:$0xff]
    %v3696 = vld [vmem:[%s3694 + $0x8] sm:$0xff]
    %v3697 = vpack.c.bf16 %v3696, %v3695
    %3698 = vmatprep.subr.bf16.mxu0 0
    %3699 = vmatpush1.bf16.msra.mxu0 0
    %3700 = vmatprep.subr.bf16.mxu0 0
    %3701 = vmatpush1.bf16.msra.mxu0 0
    %3702 = vmatprep.subr.bf16.mxu0 0
    %3703 = vmatpush1.bf16.msra.mxu0 0
    %3704 = vmatprep.subr.bf16.mxu0 0
    %3705 = vmatpush1.bf16.msra.mxu0 0
    %3706 = vmatprep.subr.bf16.mxu0 0
    %3707 = vmatpush1.bf16.msra.mxu0 0
    %3708 = vmatprep.subr.bf16.mxu0 0
    %3709 = vmatpush1.bf16.msra.mxu0 0
    %3710 = vmatprep.subr.bf16.mxu0 0
    %3711 = vmatpush1.bf16.msra.mxu0 0
    %3712 = vmatprep.subr.bf16.mxu0 0
    %3713 = vmatpush1.bf16.msra.mxu0 %v3697
    %3714 = vmatprep.subr.bf16.mxu0 0
    %3715 = vmatpush2.bf16.msra.mxu0 0
    %3716 = vmatprep.subr.bf16.mxu0 0
    %3717 = vmatpush2.bf16.msra.mxu0 0
    %3718 = vmatprep.subr.bf16.mxu0 0
    %3719 = vmatpush2.bf16.msra.mxu0 0
    %3720 = vmatprep.subr.bf16.mxu0 0
    %3721 = vmatpush2.bf16.msra.mxu0 0
    %3722 = vmatprep.subr.bf16.mxu0 0
    %3723 = vmatpush2.bf16.msra.mxu0 0
    %3724 = vmatprep.subr.bf16.mxu0 0
    %3725 = vmatpush2.bf16.msra.mxu0 0
    %3726 = vmatprep.subr.bf16.mxu0 0
    %3727 = vmatpush2.bf16.msra.mxu0 0
    %3728 = vmatprep.subr.bf16.mxu0 0
    %3729 = vmatpush2.bf16.msra.mxu0 0
    %3730 = vmatprep.mubr.bf16.mxu0 0
    %3731 = vmatmul.mubr.bf16.gmra.mxu0 %v3513
    %v3732 = vpop.f32.mrf.mxu0
    %v3733 = vadd.f32 0.0, %v3732
    %v3734 = vpop.f32.mrf.mxu0
    %v3735 = vpop.f32.mrf.mxu0
    %v3736 = vpop.f32.mrf.mxu0
    %3737 = vdwg.mxu0
    %v3738 = vpack.c.bf16 %v3693, %v3693
    %v3739 = vpack.c.bf16 %v3733, %v3733
    %v3741 = vsel %vm477, %v3738, 0
    %v3744 = vsel %vm819, %v3739, 0
    %3746 = vmatprep.subr.bf16.mxu0 0
    %3747 = vmatpush1.bf16.msra.mxu0 0
    %3748 = vmatprep.subr.bf16.mxu0 0
    %3749 = vmatpush1.bf16.msra.mxu0 0
    %3750 = vmatprep.subr.bf16.mxu0 0
    %3751 = vmatpush1.bf16.msra.mxu0 0
    %3752 = vmatprep.subr.bf16.mxu0 0
    %3753 = vmatpush1.bf16.msra.mxu0 0
    %3754 = vmatprep.subr.bf16.mxu0 0
    %3755 = vmatpush1.bf16.msra.mxu0 0
    %3756 = vmatprep.subr.bf16.mxu0 0
    %3757 = vmatpush1.bf16.msra.mxu0 0
    %3758 = vmatprep.subr.bf16.mxu0 0
    %3759 = vmatpush1.bf16.msra.mxu0 0
    %3760 = vmatprep.subr.bf16.mxu0 0
    %3761 = vmatpush1.bf16.msra.mxu0 %v3744
    %3762 = vmatprep.subr.bf16.mxu0 0
    %3763 = vmatpush2.bf16.msra.mxu0 0
    %3764 = vmatprep.subr.bf16.mxu0 0
    %3765 = vmatpush2.bf16.msra.mxu0 0
    %3766 = vmatprep.subr.bf16.mxu0 0
    %3767 = vmatpush2.bf16.msra.mxu0 0
    %3768 = vmatprep.subr.bf16.mxu0 0
    %3769 = vmatpush2.bf16.msra.mxu0 0
    %3770 = vmatprep.subr.bf16.mxu0 0
    %3771 = vmatpush2.bf16.msra.mxu0 0
    %3772 = vmatprep.subr.bf16.mxu0 0
    %3773 = vmatpush2.bf16.msra.mxu0 0
    %3774 = vmatprep.subr.bf16.mxu0 0
    %3775 = vmatpush2.bf16.msra.mxu0 0
    %3776 = vmatprep.subr.bf16.mxu0 0
    %3777 = vmatpush2.bf16.msra.mxu0 0
    %3778 = vmatprep.mubr.bf16.mxu0 0
    %3779 = vmatmul.mubr.bf16.gmra.mxu0 %v3741
    %v3780 = vpop.f32.mrf.mxu0
    %v3781 = vadd.f32 0.0, %v3780
    %v3782 = vpop.f32.mrf.mxu0
    %v3783 = vpop.f32.mrf.mxu0
    %v3784 = vpop.f32.mrf.mxu0
    %3785 = vdwg.mxu0
    %v3787 = vsel %vm477, %v3555, 0
    %v3790 = vsel %vm819, %v3556, 0
    %3792 = vmatprep.subr.bf16.mxu0 0
    %3793 = vmatpush1.bf16.msra.mxu0 0
    %3794 = vmatprep.subr.bf16.mxu0 0
    %3795 = vmatpush1.bf16.msra.mxu0 0
    %3796 = vmatprep.subr.bf16.mxu0 0
    %3797 = vmatpush1.bf16.msra.mxu0 0
    %3798 = vmatprep.subr.bf16.mxu0 0
    %3799 = vmatpush1.bf16.msra.mxu0 0
    %3800 = vmatprep.subr.bf16.mxu0 0
    %3801 = vmatpush1.bf16.msra.mxu0 0
    %3802 = vmatprep.subr.bf16.mxu0 0
    %3803 = vmatpush1.bf16.msra.mxu0 0
    %3804 = vmatprep.subr.bf16.mxu0 0
    %3805 = vmatpush1.bf16.msra.mxu0 0
    %3806 = vmatprep.subr.bf16.mxu0 0
    %3807 = vmatpush1.bf16.msra.mxu0 %v3790
    %3808 = vmatprep.subr.bf16.mxu0 0
    %3809 = vmatpush2.bf16.msra.mxu0 0
    %3810 = vmatprep.subr.bf16.mxu0 0
    %3811 = vmatpush2.bf16.msra.mxu0 0
    %3812 = vmatprep.subr.bf16.mxu0 0
    %3813 = vmatpush2.bf16.msra.mxu0 0
    %3814 = vmatprep.subr.bf16.mxu0 0
    %3815 = vmatpush2.bf16.msra.mxu0 0
    %3816 = vmatprep.subr.bf16.mxu0 0
    %3817 = vmatpush2.bf16.msra.mxu0 0
    %3818 = vmatprep.subr.bf16.mxu0 0
    %3819 = vmatpush2.bf16.msra.mxu0 0
    %3820 = vmatprep.subr.bf16.mxu0 0
    %3821 = vmatpush2.bf16.msra.mxu0 0
    %3822 = vmatprep.subr.bf16.mxu0 0
    %3823 = vmatpush2.bf16.msra.mxu0 0
    %3824 = vmatprep.mubr.bf16.mxu0 0
    %3825 = vmatmul.mubr.bf16.gmra.mxu0 %v3787
    %v3826 = vpop.f32.mrf.mxu0
    %v3827 = vadd.f32 %v3781, %v3826
    %v3828 = vpop.f32.mrf.mxu0
    %v3829 = vpop.f32.mrf.mxu0
    %v3830 = vpop.f32.mrf.mxu0
    %3831 = vdwg.mxu0
    %s3832 = scalar_lea.vmem [#allocation12], 6
    %v3833 = vld [vmem:[%s3832] sm:$0x1]
    %v3835 = vlaneseq
    %v3836 = vshrl.u32 %v3835, 7
    %v3837 = vsub.s32 0, %v3836
    %v3838 = vrot.slane %v3833, %v3837
    %v3840 = vmul.f32 %v3368, %v3838
    %v3841 = vsel %vm447, %v3840, 0.0
    %3842 = vadd.xlane.f32.xlu0 %v3841
    %v3843 = vpop.xlane.xlu0 %3842
    %s3844 = scalar_lea.vmem [#allocation14], 6
    %v3845 = vld [vmem:[%s3844] sm:$0x1]
    %v3847 = vlaneseq
    %v3848 = vshrl.u32 %v3847, 7
    %v3849 = vsub.s32 0, %v3848
    %v3850 = vrot.slane %v3845, %v3849
    %v3852 = vmul.f32 %v3368, %v3850
    %v3853 = vsel %vm447, %v3852, 0.0
    %3854 = vadd.xlane.f32.xlu0 %v3853
    %v3855 = vpop.xlane.xlu0 %3854
    %s3856 = scalar_lea.vmem [#allocation15], 6
    %v3857 = vld [vmem:[%s3856] sm:$0x1]
    %v3859 = vlaneseq
    %v3860 = vshrl.u32 %v3859, 7
    %v3861 = vsub.s32 0, %v3860
    %v3862 = vrot.slane %v3857, %v3861
    %v3864 = vmul.f32 %v1671, %v3862
    %v3865 = vmul.f32 %v1672, %v3862
    %v3866 = vmul.f32 %v1673, %v3862
    %v3867 = vmul.f32 %v1674, %v3862
    %v3868 = vmul.f32 %v1675, %v3862
    %v3869 = vmul.f32 %v1676, %v3862
    %v3870 = vmul.f32 %v1677, %v3862
    %v3871 = vmul.f32 %v1678, %v3862
    %v3872 = vsel %vm477, %v3864, 0.0
    %3873 = vadd.xlane.f32.xlu0 %v3872
    %v3874 = vpop.xlane.xlu0 %3873
    %v3875 = vsel %vm477, %v3865, 0.0
    %3876 = vadd.xlane.f32.xlu0 %v3875
    %v3877 = vpop.xlane.xlu0 %3876
    %v3878 = vsel %vm477, %v3866, 0.0
    %3879 = vadd.xlane.f32.xlu0 %v3878
    %v3880 = vpop.xlane.xlu0 %3879
    %v3881 = vsel %vm477, %v3867, 0.0
    %3882 = vadd.xlane.f32.xlu0 %v3881
    %v3883 = vpop.xlane.xlu0 %3882
    %v3884 = vsel %vm477, %v3868, 0.0
    %3885 = vadd.xlane.f32.xlu0 %v3884
    %v3886 = vpop.xlane.xlu0 %3885
    %v3887 = vsel %vm477, %v3869, 0.0
    %3888 = vadd.xlane.f32.xlu0 %v3887
    %v3889 = vpop.xlane.xlu0 %3888
    %v3890 = vsel %vm477, %v3870, 0.0
    %3891 = vadd.xlane.f32.xlu0 %v3890
    %v3892 = vpop.xlane.xlu0 %3891
    %v3893 = vsel %vm477, %v3871, 0.0
    %3894 = vadd.xlane.f32.xlu0 %v3893
    %v3895 = vpop.xlane.xlu0 %3894
    %v3897 = vlaneseq
    %v3898 = vshrl.u32 %v3897, 7
    %v3899 = vsub.s32 %v504, %v3898
    %v3900 = vrot.slane %v3855, %v3899
    %v3901 = vsel %vm510, %v3900, %v3900
    %v3902 = vsel %vm512, %v3900, %v3901
    %v3903 = vsel %vm514, %v3900, %v3902
    %v3904 = vsel %vm516, %v3900, %v3903
    %v3905 = vsel %vm518, %v3900, %v3904
    %v3906 = vsel %vm520, %v3900, %v3905
    %v3908 = vadd.f32 %v3843, %v3906
    %v3917 = vlaneseq
    %v3918 = vshrl.u32 %v3917, 7
    %v3919 = vsub.s32 %v504, %v3918
    %v3920 = vrot.slane %v3874, %v3919
    %v3921 = vlaneseq
    %v3922 = vshrl.u32 %v3921, 7
    %v3923 = vsub.s32 %v504, %v3922
    %v3924 = vrot.slane %v3877, %v3923
    %v3925 = vlaneseq
    %v3926 = vshrl.u32 %v3925, 7
    %v3927 = vsub.s32 %v504, %v3926
    %v3928 = vrot.slane %v3880, %v3927
    %v3929 = vlaneseq
    %v3930 = vshrl.u32 %v3929, 7
    %v3931 = vsub.s32 %v504, %v3930
    %v3932 = vrot.slane %v3883, %v3931
    %v3933 = vlaneseq
    %v3934 = vshrl.u32 %v3933, 7
    %v3935 = vsub.s32 %v504, %v3934
    %v3936 = vrot.slane %v3886, %v3935
    %v3937 = vlaneseq
    %v3938 = vshrl.u32 %v3937, 7
    %v3939 = vsub.s32 %v504, %v3938
    %v3940 = vrot.slane %v3889, %v3939
    %v3941 = vlaneseq
    %v3942 = vshrl.u32 %v3941, 7
    %v3943 = vsub.s32 %v504, %v3942
    %v3944 = vrot.slane %v3892, %v3943
    %v3945 = vlaneseq
    %v3946 = vshrl.u32 %v3945, 7
    %v3947 = vsub.s32 %v504, %v3946
    %v3948 = vrot.slane %v3895, %v3947
    %v3949 = vsel %vm509, %v3924, %v3920
    %v3950 = vsel %vm510, %v3928, %v3949
    %v3951 = vsel %vm512, %v3932, %v3950
    %v3952 = vsel %vm514, %v3936, %v3951
    %v3953 = vsel %vm516, %v3940, %v3952
    %v3954 = vsel %vm518, %v3944, %v3953
    %v3955 = vsel %vm520, %v3948, %v3954
    %v3957 = vadd.f32 %v3908, %v3955
    %v3958 = vsel %vm477, %v3957, -inf
    %3959 = vmax.xlane.f32.xlu0 %v3958
    %v3960 = vpop.xlane.xlu0 %3959
    %v3961 = vsub.f32 %v3957, %v3960
    %v3962 = vmul.f32 %v3961, 1.442695
    %v3963 = vpow.pop %v3962
    %v3964 = vsel %vm477, %v3963, 0.0
    %3965 = vadd.xlane.f32.xlu0 %v3964
    %v3966 = vpop.xlane.xlu0 %3965
    %v3967 = vrcp.pop %v3966
    %v3968 = vmul.f32 %v3963, %v3967
    %s3969 = scalar_lea.vmem %s21, 96
    %v3970 = vld [vmem:[%s3969] sm:$0xff]
    %v3971 = vld [vmem:[%s3969 + $0x8] sm:$0xff]
    %v3972 = vpack.c.bf16 %v3971, %v3970
    %3973 = vmatprep.subr.bf16.mxu0 0
    %3974 = vmatpush1.bf16.msra.mxu0 0
    %3975 = vmatprep.subr.bf16.mxu0 0
    %3976 = vmatpush1.bf16.msra.mxu0 0
    %3977 = vmatprep.subr.bf16.mxu0 0
    %3978 = vmatpush1.bf16.msra.mxu0 0
    %3979 = vmatprep.subr.bf16.mxu0 0
    %3980 = vmatpush1.bf16.msra.mxu0 0
    %3981 = vmatprep.subr.bf16.mxu0 0
    %3982 = vmatpush1.bf16.msra.mxu0 0
    %3983 = vmatprep.subr.bf16.mxu0 0
    %3984 = vmatpush1.bf16.msra.mxu0 0
    %3985 = vmatprep.subr.bf16.mxu0 0
    %3986 = vmatpush1.bf16.msra.mxu0 0
    %3987 = vmatprep.subr.bf16.mxu0 0
    %3988 = vmatpush1.bf16.msra.mxu0 %v3972
    %3989 = vmatprep.subr.bf16.mxu0 0
    %3990 = vmatpush2.bf16.msra.mxu0 0
    %3991 = vmatprep.subr.bf16.mxu0 0
    %3992 = vmatpush2.bf16.msra.mxu0 0
    %3993 = vmatprep.subr.bf16.mxu0 0
    %3994 = vmatpush2.bf16.msra.mxu0 0
    %3995 = vmatprep.subr.bf16.mxu0 0
    %3996 = vmatpush2.bf16.msra.mxu0 0
    %3997 = vmatprep.subr.bf16.mxu0 0
    %3998 = vmatpush2.bf16.msra.mxu0 0
    %3999 = vmatprep.subr.bf16.mxu0 0
    %4000 = vmatpush2.bf16.msra.mxu0 0
    %4001 = vmatprep.subr.bf16.mxu0 0
    %4002 = vmatpush2.bf16.msra.mxu0 0
    %4003 = vmatprep.subr.bf16.mxu0 0
    %4004 = vmatpush2.bf16.msra.mxu0 0
    %4005 = vmatprep.mubr.bf16.mxu0 0
    %4006 = vmatmul.mubr.bf16.gmra.mxu0 %v3513
    %v4007 = vpop.f32.mrf.mxu0
    %v4008 = vadd.f32 0.0, %v4007
    %v4009 = vpop.f32.mrf.mxu0
    %v4010 = vpop.f32.mrf.mxu0
    %v4011 = vpop.f32.mrf.mxu0
    %4012 = vdwg.mxu0
    %v4013 = vpack.c.bf16 %v3968, %v3968
    %v4014 = vpack.c.bf16 %v4008, %v4008
    %v4016 = vsel %vm477, %v4013, 0
    %v4019 = vsel %vm819, %v4014, 0
    %4021 = vmatprep.subr.bf16.mxu0 0
    %4022 = vmatpush1.bf16.msra.mxu0 0
    %4023 = vmatprep.subr.bf16.mxu0 0
    %4024 = vmatpush1.bf16.msra.mxu0 0
    %4025 = vmatprep.subr.bf16.mxu0 0
    %4026 = vmatpush1.bf16.msra.mxu0 0
    %4027 = vmatprep.subr.bf16.mxu0 0
    %4028 = vmatpush1.bf16.msra.mxu0 0
    %4029 = vmatprep.subr.bf16.mxu0 0
    %4030 = vmatpush1.bf16.msra.mxu0 0
    %4031 = vmatprep.subr.bf16.mxu0 0
    %4032 = vmatpush1.bf16.msra.mxu0 0
    %4033 = vmatprep.subr.bf16.mxu0 0
    %4034 = vmatpush1.bf16.msra.mxu0 0
    %4035 = vmatprep.subr.bf16.mxu0 0
    %4036 = vmatpush1.bf16.msra.mxu0 %v4019
    %4037 = vmatprep.subr.bf16.mxu0 0
    %4038 = vmatpush2.bf16.msra.mxu0 0
    %4039 = vmatprep.subr.bf16.mxu0 0
    %4040 = vmatpush2.bf16.msra.mxu0 0
    %4041 = vmatprep.subr.bf16.mxu0 0
    %4042 = vmatpush2.bf16.msra.mxu0 0
    %4043 = vmatprep.subr.bf16.mxu0 0
    %4044 = vmatpush2.bf16.msra.mxu0 0
    %4045 = vmatprep.subr.bf16.mxu0 0
    %4046 = vmatpush2.bf16.msra.mxu0 0
    %4047 = vmatprep.subr.bf16.mxu0 0
    %4048 = vmatpush2.bf16.msra.mxu0 0
    %4049 = vmatprep.subr.bf16.mxu0 0
    %4050 = vmatpush2.bf16.msra.mxu0 0
    %4051 = vmatprep.subr.bf16.mxu0 0
    %4052 = vmatpush2.bf16.msra.mxu0 0
    %4053 = vmatprep.mubr.bf16.mxu0 0
    %4054 = vmatmul.mubr.bf16.gmra.mxu0 %v4016
    %v4055 = vpop.f32.mrf.mxu0
    %v4056 = vadd.f32 0.0, %v4055
    %v4057 = vpop.f32.mrf.mxu0
    %v4058 = vpop.f32.mrf.mxu0
    %v4059 = vpop.f32.mrf.mxu0
    %4060 = vdwg.mxu0
    %v4061 = vadd.f32 %v3827, %v4056
    %s4062 = scalar_lea.vmem [#allocation12], 7
    %v4063 = vld [vmem:[%s4062] sm:$0x1]
    %v4065 = vlaneseq
    %v4066 = vshrl.u32 %v4065, 7
    %v4067 = vsub.s32 0, %v4066
    %v4068 = vrot.slane %v4063, %v4067
    %v4070 = vmul.f32 %v3368, %v4068
    %v4071 = vsel %vm447, %v4070, 0.0
    %4072 = vadd.xlane.f32.xlu0 %v4071
    %v4073 = vpop.xlane.xlu0 %4072
    %s4074 = scalar_lea.vmem [#allocation14], 7
    %v4075 = vld [vmem:[%s4074] sm:$0x1]
    %v4077 = vlaneseq
    %v4078 = vshrl.u32 %v4077, 7
    %v4079 = vsub.s32 0, %v4078
    %v4080 = vrot.slane %v4075, %v4079
    %v4082 = vmul.f32 %v3368, %v4080
    %v4083 = vsel %vm447, %v4082, 0.0
    %4084 = vadd.xlane.f32.xlu0 %v4083
    %v4085 = vpop.xlane.xlu0 %4084
    %s4086 = scalar_lea.vmem [#allocation15], 7
    %v4087 = vld [vmem:[%s4086] sm:$0x1]
    %v4089 = vlaneseq
    %v4090 = vshrl.u32 %v4089, 7
    %v4091 = vsub.s32 0, %v4090
    %v4092 = vrot.slane %v4087, %v4091
    %v4094 = vmul.f32 %v1671, %v4092
    %v4095 = vmul.f32 %v1672, %v4092
    %v4096 = vmul.f32 %v1673, %v4092
    %v4097 = vmul.f32 %v1674, %v4092
    %v4098 = vmul.f32 %v1675, %v4092
    %v4099 = vmul.f32 %v1676, %v4092
    %v4100 = vmul.f32 %v1677, %v4092
    %v4101 = vmul.f32 %v1678, %v4092
    %v4102 = vsel %vm477, %v4094, 0.0
    %4103 = vadd.xlane.f32.xlu0 %v4102
    %v4104 = vpop.xlane.xlu0 %4103
    %v4105 = vsel %vm477, %v4095, 0.0
    %4106 = vadd.xlane.f32.xlu0 %v4105
    %v4107 = vpop.xlane.xlu0 %4106
    %v4108 = vsel %vm477, %v4096, 0.0
    %4109 = vadd.xlane.f32.xlu0 %v4108
    %v4110 = vpop.xlane.xlu0 %4109
    %v4111 = vsel %vm477, %v4097, 0.0
    %4112 = vadd.xlane.f32.xlu0 %v4111
    %v4113 = vpop.xlane.xlu0 %4112
    %v4114 = vsel %vm477, %v4098, 0.0
    %4115 = vadd.xlane.f32.xlu0 %v4114
    %v4116 = vpop.xlane.xlu0 %4115
    %v4117 = vsel %vm477, %v4099, 0.0
    %4118 = vadd.xlane.f32.xlu0 %v4117
    %v4119 = vpop.xlane.xlu0 %4118
    %v4120 = vsel %vm477, %v4100, 0.0
    %4121 = vadd.xlane.f32.xlu0 %v4120
    %v4122 = vpop.xlane.xlu0 %4121
    %v4123 = vsel %vm477, %v4101, 0.0
    %4124 = vadd.xlane.f32.xlu0 %v4123
    %v4125 = vpop.xlane.xlu0 %4124
    %v4127 = vlaneseq
    %v4128 = vshrl.u32 %v4127, 7
    %v4129 = vsub.s32 %v504, %v4128
    %v4130 = vrot.slane %v4085, %v4129
    %v4131 = vsel %vm510, %v4130, %v4130
    %v4132 = vsel %vm512, %v4130, %v4131
    %v4133 = vsel %vm514, %v4130, %v4132
    %v4134 = vsel %vm516, %v4130, %v4133
    %v4135 = vsel %vm518, %v4130, %v4134
    %v4136 = vsel %vm520, %v4130, %v4135
    %v4138 = vadd.f32 %v4073, %v4136
    %v4147 = vlaneseq
    %v4148 = vshrl.u32 %v4147, 7
    %v4149 = vsub.s32 %v504, %v4148
    %v4150 = vrot.slane %v4104, %v4149
    %v4151 = vlaneseq
    %v4152 = vshrl.u32 %v4151, 7
    %v4153 = vsub.s32 %v504, %v4152
    %v4154 = vrot.slane %v4107, %v4153
    %v4155 = vlaneseq
    %v4156 = vshrl.u32 %v4155, 7
    %v4157 = vsub.s32 %v504, %v4156
    %v4158 = vrot.slane %v4110, %v4157
    %v4159 = vlaneseq
    %v4160 = vshrl.u32 %v4159, 7
    %v4161 = vsub.s32 %v504, %v4160
    %v4162 = vrot.slane %v4113, %v4161
    %v4163 = vlaneseq
    %v4164 = vshrl.u32 %v4163, 7
    %v4165 = vsub.s32 %v504, %v4164
    %v4166 = vrot.slane %v4116, %v4165
    %v4167 = vlaneseq
    %v4168 = vshrl.u32 %v4167, 7
    %v4169 = vsub.s32 %v504, %v4168
    %v4170 = vrot.slane %v4119, %v4169
    %v4171 = vlaneseq
    %v4172 = vshrl.u32 %v4171, 7
    %v4173 = vsub.s32 %v504, %v4172
    %v4174 = vrot.slane %v4122, %v4173
    %v4175 = vlaneseq
    %v4176 = vshrl.u32 %v4175, 7
    %v4177 = vsub.s32 %v504, %v4176
    %v4178 = vrot.slane %v4125, %v4177
    %v4179 = vsel %vm509, %v4154, %v4150
    %v4180 = vsel %vm510, %v4158, %v4179
    %v4181 = vsel %vm512, %v4162, %v4180
    %v4182 = vsel %vm514, %v4166, %v4181
    %v4183 = vsel %vm516, %v4170, %v4182
    %v4184 = vsel %vm518, %v4174, %v4183
    %v4185 = vsel %vm520, %v4178, %v4184
    %v4187 = vadd.f32 %v4138, %v4185
    %v4188 = vsel %vm477, %v4187, -inf
    %4189 = vmax.xlane.f32.xlu0 %v4188
    %v4190 = vpop.xlane.xlu0 %4189
    %v4191 = vsub.f32 %v4187, %v4190
    %v4192 = vmul.f32 %v4191, 1.442695
    %v4193 = vpow.pop %v4192
    %v4194 = vsel %vm477, %v4193, 0.0
    %4195 = vadd.xlane.f32.xlu0 %v4194
    %v4196 = vpop.xlane.xlu0 %4195
    %v4197 = vrcp.pop %v4196
    %v4198 = vmul.f32 %v4193, %v4197
    %s4199 = scalar_lea.vmem %s21, 112
    %v4200 = vld [vmem:[%s4199] sm:$0xff]
    %v4201 = vld [vmem:[%s4199 + $0x8] sm:$0xff]
    %v4202 = vpack.c.bf16 %v4201, %v4200
    %4203 = vmatprep.subr.bf16.mxu0 0
    %4204 = vmatpush1.bf16.msra.mxu0 0
    %4205 = vmatprep.subr.bf16.mxu0 0
    %4206 = vmatpush1.bf16.msra.mxu0 0
    %4207 = vmatprep.subr.bf16.mxu0 0
    %4208 = vmatpush1.bf16.msra.mxu0 0
    %4209 = vmatprep.subr.bf16.mxu0 0
    %4210 = vmatpush1.bf16.msra.mxu0 0
    %4211 = vmatprep.subr.bf16.mxu0 0
    %4212 = vmatpush1.bf16.msra.mxu0 0
    %4213 = vmatprep.subr.bf16.mxu0 0
    %4214 = vmatpush1.bf16.msra.mxu0 0
    %4215 = vmatprep.subr.bf16.mxu0 0
    %4216 = vmatpush1.bf16.msra.mxu0 0
    %4217 = vmatprep.subr.bf16.mxu0 0
    %4218 = vmatpush1.bf16.msra.mxu0 %v4202
    %4219 = vmatprep.subr.bf16.mxu0 0
    %4220 = vmatpush2.bf16.msra.mxu0 0
    %4221 = vmatprep.subr.bf16.mxu0 0
    %4222 = vmatpush2.bf16.msra.mxu0 0
    %4223 = vmatprep.subr.bf16.mxu0 0
    %4224 = vmatpush2.bf16.msra.mxu0 0
    %4225 = vmatprep.subr.bf16.mxu0 0
    %4226 = vmatpush2.bf16.msra.mxu0 0
    %4227 = vmatprep.subr.bf16.mxu0 0
    %4228 = vmatpush2.bf16.msra.mxu0 0
    %4229 = vmatprep.subr.bf16.mxu0 0
    %4230 = vmatpush2.bf16.msra.mxu0 0
    %4231 = vmatprep.subr.bf16.mxu0 0
    %4232 = vmatpush2.bf16.msra.mxu0 0
    %4233 = vmatprep.subr.bf16.mxu0 0
    %4234 = vmatpush2.bf16.msra.mxu0 0
    %4235 = vmatprep.mubr.bf16.mxu0 0
    %4236 = vmatmul.mubr.bf16.gmra.mxu0 %v3513
    %v4237 = vpop.f32.mrf.mxu0
    %v4238 = vadd.f32 0.0, %v4237
    %v4239 = vpop.f32.mrf.mxu0
    %v4240 = vpop.f32.mrf.mxu0
    %v4241 = vpop.f32.mrf.mxu0
    %4242 = vdwg.mxu0
    %v4243 = vpack.c.bf16 %v4198, %v4198
    %v4244 = vpack.c.bf16 %v4238, %v4238
    %v4246 = vsel %vm477, %v4243, 0
    %v4249 = vsel %vm819, %v4244, 0
    %4251 = vmatprep.subr.bf16.mxu0 0
    %4252 = vmatpush1.bf16.msra.mxu0 0
    %4253 = vmatprep.subr.bf16.mxu0 0
    %4254 = vmatpush1.bf16.msra.mxu0 0
    %4255 = vmatprep.subr.bf16.mxu0 0
    %4256 = vmatpush1.bf16.msra.mxu0 0
    %4257 = vmatprep.subr.bf16.mxu0 0
    %4258 = vmatpush1.bf16.msra.mxu0 0
    %4259 = vmatprep.subr.bf16.mxu0 0
    %4260 = vmatpush1.bf16.msra.mxu0 0
    %4261 = vmatprep.subr.bf16.mxu0 0
    %4262 = vmatpush1.bf16.msra.mxu0 0
    %4263 = vmatprep.subr.bf16.mxu0 0
    %4264 = vmatpush1.bf16.msra.mxu0 0
    %4265 = vmatprep.subr.bf16.mxu0 0
    %4266 = vmatpush1.bf16.msra.mxu0 %v4249
    %4267 = vmatprep.subr.bf16.mxu0 0
    %4268 = vmatpush2.bf16.msra.mxu0 0
    %4269 = vmatprep.subr.bf16.mxu0 0
    %4270 = vmatpush2.bf16.msra.mxu0 0
    %4271 = vmatprep.subr.bf16.mxu0 0
    %4272 = vmatpush2.bf16.msra.mxu0 0
    %4273 = vmatprep.subr.bf16.mxu0 0
    %4274 = vmatpush2.bf16.msra.mxu0 0
    %4275 = vmatprep.subr.bf16.mxu0 0
    %4276 = vmatpush2.bf16.msra.mxu0 0
    %4277 = vmatprep.subr.bf16.mxu0 0
    %4278 = vmatpush2.bf16.msra.mxu0 0
    %4279 = vmatprep.subr.bf16.mxu0 0
    %4280 = vmatpush2.bf16.msra.mxu0 0
    %4281 = vmatprep.subr.bf16.mxu0 0
    %4282 = vmatpush2.bf16.msra.mxu0 0
    %4283 = vmatprep.mubr.bf16.mxu0 0
    %4284 = vmatmul.mubr.bf16.gmra.mxu0 %v4246
    %v4285 = vpop.f32.mrf.mxu0
    %v4286 = vadd.f32 0.0, %v4285
    %v4287 = vpop.f32.mrf.mxu0
    %v4288 = vpop.f32.mrf.mxu0
    %v4289 = vpop.f32.mrf.mxu0
    %4290 = vdwg.mxu0
    %v4291 = vadd.f32 %v4061, %v4286
    %v4292 = vadd.f32 %v3368, %v4291
    %s4293 = scalar_lea.vmem [#allocation17], 1
    %v4294 = vld [vmem:[%s4293] sm:$0x1]
    %v4296 = vlaneseq
    %v4297 = vshrl.u32 %v4296, 7
    %v4298 = vsub.s32 0, %v4297
    %v4299 = vrot.slane %v4294, %v4298
    %v4301 = vadd.f32 %v4292, %v4299
    %s4302 = scalar_lea.vmem [#allocation21], 4
    %v4303 = vld [vmem:[%s4302] sm:$0x1]
    %v4305 = vlaneseq
    %v4306 = vshrl.u32 %v4305, 7
    %v4307 = vsub.s32 0, %v4306
    %v4308 = vrot.slane %v4303, %v4307
    %v4310 = vmul.f32 %v3369, %v4308
    %v4311 = vsel %vm447, %v4310, 0.0
    %4312 = vadd.xlane.f32.xlu0 %v4311
    %v4313 = vpop.xlane.xlu0 %4312
    %s4314 = scalar_lea.vmem [#allocation23], 4
    %v4315 = vld [vmem:[%s4314] sm:$0x1]
    %v4317 = vlaneseq
    %v4318 = vshrl.u32 %v4317, 7
    %v4319 = vsub.s32 0, %v4318
    %v4320 = vrot.slane %v4315, %v4319
    %v4322 = vmul.f32 %v3369, %v4320
    %v4323 = vsel %vm447, %v4322, 0.0
    %4324 = vadd.xlane.f32.xlu0 %v4323
    %v4325 = vpop.xlane.xlu0 %4324
    %s4326 = scalar_lea.vmem [#allocation24], 4
    %v4327 = vld [vmem:[%s4326] sm:$0x1]
    %v4329 = vlaneseq
    %v4330 = vshrl.u32 %v4329, 7
    %v4331 = vsub.s32 0, %v4330
    %v4332 = vrot.slane %v4327, %v4331
    %v4334 = vmul.f32 %v2899, %v4332
    %v4335 = vmul.f32 %v2900, %v4332
    %v4336 = vmul.f32 %v2901, %v4332
    %v4337 = vmul.f32 %v2902, %v4332
    %v4338 = vmul.f32 %v2903, %v4332
    %v4339 = vmul.f32 %v2904, %v4332
    %v4340 = vmul.f32 %v2905, %v4332
    %v4341 = vmul.f32 %v2906, %v4332
    %v4342 = vsel %vm477, %v4334, 0.0
    %4343 = vadd.xlane.f32.xlu0 %v4342
    %v4344 = vpop.xlane.xlu0 %4343
    %v4345 = vsel %vm477, %v4335, 0.0
    %4346 = vadd.xlane.f32.xlu0 %v4345
    %v4347 = vpop.xlane.xlu0 %4346
    %v4348 = vsel %vm477, %v4336, 0.0
    %4349 = vadd.xlane.f32.xlu0 %v4348
    %v4350 = vpop.xlane.xlu0 %4349
    %v4351 = vsel %vm477, %v4337, 0.0
    %4352 = vadd.xlane.f32.xlu0 %v4351
    %v4353 = vpop.xlane.xlu0 %4352
    %v4354 = vsel %vm477, %v4338, 0.0
    %4355 = vadd.xlane.f32.xlu0 %v4354
    %v4356 = vpop.xlane.xlu0 %4355
    %v4357 = vsel %vm477, %v4339, 0.0
    %4358 = vadd.xlane.f32.xlu0 %v4357
    %v4359 = vpop.xlane.xlu0 %4358
    %v4360 = vsel %vm477, %v4340, 0.0
    %4361 = vadd.xlane.f32.xlu0 %v4360
    %v4362 = vpop.xlane.xlu0 %4361
    %v4363 = vsel %vm477, %v4341, 0.0
    %4364 = vadd.xlane.f32.xlu0 %v4363
    %v4365 = vpop.xlane.xlu0 %4364
    %v4367 = vlaneseq
    %v4368 = vshrl.u32 %v4367, 7
    %v4369 = vsub.s32 %v504, %v4368
    %v4370 = vrot.slane %v4325, %v4369
    %v4371 = vsel %vm510, %v4370, %v4370
    %v4372 = vsel %vm512, %v4370, %v4371
    %v4373 = vsel %vm514, %v4370, %v4372
    %v4374 = vsel %vm516, %v4370, %v4373
    %v4375 = vsel %vm518, %v4370, %v4374
    %v4376 = vsel %vm520, %v4370, %v4375
    %v4378 = vadd.f32 %v4313, %v4376
    %v4387 = vlaneseq
    %v4388 = vshrl.u32 %v4387, 7
    %v4389 = vsub.s32 %v504, %v4388
    %v4390 = vrot.slane %v4344, %v4389
    %v4391 = vlaneseq
    %v4392 = vshrl.u32 %v4391, 7
    %v4393 = vsub.s32 %v504, %v4392
    %v4394 = vrot.slane %v4347, %v4393
    %v4395 = vlaneseq
    %v4396 = vshrl.u32 %v4395, 7
    %v4397 = vsub.s32 %v504, %v4396
    %v4398 = vrot.slane %v4350, %v4397
    %v4399 = vlaneseq
    %v4400 = vshrl.u32 %v4399, 7
    %v4401 = vsub.s32 %v504, %v4400
    %v4402 = vrot.slane %v4353, %v4401
    %v4403 = vlaneseq
    %v4404 = vshrl.u32 %v4403, 7
    %v4405 = vsub.s32 %v504, %v4404
    %v4406 = vrot.slane %v4356, %v4405
    %v4407 = vlaneseq
    %v4408 = vshrl.u32 %v4407, 7
    %v4409 = vsub.s32 %v504, %v4408
    %v4410 = vrot.slane %v4359, %v4409
    %v4411 = vlaneseq
    %v4412 = vshrl.u32 %v4411, 7
    %v4413 = vsub.s32 %v504, %v4412
    %v4414 = vrot.slane %v4362, %v4413
    %v4415 = vlaneseq
    %v4416 = vshrl.u32 %v4415, 7
    %v4417 = vsub.s32 %v504, %v4416
    %v4418 = vrot.slane %v4365, %v4417
    %v4419 = vsel %vm509, %v4394, %v4390
    %v4420 = vsel %vm510, %v4398, %v4419
    %v4421 = vsel %vm512, %v4402, %v4420
    %v4422 = vsel %vm514, %v4406, %v4421
    %v4423 = vsel %vm516, %v4410, %v4422
    %v4424 = vsel %vm518, %v4414, %v4423
    %v4425 = vsel %vm520, %v4418, %v4424
    %v4427 = vadd.f32 %v4378, %v4425
    %v4428 = vsel %vm477, %v4427, -inf
    %4429 = vmax.xlane.f32.xlu0 %v4428
    %v4430 = vpop.xlane.xlu0 %4429
    %v4431 = vsub.f32 %v4427, %v4430
    %v4432 = vmul.f32 %v4431, 1.442695
    %v4433 = vpow.pop %v4432
    %v4434 = vsel %vm477, %v4433, 0.0
    %4435 = vadd.xlane.f32.xlu0 %v4434
    %v4436 = vpop.xlane.xlu0 %4435
    %v4437 = vrcp.pop %v4436
    %v4438 = vmul.f32 %v4433, %v4437
    %s4439 = scalar_lea.vmem %s39, 64
    %v4440 = vld [vmem:[%s4439] sm:$0xff]
    %v4441 = vld [vmem:[%s4439 + $0x8] sm:$0xff]
    %v4442 = vpack.c.bf16 %v3369, %v3369
    %v4443 = vpack.c.bf16 %v4441, %v4440
    %v4445 = vsel %vm447, %v4442, 0
    %4447 = vmatprep.subr.bf16.mxu0 0
    %4448 = vmatpush1.bf16.msra.mxu0 0
    %4449 = vmatprep.subr.bf16.mxu0 0
    %4450 = vmatpush1.bf16.msra.mxu0 0
    %4451 = vmatprep.subr.bf16.mxu0 0
    %4452 = vmatpush1.bf16.msra.mxu0 0
    %4453 = vmatprep.subr.bf16.mxu0 0
    %4454 = vmatpush1.bf16.msra.mxu0 0
    %4455 = vmatprep.subr.bf16.mxu0 0
    %4456 = vmatpush1.bf16.msra.mxu0 0
    %4457 = vmatprep.subr.bf16.mxu0 0
    %4458 = vmatpush1.bf16.msra.mxu0 0
    %4459 = vmatprep.subr.bf16.mxu0 0
    %4460 = vmatpush1.bf16.msra.mxu0 0
    %4461 = vmatprep.subr.bf16.mxu0 0
    %4462 = vmatpush1.bf16.msra.mxu0 %v4443
    %4463 = vmatprep.subr.bf16.mxu0 0
    %4464 = vmatpush2.bf16.msra.mxu0 0
    %4465 = vmatprep.subr.bf16.mxu0 0
    %4466 = vmatpush2.bf16.msra.mxu0 0
    %4467 = vmatprep.subr.bf16.mxu0 0
    %4468 = vmatpush2.bf16.msra.mxu0 0
    %4469 = vmatprep.subr.bf16.mxu0 0
    %4470 = vmatpush2.bf16.msra.mxu0 0
    %4471 = vmatprep.subr.bf16.mxu0 0
    %4472 = vmatpush2.bf16.msra.mxu0 0
    %4473 = vmatprep.subr.bf16.mxu0 0
    %4474 = vmatpush2.bf16.msra.mxu0 0
    %4475 = vmatprep.subr.bf16.mxu0 0
    %4476 = vmatpush2.bf16.msra.mxu0 0
    %4477 = vmatprep.subr.bf16.mxu0 0
    %4478 = vmatpush2.bf16.msra.mxu0 0
    %4479 = vmatprep.mubr.bf16.mxu0 0
    %4480 = vmatmul.mubr.bf16.gmra.mxu0 %v4445
    %v4481 = vpop.f32.mrf.mxu0
    %v4482 = vadd.f32 0.0, %v4481
    %v4483 = vpop.f32.mrf.mxu0
    %v4484 = vpop.f32.mrf.mxu0
    %v4485 = vpop.f32.mrf.mxu0
    %4486 = vdwg.mxu0
    %v4487 = vpack.c.bf16 %v4438, %v4438
    %v4488 = vpack.c.bf16 %v4482, %v4482
    %s4489 = scalar_lea.vmem [#allocation21], 5
    %v4490 = vld [vmem:[%s4489] sm:$0x1]
    %v4492 = vlaneseq
    %v4493 = vshrl.u32 %v4492, 7
    %v4494 = vsub.s32 0, %v4493
    %v4495 = vrot.slane %v4490, %v4494
    %v4497 = vmul.f32 %v3369, %v4495
    %v4498 = vsel %vm447, %v4497, 0.0
    %4499 = vadd.xlane.f32.xlu0 %v4498
    %v4500 = vpop.xlane.xlu0 %4499
    %s4501 = scalar_lea.vmem [#allocation23], 5
    %v4502 = vld [vmem:[%s4501] sm:$0x1]
    %v4504 = vlaneseq
    %v4505 = vshrl.u32 %v4504, 7
    %v4506 = vsub.s32 0, %v4505
    %v4507 = vrot.slane %v4502, %v4506
    %v4509 = vmul.f32 %v3369, %v4507
    %v4510 = vsel %vm447, %v4509, 0.0
    %4511 = vadd.xlane.f32.xlu0 %v4510
    %v4512 = vpop.xlane.xlu0 %4511
    %s4513 = scalar_lea.vmem [#allocation24], 5
    %v4514 = vld [vmem:[%s4513] sm:$0x1]
    %v4516 = vlaneseq
    %v4517 = vshrl.u32 %v4516, 7
    %v4518 = vsub.s32 0, %v4517
    %v4519 = vrot.slane %v4514, %v4518
    %v4521 = vmul.f32 %v2899, %v4519
    %v4522 = vmul.f32 %v2900, %v4519
    %v4523 = vmul.f32 %v2901, %v4519
    %v4524 = vmul.f32 %v2902, %v4519
    %v4525 = vmul.f32 %v2903, %v4519
    %v4526 = vmul.f32 %v2904, %v4519
    %v4527 = vmul.f32 %v2905, %v4519
    %v4528 = vmul.f32 %v2906, %v4519
    %v4529 = vsel %vm477, %v4521, 0.0
    %4530 = vadd.xlane.f32.xlu0 %v4529
    %v4531 = vpop.xlane.xlu0 %4530
    %v4532 = vsel %vm477, %v4522, 0.0
    %4533 = vadd.xlane.f32.xlu0 %v4532
    %v4534 = vpop.xlane.xlu0 %4533
    %v4535 = vsel %vm477, %v4523, 0.0
    %4536 = vadd.xlane.f32.xlu0 %v4535
    %v4537 = vpop.xlane.xlu0 %4536
    %v4538 = vsel %vm477, %v4524, 0.0
    %4539 = vadd.xlane.f32.xlu0 %v4538
    %v4540 = vpop.xlane.xlu0 %4539
    %v4541 = vsel %vm477, %v4525, 0.0
    %4542 = vadd.xlane.f32.xlu0 %v4541
    %v4543 = vpop.xlane.xlu0 %4542
    %v4544 = vsel %vm477, %v4526, 0.0
    %4545 = vadd.xlane.f32.xlu0 %v4544
    %v4546 = vpop.xlane.xlu0 %4545
    %v4547 = vsel %vm477, %v4527, 0.0
    %4548 = vadd.xlane.f32.xlu0 %v4547
    %v4549 = vpop.xlane.xlu0 %4548
    %v4550 = vsel %vm477, %v4528, 0.0
    %4551 = vadd.xlane.f32.xlu0 %v4550
    %v4552 = vpop.xlane.xlu0 %4551
    %v4554 = vlaneseq
    %v4555 = vshrl.u32 %v4554, 7
    %v4556 = vsub.s32 %v504, %v4555
    %v4557 = vrot.slane %v4512, %v4556
    %v4558 = vsel %vm510, %v4557, %v4557
    %v4559 = vsel %vm512, %v4557, %v4558
    %v4560 = vsel %vm514, %v4557, %v4559
    %v4561 = vsel %vm516, %v4557, %v4560
    %v4562 = vsel %vm518, %v4557, %v4561
    %v4563 = vsel %vm520, %v4557, %v4562
    %v4565 = vadd.f32 %v4500, %v4563
    %v4574 = vlaneseq
    %v4575 = vshrl.u32 %v4574, 7
    %v4576 = vsub.s32 %v504, %v4575
    %v4577 = vrot.slane %v4531, %v4576
    %v4578 = vlaneseq
    %v4579 = vshrl.u32 %v4578, 7
    %v4580 = vsub.s32 %v504, %v4579
    %v4581 = vrot.slane %v4534, %v4580
    %v4582 = vlaneseq
    %v4583 = vshrl.u32 %v4582, 7
    %v4584 = vsub.s32 %v504, %v4583
    %v4585 = vrot.slane %v4537, %v4584
    %v4586 = vlaneseq
    %v4587 = vshrl.u32 %v4586, 7
    %v4588 = vsub.s32 %v504, %v4587
    %v4589 = vrot.slane %v4540, %v4588
    %v4590 = vlaneseq
    %v4591 = vshrl.u32 %v4590, 7
    %v4592 = vsub.s32 %v504, %v4591
    %v4593 = vrot.slane %v4543, %v4592
    %v4594 = vlaneseq
    %v4595 = vshrl.u32 %v4594, 7
    %v4596 = vsub.s32 %v504, %v4595
    %v4597 = vrot.slane %v4546, %v4596
    %v4598 = vlaneseq
    %v4599 = vshrl.u32 %v4598, 7
    %v4600 = vsub.s32 %v504, %v4599
    %v4601 = vrot.slane %v4549, %v4600
    %v4602 = vlaneseq
    %v4603 = vshrl.u32 %v4602, 7
    %v4604 = vsub.s32 %v504, %v4603
    %v4605 = vrot.slane %v4552, %v4604
    %v4606 = vsel %vm509, %v4581, %v4577
    %v4607 = vsel %vm510, %v4585, %v4606
    %v4608 = vsel %vm512, %v4589, %v4607
    %v4609 = vsel %vm514, %v4593, %v4608
    %v4610 = vsel %vm516, %v4597, %v4609
    %v4611 = vsel %vm518, %v4601, %v4610
    %v4612 = vsel %vm520, %v4605, %v4611
    %v4614 = vadd.f32 %v4565, %v4612
    %v4615 = vsel %vm477, %v4614, -inf
    %4616 = vmax.xlane.f32.xlu0 %v4615
    %v4617 = vpop.xlane.xlu0 %4616
    %v4618 = vsub.f32 %v4614, %v4617
    %v4619 = vmul.f32 %v4618, 1.442695
    %v4620 = vpow.pop %v4619
    %v4621 = vsel %vm477, %v4620, 0.0
    %4622 = vadd.xlane.f32.xlu0 %v4621
    %v4623 = vpop.xlane.xlu0 %4622
    %v4624 = vrcp.pop %v4623
    %v4625 = vmul.f32 %v4620, %v4624
    %s4626 = scalar_lea.vmem %s39, 80
    %v4627 = vld [vmem:[%s4626] sm:$0xff]
    %v4628 = vld [vmem:[%s4626 + $0x8] sm:$0xff]
    %v4629 = vpack.c.bf16 %v4628, %v4627
    %4630 = vmatprep.subr.bf16.mxu0 0
    %4631 = vmatpush1.bf16.msra.mxu0 0
    %4632 = vmatprep.subr.bf16.mxu0 0
    %4633 = vmatpush1.bf16.msra.mxu0 0
    %4634 = vmatprep.subr.bf16.mxu0 0
    %4635 = vmatpush1.bf16.msra.mxu0 0
    %4636 = vmatprep.subr.bf16.mxu0 0
    %4637 = vmatpush1.bf16.msra.mxu0 0
    %4638 = vmatprep.subr.bf16.mxu0 0
    %4639 = vmatpush1.bf16.msra.mxu0 0
    %4640 = vmatprep.subr.bf16.mxu0 0
    %4641 = vmatpush1.bf16.msra.mxu0 0
    %4642 = vmatprep.subr.bf16.mxu0 0
    %4643 = vmatpush1.bf16.msra.mxu0 0
    %4644 = vmatprep.subr.bf16.mxu0 0
    %4645 = vmatpush1.bf16.msra.mxu0 %v4629
    %4646 = vmatprep.subr.bf16.mxu0 0
    %4647 = vmatpush2.bf16.msra.mxu0 0
    %4648 = vmatprep.subr.bf16.mxu0 0
    %4649 = vmatpush2.bf16.msra.mxu0 0
    %4650 = vmatprep.subr.bf16.mxu0 0
    %4651 = vmatpush2.bf16.msra.mxu0 0
    %4652 = vmatprep.subr.bf16.mxu0 0
    %4653 = vmatpush2.bf16.msra.mxu0 0
    %4654 = vmatprep.subr.bf16.mxu0 0
    %4655 = vmatpush2.bf16.msra.mxu0 0
    %4656 = vmatprep.subr.bf16.mxu0 0
    %4657 = vmatpush2.bf16.msra.mxu0 0
    %4658 = vmatprep.subr.bf16.mxu0 0
    %4659 = vmatpush2.bf16.msra.mxu0 0
    %4660 = vmatprep.subr.bf16.mxu0 0
    %4661 = vmatpush2.bf16.msra.mxu0 0
    %4662 = vmatprep.mubr.bf16.mxu0 0
    %4663 = vmatmul.mubr.bf16.gmra.mxu0 %v4445
    %v4664 = vpop.f32.mrf.mxu0
    %v4665 = vadd.f32 0.0, %v4664
    %v4666 = vpop.f32.mrf.mxu0
    %v4667 = vpop.f32.mrf.mxu0
    %v4668 = vpop.f32.mrf.mxu0
    %4669 = vdwg.mxu0
    %v4670 = vpack.c.bf16 %v4625, %v4625
    %v4671 = vpack.c.bf16 %v4665, %v4665
    %v4673 = vsel %vm477, %v4670, 0
    %v4676 = vsel %vm819, %v4671, 0
    %4678 = vmatprep.subr.bf16.mxu0 0
    %4679 = vmatpush1.bf16.msra.mxu0 0
    %4680 = vmatprep.subr.bf16.mxu0 0
    %4681 = vmatpush1.bf16.msra.mxu0 0
    %4682 = vmatprep.subr.bf16.mxu0 0
    %4683 = vmatpush1.bf16.msra.mxu0 0
    %4684 = vmatprep.subr.bf16.mxu0 0
    %4685 = vmatpush1.bf16.msra.mxu0 0
    %4686 = vmatprep.subr.bf16.mxu0 0
    %4687 = vmatpush1.bf16.msra.mxu0 0
    %4688 = vmatprep.subr.bf16.mxu0 0
    %4689 = vmatpush1.bf16.msra.mxu0 0
    %4690 = vmatprep.subr.bf16.mxu0 0
    %4691 = vmatpush1.bf16.msra.mxu0 0
    %4692 = vmatprep.subr.bf16.mxu0 0
    %4693 = vmatpush1.bf16.msra.mxu0 %v4676
    %4694 = vmatprep.subr.bf16.mxu0 0
    %4695 = vmatpush2.bf16.msra.mxu0 0
    %4696 = vmatprep.subr.bf16.mxu0 0
    %4697 = vmatpush2.bf16.msra.mxu0 0
    %4698 = vmatprep.subr.bf16.mxu0 0
    %4699 = vmatpush2.bf16.msra.mxu0 0
    %4700 = vmatprep.subr.bf16.mxu0 0
    %4701 = vmatpush2.bf16.msra.mxu0 0
    %4702 = vmatprep.subr.bf16.mxu0 0
    %4703 = vmatpush2.bf16.msra.mxu0 0
    %4704 = vmatprep.subr.bf16.mxu0 0
    %4705 = vmatpush2.bf16.msra.mxu0 0
    %4706 = vmatprep.subr.bf16.mxu0 0
    %4707 = vmatpush2.bf16.msra.mxu0 0
    %4708 = vmatprep.subr.bf16.mxu0 0
    %4709 = vmatpush2.bf16.msra.mxu0 0
    %4710 = vmatprep.mubr.bf16.mxu0 0
    %4711 = vmatmul.mubr.bf16.gmra.mxu0 %v4673
    %v4712 = vpop.f32.mrf.mxu0
    %v4713 = vadd.f32 0.0, %v4712
    %v4714 = vpop.f32.mrf.mxu0
    %v4715 = vpop.f32.mrf.mxu0
    %v4716 = vpop.f32.mrf.mxu0
    %4717 = vdwg.mxu0
    %v4719 = vsel %vm477, %v4487, 0
    %v4722 = vsel %vm819, %v4488, 0
    %4724 = vmatprep.subr.bf16.mxu0 0
    %4725 = vmatpush1.bf16.msra.mxu0 0
    %4726 = vmatprep.subr.bf16.mxu0 0
    %4727 = vmatpush1.bf16.msra.mxu0 0
    %4728 = vmatprep.subr.bf16.mxu0 0
    %4729 = vmatpush1.bf16.msra.mxu0 0
    %4730 = vmatprep.subr.bf16.mxu0 0
    %4731 = vmatpush1.bf16.msra.mxu0 0
    %4732 = vmatprep.subr.bf16.mxu0 0
    %4733 = vmatpush1.bf16.msra.mxu0 0
    %4734 = vmatprep.subr.bf16.mxu0 0
    %4735 = vmatpush1.bf16.msra.mxu0 0
    %4736 = vmatprep.subr.bf16.mxu0 0
    %4737 = vmatpush1.bf16.msra.mxu0 0
    %4738 = vmatprep.subr.bf16.mxu0 0
    %4739 = vmatpush1.bf16.msra.mxu0 %v4722
    %4740 = vmatprep.subr.bf16.mxu0 0
    %4741 = vmatpush2.bf16.msra.mxu0 0
    %4742 = vmatprep.subr.bf16.mxu0 0
    %4743 = vmatpush2.bf16.msra.mxu0 0
    %4744 = vmatprep.subr.bf16.mxu0 0
    %4745 = vmatpush2.bf16.msra.mxu0 0
    %4746 = vmatprep.subr.bf16.mxu0 0
    %4747 = vmatpush2.bf16.msra.mxu0 0
    %4748 = vmatprep.subr.bf16.mxu0 0
    %4749 = vmatpush2.bf16.msra.mxu0 0
    %4750 = vmatprep.subr.bf16.mxu0 0
    %4751 = vmatpush2.bf16.msra.mxu0 0
    %4752 = vmatprep.subr.bf16.mxu0 0
    %4753 = vmatpush2.bf16.msra.mxu0 0
    %4754 = vmatprep.subr.bf16.mxu0 0
    %4755 = vmatpush2.bf16.msra.mxu0 0
    %4756 = vmatprep.mubr.bf16.mxu0 0
    %4757 = vmatmul.mubr.bf16.gmra.mxu0 %v4719
    %v4758 = vpop.f32.mrf.mxu0
    %v4759 = vadd.f32 %v4713, %v4758
    %v4760 = vpop.f32.mrf.mxu0
    %v4761 = vpop.f32.mrf.mxu0
    %v4762 = vpop.f32.mrf.mxu0
    %4763 = vdwg.mxu0
    %s4764 = scalar_lea.vmem [#allocation21], 6
    %v4765 = vld [vmem:[%s4764] sm:$0x1]
    %v4767 = vlaneseq
    %v4768 = vshrl.u32 %v4767, 7
    %v4769 = vsub.s32 0, %v4768
    %v4770 = vrot.slane %v4765, %v4769
    %v4772 = vmul.f32 %v3369, %v4770
    %v4773 = vsel %vm447, %v4772, 0.0
    %4774 = vadd.xlane.f32.xlu0 %v4773
    %v4775 = vpop.xlane.xlu0 %4774
    %s4776 = scalar_lea.vmem [#allocation23], 6
    %v4777 = vld [vmem:[%s4776] sm:$0x1]
    %v4779 = vlaneseq
    %v4780 = vshrl.u32 %v4779, 7
    %v4781 = vsub.s32 0, %v4780
    %v4782 = vrot.slane %v4777, %v4781
    %v4784 = vmul.f32 %v3369, %v4782
    %v4785 = vsel %vm447, %v4784, 0.0
    %4786 = vadd.xlane.f32.xlu0 %v4785
    %v4787 = vpop.xlane.xlu0 %4786
    %s4788 = scalar_lea.vmem [#allocation24], 6
    %v4789 = vld [vmem:[%s4788] sm:$0x1]
    %v4791 = vlaneseq
    %v4792 = vshrl.u32 %v4791, 7
    %v4793 = vsub.s32 0, %v4792
    %v4794 = vrot.slane %v4789, %v4793
    %v4796 = vmul.f32 %v2899, %v4794
    %v4797 = vmul.f32 %v2900, %v4794
    %v4798 = vmul.f32 %v2901, %v4794
    %v4799 = vmul.f32 %v2902, %v4794
    %v4800 = vmul.f32 %v2903, %v4794
    %v4801 = vmul.f32 %v2904, %v4794
    %v4802 = vmul.f32 %v2905, %v4794
    %v4803 = vmul.f32 %v2906, %v4794
    %v4804 = vsel %vm477, %v4796, 0.0
    %4805 = vadd.xlane.f32.xlu0 %v4804
    %v4806 = vpop.xlane.xlu0 %4805
    %v4807 = vsel %vm477, %v4797, 0.0
    %4808 = vadd.xlane.f32.xlu0 %v4807
    %v4809 = vpop.xlane.xlu0 %4808
    %v4810 = vsel %vm477, %v4798, 0.0
    %4811 = vadd.xlane.f32.xlu0 %v4810
    %v4812 = vpop.xlane.xlu0 %4811
    %v4813 = vsel %vm477, %v4799, 0.0
    %4814 = vadd.xlane.f32.xlu0 %v4813
    %v4815 = vpop.xlane.xlu0 %4814
    %v4816 = vsel %vm477, %v4800, 0.0
    %4817 = vadd.xlane.f32.xlu0 %v4816
    %v4818 = vpop.xlane.xlu0 %4817
    %v4819 = vsel %vm477, %v4801, 0.0
    %4820 = vadd.xlane.f32.xlu0 %v4819
    %v4821 = vpop.xlane.xlu0 %4820
    %v4822 = vsel %vm477, %v4802, 0.0
    %4823 = vadd.xlane.f32.xlu0 %v4822
    %v4824 = vpop.xlane.xlu0 %4823
    %v4825 = vsel %vm477, %v4803, 0.0
    %4826 = vadd.xlane.f32.xlu0 %v4825
    %v4827 = vpop.xlane.xlu0 %4826
    %v4829 = vlaneseq
    %v4830 = vshrl.u32 %v4829, 7
    %v4831 = vsub.s32 %v504, %v4830
    %v4832 = vrot.slane %v4787, %v4831
    %v4833 = vsel %vm510, %v4832, %v4832
    %v4834 = vsel %vm512, %v4832, %v4833
    %v4835 = vsel %vm514, %v4832, %v4834
    %v4836 = vsel %vm516, %v4832, %v4835
    %v4837 = vsel %vm518, %v4832, %v4836
    %v4838 = vsel %vm520, %v4832, %v4837
    %v4840 = vadd.f32 %v4775, %v4838
    %v4849 = vlaneseq
    %v4850 = vshrl.u32 %v4849, 7
    %v4851 = vsub.s32 %v504, %v4850
    %v4852 = vrot.slane %v4806, %v4851
    %v4853 = vlaneseq
    %v4854 = vshrl.u32 %v4853, 7
    %v4855 = vsub.s32 %v504, %v4854
    %v4856 = vrot.slane %v4809, %v4855
    %v4857 = vlaneseq
    %v4858 = vshrl.u32 %v4857, 7
    %v4859 = vsub.s32 %v504, %v4858
    %v4860 = vrot.slane %v4812, %v4859
    %v4861 = vlaneseq
    %v4862 = vshrl.u32 %v4861, 7
    %v4863 = vsub.s32 %v504, %v4862
    %v4864 = vrot.slane %v4815, %v4863
    %v4865 = vlaneseq
    %v4866 = vshrl.u32 %v4865, 7
    %v4867 = vsub.s32 %v504, %v4866
    %v4868 = vrot.slane %v4818, %v4867
    %v4869 = vlaneseq
    %v4870 = vshrl.u32 %v4869, 7
    %v4871 = vsub.s32 %v504, %v4870
    %v4872 = vrot.slane %v4821, %v4871
    %v4873 = vlaneseq
    %v4874 = vshrl.u32 %v4873, 7
    %v4875 = vsub.s32 %v504, %v4874
    %v4876 = vrot.slane %v4824, %v4875
    %v4877 = vlaneseq
    %v4878 = vshrl.u32 %v4877, 7
    %v4879 = vsub.s32 %v504, %v4878
    %v4880 = vrot.slane %v4827, %v4879
    %v4881 = vsel %vm509, %v4856, %v4852
    %v4882 = vsel %vm510, %v4860, %v4881
    %v4883 = vsel %vm512, %v4864, %v4882
    %v4884 = vsel %vm514, %v4868, %v4883
    %v4885 = vsel %vm516, %v4872, %v4884
    %v4886 = vsel %vm518, %v4876, %v4885
    %v4887 = vsel %vm520, %v4880, %v4886
    %v4889 = vadd.f32 %v4840, %v4887
    %v4890 = vsel %vm477, %v4889, -inf
    %4891 = vmax.xlane.f32.xlu0 %v4890
    %v4892 = vpop.xlane.xlu0 %4891
    %v4893 = vsub.f32 %v4889, %v4892
    %v4894 = vmul.f32 %v4893, 1.442695
    %v4895 = vpow.pop %v4894
    %v4896 = vsel %vm477, %v4895, 0.0
    %4897 = vadd.xlane.f32.xlu0 %v4896
    %v4898 = vpop.xlane.xlu0 %4897
    %v4899 = vrcp.pop %v4898
    %v4900 = vmul.f32 %v4895, %v4899
    %s4901 = scalar_lea.vmem %s39, 96
    %v4902 = vld [vmem:[%s4901] sm:$0xff]
    %v4903 = vld [vmem:[%s4901 + $0x8] sm:$0xff]
    %v4904 = vpack.c.bf16 %v4903, %v4902
    %4905 = vmatprep.subr.bf16.mxu0 0
    %4906 = vmatpush1.bf16.msra.mxu0 0
    %4907 = vmatprep.subr.bf16.mxu0 0
    %4908 = vmatpush1.bf16.msra.mxu0 0
    %4909 = vmatprep.subr.bf16.mxu0 0
    %4910 = vmatpush1.bf16.msra.mxu0 0
    %4911 = vmatprep.subr.bf16.mxu0 0
    %4912 = vmatpush1.bf16.msra.mxu0 0
    %4913 = vmatprep.subr.bf16.mxu0 0
    %4914 = vmatpush1.bf16.msra.mxu0 0
    %4915 = vmatprep.subr.bf16.mxu0 0
    %4916 = vmatpush1.bf16.msra.mxu0 0
    %4917 = vmatprep.subr.bf16.mxu0 0
    %4918 = vmatpush1.bf16.msra.mxu0 0
    %4919 = vmatprep.subr.bf16.mxu0 0
    %4920 = vmatpush1.bf16.msra.mxu0 %v4904
    %4921 = vmatprep.subr.bf16.mxu0 0
    %4922 = vmatpush2.bf16.msra.mxu0 0
    %4923 = vmatprep.subr.bf16.mxu0 0
    %4924 = vmatpush2.bf16.msra.mxu0 0
    %4925 = vmatprep.subr.bf16.mxu0 0
    %4926 = vmatpush2.bf16.msra.mxu0 0
    %4927 = vmatprep.subr.bf16.mxu0 0
    %4928 = vmatpush2.bf16.msra.mxu0 0
    %4929 = vmatprep.subr.bf16.mxu0 0
    %4930 = vmatpush2.bf16.msra.mxu0 0
    %4931 = vmatprep.subr.bf16.mxu0 0
    %4932 = vmatpush2.bf16.msra.mxu0 0
    %4933 = vmatprep.subr.bf16.mxu0 0
    %4934 = vmatpush2.bf16.msra.mxu0 0
    %4935 = vmatprep.subr.bf16.mxu0 0
    %4936 = vmatpush2.bf16.msra.mxu0 0
    %4937 = vmatprep.mubr.bf16.mxu0 0
    %4938 = vmatmul.mubr.bf16.gmra.mxu0 %v4445
    %v4939 = vpop.f32.mrf.mxu0
    %v4940 = vadd.f32 0.0, %v4939
    %v4941 = vpop.f32.mrf.mxu0
    %v4942 = vpop.f32.mrf.mxu0
    %v4943 = vpop.f32.mrf.mxu0
    %4944 = vdwg.mxu0
    %v4945 = vpack.c.bf16 %v4900, %v4900
    %v4946 = vpack.c.bf16 %v4940, %v4940
    %v4948 = vsel %vm477, %v4945, 0
    %v4951 = vsel %vm819, %v4946, 0
    %4953 = vmatprep.subr.bf16.mxu0 0
    %4954 = vmatpush1.bf16.msra.mxu0 0
    %4955 = vmatprep.subr.bf16.mxu0 0
    %4956 = vmatpush1.bf16.msra.mxu0 0
    %4957 = vmatprep.subr.bf16.mxu0 0
    %4958 = vmatpush1.bf16.msra.mxu0 0
    %4959 = vmatprep.subr.bf16.mxu0 0
    %4960 = vmatpush1.bf16.msra.mxu0 0
    %4961 = vmatprep.subr.bf16.mxu0 0
    %4962 = vmatpush1.bf16.msra.mxu0 0
    %4963 = vmatprep.subr.bf16.mxu0 0
    %4964 = vmatpush1.bf16.msra.mxu0 0
    %4965 = vmatprep.subr.bf16.mxu0 0
    %4966 = vmatpush1.bf16.msra.mxu0 0
    %4967 = vmatprep.subr.bf16.mxu0 0
    %4968 = vmatpush1.bf16.msra.mxu0 %v4951
    %4969 = vmatprep.subr.bf16.mxu0 0
    %4970 = vmatpush2.bf16.msra.mxu0 0
    %4971 = vmatprep.subr.bf16.mxu0 0
    %4972 = vmatpush2.bf16.msra.mxu0 0
    %4973 = vmatprep.subr.bf16.mxu0 0
    %4974 = vmatpush2.bf16.msra.mxu0 0
    %4975 = vmatprep.subr.bf16.mxu0 0
    %4976 = vmatpush2.bf16.msra.mxu0 0
    %4977 = vmatprep.subr.bf16.mxu0 0
    %4978 = vmatpush2.bf16.msra.mxu0 0
    %4979 = vmatprep.subr.bf16.mxu0 0
    %4980 = vmatpush2.bf16.msra.mxu0 0
    %4981 = vmatprep.subr.bf16.mxu0 0
    %4982 = vmatpush2.bf16.msra.mxu0 0
    %4983 = vmatprep.subr.bf16.mxu0 0
    %4984 = vmatpush2.bf16.msra.mxu0 0
    %4985 = vmatprep.mubr.bf16.mxu0 0
    %4986 = vmatmul.mubr.bf16.gmra.mxu0 %v4948
    %v4987 = vpop.f32.mrf.mxu0
    %v4988 = vadd.f32 0.0, %v4987
    %v4989 = vpop.f32.mrf.mxu0
    %v4990 = vpop.f32.mrf.mxu0
    %v4991 = vpop.f32.mrf.mxu0
    %4992 = vdwg.mxu0
    %v4993 = vadd.f32 %v4759, %v4988
    %s4994 = scalar_lea.vmem [#allocation21], 7
    %v4995 = vld [vmem:[%s4994] sm:$0x1]
    %v4997 = vlaneseq
    %v4998 = vshrl.u32 %v4997, 7
    %v4999 = vsub.s32 0, %v4998
    %v5000 = vrot.slane %v4995, %v4999
    %v5002 = vmul.f32 %v3369, %v5000
    %v5003 = vsel %vm447, %v5002, 0.0
    %5004 = vadd.xlane.f32.xlu0 %v5003
    %v5005 = vpop.xlane.xlu0 %5004
    %s5006 = scalar_lea.vmem [#allocation23], 7
    %v5007 = vld [vmem:[%s5006] sm:$0x1]
    %v5009 = vlaneseq
    %v5010 = vshrl.u32 %v5009, 7
    %v5011 = vsub.s32 0, %v5010
    %v5012 = vrot.slane %v5007, %v5011
    %v5014 = vmul.f32 %v3369, %v5012
    %v5015 = vsel %vm447, %v5014, 0.0
    %5016 = vadd.xlane.f32.xlu0 %v5015
    %v5017 = vpop.xlane.xlu0 %5016
    %s5018 = scalar_lea.vmem [#allocation24], 7
    %v5019 = vld [vmem:[%s5018] sm:$0x1]
    %v5021 = vlaneseq
    %v5022 = vshrl.u32 %v5021, 7
    %v5023 = vsub.s32 0, %v5022
    %v5024 = vrot.slane %v5019, %v5023
    %v5026 = vmul.f32 %v2899, %v5024
    %v5027 = vmul.f32 %v2900, %v5024
    %v5028 = vmul.f32 %v2901, %v5024
    %v5029 = vmul.f32 %v2902, %v5024
    %v5030 = vmul.f32 %v2903, %v5024
    %v5031 = vmul.f32 %v2904, %v5024
    %v5032 = vmul.f32 %v2905, %v5024
    %v5033 = vmul.f32 %v2906, %v5024
    %v5034 = vsel %vm477, %v5026, 0.0
    %5035 = vadd.xlane.f32.xlu0 %v5034
    %v5036 = vpop.xlane.xlu0 %5035
    %v5037 = vsel %vm477, %v5027, 0.0
    %5038 = vadd.xlane.f32.xlu0 %v5037
    %v5039 = vpop.xlane.xlu0 %5038
    %v5040 = vsel %vm477, %v5028, 0.0
    %5041 = vadd.xlane.f32.xlu0 %v5040
    %v5042 = vpop.xlane.xlu0 %5041
    %v5043 = vsel %vm477, %v5029, 0.0
    %5044 = vadd.xlane.f32.xlu0 %v5043
    %v5045 = vpop.xlane.xlu0 %5044
    %v5046 = vsel %vm477, %v5030, 0.0
    %5047 = vadd.xlane.f32.xlu0 %v5046
    %v5048 = vpop.xlane.xlu0 %5047
    %v5049 = vsel %vm477, %v5031, 0.0
    %5050 = vadd.xlane.f32.xlu0 %v5049
    %v5051 = vpop.xlane.xlu0 %5050
    %v5052 = vsel %vm477, %v5032, 0.0
    %5053 = vadd.xlane.f32.xlu0 %v5052
    %v5054 = vpop.xlane.xlu0 %5053
    %v5055 = vsel %vm477, %v5033, 0.0
    %5056 = vadd.xlane.f32.xlu0 %v5055
    %v5057 = vpop.xlane.xlu0 %5056
    %v5059 = vlaneseq
    %v5060 = vshrl.u32 %v5059, 7
    %v5061 = vsub.s32 %v504, %v5060
    %v5062 = vrot.slane %v5017, %v5061
    %v5063 = vsel %vm510, %v5062, %v5062
    %v5064 = vsel %vm512, %v5062, %v5063
    %v5065 = vsel %vm514, %v5062, %v5064
    %v5066 = vsel %vm516, %v5062, %v5065
    %v5067 = vsel %vm518, %v5062, %v5066
    %v5068 = vsel %vm520, %v5062, %v5067
    %v5070 = vadd.f32 %v5005, %v5068
    %v5079 = vlaneseq
    %v5080 = vshrl.u32 %v5079, 7
    %v5081 = vsub.s32 %v504, %v5080
    %v5082 = vrot.slane %v5036, %v5081
    %v5083 = vlaneseq
    %v5084 = vshrl.u32 %v5083, 7
    %v5085 = vsub.s32 %v504, %v5084
    %v5086 = vrot.slane %v5039, %v5085
    %v5087 = vlaneseq
    %v5088 = vshrl.u32 %v5087, 7
    %v5089 = vsub.s32 %v504, %v5088
    %v5090 = vrot.slane %v5042, %v5089
    %v5091 = vlaneseq
    %v5092 = vshrl.u32 %v5091, 7
    %v5093 = vsub.s32 %v504, %v5092
    %v5094 = vrot.slane %v5045, %v5093
    %v5095 = vlaneseq
    %v5096 = vshrl.u32 %v5095, 7
    %v5097 = vsub.s32 %v504, %v5096
    %v5098 = vrot.slane %v5048, %v5097
    %v5099 = vlaneseq
    %v5100 = vshrl.u32 %v5099, 7
    %v5101 = vsub.s32 %v504, %v5100
    %v5102 = vrot.slane %v5051, %v5101
    %v5103 = vlaneseq
    %v5104 = vshrl.u32 %v5103, 7
    %v5105 = vsub.s32 %v504, %v5104
    %v5106 = vrot.slane %v5054, %v5105
    %v5107 = vlaneseq
    %v5108 = vshrl.u32 %v5107, 7
    %v5109 = vsub.s32 %v504, %v5108
    %v5110 = vrot.slane %v5057, %v5109
    %v5111 = vsel %vm509, %v5086, %v5082
    %v5112 = vsel %vm510, %v5090, %v5111
    %v5113 = vsel %vm512, %v5094, %v5112
    %v5114 = vsel %vm514, %v5098, %v5113
    %v5115 = vsel %vm516, %v5102, %v5114
    %v5116 = vsel %vm518, %v5106, %v5115
    %v5117 = vsel %vm520, %v5110, %v5116
    %v5119 = vadd.f32 %v5070, %v5117
    %v5120 = vsel %vm477, %v5119, -inf
    %5121 = vmax.xlane.f32.xlu0 %v5120
    %v5122 = vpop.xlane.xlu0 %5121
    %v5123 = vsub.f32 %v5119, %v5122
    %v5124 = vmul.f32 %v5123, 1.442695
    %v5125 = vpow.pop %v5124
    %v5126 = vsel %vm477, %v5125, 0.0
    %5127 = vadd.xlane.f32.xlu0 %v5126
    %v5128 = vpop.xlane.xlu0 %5127
    %v5129 = vrcp.pop %v5128
    %v5130 = vmul.f32 %v5125, %v5129
    %s5131 = scalar_lea.vmem %s39, 112
    %v5132 = vld [vmem:[%s5131] sm:$0xff]
    %v5133 = vld [vmem:[%s5131 + $0x8] sm:$0xff]
    %v5134 = vpack.c.bf16 %v5133, %v5132
    %5135 = vmatprep.subr.bf16.mxu0 0
    %5136 = vmatpush1.bf16.msra.mxu0 0
    %5137 = vmatprep.subr.bf16.mxu0 0
    %5138 = vmatpush1.bf16.msra.mxu0 0
    %5139 = vmatprep.subr.bf16.mxu0 0
    %5140 = vmatpush1.bf16.msra.mxu0 0
    %5141 = vmatprep.subr.bf16.mxu0 0
    %5142 = vmatpush1.bf16.msra.mxu0 0
    %5143 = vmatprep.subr.bf16.mxu0 0
    %5144 = vmatpush1.bf16.msra.mxu0 0
    %5145 = vmatprep.subr.bf16.mxu0 0
    %5146 = vmatpush1.bf16.msra.mxu0 0
    %5147 = vmatprep.subr.bf16.mxu0 0
    %5148 = vmatpush1.bf16.msra.mxu0 0
    %5149 = vmatprep.subr.bf16.mxu0 0
    %5150 = vmatpush1.bf16.msra.mxu0 %v5134
    %5151 = vmatprep.subr.bf16.mxu0 0
    %5152 = vmatpush2.bf16.msra.mxu0 0
    %5153 = vmatprep.subr.bf16.mxu0 0
    %5154 = vmatpush2.bf16.msra.mxu0 0
    %5155 = vmatprep.subr.bf16.mxu0 0
    %5156 = vmatpush2.bf16.msra.mxu0 0
    %5157 = vmatprep.subr.bf16.mxu0 0
    %5158 = vmatpush2.bf16.msra.mxu0 0
    %5159 = vmatprep.subr.bf16.mxu0 0
    %5160 = vmatpush2.bf16.msra.mxu0 0
    %5161 = vmatprep.subr.bf16.mxu0 0
    %5162 = vmatpush2.bf16.msra.mxu0 0
    %5163 = vmatprep.subr.bf16.mxu0 0
    %5164 = vmatpush2.bf16.msra.mxu0 0
    %5165 = vmatprep.subr.bf16.mxu0 0
    %5166 = vmatpush2.bf16.msra.mxu0 0
    %5167 = vmatprep.mubr.bf16.mxu0 0
    %5168 = vmatmul.mubr.bf16.gmra.mxu0 %v4445
    %v5169 = vpop.f32.mrf.mxu0
    %v5170 = vadd.f32 0.0, %v5169
    %v5171 = vpop.f32.mrf.mxu0
    %v5172 = vpop.f32.mrf.mxu0
    %v5173 = vpop.f32.mrf.mxu0
    %5174 = vdwg.mxu0
    %v5175 = vpack.c.bf16 %v5130, %v5130
    %v5176 = vpack.c.bf16 %v5170, %v5170
    %v5178 = vsel %vm477, %v5175, 0
    %v5181 = vsel %vm819, %v5176, 0
    %5183 = vmatprep.subr.bf16.mxu0 0
    %5184 = vmatpush1.bf16.msra.mxu0 0
    %5185 = vmatprep.subr.bf16.mxu0 0
    %5186 = vmatpush1.bf16.msra.mxu0 0
    %5187 = vmatprep.subr.bf16.mxu0 0
    %5188 = vmatpush1.bf16.msra.mxu0 0
    %5189 = vmatprep.subr.bf16.mxu0 0
    %5190 = vmatpush1.bf16.msra.mxu0 0
    %5191 = vmatprep.subr.bf16.mxu0 0
    %5192 = vmatpush1.bf16.msra.mxu0 0
    %5193 = vmatprep.subr.bf16.mxu0 0
    %5194 = vmatpush1.bf16.msra.mxu0 0
    %5195 = vmatprep.subr.bf16.mxu0 0
    %5196 = vmatpush1.bf16.msra.mxu0 0
    %5197 = vmatprep.subr.bf16.mxu0 0
    %5198 = vmatpush1.bf16.msra.mxu0 %v5181
    %5199 = vmatprep.subr.bf16.mxu0 0
    %5200 = vmatpush2.bf16.msra.mxu0 0
    %5201 = vmatprep.subr.bf16.mxu0 0
    %5202 = vmatpush2.bf16.msra.mxu0 0
    %5203 = vmatprep.subr.bf16.mxu0 0
    %5204 = vmatpush2.bf16.msra.mxu0 0
    %5205 = vmatprep.subr.bf16.mxu0 0
    %5206 = vmatpush2.bf16.msra.mxu0 0
    %5207 = vmatprep.subr.bf16.mxu0 0
    %5208 = vmatpush2.bf16.msra.mxu0 0
    %5209 = vmatprep.subr.bf16.mxu0 0
    %5210 = vmatpush2.bf16.msra.mxu0 0
    %5211 = vmatprep.subr.bf16.mxu0 0
    %5212 = vmatpush2.bf16.msra.mxu0 0
    %5213 = vmatprep.subr.bf16.mxu0 0
    %5214 = vmatpush2.bf16.msra.mxu0 0
    %5215 = vmatprep.mubr.bf16.mxu0 0
    %5216 = vmatmul.mubr.bf16.gmra.mxu0 %v5178
    %v5217 = vpop.f32.mrf.mxu0
    %v5218 = vadd.f32 0.0, %v5217
    %v5219 = vpop.f32.mrf.mxu0
    %v5220 = vpop.f32.mrf.mxu0
    %v5221 = vpop.f32.mrf.mxu0
    %5222 = vdwg.mxu0
    %v5223 = vadd.f32 %v4993, %v5218
    %v5224 = vadd.f32 %v3369, %v5223
    %s5225 = scalar_lea.vmem %s41, 1
    %v5226 = vld [vmem:[%s5225] sm:$0x1]
    %v5228 = vlaneseq
    %v5229 = vshrl.u32 %v5228, 7
    %v5230 = vsub.s32 0, %v5229
    %v5231 = vrot.slane %v5226, %v5230
    %v5233 = vadd.f32 %v5224, %v5231
    %s5234 = scalar_lea.vmem [#allocation29], 16
    %v5235 = vld [vmem:[%s5234] sm:$0xff]
    %v5236 = vld [vmem:[%s5234 + $0x8] sm:$0xff]
    %v5237 = vpack.c.bf16 %v4301, %v4301
    %v5238 = vpack.c.bf16 %v5236, %v5235
    %s5239 = scalar_lea.vmem [#allocation30], 1
    %v5240 = vld [vmem:[%s5239] sm:$0x1]
    %v5242 = vlaneseq
    %v5243 = vshrl.u32 %v5242, 7
    %v5244 = vsub.s32 0, %v5243
    %v5245 = vrot.slane %v5240, %v5244
    %v5248 = vsel %vm447, %v5237, 0
    %5250 = vmatprep.subr.bf16.mxu0 0
    %5251 = vmatpush1.bf16.msra.mxu0 0
    %5252 = vmatprep.subr.bf16.mxu0 0
    %5253 = vmatpush1.bf16.msra.mxu0 0
    %5254 = vmatprep.subr.bf16.mxu0 0
    %5255 = vmatpush1.bf16.msra.mxu0 0
    %5256 = vmatprep.subr.bf16.mxu0 0
    %5257 = vmatpush1.bf16.msra.mxu0 0
    %5258 = vmatprep.subr.bf16.mxu0 0
    %5259 = vmatpush1.bf16.msra.mxu0 0
    %5260 = vmatprep.subr.bf16.mxu0 0
    %5261 = vmatpush1.bf16.msra.mxu0 0
    %5262 = vmatprep.subr.bf16.mxu0 0
    %5263 = vmatpush1.bf16.msra.mxu0 0
    %5264 = vmatprep.subr.bf16.mxu0 0
    %5265 = vmatpush1.bf16.msra.mxu0 %v5238
    %5266 = vmatprep.subr.bf16.mxu0 0
    %5267 = vmatpush2.bf16.msra.mxu0 0
    %5268 = vmatprep.subr.bf16.mxu0 0
    %5269 = vmatpush2.bf16.msra.mxu0 0
    %5270 = vmatprep.subr.bf16.mxu0 0
    %5271 = vmatpush2.bf16.msra.mxu0 0
    %5272 = vmatprep.subr.bf16.mxu0 0
    %5273 = vmatpush2.bf16.msra.mxu0 0
    %5274 = vmatprep.subr.bf16.mxu0 0
    %5275 = vmatpush2.bf16.msra.mxu0 0
    %5276 = vmatprep.subr.bf16.mxu0 0
    %5277 = vmatpush2.bf16.msra.mxu0 0
    %5278 = vmatprep.subr.bf16.mxu0 0
    %5279 = vmatpush2.bf16.msra.mxu0 0
    %5280 = vmatprep.subr.bf16.mxu0 0
    %5281 = vmatpush2.bf16.msra.mxu0 0
    %5282 = vmatprep.mubr.bf16.mxu0 0
    %5283 = vmatmul.mubr.bf16.gmra.mxu0 %v5248
    %v5284 = vpop.f32.mrf.mxu0
    %v5285 = vadd.f32 %v5245, %v5284
    %v5286 = vpop.f32.mrf.mxu0
    %v5287 = vpop.f32.mrf.mxu0
    %v5288 = vpop.f32.mrf.mxu0
    %5289 = vdwg.mxu0
    %s5290 = scalar_lea.vmem [#allocation32], 16
    %v5291 = vld [vmem:[%s5290] sm:$0xff]
    %v5292 = vld [vmem:[%s5290 + $0x8] sm:$0xff]
    %v5293 = vpack.c.bf16 %v5233, %v5233
    %v5294 = vpack.c.bf16 %v5292, %v5291
    %s5295 = scalar_lea.vmem [#allocation33], 1
    %v5296 = vld [vmem:[%s5295] sm:$0x1]
    %v5298 = vlaneseq
    %v5299 = vshrl.u32 %v5298, 7
    %v5300 = vsub.s32 0, %v5299
    %v5301 = vrot.slane %v5296, %v5300
    %v5304 = vsel %vm447, %v5293, 0
    %5306 = vmatprep.subr.bf16.mxu0 0
    %5307 = vmatpush1.bf16.msra.mxu0 0
    %5308 = vmatprep.subr.bf16.mxu0 0
    %5309 = vmatpush1.bf16.msra.mxu0 0
    %5310 = vmatprep.subr.bf16.mxu0 0
    %5311 = vmatpush1.bf16.msra.mxu0 0
    %5312 = vmatprep.subr.bf16.mxu0 0
    %5313 = vmatpush1.bf16.msra.mxu0 0
    %5314 = vmatprep.subr.bf16.mxu0 0
    %5315 = vmatpush1.bf16.msra.mxu0 0
    %5316 = vmatprep.subr.bf16.mxu0 0
    %5317 = vmatpush1.bf16.msra.mxu0 0
    %5318 = vmatprep.subr.bf16.mxu0 0
    %5319 = vmatpush1.bf16.msra.mxu0 0
    %5320 = vmatprep.subr.bf16.mxu0 0
    %5321 = vmatpush1.bf16.msra.mxu0 %v5294
    %5322 = vmatprep.subr.bf16.mxu0 0
    %5323 = vmatpush2.bf16.msra.mxu0 0
    %5324 = vmatprep.subr.bf16.mxu0 0
    %5325 = vmatpush2.bf16.msra.mxu0 0
    %5326 = vmatprep.subr.bf16.mxu0 0
    %5327 = vmatpush2.bf16.msra.mxu0 0
    %5328 = vmatprep.subr.bf16.mxu0 0
    %5329 = vmatpush2.bf16.msra.mxu0 0
    %5330 = vmatprep.subr.bf16.mxu0 0
    %5331 = vmatpush2.bf16.msra.mxu0 0
    %5332 = vmatprep.subr.bf16.mxu0 0
    %5333 = vmatpush2.bf16.msra.mxu0 0
    %5334 = vmatprep.subr.bf16.mxu0 0
    %5335 = vmatpush2.bf16.msra.mxu0 0
    %5336 = vmatprep.subr.bf16.mxu0 0
    %5337 = vmatpush2.bf16.msra.mxu0 0
    %5338 = vmatprep.mubr.bf16.mxu0 0
    %5339 = vmatmul.mubr.bf16.gmra.mxu0 %v5304
    %v5340 = vpop.f32.mrf.mxu0
    %v5341 = vadd.f32 %v5301, %v5340
    %v5342 = vpop.f32.mrf.mxu0
    %v5343 = vpop.f32.mrf.mxu0
    %v5344 = vpop.f32.mrf.mxu0
    %5345 = vdwg.mxu0
    %v5346 = vpack.c.bf16 %v5285, %v5285
    %v5348 = vsel %vm819, %v5346, 0
    %5350 = vmatprep.subr.bf16.mxu0 0
    %5351 = vmatpush1.bf16.msra.mxu0 0
    %5352 = vmatprep.subr.bf16.mxu0 0
    %5353 = vmatpush1.bf16.msra.mxu0 0
    %5354 = vmatprep.subr.bf16.mxu0 0
    %5355 = vmatpush1.bf16.msra.mxu0 0
    %5356 = vmatprep.subr.bf16.mxu0 0
    %5357 = vmatpush1.bf16.msra.mxu0 0
    %5358 = vmatprep.subr.bf16.mxu0 0
    %5359 = vmatpush1.bf16.msra.mxu0 0
    %5360 = vmatprep.subr.bf16.mxu0 0
    %5361 = vmatpush1.bf16.msra.mxu0 0
    %5362 = vmatprep.subr.bf16.mxu0 0
    %5363 = vmatpush1.bf16.msra.mxu0 0
    %5364 = vmatprep.subr.bf16.mxu0 0
    %5365 = vmatpush1.bf16.msra.mxu0 %v5348
    %5366 = vmatprep.subr.bf16.mxu0 0
    %5367 = vmatpush2.bf16.msra.mxu0 0
    %5368 = vmatprep.subr.bf16.mxu0 0
    %5369 = vmatpush2.bf16.msra.mxu0 0
    %5370 = vmatprep.subr.bf16.mxu0 0
    %5371 = vmatpush2.bf16.msra.mxu0 0
    %5372 = vmatprep.subr.bf16.mxu0 0
    %5373 = vmatpush2.bf16.msra.mxu0 0
    %5374 = vmatprep.subr.bf16.mxu0 0
    %5375 = vmatpush2.bf16.msra.mxu0 0
    %5376 = vmatprep.subr.bf16.mxu0 0
    %5377 = vmatpush2.bf16.msra.mxu0 0
    %5378 = vmatprep.subr.bf16.mxu0 0
    %5379 = vmatpush2.bf16.msra.mxu0 0
    %5380 = vmatprep.subr.bf16.mxu0 0
    %5381 = vmatpush2.bf16.msra.mxu0 0
    %5382 = vmatprep.mubr.bf16.mxu0 0
    %5383 = vmatmul.mubr.bf16.gmra.mxu0 %v3018
    %v5384 = vpop.f32.mrf.mxu0
    %v5385 = vadd.f32 0.0, %v5384
    %v5386 = vpop.f32.mrf.mxu0
    %v5387 = vpop.f32.mrf.mxu0
    %v5388 = vpop.f32.mrf.mxu0
    %5389 = vdwg.mxu0
    %v5390 = vpack.c.bf16 %v5341, %v5341
    %v5392 = vsel %vm819, %v5390, 0
    %5394 = vmatprep.subr.bf16.mxu0 0
    %5395 = vmatpush1.bf16.msra.mxu0 0
    %5396 = vmatprep.subr.bf16.mxu0 0
    %5397 = vmatpush1.bf16.msra.mxu0 0
    %5398 = vmatprep.subr.bf16.mxu0 0
    %5399 = vmatpush1.bf16.msra.mxu0 0
    %5400 = vmatprep.subr.bf16.mxu0 0
    %5401 = vmatpush1.bf16.msra.mxu0 0
    %5402 = vmatprep.subr.bf16.mxu0 0
    %5403 = vmatpush1.bf16.msra.mxu0 0
    %5404 = vmatprep.subr.bf16.mxu0 0
    %5405 = vmatpush1.bf16.msra.mxu0 0
    %5406 = vmatprep.subr.bf16.mxu0 0
    %5407 = vmatpush1.bf16.msra.mxu0 0
    %5408 = vmatprep.subr.bf16.mxu0 0
    %5409 = vmatpush1.bf16.msra.mxu0 %v5392
    %5410 = vmatprep.subr.bf16.mxu0 0
    %5411 = vmatpush2.bf16.msra.mxu0 0
    %5412 = vmatprep.subr.bf16.mxu0 0
    %5413 = vmatpush2.bf16.msra.mxu0 0
    %5414 = vmatprep.subr.bf16.mxu0 0
    %5415 = vmatpush2.bf16.msra.mxu0 0
    %5416 = vmatprep.subr.bf16.mxu0 0
    %5417 = vmatpush2.bf16.msra.mxu0 0
    %5418 = vmatprep.subr.bf16.mxu0 0
    %5419 = vmatpush2.bf16.msra.mxu0 0
    %5420 = vmatprep.subr.bf16.mxu0 0
    %5421 = vmatpush2.bf16.msra.mxu0 0
    %5422 = vmatprep.subr.bf16.mxu0 0
    %5423 = vmatpush2.bf16.msra.mxu0 0
    %5424 = vmatprep.subr.bf16.mxu0 0
    %5425 = vmatpush2.bf16.msra.mxu0 0
    %5426 = vmatprep.mubr.bf16.mxu0 0
    %5427 = vmatmul.mubr.bf16.gmra.mxu0 %v3066
    %v5428 = vpop.f32.mrf.mxu0
    %v5429 = vadd.f32 0.0, %v5428
    %v5430 = vpop.f32.mrf.mxu0
    %v5431 = vpop.f32.mrf.mxu0
    %v5432 = vpop.f32.mrf.mxu0
    %5433 = vdwg.mxu0
    %v5434 = vsel %vm3111, %v5385, 0.0
    %5435 = vadd.xlane.f32.xlu0 %v5434
    %v5436 = vpop.xlane.xlu0 %5435
    %v5437 = vsel %vm3111, %v5429, 0.0
    %5438 = vadd.xlane.f32.xlu0 %v5437
    %v5439 = vpop.xlane.xlu0 %5438
    %v5441 = vlaneseq
    %v5442 = vshrl.u32 %v5441, 7
    %v5443 = vsub.s32 %v504, %v5442
    %v5444 = vrot.slane %v5436, %v5443
    %v5445 = vsel %vm510, %v5444, %v5444
    %v5446 = vsel %vm512, %v5444, %v5445
    %v5447 = vsel %vm514, %v5444, %v5446
    %v5448 = vsel %vm516, %v5444, %v5447
    %v5449 = vsel %vm518, %v5444, %v5448
    %v5450 = vsel %vm520, %v5444, %v5449
    %v5452 = vadd.f32 %v5439, %v5450
    %v5453 = vsel %vm477, %v5452, -inf
    %5454 = vmax.xlane.f32.xlu0 %v5453
    %v5455 = vpop.xlane.xlu0 %5454
    %v5456 = vsub.f32 %v5452, %v5455
    %v5457 = vmul.f32 %v5456, 1.442695
    %v5458 = vpow.pop %v5457
    %v5459 = vsel %vm477, %v5458, 0.0
    %5460 = vadd.xlane.f32.xlu0 %v5459
    %v5461 = vpop.xlane.xlu0 %5460
    %v5462 = vrcp.pop %v5461
    %v5463 = vmul.f32 %v5458, %v5462
    %v5464 = vpack.c.bf16 %v5463, %v5463
    %v5466 = vsel %vm477, %v5464, 0
    %5468 = vmatprep.subr.bf16.mxu0 0
    %5469 = vmatpush1.bf16.msra.mxu0 0
    %5470 = vmatprep.subr.bf16.mxu0 0
    %5471 = vmatpush1.bf16.msra.mxu0 0
    %5472 = vmatprep.subr.bf16.mxu0 0
    %5473 = vmatpush1.bf16.msra.mxu0 0
    %5474 = vmatprep.subr.bf16.mxu0 0
    %5475 = vmatpush1.bf16.msra.mxu0 0
    %5476 = vmatprep.subr.bf16.mxu0 0
    %5477 = vmatpush1.bf16.msra.mxu0 0
    %5478 = vmatprep.subr.bf16.mxu0 0
    %5479 = vmatpush1.bf16.msra.mxu0 0
    %5480 = vmatprep.subr.bf16.mxu0 0
    %5481 = vmatpush1.bf16.msra.mxu0 0
    %5482 = vmatprep.subr.bf16.mxu0 0
    %5483 = vmatpush1.bf16.msra.mxu0 %v5348
    %5484 = vmatprep.subr.bf16.mxu0 0
    %5485 = vmatpush2.bf16.msra.mxu0 0
    %5486 = vmatprep.subr.bf16.mxu0 0
    %5487 = vmatpush2.bf16.msra.mxu0 0
    %5488 = vmatprep.subr.bf16.mxu0 0
    %5489 = vmatpush2.bf16.msra.mxu0 0
    %5490 = vmatprep.subr.bf16.mxu0 0
    %5491 = vmatpush2.bf16.msra.mxu0 0
    %5492 = vmatprep.subr.bf16.mxu0 0
    %5493 = vmatpush2.bf16.msra.mxu0 0
    %5494 = vmatprep.subr.bf16.mxu0 0
    %5495 = vmatpush2.bf16.msra.mxu0 0
    %5496 = vmatprep.subr.bf16.mxu0 0
    %5497 = vmatpush2.bf16.msra.mxu0 0
    %5498 = vmatprep.subr.bf16.mxu0 0
    %5499 = vmatpush2.bf16.msra.mxu0 0
    %5500 = vmatprep.mubr.bf16.mxu0 0
    %5501 = vmatmul.mubr.bf16.gmra.mxu0 %v5466
    %v5502 = vpop.f32.mrf.mxu0
    %v5503 = vadd.f32 0.0, %v5502
    %v5504 = vpop.f32.mrf.mxu0
    %v5505 = vpop.f32.mrf.mxu0
    %v5506 = vpop.f32.mrf.mxu0
    %5507 = vdwg.mxu0
    %s5508 = scalar_lea.vmem %s63, 32
    %v5509 = vld [vmem:[%s5508] sm:$0xff]
    %v5510 = vld [vmem:[%s5508 + $0x8] sm:$0xff]
    %v5511 = vld [vmem:[%s5508 + $0x10] sm:$0xff]
    %v5512 = vld [vmem:[%s5508 + $0x18] sm:$0xff]
    %v5513 = vpack.c.bf16 %v5503, %v5503
    %v5514 = vpack.c.bf16 %v5510, %v5509
    %v5515 = vpack.c.bf16 %v5512, %v5511
    %s5516 = scalar_lea.vmem %s65, 1
    %v5517 = vld [vmem:[%s5516] sm:$0x1]
    %v5519 = vlaneseq
    %v5520 = vshrl.u32 %v5519, 7
    %v5521 = vsub.s32 0, %v5520
    %v5522 = vrot.slane %v5517, %v5521
    %v5525 = vsel %vm3111, %v5513, 0
    %5527 = vmatprep.subr.bf16.mxu0 0
    %5528 = vmatpush1.bf16.msra.mxu0 0
    %5529 = vmatprep.subr.bf16.mxu0 0
    %5530 = vmatpush1.bf16.msra.mxu0 0
    %5531 = vmatprep.subr.bf16.mxu0 0
    %5532 = vmatpush1.bf16.msra.mxu0 0
    %5533 = vmatprep.subr.bf16.mxu0 0
    %5534 = vmatpush1.bf16.msra.mxu0 0
    %5535 = vmatprep.subr.bf16.mxu0 0
    %5536 = vmatpush1.bf16.msra.mxu0 0
    %5537 = vmatprep.subr.bf16.mxu0 0
    %5538 = vmatpush1.bf16.msra.mxu0 0
    %5539 = vmatprep.subr.bf16.mxu0 0
    %5540 = vmatpush1.bf16.msra.mxu0 %v5515
    %5541 = vmatprep.subr.bf16.mxu0 0
    %5542 = vmatpush1.bf16.msra.mxu0 %v5514
    %5543 = vmatprep.subr.bf16.mxu0 0
    %5544 = vmatpush2.bf16.msra.mxu0 0
    %5545 = vmatprep.subr.bf16.mxu0 0
    %5546 = vmatpush2.bf16.msra.mxu0 0
    %5547 = vmatprep.subr.bf16.mxu0 0
    %5548 = vmatpush2.bf16.msra.mxu0 0
    %5549 = vmatprep.subr.bf16.mxu0 0
    %5550 = vmatpush2.bf16.msra.mxu0 0
    %5551 = vmatprep.subr.bf16.mxu0 0
    %5552 = vmatpush2.bf16.msra.mxu0 0
    %5553 = vmatprep.subr.bf16.mxu0 0
    %5554 = vmatpush2.bf16.msra.mxu0 0
    %5555 = vmatprep.subr.bf16.mxu0 0
    %5556 = vmatpush2.bf16.msra.mxu0 0
    %5557 = vmatprep.subr.bf16.mxu0 0
    %5558 = vmatpush2.bf16.msra.mxu0 0
    %5559 = vmatprep.mubr.bf16.mxu0 0
    %5560 = vmatmul.mubr.bf16.gmra.mxu0 %v5525
    %v5561 = vpop.f32.mrf.mxu0
    %v5562 = vadd.f32 %v5522, %v5561
    %v5563 = vpop.f32.mrf.mxu0
    %v5564 = vpop.f32.mrf.mxu0
    %v5565 = vpop.f32.mrf.mxu0
    %5566 = vdwg.mxu0
    %v5567 = vadd.f32 %v5233, %v5562
    %v5568 = vld [vmem:[#allocation11] sm:$0x1]
    %v5569 = vpack.c.bf16 %v5568, %v5568
    %v5570 = vpack.c.bf16 %v5567, %v5567
    %v5572 = vsel %vm477, %v5569, 0
    %v5575 = vsel %vm819, %v5570, 0
    %5577 = vmatprep.subr.bf16.mxu0 0
    %5578 = vmatpush1.bf16.msra.mxu0 0
    %5579 = vmatprep.subr.bf16.mxu0 0
    %5580 = vmatpush1.bf16.msra.mxu0 0
    %5581 = vmatprep.subr.bf16.mxu0 0
    %5582 = vmatpush1.bf16.msra.mxu0 0
    %5583 = vmatprep.subr.bf16.mxu0 0
    %5584 = vmatpush1.bf16.msra.mxu0 0
    %5585 = vmatprep.subr.bf16.mxu0 0
    %5586 = vmatpush1.bf16.msra.mxu0 0
    %5587 = vmatprep.subr.bf16.mxu0 0
    %5588 = vmatpush1.bf16.msra.mxu0 0
    %5589 = vmatprep.subr.bf16.mxu0 0
    %5590 = vmatpush1.bf16.msra.mxu0 0
    %5591 = vmatprep.subr.bf16.mxu0 0
    %5592 = vmatpush1.bf16.msra.mxu0 %v5575
    %5593 = vmatprep.subr.bf16.mxu0 0
    %5594 = vmatpush2.bf16.msra.mxu0 0
    %5595 = vmatprep.subr.bf16.mxu0 0
    %5596 = vmatpush2.bf16.msra.mxu0 0
    %5597 = vmatprep.subr.bf16.mxu0 0
    %5598 = vmatpush2.bf16.msra.mxu0 0
    %5599 = vmatprep.subr.bf16.mxu0 0
    %5600 = vmatpush2.bf16.msra.mxu0 0
    %5601 = vmatprep.subr.bf16.mxu0 0
    %5602 = vmatpush2.bf16.msra.mxu0 0
    %5603 = vmatprep.subr.bf16.mxu0 0
    %5604 = vmatpush2.bf16.msra.mxu0 0
    %5605 = vmatprep.subr.bf16.mxu0 0
    %5606 = vmatpush2.bf16.msra.mxu0 0
    %5607 = vmatprep.subr.bf16.mxu0 0
    %5608 = vmatpush2.bf16.msra.mxu0 0
    %5609 = vmatprep.mubr.bf16.mxu0 0
    %5610 = vmatmul.mubr.bf16.gmra.mxu0 %v5572
    %v5611 = vpop.f32.mrf.mxu0
    %v5612 = vadd.f32 0.0, %v5611
    %v5613 = vpop.f32.mrf.mxu0
    %v5614 = vpop.f32.mrf.mxu0
    %v5615 = vpop.f32.mrf.mxu0
    %5616 = vdwg.mxu0
    %v5617 = vld [vmem:[%s67] sm:$0xff]
    %v5618 = vld [vmem:[%s67 + $0x8] sm:$0xff]
    %v5619 = vpack.c.bf16 %v5612, %v5612
    %v5620 = vpack.c.bf16 %v5618, %v5617
    %v5621 = vld [vmem:[%s69] sm:$0x1]
    %v5623 = vsel %vm447, %v5619, 0
    %5625 = vmatprep.subr.bf16.mxu0 0
    %5626 = vmatpush1.bf16.msra.mxu0 0
    %5627 = vmatprep.subr.bf16.mxu0 0
    %5628 = vmatpush1.bf16.msra.mxu0 0
    %5629 = vmatprep.subr.bf16.mxu0 0
    %5630 = vmatpush1.bf16.msra.mxu0 0
    %5631 = vmatprep.subr.bf16.mxu0 0
    %5632 = vmatpush1.bf16.msra.mxu0 0
    %5633 = vmatprep.subr.bf16.mxu0 0
    %5634 = vmatpush1.bf16.msra.mxu0 0
    %5635 = vmatprep.subr.bf16.mxu0 0
    %5636 = vmatpush1.bf16.msra.mxu0 0
    %5637 = vmatprep.subr.bf16.mxu0 0
    %5638 = vmatpush1.bf16.msra.mxu0 0
    %5639 = vmatprep.subr.bf16.mxu0 0
    %5640 = vmatpush1.bf16.msra.mxu0 %v5620
    %5641 = vmatprep.subr.bf16.mxu0 0
    %5642 = vmatpush2.bf16.msra.mxu0 0
    %5643 = vmatprep.subr.bf16.mxu0 0
    %5644 = vmatpush2.bf16.msra.mxu0 0
    %5645 = vmatprep.subr.bf16.mxu0 0
    %5646 = vmatpush2.bf16.msra.mxu0 0
    %5647 = vmatprep.subr.bf16.mxu0 0
    %5648 = vmatpush2.bf16.msra.mxu0 0
    %5649 = vmatprep.subr.bf16.mxu0 0
    %5650 = vmatpush2.bf16.msra.mxu0 0
    %5651 = vmatprep.subr.bf16.mxu0 0
    %5652 = vmatpush2.bf16.msra.mxu0 0
    %5653 = vmatprep.subr.bf16.mxu0 0
    %5654 = vmatpush2.bf16.msra.mxu0 0
    %5655 = vmatprep.subr.bf16.mxu0 0
    %5656 = vmatpush2.bf16.msra.mxu0 0
    %5657 = vmatprep.mubr.bf16.mxu0 0
    %5658 = vmatmul.mubr.bf16.gmra.mxu0 %v5623
    %v5659 = vpop.f32.mrf.mxu0
    %v5660 = vadd.f32 %v5621, %v5659
    %v5661 = vpop.f32.mrf.mxu0
    %v5662 = vpop.f32.mrf.mxu0
    %v5663 = vpop.f32.mrf.mxu0
    %5664 = vdwg.mxu0
    %v5665 = vmax.f32 %v5660, 0.0
    %v5666 = vld [vmem:[%s71] sm:$0xff]
    %v5667 = vld [vmem:[%s71 + $0x8] sm:$0xff]
    %v5668 = vld [vmem:[%s71 + $0x10] sm:$0xff]
    %v5669 = vld [vmem:[%s71 + $0x18] sm:$0xff]
    %v5670 = vpack.c.bf16 %v5665, %v5665
    %v5671 = vpack.c.bf16 %v5667, %v5666
    %v5672 = vpack.c.bf16 %v5669, %v5668
    %v5673 = vld [vmem:[#allocation2] sm:$0x1]
    %v5675 = vsel %vm3111, %v5670, 0
    %5677 = vmatprep.subr.bf16.mxu0 0
    %5678 = vmatpush1.bf16.msra.mxu0 0
    %5679 = vmatprep.subr.bf16.mxu0 0
    %5680 = vmatpush1.bf16.msra.mxu0 0
    %5681 = vmatprep.subr.bf16.mxu0 0
    %5682 = vmatpush1.bf16.msra.mxu0 0
    %5683 = vmatprep.subr.bf16.mxu0 0
    %5684 = vmatpush1.bf16.msra.mxu0 0
    %5685 = vmatprep.subr.bf16.mxu0 0
    %5686 = vmatpush1.bf16.msra.mxu0 0
    %5687 = vmatprep.subr.bf16.mxu0 0
    %5688 = vmatpush1.bf16.msra.mxu0 0
    %5689 = vmatprep.subr.bf16.mxu0 0
    %5690 = vmatpush1.bf16.msra.mxu0 %v5672
    %5691 = vmatprep.subr.bf16.mxu0 0
    %5692 = vmatpush1.bf16.msra.mxu0 %v5671
    %5693 = vmatprep.subr.bf16.mxu0 0
    %5694 = vmatpush2.bf16.msra.mxu0 0
    %5695 = vmatprep.subr.bf16.mxu0 0
    %5696 = vmatpush2.bf16.msra.mxu0 0
    %5697 = vmatprep.subr.bf16.mxu0 0
    %5698 = vmatpush2.bf16.msra.mxu0 0
    %5699 = vmatprep.subr.bf16.mxu0 0
    %5700 = vmatpush2.bf16.msra.mxu0 0
    %5701 = vmatprep.subr.bf16.mxu0 0
    %5702 = vmatpush2.bf16.msra.mxu0 0
    %5703 = vmatprep.subr.bf16.mxu0 0
    %5704 = vmatpush2.bf16.msra.mxu0 0
    %5705 = vmatprep.subr.bf16.mxu0 0
    %5706 = vmatpush2.bf16.msra.mxu0 0
    %5707 = vmatprep.subr.bf16.mxu0 0
    %5708 = vmatpush2.bf16.msra.mxu0 0
    %5709 = vmatprep.mubr.bf16.mxu0 0
    %5710 = vmatmul.mubr.bf16.gmra.mxu0 %v5675
    %v5711 = vpop.f32.mrf.mxu0
    %v5712 = vadd.f32 %v5673, %v5711
    %v5713 = vpop.f32.mrf.mxu0
    %v5714 = vpop.f32.mrf.mxu0
    %v5715 = vpop.f32.mrf.mxu0
    %5716 = vdwg.mxu0
    %vm5717 = vcmask 0
    %5718 = vst.msk [vmem:[#allocation35] sm:$0x1] %vm5717, %v5712
    // Predicated region
    $region230: #{tpu_custom_call.1} parent=1 // pred_check
      _
    $region231: #{tpu_custom_call.1} parent=1 // pred_check_branch
      %5720 = sbr.rel (0) target = $region233
    $region232: #{tpu_custom_call.1} parent=1 // pred_region
      %s5722 = ssub.s32 16, 16
      %5723 = vsyncadd [#allocation5], %s5722
      %s5725 = sshll.u32 [#allocation35], 4
      %s5726 = int_to_ptr.vmem [resolvable:$true] %s5725
      %5728 = dma.vmem_to_hbm [thread:$0]  %s5726, 16, %s75, [#allocation5]
    $region233: #{tpu_custom_call.1} parent=1 // pred_fallthru
      _
    // Predicated region
    $region234: #{tpu_custom_call.1} parent=1 // pred_check
      _
    $region235: #{tpu_custom_call.1} parent=1 // pred_check_branch
      %5730 = sbr.rel (0) target = $region237
    $region236: #{tpu_custom_call.1} parent=1 // pred_region
      %5731 = dma.done [#allocation5], 16
    $region237: #{tpu_custom_call.1} parent=1 // pred_fallthru
      _
    %5732 = vsyncpa [#allocation4], 1
    %5733 = vsyncpa [#allocation7], 1
    %5734 = vsyncpa [#allocation10], 1
    %5735 = vsyncpa [#allocation13], 1
    %5736 = vsyncpa [#allocation16], 1
    %5737 = vsyncpa [#allocation19], 1
    %5738 = vsyncpa [#allocation22], 1
    %5739 = vsyncpa [#allocation25], 1
    %5740 = vsyncpa [#allocation28], 1
    %5741 = vsyncpa [#allocation31], 1
    %5742 = vsyncpa [#allocation34], 1
    %5743 = vsyncpa [#allocation5], 1

</llo_original>
